<compile_context>
chip_gen: v7x
topology: tpu7x:2x2x1
jax: 0.10.0
libtpu: 0.0.40
codegen_flags: <defaults>
</compile_context>

<pallas_src>
import jax
import jax.numpy as jnp
from jax.experimental import pallas as pl
from jax.experimental.pallas import tpu as pltpu  # noqa: F401  (TPU backend)

# ----------------------------- configuration -------------------------------
VOCAB = 16          # vocab_size
NUM_CLASSES = 10
LATENT = 128        # latent_dim
EMBED = 32          # embed_dim
HIDDEN = 64         # hidden_dim
MAX_LEN = 7
N_HEADS = 4
HEAD_DIM = LATENT // N_HEADS
C1, C2 = 16, 32     # conv channel widths (28 -> 14 -> 7 spatial)


# --------------------------- simple linear kernel ---------------------------
def _linear_relu_kernel(a_ref, w_ref, b_ref, o_ref):
    r = jnp.dot(a_ref[...], w_ref[...], preferred_element_type=jnp.float32)
    o_ref[...] = jnp.maximum(r + b_ref[...], 0.0)


def linear_relu(a, w, b_row):
    """relu(a @ w + b). Single full-extent block, no grid, no padding."""
    M = a.shape[0]
    N = w.shape[1]
    return pl.pallas_call(
        _linear_relu_kernel,
        out_shape=jax.ShapeDtypeStruct((M, N), jnp.float32),
    )(a, w, b_row)


# ------------------------------ GRU step (in-kernel) ------------------------
def _gru_step(xg, h, w_hh, b_hh):
    """One GRU step. xg: (B,3H) precomputed input gates (incl. b_ih).
    Single (B,H)x(H,3H) matmul per step; gates split with lane slices."""
    g = jnp.dot(h, w_hh, preferred_element_type=jnp.float32) + b_hh
    r = jax.nn.sigmoid(xg[:, :HIDDEN] + g[:, :HIDDEN])
    z = jax.nn.sigmoid(xg[:, HIDDEN:2 * HIDDEN] + g[:, HIDDEN:2 * HIDDEN])
    n = jnp.tanh(xg[:, 2 * HIDDEN:] + r * g[:, 2 * HIDDEN:])
    return (1.0 - z) * n + z * h


# ------------------------------- MEGA kernel ---------------------------------
# image-encoder fc + text encoder + attention fusion + z-heads + classifier +
# text decoder, all in one kernel (everything resident in VMEM).
def _mega_kernel(
    # inputs
    img_flat_ref, emb_ref,
    ienc_fc_w_ref, ienc_fc_b_ref,
    tenc_wih_ref, tenc_bih_ref, tenc_whh_ref, tenc_bhh_ref,
    tenc_fc_w_ref, tenc_fc_b_ref,
    wqkv_ref, bqkv_ref, wo_ref, bo_ref, hsum_ref, hexp_ref,
    heads_w_ref, heads_b_ref,
    cls_w2_ref, cls_b2_ref,
    tdec_wih_ref, tdec_bih_ref, tdec_whh_ref, tdec_bhh_ref,
    tdec_out_w_ref, tdec_out_b_ref,
    # outputs
    img_z_ref, txt_z_ref, cls_ref, img_h_ref, txt_logits_ref,
):
    B = img_flat_ref.shape[0]
    D = LATENT

    # ---- image encoder final fc:  (B,1568) @ (1568,128) ----
    img_z = (jnp.dot(img_flat_ref[...], ienc_fc_w_ref[...],
                     preferred_element_type=jnp.float32) + ienc_fc_b_ref[...])
    img_z_ref[...] = img_z

    # ---- text encoder: input gates (one matmul) + 7-step GRU + fc ----
    xg_all = (jnp.dot(emb_ref[...], tenc_wih_ref[...],
                      preferred_element_type=jnp.float32) + tenc_bih_ref[...])
    whh_e = tenc_whh_ref[...]
    bhh_e = tenc_bhh_ref[...]
    h = jnp.zeros((B, HIDDEN), jnp.float32)
    for t in range(MAX_LEN):                       # static unroll
        h = _gru_step(xg_all[t * B:(t + 1) * B, :], h, whh_e, bhh_e)
    txt_z = (jnp.dot(h, tenc_fc_w_ref[...],
                     preferred_element_type=jnp.float32) + tenc_fc_b_ref[...])
    txt_z_ref[...] = txt_z

    # ---- bidirectional cross-modal fusion (4 heads over 2 tokens) ----
    qkv_i = (jnp.dot(img_z, wqkv_ref[...],
                     preferred_element_type=jnp.float32) + bqkv_ref[...])
    qkv_t = (jnp.dot(txt_z, wqkv_ref[...],
                     preferred_element_type=jnp.float32) + bqkv_ref[...])
    q_i, k_i, v_i = qkv_i[:, :D], qkv_i[:, D:2 * D], qkv_i[:, 2 * D:]
    q_t, k_t, v_t = qkv_t[:, :D], qkv_t[:, D:2 * D], qkv_t[:, 2 * D:]

    hsum = hsum_ref[...]                           # (D, heads) 0/1 reducer
    hexp = hexp_ref[...]                           # (heads, D) 0/1 expander
    scale = 1.0 / (HEAD_DIM ** 0.5)
    s_ii = jnp.dot(q_i * k_i, hsum, preferred_element_type=jnp.float32) * scale
    s_it = jnp.dot(q_i * k_t, hsum, preferred_element_type=jnp.float32) * scale
    s_ti = jnp.dot(q_t * k_i, hsum, preferred_element_type=jnp.float32) * scale
    s_tt = jnp.dot(q_t * k_t, hsum, preferred_element_type=jnp.float32) * scale

    def softmax2(a, b):
        m = jnp.maximum(a, b)
        ea = jnp.exp(a - m)
        eb = jnp.exp(b - m)
        inv = 1.0 / (ea + eb)
        return ea * inv, eb * inv

    a_ii, a_it = softmax2(s_ii, s_it)              # query = image token
    a_ti, a_tt = softmax2(s_ti, s_tt)              # query = text token
    out_i = (jnp.dot(a_ii, hexp, preferred_element_type=jnp.float32) * v_i +
             jnp.dot(a_it, hexp, preferred_element_type=jnp.float32) * v_t)
    out_t = (jnp.dot(a_ti, hexp, preferred_element_type=jnp.float32) * v_i +
             jnp.dot(a_tt, hexp, preferred_element_type=jnp.float32) * v_t)
    proj_i = (jnp.dot(out_i, wo_ref[...],
                      preferred_element_type=jnp.float32) + bo_ref[...])
    proj_t = (jnp.dot(out_t, wo_ref[...],
                      preferred_element_type=jnp.float32) + bo_ref[...])
    z = 0.5 * (proj_i + proj_t)                    # fused latent (B, D)

    # ---- fused z-heads: [img-dec fc | cls fc1 | txt-dec h0 | txt-dec in] ----
    big = (jnp.dot(z, heads_w_ref[...],
                   preferred_element_type=jnp.float32) + heads_b_ref[...])
    s0 = C2 * 49
    s1 = s0 + LATENT // 2
    s2 = s1 + HIDDEN
    img_h = jnp.maximum(big[:, :s0], 0.0)          # image decoder fc (ReLU)
    cls_h = jnp.maximum(big[:, s0:s1], 0.0)        # classifier hidden (ReLU)
    h0 = jnp.tanh(big[:, s1:s2])                   # text decoder init state
    x_in = big[:, s2:]                             # text decoder input embed
    img_h_ref[...] = img_h

    # classifier output layer
    cls_ref[...] = (jnp.dot(cls_h, cls_w2_ref[...],
                            preferred_element_type=jnp.float32) + cls_b2_ref[...])

    # ---- text decoder: same (B,3H) input gates reused every step ----
    xg_d = (jnp.dot(x_in, tdec_wih_ref[...],
                    preferred_element_type=jnp.float32) + tdec_bih_ref[...])
    whh_d = tdec_whh_ref[...]
    bhh_d = tdec_bhh_ref[...]
    out_w = tdec_out_w_ref[...]
    out_b = tdec_out_b_ref[...]
    hd = h0
    for t in range(MAX_LEN):                       # static unroll
        hd = _gru_step(xg_d, hd, whh_d, bhh_d)
        logits_t = (jnp.dot(hd, out_w,
                            preferred_element_type=jnp.float32) + out_b)
        txt_logits_ref[t * B:(t + 1) * B, :] = logits_t


def mega_forward(img_flat, emb_flat, p):
    B = img_flat.shape[0]
    return pl.pallas_call(
        _mega_kernel,
        out_shape=(
            jax.ShapeDtypeStruct((B, LATENT), jnp.float32),       # img_z
            jax.ShapeDtypeStruct((B, LATENT), jnp.float32),       # txt_z
            jax.ShapeDtypeStruct((B, NUM_CLASSES), jnp.float32),  # class logits
            jax.ShapeDtypeStruct((B, C2 * 49), jnp.float32),      # img_h
            jax.ShapeDtypeStruct((MAX_LEN * B, VOCAB), jnp.float32),  # text logits
        ),
    )(img_flat, emb_flat,
      p["ienc_fc_w"], p["ienc_fc_b"],
      p["tenc_wih"], p["tenc_bih"], p["tenc_whh"], p["tenc_bhh"],
      p["tenc_fc_w"], p["tenc_fc_b"],
      p["wqkv"], p["bqkv"], p["wo"], p["bo"], p["hsum"], p["hexp"],
      p["heads_w"], p["heads_b"],
      p["cls_w2"], p["cls_b2"],
      p["tdec_wih"], p["tdec_bih"], p["tdec_whh"], p["tdec_bhh"],
      p["tdec_out_w"], p["tdec_out_b"])


# ------------------------------ image decoder --------------------------------
def _img_decoder_kernel(x_ref, dc1_w_ref, dc1_b_ref, dc2_w_ref, dc2_b_ref, o_ref):
    """Both transposed convs fused; per-7x7-pixel independent computation."""
    y1 = (jnp.dot(x_ref[...], dc1_w_ref[...],
                  preferred_element_type=jnp.float32) + dc1_b_ref[...])
    y1 = jnp.maximum(y1, 0.0)                              # (B*49, 4*C1)
    for s in range(4):                                     # (kh1, kw1) sub-pixel
        y1_s = y1[:, s * C1:(s + 1) * C1]
        y2_s = (jnp.dot(y1_s, dc2_w_ref[...],
                        preferred_element_type=jnp.float32) + dc2_b_ref[...])
        o_ref[:, s * 4:(s + 1) * 4] = jax.nn.sigmoid(y2_s)  # (B*49, 4)


def image_decoder(img_h, p):
    B = img_h.shape[0]
    x = img_h.reshape(B * 49, C2)
    patches = pl.pallas_call(
        _img_decoder_kernel,
        out_shape=jax.ShapeDtypeStruct((B * 49, 16), jnp.float32),
    )(x, p["dc1_w"], p["dc1_b4"], p["dc2_w"], p["dc2_b4"])
    # (b,h7,w7,kh1,kw1,kh2,kw2): row = 4*h7 + 2*kh1 + kh2, col = 4*w7 + 2*kw1 + kw2
    y = patches.reshape(B, 7, 7, 2, 2, 2, 2)
    y = jnp.transpose(y, (0, 1, 3, 5, 2, 4, 6)).reshape(B, 1, 28, 28)
    return y


# ------------------------------- XLA-level glue ------------------------------
def im2col(x, ksize=3, stride=2, pad=1):
    """x: [B, H, W, C] NHWC -> patches [B*Ho*Wo, ksize*ksize*C]."""
    B, H, W, C = x.shape
    xp = jnp.pad(x, ((0, 0), (pad, pad), (pad, pad), (0, 0)))
    Ho = (H + 2 * pad - ksize) // stride + 1
    Wo = (W + 2 * pad - ksize) // stride + 1
    cols = []
    for kh in range(ksize):
        for kw in range(ksize):
            cols.append(xp[:, kh:kh + stride * Ho:stride,
                           kw:kw + stride * Wo:stride, :])
    patches = jnp.concatenate(cols, axis=-1)               # [B, Ho, Wo, k*k*C]
    return patches.reshape(B * Ho * Wo, ksize * ksize * C), Ho, Wo


def image_encoder_convs(image_nchw, p):
    x = jnp.transpose(image_nchw, (0, 2, 3, 1))            # NCHW -> NHWC
    B = x.shape[0]
    cols, ho, wo = im2col(x)                                # 28 -> 14, K=9
    y = linear_relu(cols, p["conv1_w"], p["conv1_b"])       # (B*196, 16)
    y = y.reshape(B, ho, wo, C1)
    cols2, ho2, wo2 = im2col(y)                             # 14 -> 7, K=144
    y2 = linear_relu(cols2, p["conv2_w"], p["conv2_b"])     # (B*49, 32)
    return y2.reshape(B, ho2 * wo2 * C2)                    # (B, 1568)


# ------------------------------ parameters ----------------------------------
def init_params(key):
    ks = iter(jax.random.split(key, 64))

    def w(shape, scale=0.05):
        return scale * jax.random.normal(next(ks), shape, dtype=jnp.float32)

    def b(shape):
        return jnp.zeros(shape, jnp.float32)

    def row(x):
        return x.reshape(1, -1)

    def gru_hh():   # pre-packed [r | z | n] hidden weights / biases
        return w((HIDDEN, 3 * HIDDEN)), row(b((3 * HIDDEN,)))

    tenc_whh, tenc_bhh = gru_hh()
    tdec_whh, tdec_bhh = gru_hh()

    # fusion: pre-concatenated Q|K|V, plus 0/1 per-head reduce/expand matrices
    wq, wk, wv = w((LATENT, LATENT)), w((LATENT, LATENT)), w((LATENT, LATENT))
    hsum = (jnp.arange(LATENT)[:, None] // HEAD_DIM ==
            jnp.arange(N_HEADS)[None, :]).astype(jnp.float32)      # (D, heads)

    # fused z-heads: [image-decoder fc | classifier fc1 | txt-dec h0 | txt-dec in]
    imgdec_fc_w, imgdec_fc_b = w((LATENT, C2 * 49)), b((C2 * 49,))
    cls_w1, cls_b1 = w((LATENT, LATENT // 2)), b((LATENT // 2,))
    tdec_h0_w, tdec_h0_b = w((LATENT, HIDDEN)), b((HIDDEN,))
    tdec_in_w, tdec_in_b = w((LATENT, EMBED)), b((EMBED,))

    return {
        # image encoder
        "conv1_w": w((9 * 1, C1)),  "conv1_b": row(b((C1,))),
        "conv2_w": w((9 * C1, C2)), "conv2_b": row(b((C2,))),
        "ienc_fc_w": w((C2 * 49, LATENT)), "ienc_fc_b": row(b((LATENT,))),
        # text encoder
        "emb": w((VOCAB, EMBED), 0.1),
        "tenc_wih": w((EMBED, 3 * HIDDEN)), "tenc_bih": row(b((3 * HIDDEN,))),
        "tenc_whh": tenc_whh, "tenc_bhh": tenc_bhh,
        "tenc_fc_w": w((HIDDEN, LATENT)), "tenc_fc_b": row(b((LATENT,))),
        # fusion (attention)
        "wqkv": jnp.concatenate([wq, wk, wv], axis=1),
        "bqkv": row(b((3 * LATENT,))),
        "wo": w((LATENT, LATENT)), "bo": row(b((LATENT,))),
        "hsum": hsum, "hexp": hsum.T,
        # fused z heads + classifier output layer
        "heads_w": jnp.concatenate([imgdec_fc_w, cls_w1, tdec_h0_w, tdec_in_w],
                                   axis=1),
        "heads_b": row(jnp.concatenate([imgdec_fc_b, cls_b1, tdec_h0_b,
                                        tdec_in_b], axis=0)),
        "cls_w2": w((LATENT // 2, NUM_CLASSES)), "cls_b2": row(b((NUM_CLASSES,))),
        # text decoder
        "tdec_wih": w((EMBED, 3 * HIDDEN)), "tdec_bih": row(b((3 * HIDDEN,))),
        "tdec_whh": tdec_whh, "tdec_bhh": tdec_bhh,
        "tdec_out_w": w((HIDDEN, VOCAB)), "tdec_out_b": row(b((VOCAB,))),
        # image decoder (deconv weights (cin)->(kh,kw,cout), biases pre-tiled)
        "dc1_w": w((C2, 4 * C1)), "dc1_b4": row(jnp.tile(b((C1,)), 4)),
        "dc2_w": w((C1, 4)),      "dc2_b4": row(jnp.tile(b((1,)), 4)),
    }


# -------------------------------- forward -----------------------------------
def forward(params, image, text):
    B = image.shape[0]
    img_flat = image_encoder_convs(image, params)             # (B, 1568)
    # embedding gather kept at XLA level; rows ordered (t, b)
    emb_flat = params["emb"][text.T].reshape(MAX_LEN * B, EMBED)
    img_z, txt_z, class_logits, img_h, txt_logits = mega_forward(
        img_flat, emb_flat, params)
    recon_img = image_decoder(img_h, params)
    recon_text = jnp.transpose(txt_logits.reshape(MAX_LEN, B, VOCAB), (1, 0, 2))
    return recon_img, recon_text, class_logits, img_z, txt_z


# ---------------------------------- main -------------------------------------
if __name__ == "__main__":
    key = jax.random.PRNGKey(0)
    k_params, k_img, k_txt = jax.random.split(key, 3)

    B = 2
    image = jax.random.normal(k_img, (B, 1, 28, 28), dtype=jnp.float32)
    text = jax.random.randint(k_txt, (B, MAX_LEN), 0, VOCAB, dtype=jnp.int32)

    params = init_params(k_params)

    fwd = jax.jit(forward)
    recon_img, recon_text, class_logits, img_z, txt_z = fwd(params, image, text)
    jax.block_until_ready((recon_img, recon_text, class_logits, img_z, txt_z))

    assert recon_img.shape == (B, 1, 28, 28)
    assert recon_text.shape == (B, MAX_LEN, VOCAB)
    assert class_logits.shape == (B, NUM_CLASSES)
    assert img_z.shape == (B, LATENT)
    assert txt_z.shape == (B, LATENT)
    print("KERNEL_OK")
</pallas_src>

<mosaic_0001>
module attributes {stable_mosaic.version = 11 : i64} {
  func.func @_linear_relu_kernel(%arg0: memref<392x9xf32, #tpu.memory_space<vmem>>, %arg1: memref<9x16xf32, #tpu.memory_space<vmem>>, %arg2: memref<1x16xf32, #tpu.memory_space<vmem>>, %arg3: memref<392x16xf32, #tpu.memory_space<vmem>>) attributes {dimension_semantics = [], scalar_prefetch = 0 : i64, scratch_operands = 0 : i64, tpu.core_type = #tpu.core_type<tc>} {
    %c0 = arith.constant 0 : index
    %c0_0 = arith.constant 0 : index
    %0 = vector.load %arg0[%c0, %c0_0] : memref<392x9xf32, #tpu.memory_space<vmem>>, vector<392x9xf32>
    %c0_1 = arith.constant 0 : index
    %c0_2 = arith.constant 0 : index
    %1 = vector.load %arg1[%c0_1, %c0_2] : memref<9x16xf32, #tpu.memory_space<vmem>>, vector<9x16xf32>
    %cst = arith.constant dense<0.000000e+00> : vector<392x16xf32>
    %2 = tpu.matmul %0, %1, %cst {dimension_numbers = #tpu.dot_dimension_numbers<[1], [0], [0], [1], [0, 0, 1, 1], [], []>} : vector<392x9xf32>, vector<9x16xf32>, vector<392x16xf32> -> vector<392x16xf32>
    %c0_3 = arith.constant 0 : index
    %c0_4 = arith.constant 0 : index
    %3 = vector.load %arg2[%c0_3, %c0_4] : memref<1x16xf32, #tpu.memory_space<vmem>>, vector<1x16xf32>
    %4 = vector.broadcast %3 : vector<1x16xf32> to vector<392x16xf32>
    %5 = arith.addf %2, %4 : vector<392x16xf32>
    %cst_5 = arith.constant 0.000000e+00 : f32
    %6 = vector.broadcast %cst_5 : f32 to vector<392x16xf32>
    %7 = arith.maximumf %5, %6 : vector<392x16xf32>
    %c0_6 = arith.constant 0 : index
    %c0_7 = arith.constant 0 : index
    %8 = vector.load %arg3[%c0_6, %c0_7] : memref<392x16xf32, #tpu.memory_space<vmem>>, vector<392x16xf32>
    tpu.vector_store %arg3[%c0_6, %c0_7], %7 {strides = array<i32>} : memref<392x16xf32, #tpu.memory_space<vmem>>, vector<392x16xf32>,
    return
  }
}

module attributes {stable_mosaic.version = 11 : i64} {
  func.func @_linear_relu_kernel(%arg0: memref<98x144xf32, #tpu.memory_space<vmem>>, %arg1: memref<144x32xf32, #tpu.memory_space<vmem>>, %arg2: memref<1x32xf32, #tpu.memory_space<vmem>>, %arg3: memref<98x32xf32, #tpu.memory_space<vmem>>) attributes {dimension_semantics = [], scalar_prefetch = 0 : i64, scratch_operands = 0 : i64, tpu.core_type = #tpu.core_type<tc>} {
    %c0 = arith.constant 0 : index
    %c0_0 = arith.constant 0 : index
    %0 = vector.load %arg0[%c0, %c0_0] : memref<98x144xf32, #tpu.memory_space<vmem>>, vector<98x144xf32>
    %c0_1 = arith.constant 0 : index
    %c0_2 = arith.constant 0 : index
    %1 = vector.load %arg1[%c0_1, %c0_2] : memref<144x32xf32, #tpu.memory_space<vmem>>, vector<144x32xf32>
    %cst = arith.constant dense<0.000000e+00> : vector<98x32xf32>
    %2 = tpu.matmul %0, %1, %cst {dimension_numbers = #tpu.dot_dimension_numbers<[1], [0], [0], [1], [0, 0, 1, 1], [], []>} : vector<98x144xf32>, vector<144x32xf32>, vector<98x32xf32> -> vector<98x32xf32>
    %c0_3 = arith.constant 0 : index
    %c0_4 = arith.constant 0 : index
    %3 = vector.load %arg2[%c0_3, %c0_4] : memref<1x32xf32, #tpu.memory_space<vmem>>, vector<1x32xf32>
    %4 = vector.broadcast %3 : vector<1x32xf32> to vector<98x32xf32>
    %5 = arith.addf %2, %4 : vector<98x32xf32>
    %cst_5 = arith.constant 0.000000e+00 : f32
    %6 = vector.broadcast %cst_5 : f32 to vector<98x32xf32>
    %7 = arith.maximumf %5, %6 : vector<98x32xf32>
    %c0_6 = arith.constant 0 : index
    %c0_7 = arith.constant 0 : index
    %8 = vector.load %arg3[%c0_6, %c0_7] : memref<98x32xf32, #tpu.memory_space<vmem>>, vector<98x32xf32>
    tpu.vector_store %arg3[%c0_6, %c0_7], %7 {strides = array<i32>} : memref<98x32xf32, #tpu.memory_space<vmem>>, vector<98x32xf32>,
    return
  }
}

module attributes {stable_mosaic.version = 11 : i64} {
  func.func @_mega_kernel(%arg0: memref<2x1568xf32, #tpu.memory_space<vmem>>, %arg1: memref<14x32xf32, #tpu.memory_space<vmem>>, %arg2: memref<1568x128xf32, #tpu.memory_space<vmem>>, %arg3: memref<1x128xf32, #tpu.memory_space<vmem>>, %arg4: memref<32x192xf32, #tpu.memory_space<vmem>>, %arg5: memref<1x192xf32, #tpu.memory_space<vmem>>, %arg6: memref<64x192xf32, #tpu.memory_space<vmem>>, %arg7: memref<1x192xf32, #tpu.memory_space<vmem>>, %arg8: memref<64x128xf32, #tpu.memory_space<vmem>>, %arg9: memref<1x128xf32, #tpu.memory_space<vmem>>, %arg10: memref<128x384xf32, #tpu.memory_space<vmem>>, %arg11: memref<1x384xf32, #tpu.memory_space<vmem>>, %arg12: memref<128x128xf32, #tpu.memory_space<vmem>>, %arg13: memref<1x128xf32, #tpu.memory_space<vmem>>, %arg14: memref<128x4xf32, #tpu.memory_space<vmem>>, %arg15: memref<4x128xf32, #tpu.memory_space<vmem>>, %arg16: memref<128x1728xf32, #tpu.memory_space<vmem>>, %arg17: memref<1x1728xf32, #tpu.memory_space<vmem>>, %arg18: memref<64x10xf32, #tpu.memory_space<vmem>>, %arg19: memref<1x10xf32, #tpu.memory_space<vmem>>, %arg20: memref<32x192xf32, #tpu.memory_space<vmem>>, %arg21: memref<1x192xf32, #tpu.memory_space<vmem>>, %arg22: memref<64x192xf32, #tpu.memory_space<vmem>>, %arg23: memref<1x192xf32, #tpu.memory_space<vmem>>, %arg24: memref<64x16xf32, #tpu.memory_space<vmem>>, %arg25: memref<1x16xf32, #tpu.memory_space<vmem>>, %arg26: memref<2x128xf32, #tpu.memory_space<vmem>>, %arg27: memref<2x128xf32, #tpu.memory_space<vmem>>, %arg28: memref<2x10xf32, #tpu.memory_space<vmem>>, %arg29: memref<2x1568xf32, #tpu.memory_space<vmem>>, %arg30: memref<14x16xf32, #tpu.memory_space<vmem>>) attributes {dimension_semantics = [], scalar_prefetch = 0 : i64, scratch_operands = 0 : i64, tpu.core_type = #tpu.core_type<tc>} {
    %c0 = arith.constant 0 : index
    %c0_0 = arith.constant 0 : index
    %0 = vector.load %arg0[%c0, %c0_0] : memref<2x1568xf32, #tpu.memory_space<vmem>>, vector<2x1568xf32>
    %c0_1 = arith.constant 0 : index
    %c0_2 = arith.constant 0 : index
    %1 = vector.load %arg2[%c0_1, %c0_2] : memref<1568x128xf32, #tpu.memory_space<vmem>>, vector<1568x128xf32>
    %cst = arith.constant dense<0.000000e+00> : vector<2x128xf32>
    %2 = tpu.matmul %0, %1, %cst {dimension_numbers = #tpu.dot_dimension_numbers<[1], [0], [0], [1], [0, 0, 1, 1], [], []>} : vector<2x1568xf32>, vector<1568x128xf32>, vector<2x128xf32> -> vector<2x128xf32>
    %c0_3 = arith.constant 0 : index
    %c0_4 = arith.constant 0 : index
    %3 = vector.load %arg3[%c0_3, %c0_4] : memref<1x128xf32, #tpu.memory_space<vmem>>, vector<1x128xf32>
    %4 = vector.broadcast %3 : vector<1x128xf32> to vector<2x128xf32>
    %5 = arith.addf %2, %4 : vector<2x128xf32>
    %c0_5 = arith.constant 0 : index
    %c0_6 = arith.constant 0 : index
    %6 = vector.load %arg26[%c0_5, %c0_6] : memref<2x128xf32, #tpu.memory_space<vmem>>, vector<2x128xf32>
    tpu.vector_store %arg26[%c0_5, %c0_6], %5 {strides = array<i32>} : memref<2x128xf32, #tpu.memory_space<vmem>>, vector<2x128xf32>,
    %c0_7 = arith.constant 0 : index
    %c0_8 = arith.constant 0 : index
    %7 = vector.load %arg1[%c0_7, %c0_8] : memref<14x32xf32, #tpu.memory_space<vmem>>, vector<14x32xf32>
    %c0_9 = arith.constant 0 : index
    %c0_10 = arith.constant 0 : index
    %8 = vector.load %arg4[%c0_9, %c0_10] : memref<32x192xf32, #tpu.memory_space<vmem>>, vector<32x192xf32>
    %cst_11 = arith.constant dense<0.000000e+00> : vector<14x192xf32>
    %9 = tpu.matmul %7, %8, %cst_11 {dimension_numbers = #tpu.dot_dimension_numbers<[1], [0], [0], [1], [0, 0, 1, 1], [], []>} : vector<14x32xf32>, vector<32x192xf32>, vector<14x192xf32> -> vector<14x192xf32>
    %c0_12 = arith.constant 0 : index
    %c0_13 = arith.constant 0 : index
    %10 = vector.load %arg5[%c0_12, %c0_13] : memref<1x192xf32, #tpu.memory_space<vmem>>, vector<1x192xf32>
    %11 = vector.broadcast %10 : vector<1x192xf32> to vector<14x192xf32>
    %12 = arith.addf %9, %11 : vector<14x192xf32>
    %c0_14 = arith.constant 0 : index
    %c0_15 = arith.constant 0 : index
    %13 = vector.load %arg6[%c0_14, %c0_15] : memref<64x192xf32, #tpu.memory_space<vmem>>, vector<64x192xf32>
    %c0_16 = arith.constant 0 : index
    %c0_17 = arith.constant 0 : index
    %14 = vector.load %arg7[%c0_16, %c0_17] : memref<1x192xf32, #tpu.memory_space<vmem>>, vector<1x192xf32>
    %cst_18 = arith.constant 0.000000e+00 : f32
    %15 = vector.broadcast %cst_18 : f32 to vector<2x64xf32>
    %16 = vector.extract_strided_slice %12 {offsets = [0, 0], sizes = [2, 192], strides = [1, 1]} : vector<14x192xf32> to vector<2x192xf32>
    %cst_19 = arith.constant dense<0.000000e+00> : vector<2x192xf32>
    %17 = tpu.matmul %15, %13, %cst_19 {dimension_numbers = #tpu.dot_dimension_numbers<[1], [0], [0], [1], [0, 0, 1, 1], [], []>} : vector<2x64xf32>, vector<64x192xf32>, vector<2x192xf32> -> vector<2x192xf32>
    %18 = vector.broadcast %14 : vector<1x192xf32> to vector<2x192xf32>
    %19 = arith.addf %17, %18 : vector<2x192xf32>
    %20 = vector.extract_strided_slice %16 {offsets = [0, 0], sizes = [2, 64], strides = [1, 1]} : vector<2x192xf32> to vector<2x64xf32>
    %21 = vector.extract_strided_slice %19 {offsets = [0, 0], sizes = [2, 64], strides = [1, 1]} : vector<2x192xf32> to vector<2x64xf32>
    %22 = arith.addf %20, %21 : vector<2x64xf32>
    %23 = arith.negf %22 : vector<2x64xf32>
    %24 = math.exp %23 : vector<2x64xf32>
    %cst_20 = arith.constant 1.000000e+00 : f32
    %25 = vector.broadcast %cst_20 : f32 to vector<2x64xf32>
    %26 = arith.addf %25, %24 : vector<2x64xf32>
    %27 = arith.divf %25, %26 : vector<2x64xf32>
    %28 = vector.extract_strided_slice %16 {offsets = [0, 64], sizes = [2, 64], strides = [1, 1]} : vector<2x192xf32> to vector<2x64xf32>
    %29 = vector.extract_strided_slice %19 {offsets = [0, 64], sizes = [2, 64], strides = [1, 1]} : vector<2x192xf32> to vector<2x64xf32>
    %30 = arith.addf %28, %29 : vector<2x64xf32>
    %31 = arith.negf %30 : vector<2x64xf32>
    %32 = math.exp %31 : vector<2x64xf32>
    %cst_21 = arith.constant 1.000000e+00 : f32
    %33 = vector.broadcast %cst_21 : f32 to vector<2x64xf32>
    %34 = arith.addf %33, %32 : vector<2x64xf32>
    %35 = arith.divf %33, %34 : vector<2x64xf32>
    %36 = vector.extract_strided_slice %16 {offsets = [0, 128], sizes = [2, 64], strides = [1, 1]} : vector<2x192xf32> to vector<2x64xf32>
    %37 = vector.extract_strided_slice %19 {offsets = [0, 128], sizes = [2, 64], strides = [1, 1]} : vector<2x192xf32> to vector<2x64xf32>
    %38 = arith.mulf %27, %37 : vector<2x64xf32>
    %39 = arith.addf %36, %38 : vector<2x64xf32>
    %40 = math.tanh %39 : vector<2x64xf32>
    %cst_22 = arith.constant 1.000000e+00 : f32
    %41 = vector.broadcast %cst_22 : f32 to vector<2x64xf32>
    %42 = arith.subf %41, %35 : vector<2x64xf32>
    %43 = arith.mulf %42, %40 : vector<2x64xf32>
    %44 = arith.mulf %35, %15 : vector<2x64xf32>
    %45 = arith.addf %43, %44 : vector<2x64xf32>
    %46 = vector.extract_strided_slice %12 {offsets = [2, 0], sizes = [2, 192], strides = [1, 1]} : vector<14x192xf32> to vector<2x192xf32>
    %cst_23 = arith.constant dense<0.000000e+00> : vector<2x192xf32>
    %47 = tpu.matmul %45, %13, %cst_23 {dimension_numbers = #tpu.dot_dimension_numbers<[1], [0], [0], [1], [0, 0, 1, 1], [], []>} : vector<2x64xf32>, vector<64x192xf32>, vector<2x192xf32> -> vector<2x192xf32>
    %48 = vector.broadcast %14 : vector<1x192xf32> to vector<2x192xf32>
    %49 = arith.addf %47, %48 : vector<2x192xf32>
    %50 = vector.extract_strided_slice %46 {offsets = [0, 0], sizes = [2, 64], strides = [1, 1]} : vector<2x192xf32> to vector<2x64xf32>
    %51 = vector.extract_strided_slice %49 {offsets = [0, 0], sizes = [2, 64], strides = [1, 1]} : vector<2x192xf32> to vector<2x64xf32>
    %52 = arith.addf %50, %51 : vector<2x64xf32>
    %53 = arith.negf %52 : vector<2x64xf32>
    %54 = math.exp %53 : vector<2x64xf32>
    %cst_24 = arith.constant 1.000000e+00 : f32
    %55 = vector.broadcast %cst_24 : f32 to vector<2x64xf32>
    %56 = arith.addf %55, %54 : vector<2x64xf32>
    %57 = arith.divf %55, %56 : vector<2x64xf32>
    %58 = vector.extract_strided_slice %46 {offsets = [0, 64], sizes = [2, 64], strides = [1, 1]} : vector<2x192xf32> to vector<2x64xf32>
    %59 = vector.extract_strided_slice %49 {offsets = [0, 64], sizes = [2, 64], strides = [1, 1]} : vector<2x192xf32> to vector<2x64xf32>
    %60 = arith.addf %58, %59 : vector<2x64xf32>
    %61 = arith.negf %60 : vector<2x64xf32>
    %62 = math.exp %61 : vector<2x64xf32>
    %cst_25 = arith.constant 1.000000e+00 : f32
    %63 = vector.broadcast %cst_25 : f32 to vector<2x64xf32>
    %64 = arith.addf %63, %62 : vector<2x64xf32>
    %65 = arith.divf %63, %64 : vector<2x64xf32>
    %66 = vector.extract_strided_slice %46 {offsets = [0, 128], sizes = [2, 64], strides = [1, 1]} : vector<2x192xf32> to vector<2x64xf32>
    %67 = vector.extract_strided_slice %49 {offsets = [0, 128], sizes = [2, 64], strides = [1, 1]} : vector<2x192xf32> to vector<2x64xf32>
    %68 = arith.mulf %57, %67 : vector<2x64xf32>
    %69 = arith.addf %66, %68 : vector<2x64xf32>
    %70 = math.tanh %69 : vector<2x64xf32>
    %cst_26 = arith.constant 1.000000e+00 : f32
    %71 = vector.broadcast %cst_26 : f32 to vector<2x64xf32>
    %72 = arith.subf %71, %65 : vector<2x64xf32>
    %73 = arith.mulf %72, %70 : vector<2x64xf32>
    %74 = arith.mulf %65, %45 : vector<2x64xf32>
    %75 = arith.addf %73, %74 : vector<2x64xf32>
    %76 = vector.extract_strided_slice %12 {offsets = [4, 0], sizes = [2, 192], strides = [1, 1]} : vector<14x192xf32> to vector<2x192xf32>
    %cst_27 = arith.constant dense<0.000000e+00> : vector<2x192xf32>
    %77 = tpu.matmul %75, %13, %cst_27 {dimension_numbers = #tpu.dot_dimension_numbers<[1], [0], [0], [1], [0, 0, 1, 1], [], []>} : vector<2x64xf32>, vector<64x192xf32>, vector<2x192xf32> -> vector<2x192xf32>
    %78 = vector.broadcast %14 : vector<1x192xf32> to vector<2x192xf32>
    %79 = arith.addf %77, %78 : vector<2x192xf32>
    %80 = vector.extract_strided_slice %76 {offsets = [0, 0], sizes = [2, 64], strides = [1, 1]} : vector<2x192xf32> to vector<2x64xf32>
    %81 = vector.extract_strided_slice %79 {offsets = [0, 0], sizes = [2, 64], strides = [1, 1]} : vector<2x192xf32> to vector<2x64xf32>
    %82 = arith.addf %80, %81 : vector<2x64xf32>
    %83 = arith.negf %82 : vector<2x64xf32>
    %84 = math.exp %83 : vector<2x64xf32>
    %cst_28 = arith.constant 1.000000e+00 : f32
    %85 = vector.broadcast %cst_28 : f32 to vector<2x64xf32>
    %86 = arith.addf %85, %84 : vector<2x64xf32>
    %87 = arith.divf %85, %86 : vector<2x64xf32>
    %88 = vector.extract_strided_slice %76 {offsets = [0, 64], sizes = [2, 64], strides = [1, 1]} : vector<2x192xf32> to vector<2x64xf32>
    %89 = vector.extract_strided_slice %79 {offsets = [0, 64], sizes = [2, 64], strides = [1, 1]} : vector<2x192xf32> to vector<2x64xf32>
    %90 = arith.addf %88, %89 : vector<2x64xf32>
    %91 = arith.negf %90 : vector<2x64xf32>
    %92 = math.exp %91 : vector<2x64xf32>
    %cst_29 = arith.constant 1.000000e+00 : f32
    %93 = vector.broadcast %cst_29 : f32 to vector<2x64xf32>
    %94 = arith.addf %93, %92 : vector<2x64xf32>
    %95 = arith.divf %93, %94 : vector<2x64xf32>
    %96 = vector.extract_strided_slice %76 {offsets = [0, 128], sizes = [2, 64], strides = [1, 1]} : vector<2x192xf32> to vector<2x64xf32>
    %97 = vector.extract_strided_slice %79 {offsets = [0, 128], sizes = [2, 64], strides = [1, 1]} : vector<2x192xf32> to vector<2x64xf32>
    %98 = arith.mulf %87, %97 : vector<2x64xf32>
    %99 = arith.addf %96, %98 : vector<2x64xf32>
    %100 = math.tanh %99 : vector<2x64xf32>
    %cst_30 = arith.constant 1.000000e+00 : f32
    %101 = vector.broadcast %cst_30 : f32 to vector<2x64xf32>
    %102 = arith.subf %101, %95 : vector<2x64xf32>
    %103 = arith.mulf %102, %100 : vector<2x64xf32>
    %104 = arith.mulf %95, %75 : vector<2x64xf32>
    %105 = arith.addf %103, %104 : vector<2x64xf32>
    %106 = vector.extract_strided_slice %12 {offsets = [6, 0], sizes = [2, 192], strides = [1, 1]} : vector<14x192xf32> to vector<2x192xf32>
    %cst_31 = arith.constant dense<0.000000e+00> : vector<2x192xf32>
    %107 = tpu.matmul %105, %13, %cst_31 {dimension_numbers = #tpu.dot_dimension_numbers<[1], [0], [0], [1], [0, 0, 1, 1], [], []>} : vector<2x64xf32>, vector<64x192xf32>, vector<2x192xf32> -> vector<2x192xf32>
    %108 = vector.broadcast %14 : vector<1x192xf32> to vector<2x192xf32>
    %109 = arith.addf %107, %108 : vector<2x192xf32>
    %110 = vector.extract_strided_slice %106 {offsets = [0, 0], sizes = [2, 64], strides = [1, 1]} : vector<2x192xf32> to vector<2x64xf32>
    %111 = vector.extract_strided_slice %109 {offsets = [0, 0], sizes = [2, 64], strides = [1, 1]} : vector<2x192xf32> to vector<2x64xf32>
    %112 = arith.addf %110, %111 : vector<2x64xf32>
    %113 = arith.negf %112 : vector<2x64xf32>
    %114 = math.exp %113 : vector<2x64xf32>
    %cst_32 = arith.constant 1.000000e+00 : f32
    %115 = vector.broadcast %cst_32 : f32 to vector<2x64xf32>
    %116 = arith.addf %115, %114 : vector<2x64xf32>
    %117 = arith.divf %115, %116 : vector<2x64xf32>
    %118 = vector.extract_strided_slice %106 {offsets = [0, 64], sizes = [2, 64], strides = [1, 1]} : vector<2x192xf32> to vector<2x64xf32>
    %119 = vector.extract_strided_slice %109 {offsets = [0, 64], sizes = [2, 64], strides = [1, 1]} : vector<2x192xf32> to vector<2x64xf32>
    %120 = arith.addf %118, %119 : vector<2x64xf32>
    %121 = arith.negf %120 : vector<2x64xf32>
    %122 = math.exp %121 : vector<2x64xf32>
    %cst_33 = arith.constant 1.000000e+00 : f32
    %123 = vector.broadcast %cst_33 : f32 to vector<2x64xf32>
    %124 = arith.addf %123, %122 : vector<2x64xf32>
    %125 = arith.divf %123, %124 : vector<2x64xf32>
    %126 = vector.extract_strided_slice %106 {offsets = [0, 128], sizes = [2, 64], strides = [1, 1]} : vector<2x192xf32> to vector<2x64xf32>
    %127 = vector.extract_strided_slice %109 {offsets = [0, 128], sizes = [2, 64], strides = [1, 1]} : vector<2x192xf32> to vector<2x64xf32>
    %128 = arith.mulf %117, %127 : vector<2x64xf32>
    %129 = arith.addf %126, %128 : vector<2x64xf32>
    %130 = math.tanh %129 : vector<2x64xf32>
    %cst_34 = arith.constant 1.000000e+00 : f32
    %131 = vector.broadcast %cst_34 : f32 to vector<2x64xf32>
    %132 = arith.subf %131, %125 : vector<2x64xf32>
    %133 = arith.mulf %132, %130 : vector<2x64xf32>
    %134 = arith.mulf %125, %105 : vector<2x64xf32>
    %135 = arith.addf %133, %134 : vector<2x64xf32>
    %136 = vector.extract_strided_slice %12 {offsets = [8, 0], sizes = [2, 192], strides = [1, 1]} : vector<14x192xf32> to vector<2x192xf32>
    %cst_35 = arith.constant dense<0.000000e+00> : vector<2x192xf32>
    %137 = tpu.matmul %135, %13, %cst_35 {dimension_numbers = #tpu.dot_dimension_numbers<[1], [0], [0], [1], [0, 0, 1, 1], [], []>} : vector<2x64xf32>, vector<64x192xf32>, vector<2x192xf32> -> vector<2x192xf32>
    %138 = vector.broadcast %14 : vector<1x192xf32> to vector<2x192xf32>
    %139 = arith.addf %137, %138 : vector<2x192xf32>
    %140 = vector.extract_strided_slice %136 {offsets = [0, 0], sizes = [2, 64], strides = [1, 1]} : vector<2x192xf32> to vector<2x64xf32>
    %141 = vector.extract_strided_slice %139 {offsets = [0, 0], sizes = [2, 64], strides = [1, 1]} : vector<2x192xf32> to vector<2x64xf32>
    %142 = arith.addf %140, %141 : vector<2x64xf32>
    %143 = arith.negf %142 : vector<2x64xf32>
    %144 = math.exp %143 : vector<2x64xf32>
    %cst_36 = arith.constant 1.000000e+00 : f32
    %145 = vector.broadcast %cst_36 : f32 to vector<2x64xf32>
    %146 = arith.addf %145, %144 : vector<2x64xf32>
    %147 = arith.divf %145, %146 : vector<2x64xf32>
    %148 = vector.extract_strided_slice %136 {offsets = [0, 64], sizes = [2, 64], strides = [1, 1]} : vector<2x192xf32> to vector<2x64xf32>
    %149 = vector.extract_strided_slice %139 {offsets = [0, 64], sizes = [2, 64], strides = [1, 1]} : vector<2x192xf32> to vector<2x64xf32>
    %150 = arith.addf %148, %149 : vector<2x64xf32>
    %151 = arith.negf %150 : vector<2x64xf32>
    %152 = math.exp %151 : vector<2x64xf32>
    %cst_37 = arith.constant 1.000000e+00 : f32
    %153 = vector.broadcast %cst_37 : f32 to vector<2x64xf32>
    %154 = arith.addf %153, %152 : vector<2x64xf32>
    %155 = arith.divf %153, %154 : vector<2x64xf32>
    %156 = vector.extract_strided_slice %136 {offsets = [0, 128], sizes = [2, 64], strides = [1, 1]} : vector<2x192xf32> to vector<2x64xf32>
    %157 = vector.extract_strided_slice %139 {offsets = [0, 128], sizes = [2, 64], strides = [1, 1]} : vector<2x192xf32> to vector<2x64xf32>
    %158 = arith.mulf %147, %157 : vector<2x64xf32>
    %159 = arith.addf %156, %158 : vector<2x64xf32>
    %160 = math.tanh %159 : vector<2x64xf32>
    %cst_38 = arith.constant 1.000000e+00 : f32
    %161 = vector.broadcast %cst_38 : f32 to vector<2x64xf32>
    %162 = arith.subf %161, %155 : vector<2x64xf32>
    %163 = arith.mulf %162, %160 : vector<2x64xf32>
    %164 = arith.mulf %155, %135 : vector<2x64xf32>
    %165 = arith.addf %163, %164 : vector<2x64xf32>
    %166 = vector.extract_strided_slice %12 {offsets = [10, 0], sizes = [2, 192], strides = [1, 1]} : vector<14x192xf32> to vector<2x192xf32>
    %cst_39 = arith.constant dense<0.000000e+00> : vector<2x192xf32>
    %167 = tpu.matmul %165, %13, %cst_39 {dimension_numbers = #tpu.dot_dimension_numbers<[1], [0], [0], [1], [0, 0, 1, 1], [], []>} : vector<2x64xf32>, vector<64x192xf32>, vector<2x192xf32> -> vector<2x192xf32>
    %168 = vector.broadcast %14 : vector<1x192xf32> to vector<2x192xf32>
    %169 = arith.addf %167, %168 : vector<2x192xf32>
    %170 = vector.extract_strided_slice %166 {offsets = [0, 0], sizes = [2, 64], strides = [1, 1]} : vector<2x192xf32> to vector<2x64xf32>
    %171 = vector.extract_strided_slice %169 {offsets = [0, 0], sizes = [2, 64], strides = [1, 1]} : vector<2x192xf32> to vector<2x64xf32>
    %172 = arith.addf %170, %171 : vector<2x64xf32>
    %173 = arith.negf %172 : vector<2x64xf32>
    %174 = math.exp %173 : vector<2x64xf32>
    %cst_40 = arith.constant 1.000000e+00 : f32
    %175 = vector.broadcast %cst_40 : f32 to vector<2x64xf32>
    %176 = arith.addf %175, %174 : vector<2x64xf32>
    %177 = arith.divf %175, %176 : vector<2x64xf32>
    %178 = vector.extract_strided_slice %166 {offsets = [0, 64], sizes = [2, 64], strides = [1, 1]} : vector<2x192xf32> to vector<2x64xf32>
    %179 = vector.extract_strided_slice %169 {offsets = [0, 64], sizes = [2, 64], strides = [1, 1]} : vector<2x192xf32> to vector<2x64xf32>
    %180 = arith.addf %178, %179 : vector<2x64xf32>
    %181 = arith.negf %180 : vector<2x64xf32>
    %182 = math.exp %181 : vector<2x64xf32>
    %cst_41 = arith.constant 1.000000e+00 : f32
    %183 = vector.broadcast %cst_41 : f32 to vector<2x64xf32>
    %184 = arith.addf %183, %182 : vector<2x64xf32>
    %185 = arith.divf %183, %184 : vector<2x64xf32>
    %186 = vector.extract_strided_slice %166 {offsets = [0, 128], sizes = [2, 64], strides = [1, 1]} : vector<2x192xf32> to vector<2x64xf32>
    %187 = vector.extract_strided_slice %169 {offsets = [0, 128], sizes = [2, 64], strides = [1, 1]} : vector<2x192xf32> to vector<2x64xf32>
    %188 = arith.mulf %177, %187 : vector<2x64xf32>
    %189 = arith.addf %186, %188 : vector<2x64xf32>
    %190 = math.tanh %189 : vector<2x64xf32>
    %cst_42 = arith.constant 1.000000e+00 : f32
    %191 = vector.broadcast %cst_42 : f32 to vector<2x64xf32>
    %192 = arith.subf %191, %185 : vector<2x64xf32>
    %193 = arith.mulf %192, %190 : vector<2x64xf32>
    %194 = arith.mulf %185, %165 : vector<2x64xf32>
    %195 = arith.addf %193, %194 : vector<2x64xf32>
    %196 = vector.extract_strided_slice %12 {offsets = [12, 0], sizes = [2, 192], strides = [1, 1]} : vector<14x192xf32> to vector<2x192xf32>
    %cst_43 = arith.constant dense<0.000000e+00> : vector<2x192xf32>
    %197 = tpu.matmul %195, %13, %cst_43 {dimension_numbers = #tpu.dot_dimension_numbers<[1], [0], [0], [1], [0, 0, 1, 1], [], []>} : vector<2x64xf32>, vector<64x192xf32>, vector<2x192xf32> -> vector<2x192xf32>
    %198 = vector.broadcast %14 : vector<1x192xf32> to vector<2x192xf32>
    %199 = arith.addf %197, %198 : vector<2x192xf32>
    %200 = vector.extract_strided_slice %196 {offsets = [0, 0], sizes = [2, 64], strides = [1, 1]} : vector<2x192xf32> to vector<2x64xf32>
    %201 = vector.extract_strided_slice %199 {offsets = [0, 0], sizes = [2, 64], strides = [1, 1]} : vector<2x192xf32> to vector<2x64xf32>
    %202 = arith.addf %200, %201 : vector<2x64xf32>
    %203 = arith.negf %202 : vector<2x64xf32>
    %204 = math.exp %203 : vector<2x64xf32>
    %cst_44 = arith.constant 1.000000e+00 : f32
    %205 = vector.broadcast %cst_44 : f32 to vector<2x64xf32>
    %206 = arith.addf %205, %204 : vector<2x64xf32>
    %207 = arith.divf %205, %206 : vector<2x64xf32>
    %208 = vector.extract_strided_slice %196 {offsets = [0, 64], sizes = [2, 64], strides = [1, 1]} : vector<2x192xf32> to vector<2x64xf32>
    %209 = vector.extract_strided_slice %199 {offsets = [0, 64], sizes = [2, 64], strides = [1, 1]} : vector<2x192xf32> to vector<2x64xf32>
    %210 = arith.addf %208, %209 : vector<2x64xf32>
    %211 = arith.negf %210 : vector<2x64xf32>
    %212 = math.exp %211 : vector<2x64xf32>
    %cst_45 = arith.constant 1.000000e+00 : f32
    %213 = vector.broadcast %cst_45 : f32 to vector<2x64xf32>
    %214 = arith.addf %213, %212 : vector<2x64xf32>
    %215 = arith.divf %213, %214 : vector<2x64xf32>
    %216 = vector.extract_strided_slice %196 {offsets = [0, 128], sizes = [2, 64], strides = [1, 1]} : vector<2x192xf32> to vector<2x64xf32>
    %217 = vector.extract_strided_slice %199 {offsets = [0, 128], sizes = [2, 64], strides = [1, 1]} : vector<2x192xf32> to vector<2x64xf32>
    %218 = arith.mulf %207, %217 : vector<2x64xf32>
    %219 = arith.addf %216, %218 : vector<2x64xf32>
    %220 = math.tanh %219 : vector<2x64xf32>
    %cst_46 = arith.constant 1.000000e+00 : f32
    %221 = vector.broadcast %cst_46 : f32 to vector<2x64xf32>
    %222 = arith.subf %221, %215 : vector<2x64xf32>
    %223 = arith.mulf %222, %220 : vector<2x64xf32>
    %224 = arith.mulf %215, %195 : vector<2x64xf32>
    %225 = arith.addf %223, %224 : vector<2x64xf32>
    %c0_47 = arith.constant 0 : index
    %c0_48 = arith.constant 0 : index
    %226 = vector.load %arg8[%c0_47, %c0_48] : memref<64x128xf32, #tpu.memory_space<vmem>>, vector<64x128xf32>
    %cst_49 = arith.constant dense<0.000000e+00> : vector<2x128xf32>
    %227 = tpu.matmul %225, %226, %cst_49 {dimension_numbers = #tpu.dot_dimension_numbers<[1], [0], [0], [1], [0, 0, 1, 1], [], []>} : vector<2x64xf32>, vector<64x128xf32>, vector<2x128xf32> -> vector<2x128xf32>
    %c0_50 = arith.constant 0 : index
    %c0_51 = arith.constant 0 : index
    %228 = vector.load %arg9[%c0_50, %c0_51] : memref<1x128xf32, #tpu.memory_space<vmem>>, vector<1x128xf32>
    %229 = vector.broadcast %228 : vector<1x128xf32> to vector<2x128xf32>
    %230 = arith.addf %227, %229 : vector<2x128xf32>
    %c0_52 = arith.constant 0 : index
    %c0_53 = arith.constant 0 : index
    %231 = vector.load %arg27[%c0_52, %c0_53] : memref<2x128xf32, #tpu.memory_space<vmem>>, vector<2x128xf32>
    tpu.vector_store %arg27[%c0_52, %c0_53], %230 {strides = array<i32>} : memref<2x128xf32, #tpu.memory_space<vmem>>, vector<2x128xf32>,
    %c0_54 = arith.constant 0 : index
    %c0_55 = arith.constant 0 : index
    %232 = vector.load %arg10[%c0_54, %c0_55] : memref<128x384xf32, #tpu.memory_space<vmem>>, vector<128x384xf32>
    %cst_56 = arith.constant dense<0.000000e+00> : vector<2x384xf32>
    %233 = tpu.matmul %5, %232, %cst_56 {dimension_numbers = #tpu.dot_dimension_numbers<[1], [0], [0], [1], [0, 0, 1, 1], [], []>} : vector<2x128xf32>, vector<128x384xf32>, vector<2x384xf32> -> vector<2x384xf32>
    %c0_57 = arith.constant 0 : index
    %c0_58 = arith.constant 0 : index
    %234 = vector.load %arg11[%c0_57, %c0_58] : memref<1x384xf32, #tpu.memory_space<vmem>>, vector<1x384xf32>
    %235 = vector.broadcast %234 : vector<1x384xf32> to vector<2x384xf32>
    %236 = arith.addf %233, %235 : vector<2x384xf32>
    %c0_59 = arith.constant 0 : index
    %c0_60 = arith.constant 0 : index
    %237 = vector.load %arg10[%c0_59, %c0_60] : memref<128x384xf32, #tpu.memory_space<vmem>>, vector<128x384xf32>
    %cst_61 = arith.constant dense<0.000000e+00> : vector<2x384xf32>
    %238 = tpu.matmul %230, %237, %cst_61 {dimension_numbers = #tpu.dot_dimension_numbers<[1], [0], [0], [1], [0, 0, 1, 1], [], []>} : vector<2x128xf32>, vector<128x384xf32>, vector<2x384xf32> -> vector<2x384xf32>
    %c0_62 = arith.constant 0 : index
    %c0_63 = arith.constant 0 : index
    %239 = vector.load %arg11[%c0_62, %c0_63] : memref<1x384xf32, #tpu.memory_space<vmem>>, vector<1x384xf32>
    %240 = vector.broadcast %239 : vector<1x384xf32> to vector<2x384xf32>
    %241 = arith.addf %238, %240 : vector<2x384xf32>
    %242 = vector.extract_strided_slice %236 {offsets = [0, 0], sizes = [2, 128], strides = [1, 1]} : vector<2x384xf32> to vector<2x128xf32>
    %243 = vector.extract_strided_slice %236 {offsets = [0, 128], sizes = [2, 128], strides = [1, 1]} : vector<2x384xf32> to vector<2x128xf32>
    %244 = vector.extract_strided_slice %236 {offsets = [0, 256], sizes = [2, 128], strides = [1, 1]} : vector<2x384xf32> to vector<2x128xf32>
    %245 = vector.extract_strided_slice %241 {offsets = [0, 0], sizes = [2, 128], strides = [1, 1]} : vector<2x384xf32> to vector<2x128xf32>
    %246 = vector.extract_strided_slice %241 {offsets = [0, 128], sizes = [2, 128], strides = [1, 1]} : vector<2x384xf32> to vector<2x128xf32>
    %247 = vector.extract_strided_slice %241 {offsets = [0, 256], sizes = [2, 128], strides = [1, 1]} : vector<2x384xf32> to vector<2x128xf32>
    %c0_64 = arith.constant 0 : index
    %c0_65 = arith.constant 0 : index
    %248 = vector.load %arg14[%c0_64, %c0_65] : memref<128x4xf32, #tpu.memory_space<vmem>>, vector<128x4xf32>
    %c0_66 = arith.constant 0 : index
    %c0_67 = arith.constant 0 : index
    %249 = vector.load %arg15[%c0_66, %c0_67] : memref<4x128xf32, #tpu.memory_space<vmem>>, vector<4x128xf32>
    %250 = arith.mulf %242, %243 : vector<2x128xf32>
    %cst_68 = arith.constant dense<0.000000e+00> : vector<2x4xf32>
    %251 = tpu.matmul %250, %248, %cst_68 {dimension_numbers = #tpu.dot_dimension_numbers<[1], [0], [0], [1], [0, 0, 1, 1], [], []>} : vector<2x128xf32>, vector<128x4xf32>, vector<2x4xf32> -> vector<2x4xf32>
    %cst_69 = arith.constant 0.176776692 : f32
    %252 = vector.broadcast %cst_69 : f32 to vector<2x4xf32>
    %253 = arith.mulf %251, %252 : vector<2x4xf32>
    %254 = arith.mulf %242, %246 : vector<2x128xf32>
    %cst_70 = arith.constant dense<0.000000e+00> : vector<2x4xf32>
    %255 = tpu.matmul %254, %248, %cst_70 {dimension_numbers = #tpu.dot_dimension_numbers<[1], [0], [0], [1], [0, 0, 1, 1], [], []>} : vector<2x128xf32>, vector<128x4xf32>, vector<2x4xf32> -> vector<2x4xf32>
    %cst_71 = arith.constant 0.176776692 : f32
    %256 = vector.broadcast %cst_71 : f32 to vector<2x4xf32>
    %257 = arith.mulf %255, %256 : vector<2x4xf32>
    %258 = arith.mulf %245, %243 : vector<2x128xf32>
    %cst_72 = arith.constant dense<0.000000e+00> : vector<2x4xf32>
    %259 = tpu.matmul %258, %248, %cst_72 {dimension_numbers = #tpu.dot_dimension_numbers<[1], [0], [0], [1], [0, 0, 1, 1], [], []>} : vector<2x128xf32>, vector<128x4xf32>, vector<2x4xf32> -> vector<2x4xf32>
    %cst_73 = arith.constant 0.176776692 : f32
    %260 = vector.broadcast %cst_73 : f32 to vector<2x4xf32>
    %261 = arith.mulf %259, %260 : vector<2x4xf32>
    %262 = arith.mulf %245, %246 : vector<2x128xf32>
    %cst_74 = arith.constant dense<0.000000e+00> : vector<2x4xf32>
    %263 = tpu.matmul %262, %248, %cst_74 {dimension_numbers = #tpu.dot_dimension_numbers<[1], [0], [0], [1], [0, 0, 1, 1], [], []>} : vector<2x128xf32>, vector<128x4xf32>, vector<2x4xf32> -> vector<2x4xf32>
    %cst_75 = arith.constant 0.176776692 : f32
    %264 = vector.broadcast %cst_75 : f32 to vector<2x4xf32>
    %265 = arith.mulf %263, %264 : vector<2x4xf32>
    %266 = arith.maximumf %253, %257 : vector<2x4xf32>
    %267 = arith.subf %253, %266 : vector<2x4xf32>
    %268 = math.exp %267 : vector<2x4xf32>
    %269 = arith.subf %257, %266 : vector<2x4xf32>
    %270 = math.exp %269 : vector<2x4xf32>
    %271 = arith.addf %268, %270 : vector<2x4xf32>
    %cst_76 = arith.constant 1.000000e+00 : f32
    %272 = vector.broadcast %cst_76 : f32 to vector<2x4xf32>
    %273 = arith.divf %272, %271 : vector<2x4xf32>
    %274 = arith.mulf %268, %273 : vector<2x4xf32>
    %275 = arith.mulf %270, %273 : vector<2x4xf32>
    %276 = arith.maximumf %261, %265 : vector<2x4xf32>
    %277 = arith.subf %261, %276 : vector<2x4xf32>
    %278 = math.exp %277 : vector<2x4xf32>
    %279 = arith.subf %265, %276 : vector<2x4xf32>
    %280 = math.exp %279 : vector<2x4xf32>
    %281 = arith.addf %278, %280 : vector<2x4xf32>
    %cst_77 = arith.constant 1.000000e+00 : f32
    %282 = vector.broadcast %cst_77 : f32 to vector<2x4xf32>
    %283 = arith.divf %282, %281 : vector<2x4xf32>
    %284 = arith.mulf %278, %283 : vector<2x4xf32>
    %285 = arith.mulf %280, %283 : vector<2x4xf32>
    %cst_78 = arith.constant dense<0.000000e+00> : vector<2x128xf32>
    %286 = tpu.matmul %274, %249, %cst_78 {dimension_numbers = #tpu.dot_dimension_numbers<[1], [0], [0], [1], [0, 0, 1, 1], [], []>} : vector<2x4xf32>, vector<4x128xf32>, vector<2x128xf32> -> vector<2x128xf32>
    %287 = arith.mulf %286, %244 : vector<2x128xf32>
    %cst_79 = arith.constant dense<0.000000e+00> : vector<2x128xf32>
    %288 = tpu.matmul %275, %249, %cst_79 {dimension_numbers = #tpu.dot_dimension_numbers<[1], [0], [0], [1], [0, 0, 1, 1], [], []>} : vector<2x4xf32>, vector<4x128xf32>, vector<2x128xf32> -> vector<2x128xf32>
    %289 = arith.mulf %288, %247 : vector<2x128xf32>
    %290 = arith.addf %287, %289 : vector<2x128xf32>
    %cst_80 = arith.constant dense<0.000000e+00> : vector<2x128xf32>
    %291 = tpu.matmul %284, %249, %cst_80 {dimension_numbers = #tpu.dot_dimension_numbers<[1], [0], [0], [1], [0, 0, 1, 1], [], []>} : vector<2x4xf32>, vector<4x128xf32>, vector<2x128xf32> -> vector<2x128xf32>
    %292 = arith.mulf %291, %244 : vector<2x128xf32>
    %cst_81 = arith.constant dense<0.000000e+00> : vector<2x128xf32>
    %293 = tpu.matmul %285, %249, %cst_81 {dimension_numbers = #tpu.dot_dimension_numbers<[1], [0], [0], [1], [0, 0, 1, 1], [], []>} : vector<2x4xf32>, vector<4x128xf32>, vector<2x128xf32> -> vector<2x128xf32>
    %294 = arith.mulf %293, %247 : vector<2x128xf32>
    %295 = arith.addf %292, %294 : vector<2x128xf32>
    %c0_82 = arith.constant 0 : index
    %c0_83 = arith.constant 0 : index
    %296 = vector.load %arg12[%c0_82, %c0_83] : memref<128x128xf32, #tpu.memory_space<vmem>>, vector<128x128xf32>
    %cst_84 = arith.constant dense<0.000000e+00> : vector<2x128xf32>
    %297 = tpu.matmul %290, %296, %cst_84 {dimension_numbers = #tpu.dot_dimension_numbers<[1], [0], [0], [1], [0, 0, 1, 1], [], []>} : vector<2x128xf32>, vector<128x128xf32>, vector<2x128xf32> -> vector<2x128xf32>
    %c0_85 = arith.constant 0 : index
    %c0_86 = arith.constant 0 : index
    %298 = vector.load %arg13[%c0_85, %c0_86] : memref<1x128xf32, #tpu.memory_space<vmem>>, vector<1x128xf32>
    %299 = vector.broadcast %298 : vector<1x128xf32> to vector<2x128xf32>
    %300 = arith.addf %297, %299 : vector<2x128xf32>
    %c0_87 = arith.constant 0 : index
    %c0_88 = arith.constant 0 : index
    %301 = vector.load %arg12[%c0_87, %c0_88] : memref<128x128xf32, #tpu.memory_space<vmem>>, vector<128x128xf32>
    %cst_89 = arith.constant dense<0.000000e+00> : vector<2x128xf32>
    %302 = tpu.matmul %295, %301, %cst_89 {dimension_numbers = #tpu.dot_dimension_numbers<[1], [0], [0], [1], [0, 0, 1, 1], [], []>} : vector<2x128xf32>, vector<128x128xf32>, vector<2x128xf32> -> vector<2x128xf32>
    %c0_90 = arith.constant 0 : index
    %c0_91 = arith.constant 0 : index
    %303 = vector.load %arg13[%c0_90, %c0_91] : memref<1x128xf32, #tpu.memory_space<vmem>>, vector<1x128xf32>
    %304 = vector.broadcast %303 : vector<1x128xf32> to vector<2x128xf32>
    %305 = arith.addf %302, %304 : vector<2x128xf32>
    %306 = arith.addf %300, %305 : vector<2x128xf32>
    %cst_92 = arith.constant 5.000000e-01 : f32
    %307 = vector.broadcast %cst_92 : f32 to vector<2x128xf32>
    %308 = arith.mulf %307, %306 : vector<2x128xf32>
    %c0_93 = arith.constant 0 : index
    %c0_94 = arith.constant 0 : index
    %309 = vector.load %arg16[%c0_93, %c0_94] : memref<128x1728xf32, #tpu.memory_space<vmem>>, vector<128x1728xf32>
    %cst_95 = arith.constant dense<0.000000e+00> : vector<2x1728xf32>
    %310 = tpu.matmul %308, %309, %cst_95 {dimension_numbers = #tpu.dot_dimension_numbers<[1], [0], [0], [1], [0, 0, 1, 1], [], []>} : vector<2x128xf32>, vector<128x1728xf32>, vector<2x1728xf32> -> vector<2x1728xf32>
    %c0_96 = arith.constant 0 : index
    %c0_97 = arith.constant 0 : index
    %311 = vector.load %arg17[%c0_96, %c0_97] : memref<1x1728xf32, #tpu.memory_space<vmem>>, vector<1x1728xf32>
    %312 = vector.broadcast %311 : vector<1x1728xf32> to vector<2x1728xf32>
    %313 = arith.addf %310, %312 : vector<2x1728xf32>
    %314 = vector.extract_strided_slice %313 {offsets = [0, 0], sizes = [2, 1568], strides = [1, 1]} : vector<2x1728xf32> to vector<2x1568xf32>
    %cst_98 = arith.constant 0.000000e+00 : f32
    %315 = vector.broadcast %cst_98 : f32 to vector<2x1568xf32>
    %316 = arith.maximumf %314, %315 : vector<2x1568xf32>
    %317 = vector.extract_strided_slice %313 {offsets = [0, 1568], sizes = [2, 64], strides = [1, 1]} : vector<2x1728xf32> to vector<2x64xf32>
    %cst_99 = arith.constant 0.000000e+00 : f32
    %318 = vector.broadcast %cst_99 : f32 to vector<2x64xf32>
    %319 = arith.maximumf %317, %318 : vector<2x64xf32>
    %320 = vector.extract_strided_slice %313 {offsets = [0, 1632], sizes = [2, 64], strides = [1, 1]} : vector<2x1728xf32> to vector<2x64xf32>
    %321 = math.tanh %320 : vector<2x64xf32>
    %322 = vector.extract_strided_slice %313 {offsets = [0, 1696], sizes = [2, 32], strides = [1, 1]} : vector<2x1728xf32> to vector<2x32xf32>
    %c0_100 = arith.constant 0 : index
    %c0_101 = arith.constant 0 : index
    %323 = vector.load %arg29[%c0_100, %c0_101] : memref<2x1568xf32, #tpu.memory_space<vmem>>, vector<2x1568xf32>
    tpu.vector_store %arg29[%c0_100, %c0_101], %316 {strides = array<i32>} : memref<2x1568xf32, #tpu.memory_space<vmem>>, vector<2x1568xf32>,
    %c0_102 = arith.constant 0 : index
    %c0_103 = arith.constant 0 : index
    %324 = vector.load %arg18[%c0_102, %c0_103] : memref<64x10xf32, #tpu.memory_space<vmem>>, vector<64x10xf32>
    %cst_104 = arith.constant dense<0.000000e+00> : vector<2x10xf32>
    %325 = tpu.matmul %319, %324, %cst_104 {dimension_numbers = #tpu.dot_dimension_numbers<[1], [0], [0], [1], [0, 0, 1, 1], [], []>} : vector<2x64xf32>, vector<64x10xf32>, vector<2x10xf32> -> vector<2x10xf32>
    %c0_105 = arith.constant 0 : index
    %c0_106 = arith.constant 0 : index
    %326 = vector.load %arg19[%c0_105, %c0_106] : memref<1x10xf32, #tpu.memory_space<vmem>>, vector<1x10xf32>
    %327 = vector.broadcast %326 : vector<1x10xf32> to vector<2x10xf32>
    %328 = arith.addf %325, %327 : vector<2x10xf32>
    %c0_107 = arith.constant 0 : index
    %c0_108 = arith.constant 0 : index
    %329 = vector.load %arg28[%c0_107, %c0_108] : memref<2x10xf32, #tpu.memory_space<vmem>>, vector<2x10xf32>
    tpu.vector_store %arg28[%c0_107, %c0_108], %328 {strides = array<i32>} : memref<2x10xf32, #tpu.memory_space<vmem>>, vector<2x10xf32>,
    %c0_109 = arith.constant 0 : index
    %c0_110 = arith.constant 0 : index
    %330 = vector.load %arg20[%c0_109, %c0_110] : memref<32x192xf32, #tpu.memory_space<vmem>>, vector<32x192xf32>
    %cst_111 = arith.constant dense<0.000000e+00> : vector<2x192xf32>
    %331 = tpu.matmul %322, %330, %cst_111 {dimension_numbers = #tpu.dot_dimension_numbers<[1], [0], [0], [1], [0, 0, 1, 1], [], []>} : vector<2x32xf32>, vector<32x192xf32>, vector<2x192xf32> -> vector<2x192xf32>
    %c0_112 = arith.constant 0 : index
    %c0_113 = arith.constant 0 : index
    %332 = vector.load %arg21[%c0_112, %c0_113] : memref<1x192xf32, #tpu.memory_space<vmem>>, vector<1x192xf32>
    %333 = vector.broadcast %332 : vector<1x192xf32> to vector<2x192xf32>
    %334 = arith.addf %331, %333 : vector<2x192xf32>
    %c0_114 = arith.constant 0 : index
    %c0_115 = arith.constant 0 : index
    %335 = vector.load %arg22[%c0_114, %c0_115] : memref<64x192xf32, #tpu.memory_space<vmem>>, vector<64x192xf32>
    %c0_116 = arith.constant 0 : index
    %c0_117 = arith.constant 0 : index
    %336 = vector.load %arg23[%c0_116, %c0_117] : memref<1x192xf32, #tpu.memory_space<vmem>>, vector<1x192xf32>
    %c0_118 = arith.constant 0 : index
    %c0_119 = arith.constant 0 : index
    %337 = vector.load %arg24[%c0_118, %c0_119] : memref<64x16xf32, #tpu.memory_space<vmem>>, vector<64x16xf32>
    %c0_120 = arith.constant 0 : index
    %c0_121 = arith.constant 0 : index
    %338 = vector.load %arg25[%c0_120, %c0_121] : memref<1x16xf32, #tpu.memory_space<vmem>>, vector<1x16xf32>
    %cst_122 = arith.constant dense<0.000000e+00> : vector<2x192xf32>
    %339 = tpu.matmul %321, %335, %cst_122 {dimension_numbers = #tpu.dot_dimension_numbers<[1], [0], [0], [1], [0, 0, 1, 1], [], []>} : vector<2x64xf32>, vector<64x192xf32>, vector<2x192xf32> -> vector<2x192xf32>
    %340 = vector.broadcast %336 : vector<1x192xf32> to vector<2x192xf32>
    %341 = arith.addf %339, %340 : vector<2x192xf32>
    %342 = vector.extract_strided_slice %334 {offsets = [0, 0], sizes = [2, 64], strides = [1, 1]} : vector<2x192xf32> to vector<2x64xf32>
    %343 = vector.extract_strided_slice %341 {offsets = [0, 0], sizes = [2, 64], strides = [1, 1]} : vector<2x192xf32> to vector<2x64xf32>
    %344 = arith.addf %342, %343 : vector<2x64xf32>
    %345 = arith.negf %344 : vector<2x64xf32>
    %346 = math.exp %345 : vector<2x64xf32>
    %cst_123 = arith.constant 1.000000e+00 : f32
    %347 = vector.broadcast %cst_123 : f32 to vector<2x64xf32>
    %348 = arith.addf %347, %346 : vector<2x64xf32>
    %349 = arith.divf %347, %348 : vector<2x64xf32>
    %350 = vector.extract_strided_slice %334 {offsets = [0, 64], sizes = [2, 64], strides = [1, 1]} : vector<2x192xf32> to vector<2x64xf32>
    %351 = vector.extract_strided_slice %341 {offsets = [0, 64], sizes = [2, 64], strides = [1, 1]} : vector<2x192xf32> to vector<2x64xf32>
    %352 = arith.addf %350, %351 : vector<2x64xf32>
    %353 = arith.negf %352 : vector<2x64xf32>
    %354 = math.exp %353 : vector<2x64xf32>
    %cst_124 = arith.constant 1.000000e+00 : f32
    %355 = vector.broadcast %cst_124 : f32 to vector<2x64xf32>
    %356 = arith.addf %355, %354 : vector<2x64xf32>
    %357 = arith.divf %355, %356 : vector<2x64xf32>
    %358 = vector.extract_strided_slice %334 {offsets = [0, 128], sizes = [2, 64], strides = [1, 1]} : vector<2x192xf32> to vector<2x64xf32>
    %359 = vector.extract_strided_slice %341 {offsets = [0, 128], sizes = [2, 64], strides = [1, 1]} : vector<2x192xf32> to vector<2x64xf32>
    %360 = arith.mulf %349, %359 : vector<2x64xf32>
    %361 = arith.addf %358, %360 : vector<2x64xf32>
    %362 = math.tanh %361 : vector<2x64xf32>
    %cst_125 = arith.constant 1.000000e+00 : f32
    %363 = vector.broadcast %cst_125 : f32 to vector<2x64xf32>
    %364 = arith.subf %363, %357 : vector<2x64xf32>
    %365 = arith.mulf %364, %362 : vector<2x64xf32>
    %366 = arith.mulf %357, %321 : vector<2x64xf32>
    %367 = arith.addf %365, %366 : vector<2x64xf32>
    %cst_126 = arith.constant dense<0.000000e+00> : vector<2x16xf32>
    %368 = tpu.matmul %367, %337, %cst_126 {dimension_numbers = #tpu.dot_dimension_numbers<[1], [0], [0], [1], [0, 0, 1, 1], [], []>} : vector<2x64xf32>, vector<64x16xf32>, vector<2x16xf32> -> vector<2x16xf32>
    %369 = vector.broadcast %338 : vector<1x16xf32> to vector<2x16xf32>
    %370 = arith.addf %368, %369 : vector<2x16xf32>
    %c0_127 = arith.constant 0 : index
    %c0_128 = arith.constant 0 : index
    %371 = vector.load %arg30[%c0_127, %c0_128] : memref<14x16xf32, #tpu.memory_space<vmem>>, vector<2x16xf32>
    tpu.vector_store %arg30[%c0_127, %c0_128], %370 {strides = array<i32>} : memref<14x16xf32, #tpu.memory_space<vmem>>, vector<2x16xf32>,
    %cst_129 = arith.constant dense<0.000000e+00> : vector<2x192xf32>
    %372 = tpu.matmul %367, %335, %cst_129 {dimension_numbers = #tpu.dot_dimension_numbers<[1], [0], [0], [1], [0, 0, 1, 1], [], []>} : vector<2x64xf32>, vector<64x192xf32>, vector<2x192xf32> -> vector<2x192xf32>
    %373 = vector.broadcast %336 : vector<1x192xf32> to vector<2x192xf32>
    %374 = arith.addf %372, %373 : vector<2x192xf32>
    %375 = vector.extract_strided_slice %334 {offsets = [0, 0], sizes = [2, 64], strides = [1, 1]} : vector<2x192xf32> to vector<2x64xf32>
    %376 = vector.extract_strided_slice %374 {offsets = [0, 0], sizes = [2, 64], strides = [1, 1]} : vector<2x192xf32> to vector<2x64xf32>
    %377 = arith.addf %375, %376 : vector<2x64xf32>
    %378 = arith.negf %377 : vector<2x64xf32>
    %379 = math.exp %378 : vector<2x64xf32>
    %cst_130 = arith.constant 1.000000e+00 : f32
    %380 = vector.broadcast %cst_130 : f32 to vector<2x64xf32>
    %381 = arith.addf %380, %379 : vector<2x64xf32>
    %382 = arith.divf %380, %381 : vector<2x64xf32>
    %383 = vector.extract_strided_slice %334 {offsets = [0, 64], sizes = [2, 64], strides = [1, 1]} : vector<2x192xf32> to vector<2x64xf32>
    %384 = vector.extract_strided_slice %374 {offsets = [0, 64], sizes = [2, 64], strides = [1, 1]} : vector<2x192xf32> to vector<2x64xf32>
    %385 = arith.addf %383, %384 : vector<2x64xf32>
    %386 = arith.negf %385 : vector<2x64xf32>
    %387 = math.exp %386 : vector<2x64xf32>
    %cst_131 = arith.constant 1.000000e+00 : f32
    %388 = vector.broadcast %cst_131 : f32 to vector<2x64xf32>
    %389 = arith.addf %388, %387 : vector<2x64xf32>
    %390 = arith.divf %388, %389 : vector<2x64xf32>
    %391 = vector.extract_strided_slice %334 {offsets = [0, 128], sizes = [2, 64], strides = [1, 1]} : vector<2x192xf32> to vector<2x64xf32>
    %392 = vector.extract_strided_slice %374 {offsets = [0, 128], sizes = [2, 64], strides = [1, 1]} : vector<2x192xf32> to vector<2x64xf32>
    %393 = arith.mulf %382, %392 : vector<2x64xf32>
    %394 = arith.addf %391, %393 : vector<2x64xf32>
    %395 = math.tanh %394 : vector<2x64xf32>
    %cst_132 = arith.constant 1.000000e+00 : f32
    %396 = vector.broadcast %cst_132 : f32 to vector<2x64xf32>
    %397 = arith.subf %396, %390 : vector<2x64xf32>
    %398 = arith.mulf %397, %395 : vector<2x64xf32>
    %399 = arith.mulf %390, %367 : vector<2x64xf32>
    %400 = arith.addf %398, %399 : vector<2x64xf32>
    %cst_133 = arith.constant dense<0.000000e+00> : vector<2x16xf32>
    %401 = tpu.matmul %400, %337, %cst_133 {dimension_numbers = #tpu.dot_dimension_numbers<[1], [0], [0], [1], [0, 0, 1, 1], [], []>} : vector<2x64xf32>, vector<64x16xf32>, vector<2x16xf32> -> vector<2x16xf32>
    %402 = vector.broadcast %338 : vector<1x16xf32> to vector<2x16xf32>
    %403 = arith.addf %401, %402 : vector<2x16xf32>
    %c2 = arith.constant 2 : index
    %c0_134 = arith.constant 0 : index
    %404 = vector.load %arg30[%c2, %c0_134] : memref<14x16xf32, #tpu.memory_space<vmem>>, vector<2x16xf32>
    tpu.vector_store %arg30[%c2, %c0_134], %403 {strides = array<i32>} : memref<14x16xf32, #tpu.memory_space<vmem>>, vector<2x16xf32>,
    %cst_135 = arith.constant dense<0.000000e+00> : vector<2x192xf32>
    %405 = tpu.matmul %400, %335, %cst_135 {dimension_numbers = #tpu.dot_dimension_numbers<[1], [0], [0], [1], [0, 0, 1, 1], [], []>} : vector<2x64xf32>, vector<64x192xf32>, vector<2x192xf32> -> vector<2x192xf32>
    %406 = vector.broadcast %336 : vector<1x192xf32> to vector<2x192xf32>
    %407 = arith.addf %405, %406 : vector<2x192xf32>
    %408 = vector.extract_strided_slice %334 {offsets = [0, 0], sizes = [2, 64], strides = [1, 1]} : vector<2x192xf32> to vector<2x64xf32>
    %409 = vector.extract_strided_slice %407 {offsets = [0, 0], sizes = [2, 64], strides = [1, 1]} : vector<2x192xf32> to vector<2x64xf32>
    %410 = arith.addf %408, %409 : vector<2x64xf32>
    %411 = arith.negf %410 : vector<2x64xf32>
    %412 = math.exp %411 : vector<2x64xf32>
    %cst_136 = arith.constant 1.000000e+00 : f32
    %413 = vector.broadcast %cst_136 : f32 to vector<2x64xf32>
    %414 = arith.addf %413, %412 : vector<2x64xf32>
    %415 = arith.divf %413, %414 : vector<2x64xf32>
    %416 = vector.extract_strided_slice %334 {offsets = [0, 64], sizes = [2, 64], strides = [1, 1]} : vector<2x192xf32> to vector<2x64xf32>
    %417 = vector.extract_strided_slice %407 {offsets = [0, 64], sizes = [2, 64], strides = [1, 1]} : vector<2x192xf32> to vector<2x64xf32>
    %418 = arith.addf %416, %417 : vector<2x64xf32>
    %419 = arith.negf %418 : vector<2x64xf32>
    %420 = math.exp %419 : vector<2x64xf32>
    %cst_137 = arith.constant 1.000000e+00 : f32
    %421 = vector.broadcast %cst_137 : f32 to vector<2x64xf32>
    %422 = arith.addf %421, %420 : vector<2x64xf32>
    %423 = arith.divf %421, %422 : vector<2x64xf32>
    %424 = vector.extract_strided_slice %334 {offsets = [0, 128], sizes = [2, 64], strides = [1, 1]} : vector<2x192xf32> to vector<2x64xf32>
    %425 = vector.extract_strided_slice %407 {offsets = [0, 128], sizes = [2, 64], strides = [1, 1]} : vector<2x192xf32> to vector<2x64xf32>
    %426 = arith.mulf %415, %425 : vector<2x64xf32>
    %427 = arith.addf %424, %426 : vector<2x64xf32>
    %428 = math.tanh %427 : vector<2x64xf32>
    %cst_138 = arith.constant 1.000000e+00 : f32
    %429 = vector.broadcast %cst_138 : f32 to vector<2x64xf32>
    %430 = arith.subf %429, %423 : vector<2x64xf32>
    %431 = arith.mulf %430, %428 : vector<2x64xf32>
    %432 = arith.mulf %423, %400 : vector<2x64xf32>
    %433 = arith.addf %431, %432 : vector<2x64xf32>
    %cst_139 = arith.constant dense<0.000000e+00> : vector<2x16xf32>
    %434 = tpu.matmul %433, %337, %cst_139 {dimension_numbers = #tpu.dot_dimension_numbers<[1], [0], [0], [1], [0, 0, 1, 1], [], []>} : vector<2x64xf32>, vector<64x16xf32>, vector<2x16xf32> -> vector<2x16xf32>
    %435 = vector.broadcast %338 : vector<1x16xf32> to vector<2x16xf32>
    %436 = arith.addf %434, %435 : vector<2x16xf32>
    %c4 = arith.constant 4 : index
    %c0_140 = arith.constant 0 : index
    %437 = vector.load %arg30[%c4, %c0_140] : memref<14x16xf32, #tpu.memory_space<vmem>>, vector<2x16xf32>
    tpu.vector_store %arg30[%c4, %c0_140], %436 {strides = array<i32>} : memref<14x16xf32, #tpu.memory_space<vmem>>, vector<2x16xf32>,
    %cst_141 = arith.constant dense<0.000000e+00> : vector<2x192xf32>
    %438 = tpu.matmul %433, %335, %cst_141 {dimension_numbers = #tpu.dot_dimension_numbers<[1], [0], [0], [1], [0, 0, 1, 1], [], []>} : vector<2x64xf32>, vector<64x192xf32>, vector<2x192xf32> -> vector<2x192xf32>
    %439 = vector.broadcast %336 : vector<1x192xf32> to vector<2x192xf32>
    %440 = arith.addf %438, %439 : vector<2x192xf32>
    %441 = vector.extract_strided_slice %334 {offsets = [0, 0], sizes = [2, 64], strides = [1, 1]} : vector<2x192xf32> to vector<2x64xf32>
    %442 = vector.extract_strided_slice %440 {offsets = [0, 0], sizes = [2, 64], strides = [1, 1]} : vector<2x192xf32> to vector<2x64xf32>
    %443 = arith.addf %441, %442 : vector<2x64xf32>
    %444 = arith.negf %443 : vector<2x64xf32>
    %445 = math.exp %444 : vector<2x64xf32>
    %cst_142 = arith.constant 1.000000e+00 : f32
    %446 = vector.broadcast %cst_142 : f32 to vector<2x64xf32>
    %447 = arith.addf %446, %445 : vector<2x64xf32>
    %448 = arith.divf %446, %447 : vector<2x64xf32>
    %449 = vector.extract_strided_slice %334 {offsets = [0, 64], sizes = [2, 64], strides = [1, 1]} : vector<2x192xf32> to vector<2x64xf32>
    %450 = vector.extract_strided_slice %440 {offsets = [0, 64], sizes = [2, 64], strides = [1, 1]} : vector<2x192xf32> to vector<2x64xf32>
    %451 = arith.addf %449, %450 : vector<2x64xf32>
    %452 = arith.negf %451 : vector<2x64xf32>
    %453 = math.exp %452 : vector<2x64xf32>
    %cst_143 = arith.constant 1.000000e+00 : f32
    %454 = vector.broadcast %cst_143 : f32 to vector<2x64xf32>
    %455 = arith.addf %454, %453 : vector<2x64xf32>
    %456 = arith.divf %454, %455 : vector<2x64xf32>
    %457 = vector.extract_strided_slice %334 {offsets = [0, 128], sizes = [2, 64], strides = [1, 1]} : vector<2x192xf32> to vector<2x64xf32>
    %458 = vector.extract_strided_slice %440 {offsets = [0, 128], sizes = [2, 64], strides = [1, 1]} : vector<2x192xf32> to vector<2x64xf32>
    %459 = arith.mulf %448, %458 : vector<2x64xf32>
    %460 = arith.addf %457, %459 : vector<2x64xf32>
    %461 = math.tanh %460 : vector<2x64xf32>
    %cst_144 = arith.constant 1.000000e+00 : f32
    %462 = vector.broadcast %cst_144 : f32 to vector<2x64xf32>
    %463 = arith.subf %462, %456 : vector<2x64xf32>
    %464 = arith.mulf %463, %461 : vector<2x64xf32>
    %465 = arith.mulf %456, %433 : vector<2x64xf32>
    %466 = arith.addf %464, %465 : vector<2x64xf32>
    %cst_145 = arith.constant dense<0.000000e+00> : vector<2x16xf32>
    %467 = tpu.matmul %466, %337, %cst_145 {dimension_numbers = #tpu.dot_dimension_numbers<[1], [0], [0], [1], [0, 0, 1, 1], [], []>} : vector<2x64xf32>, vector<64x16xf32>, vector<2x16xf32> -> vector<2x16xf32>
    %468 = vector.broadcast %338 : vector<1x16xf32> to vector<2x16xf32>
    %469 = arith.addf %467, %468 : vector<2x16xf32>
    %c6 = arith.constant 6 : index
    %c0_146 = arith.constant 0 : index
    %470 = vector.load %arg30[%c6, %c0_146] : memref<14x16xf32, #tpu.memory_space<vmem>>, vector<2x16xf32>
    tpu.vector_store %arg30[%c6, %c0_146], %469 {strides = array<i32>} : memref<14x16xf32, #tpu.memory_space<vmem>>, vector<2x16xf32>,
    %cst_147 = arith.constant dense<0.000000e+00> : vector<2x192xf32>
    %471 = tpu.matmul %466, %335, %cst_147 {dimension_numbers = #tpu.dot_dimension_numbers<[1], [0], [0], [1], [0, 0, 1, 1], [], []>} : vector<2x64xf32>, vector<64x192xf32>, vector<2x192xf32> -> vector<2x192xf32>
    %472 = vector.broadcast %336 : vector<1x192xf32> to vector<2x192xf32>
    %473 = arith.addf %471, %472 : vector<2x192xf32>
    %474 = vector.extract_strided_slice %334 {offsets = [0, 0], sizes = [2, 64], strides = [1, 1]} : vector<2x192xf32> to vector<2x64xf32>
    %475 = vector.extract_strided_slice %473 {offsets = [0, 0], sizes = [2, 64], strides = [1, 1]} : vector<2x192xf32> to vector<2x64xf32>
    %476 = arith.addf %474, %475 : vector<2x64xf32>
    %477 = arith.negf %476 : vector<2x64xf32>
    %478 = math.exp %477 : vector<2x64xf32>
    %cst_148 = arith.constant 1.000000e+00 : f32
    %479 = vector.broadcast %cst_148 : f32 to vector<2x64xf32>
    %480 = arith.addf %479, %478 : vector<2x64xf32>
    %481 = arith.divf %479, %480 : vector<2x64xf32>
    %482 = vector.extract_strided_slice %334 {offsets = [0, 64], sizes = [2, 64], strides = [1, 1]} : vector<2x192xf32> to vector<2x64xf32>
    %483 = vector.extract_strided_slice %473 {offsets = [0, 64], sizes = [2, 64], strides = [1, 1]} : vector<2x192xf32> to vector<2x64xf32>
    %484 = arith.addf %482, %483 : vector<2x64xf32>
    %485 = arith.negf %484 : vector<2x64xf32>
    %486 = math.exp %485 : vector<2x64xf32>
    %cst_149 = arith.constant 1.000000e+00 : f32
    %487 = vector.broadcast %cst_149 : f32 to vector<2x64xf32>
    %488 = arith.addf %487, %486 : vector<2x64xf32>
    %489 = arith.divf %487, %488 : vector<2x64xf32>
    %490 = vector.extract_strided_slice %334 {offsets = [0, 128], sizes = [2, 64], strides = [1, 1]} : vector<2x192xf32> to vector<2x64xf32>
    %491 = vector.extract_strided_slice %473 {offsets = [0, 128], sizes = [2, 64], strides = [1, 1]} : vector<2x192xf32> to vector<2x64xf32>
    %492 = arith.mulf %481, %491 : vector<2x64xf32>
    %493 = arith.addf %490, %492 : vector<2x64xf32>
    %494 = math.tanh %493 : vector<2x64xf32>
    %cst_150 = arith.constant 1.000000e+00 : f32
    %495 = vector.broadcast %cst_150 : f32 to vector<2x64xf32>
    %496 = arith.subf %495, %489 : vector<2x64xf32>
    %497 = arith.mulf %496, %494 : vector<2x64xf32>
    %498 = arith.mulf %489, %466 : vector<2x64xf32>
    %499 = arith.addf %497, %498 : vector<2x64xf32>
    %cst_151 = arith.constant dense<0.000000e+00> : vector<2x16xf32>
    %500 = tpu.matmul %499, %337, %cst_151 {dimension_numbers = #tpu.dot_dimension_numbers<[1], [0], [0], [1], [0, 0, 1, 1], [], []>} : vector<2x64xf32>, vector<64x16xf32>, vector<2x16xf32> -> vector<2x16xf32>
    %501 = vector.broadcast %338 : vector<1x16xf32> to vector<2x16xf32>
    %502 = arith.addf %500, %501 : vector<2x16xf32>
    %c8 = arith.constant 8 : index
    %c0_152 = arith.constant 0 : index
    %503 = vector.load %arg30[%c8, %c0_152] : memref<14x16xf32, #tpu.memory_space<vmem>>, vector<2x16xf32>
    tpu.vector_store %arg30[%c8, %c0_152], %502 {strides = array<i32>} : memref<14x16xf32, #tpu.memory_space<vmem>>, vector<2x16xf32>,
    %cst_153 = arith.constant dense<0.000000e+00> : vector<2x192xf32>
    %504 = tpu.matmul %499, %335, %cst_153 {dimension_numbers = #tpu.dot_dimension_numbers<[1], [0], [0], [1], [0, 0, 1, 1], [], []>} : vector<2x64xf32>, vector<64x192xf32>, vector<2x192xf32> -> vector<2x192xf32>
    %505 = vector.broadcast %336 : vector<1x192xf32> to vector<2x192xf32>
    %506 = arith.addf %504, %505 : vector<2x192xf32>
    %507 = vector.extract_strided_slice %334 {offsets = [0, 0], sizes = [2, 64], strides = [1, 1]} : vector<2x192xf32> to vector<2x64xf32>
    %508 = vector.extract_strided_slice %506 {offsets = [0, 0], sizes = [2, 64], strides = [1, 1]} : vector<2x192xf32> to vector<2x64xf32>
    %509 = arith.addf %507, %508 : vector<2x64xf32>
    %510 = arith.negf %509 : vector<2x64xf32>
    %511 = math.exp %510 : vector<2x64xf32>
    %cst_154 = arith.constant 1.000000e+00 : f32
    %512 = vector.broadcast %cst_154 : f32 to vector<2x64xf32>
    %513 = arith.addf %512, %511 : vector<2x64xf32>
    %514 = arith.divf %512, %513 : vector<2x64xf32>
    %515 = vector.extract_strided_slice %334 {offsets = [0, 64], sizes = [2, 64], strides = [1, 1]} : vector<2x192xf32> to vector<2x64xf32>
    %516 = vector.extract_strided_slice %506 {offsets = [0, 64], sizes = [2, 64], strides = [1, 1]} : vector<2x192xf32> to vector<2x64xf32>
    %517 = arith.addf %515, %516 : vector<2x64xf32>
    %518 = arith.negf %517 : vector<2x64xf32>
    %519 = math.exp %518 : vector<2x64xf32>
    %cst_155 = arith.constant 1.000000e+00 : f32
    %520 = vector.broadcast %cst_155 : f32 to vector<2x64xf32>
    %521 = arith.addf %520, %519 : vector<2x64xf32>
    %522 = arith.divf %520, %521 : vector<2x64xf32>
    %523 = vector.extract_strided_slice %334 {offsets = [0, 128], sizes = [2, 64], strides = [1, 1]} : vector<2x192xf32> to vector<2x64xf32>
    %524 = vector.extract_strided_slice %506 {offsets = [0, 128], sizes = [2, 64], strides = [1, 1]} : vector<2x192xf32> to vector<2x64xf32>
    %525 = arith.mulf %514, %524 : vector<2x64xf32>
    %526 = arith.addf %523, %525 : vector<2x64xf32>
    %527 = math.tanh %526 : vector<2x64xf32>
    %cst_156 = arith.constant 1.000000e+00 : f32
    %528 = vector.broadcast %cst_156 : f32 to vector<2x64xf32>
    %529 = arith.subf %528, %522 : vector<2x64xf32>
    %530 = arith.mulf %529, %527 : vector<2x64xf32>
    %531 = arith.mulf %522, %499 : vector<2x64xf32>
    %532 = arith.addf %530, %531 : vector<2x64xf32>
    %cst_157 = arith.constant dense<0.000000e+00> : vector<2x16xf32>
    %533 = tpu.matmul %532, %337, %cst_157 {dimension_numbers = #tpu.dot_dimension_numbers<[1], [0], [0], [1], [0, 0, 1, 1], [], []>} : vector<2x64xf32>, vector<64x16xf32>, vector<2x16xf32> -> vector<2x16xf32>
    %534 = vector.broadcast %338 : vector<1x16xf32> to vector<2x16xf32>
    %535 = arith.addf %533, %534 : vector<2x16xf32>
    %c10 = arith.constant 10 : index
    %c0_158 = arith.constant 0 : index
    %536 = vector.load %arg30[%c10, %c0_158] : memref<14x16xf32, #tpu.memory_space<vmem>>, vector<2x16xf32>
    tpu.vector_store %arg30[%c10, %c0_158], %535 {strides = array<i32>} : memref<14x16xf32, #tpu.memory_space<vmem>>, vector<2x16xf32>,
    %cst_159 = arith.constant dense<0.000000e+00> : vector<2x192xf32>
    %537 = tpu.matmul %532, %335, %cst_159 {dimension_numbers = #tpu.dot_dimension_numbers<[1], [0], [0], [1], [0, 0, 1, 1], [], []>} : vector<2x64xf32>, vector<64x192xf32>, vector<2x192xf32> -> vector<2x192xf32>
    %538 = vector.broadcast %336 : vector<1x192xf32> to vector<2x192xf32>
    %539 = arith.addf %537, %538 : vector<2x192xf32>
    %540 = vector.extract_strided_slice %334 {offsets = [0, 0], sizes = [2, 64], strides = [1, 1]} : vector<2x192xf32> to vector<2x64xf32>
    %541 = vector.extract_strided_slice %539 {offsets = [0, 0], sizes = [2, 64], strides = [1, 1]} : vector<2x192xf32> to vector<2x64xf32>
    %542 = arith.addf %540, %541 : vector<2x64xf32>
    %543 = arith.negf %542 : vector<2x64xf32>
    %544 = math.exp %543 : vector<2x64xf32>
    %cst_160 = arith.constant 1.000000e+00 : f32
    %545 = vector.broadcast %cst_160 : f32 to vector<2x64xf32>
    %546 = arith.addf %545, %544 : vector<2x64xf32>
    %547 = arith.divf %545, %546 : vector<2x64xf32>
    %548 = vector.extract_strided_slice %334 {offsets = [0, 64], sizes = [2, 64], strides = [1, 1]} : vector<2x192xf32> to vector<2x64xf32>
    %549 = vector.extract_strided_slice %539 {offsets = [0, 64], sizes = [2, 64], strides = [1, 1]} : vector<2x192xf32> to vector<2x64xf32>
    %550 = arith.addf %548, %549 : vector<2x64xf32>
    %551 = arith.negf %550 : vector<2x64xf32>
    %552 = math.exp %551 : vector<2x64xf32>
    %cst_161 = arith.constant 1.000000e+00 : f32
    %553 = vector.broadcast %cst_161 : f32 to vector<2x64xf32>
    %554 = arith.addf %553, %552 : vector<2x64xf32>
    %555 = arith.divf %553, %554 : vector<2x64xf32>
    %556 = vector.extract_strided_slice %334 {offsets = [0, 128], sizes = [2, 64], strides = [1, 1]} : vector<2x192xf32> to vector<2x64xf32>
    %557 = vector.extract_strided_slice %539 {offsets = [0, 128], sizes = [2, 64], strides = [1, 1]} : vector<2x192xf32> to vector<2x64xf32>
    %558 = arith.mulf %547, %557 : vector<2x64xf32>
    %559 = arith.addf %556, %558 : vector<2x64xf32>
    %560 = math.tanh %559 : vector<2x64xf32>
    %cst_162 = arith.constant 1.000000e+00 : f32
    %561 = vector.broadcast %cst_162 : f32 to vector<2x64xf32>
    %562 = arith.subf %561, %555 : vector<2x64xf32>
    %563 = arith.mulf %562, %560 : vector<2x64xf32>
    %564 = arith.mulf %555, %532 : vector<2x64xf32>
    %565 = arith.addf %563, %564 : vector<2x64xf32>
    %cst_163 = arith.constant dense<0.000000e+00> : vector<2x16xf32>
    %566 = tpu.matmul %565, %337, %cst_163 {dimension_numbers = #tpu.dot_dimension_numbers<[1], [0], [0], [1], [0, 0, 1, 1], [], []>} : vector<2x64xf32>, vector<64x16xf32>, vector<2x16xf32> -> vector<2x16xf32>
    %567 = vector.broadcast %338 : vector<1x16xf32> to vector<2x16xf32>
    %568 = arith.addf %566, %567 : vector<2x16xf32>
    %c12 = arith.constant 12 : index
    %c0_164 = arith.constant 0 : index
    %569 = vector.load %arg30[%c12, %c0_164] : memref<14x16xf32, #tpu.memory_space<vmem>>, vector<2x16xf32>
    tpu.vector_store %arg30[%c12, %c0_164], %568 {strides = array<i32>} : memref<14x16xf32, #tpu.memory_space<vmem>>, vector<2x16xf32>,
    return
  }
}

module attributes {stable_mosaic.version = 11 : i64} {
  func.func @_img_decoder_kernel(%arg0: memref<98x32xf32, #tpu.memory_space<vmem>>, %arg1: memref<32x64xf32, #tpu.memory_space<vmem>>, %arg2: memref<1x64xf32, #tpu.memory_space<vmem>>, %arg3: memref<16x4xf32, #tpu.memory_space<vmem>>, %arg4: memref<1x4xf32, #tpu.memory_space<vmem>>, %arg5: memref<98x16xf32, #tpu.memory_space<vmem>>) attributes {dimension_semantics = [], scalar_prefetch = 0 : i64, scratch_operands = 0 : i64, tpu.core_type = #tpu.core_type<tc>} {
    %c0 = arith.constant 0 : index
    %c0_0 = arith.constant 0 : index
    %0 = vector.load %arg0[%c0, %c0_0] : memref<98x32xf32, #tpu.memory_space<vmem>>, vector<98x32xf32>
    %c0_1 = arith.constant 0 : index
    %c0_2 = arith.constant 0 : index
    %1 = vector.load %arg1[%c0_1, %c0_2] : memref<32x64xf32, #tpu.memory_space<vmem>>, vector<32x64xf32>
    %cst = arith.constant dense<0.000000e+00> : vector<98x64xf32>
    %2 = tpu.matmul %0, %1, %cst {dimension_numbers = #tpu.dot_dimension_numbers<[1], [0], [0], [1], [0, 0, 1, 1], [], []>} : vector<98x32xf32>, vector<32x64xf32>, vector<98x64xf32> -> vector<98x64xf32>
    %c0_3 = arith.constant 0 : index
    %c0_4 = arith.constant 0 : index
    %3 = vector.load %arg2[%c0_3, %c0_4] : memref<1x64xf32, #tpu.memory_space<vmem>>, vector<1x64xf32>
    %4 = vector.broadcast %3 : vector<1x64xf32> to vector<98x64xf32>
    %5 = arith.addf %2, %4 : vector<98x64xf32>
    %cst_5 = arith.constant 0.000000e+00 : f32
    %6 = vector.broadcast %cst_5 : f32 to vector<98x64xf32>
    %7 = arith.maximumf %5, %6 : vector<98x64xf32>
    %8 = vector.extract_strided_slice %7 {offsets = [0, 0], sizes = [98, 16], strides = [1, 1]} : vector<98x64xf32> to vector<98x16xf32>
    %c0_6 = arith.constant 0 : index
    %c0_7 = arith.constant 0 : index
    %9 = vector.load %arg3[%c0_6, %c0_7] : memref<16x4xf32, #tpu.memory_space<vmem>>, vector<16x4xf32>
    %cst_8 = arith.constant dense<0.000000e+00> : vector<98x4xf32>
    %10 = tpu.matmul %8, %9, %cst_8 {dimension_numbers = #tpu.dot_dimension_numbers<[1], [0], [0], [1], [0, 0, 1, 1], [], []>} : vector<98x16xf32>, vector<16x4xf32>, vector<98x4xf32> -> vector<98x4xf32>
    %c0_9 = arith.constant 0 : index
    %c0_10 = arith.constant 0 : index
    %11 = vector.load %arg4[%c0_9, %c0_10] : memref<1x4xf32, #tpu.memory_space<vmem>>, vector<1x4xf32>
    %12 = vector.broadcast %11 : vector<1x4xf32> to vector<98x4xf32>
    %13 = arith.addf %10, %12 : vector<98x4xf32>
    %14 = arith.negf %13 : vector<98x4xf32>
    %15 = math.exp %14 : vector<98x4xf32>
    %cst_11 = arith.constant 1.000000e+00 : f32
    %16 = vector.broadcast %cst_11 : f32 to vector<98x4xf32>
    %17 = arith.addf %16, %15 : vector<98x4xf32>
    %18 = arith.divf %16, %17 : vector<98x4xf32>
    %c0_12 = arith.constant 0 : index
    %c0_13 = arith.constant 0 : index
    %19 = vector.load %arg5[%c0_12, %c0_13] : memref<98x16xf32, #tpu.memory_space<vmem>>, vector<98x4xf32>
    tpu.vector_store %arg5[%c0_12, %c0_13], %18 {strides = array<i32>} : memref<98x16xf32, #tpu.memory_space<vmem>>, vector<98x4xf32>,
    %20 = vector.extract_strided_slice %7 {offsets = [0, 16], sizes = [98, 16], strides = [1, 1]} : vector<98x64xf32> to vector<98x16xf32>
    %c0_14 = arith.constant 0 : index
    %c0_15 = arith.constant 0 : index
    %21 = vector.load %arg3[%c0_14, %c0_15] : memref<16x4xf32, #tpu.memory_space<vmem>>, vector<16x4xf32>
    %cst_16 = arith.constant dense<0.000000e+00> : vector<98x4xf32>
    %22 = tpu.matmul %20, %21, %cst_16 {dimension_numbers = #tpu.dot_dimension_numbers<[1], [0], [0], [1], [0, 0, 1, 1], [], []>} : vector<98x16xf32>, vector<16x4xf32>, vector<98x4xf32> -> vector<98x4xf32>
    %c0_17 = arith.constant 0 : index
    %c0_18 = arith.constant 0 : index
    %23 = vector.load %arg4[%c0_17, %c0_18] : memref<1x4xf32, #tpu.memory_space<vmem>>, vector<1x4xf32>
    %24 = vector.broadcast %23 : vector<1x4xf32> to vector<98x4xf32>
    %25 = arith.addf %22, %24 : vector<98x4xf32>
    %26 = arith.negf %25 : vector<98x4xf32>
    %27 = math.exp %26 : vector<98x4xf32>
    %cst_19 = arith.constant 1.000000e+00 : f32
    %28 = vector.broadcast %cst_19 : f32 to vector<98x4xf32>
    %29 = arith.addf %28, %27 : vector<98x4xf32>
    %30 = arith.divf %28, %29 : vector<98x4xf32>
    %c0_20 = arith.constant 0 : index
    %c4 = arith.constant 4 : index
    %31 = vector.load %arg5[%c0_20, %c4] : memref<98x16xf32, #tpu.memory_space<vmem>>, vector<98x4xf32>
    tpu.vector_store %arg5[%c0_20, %c4], %30 {strides = array<i32>} : memref<98x16xf32, #tpu.memory_space<vmem>>, vector<98x4xf32>,
    %32 = vector.extract_strided_slice %7 {offsets = [0, 32], sizes = [98, 16], strides = [1, 1]} : vector<98x64xf32> to vector<98x16xf32>
    %c0_21 = arith.constant 0 : index
    %c0_22 = arith.constant 0 : index
    %33 = vector.load %arg3[%c0_21, %c0_22] : memref<16x4xf32, #tpu.memory_space<vmem>>, vector<16x4xf32>
    %cst_23 = arith.constant dense<0.000000e+00> : vector<98x4xf32>
    %34 = tpu.matmul %32, %33, %cst_23 {dimension_numbers = #tpu.dot_dimension_numbers<[1], [0], [0], [1], [0, 0, 1, 1], [], []>} : vector<98x16xf32>, vector<16x4xf32>, vector<98x4xf32> -> vector<98x4xf32>
    %c0_24 = arith.constant 0 : index
    %c0_25 = arith.constant 0 : index
    %35 = vector.load %arg4[%c0_24, %c0_25] : memref<1x4xf32, #tpu.memory_space<vmem>>, vector<1x4xf32>
    %36 = vector.broadcast %35 : vector<1x4xf32> to vector<98x4xf32>
    %37 = arith.addf %34, %36 : vector<98x4xf32>
    %38 = arith.negf %37 : vector<98x4xf32>
    %39 = math.exp %38 : vector<98x4xf32>
    %cst_26 = arith.constant 1.000000e+00 : f32
    %40 = vector.broadcast %cst_26 : f32 to vector<98x4xf32>
    %41 = arith.addf %40, %39 : vector<98x4xf32>
    %42 = arith.divf %40, %41 : vector<98x4xf32>
    %c0_27 = arith.constant 0 : index
    %c8 = arith.constant 8 : index
    %43 = vector.load %arg5[%c0_27, %c8] : memref<98x16xf32, #tpu.memory_space<vmem>>, vector<98x4xf32>
    tpu.vector_store %arg5[%c0_27, %c8], %42 {strides = array<i32>} : memref<98x16xf32, #tpu.memory_space<vmem>>, vector<98x4xf32>,
    %44 = vector.extract_strided_slice %7 {offsets = [0, 48], sizes = [98, 16], strides = [1, 1]} : vector<98x64xf32> to vector<98x16xf32>
    %c0_28 = arith.constant 0 : index
    %c0_29 = arith.constant 0 : index
    %45 = vector.load %arg3[%c0_28, %c0_29] : memref<16x4xf32, #tpu.memory_space<vmem>>, vector<16x4xf32>
    %cst_30 = arith.constant dense<0.000000e+00> : vector<98x4xf32>
    %46 = tpu.matmul %44, %45, %cst_30 {dimension_numbers = #tpu.dot_dimension_numbers<[1], [0], [0], [1], [0, 0, 1, 1], [], []>} : vector<98x16xf32>, vector<16x4xf32>, vector<98x4xf32> -> vector<98x4xf32>
    %c0_31 = arith.constant 0 : index
    %c0_32 = arith.constant 0 : index
    %47 = vector.load %arg4[%c0_31, %c0_32] : memref<1x4xf32, #tpu.memory_space<vmem>>, vector<1x4xf32>
    %48 = vector.broadcast %47 : vector<1x4xf32> to vector<98x4xf32>
    %49 = arith.addf %46, %48 : vector<98x4xf32>
    %50 = arith.negf %49 : vector<98x4xf32>
    %51 = math.exp %50 : vector<98x4xf32>
    %cst_33 = arith.constant 1.000000e+00 : f32
    %52 = vector.broadcast %cst_33 : f32 to vector<98x4xf32>
    %53 = arith.addf %52, %51 : vector<98x4xf32>
    %54 = arith.divf %52, %53 : vector<98x4xf32>
    %c0_34 = arith.constant 0 : index
    %c12 = arith.constant 12 : index
    %55 = vector.load %arg5[%c0_34, %c12] : memref<98x16xf32, #tpu.memory_space<vmem>>, vector<98x4xf32>
    tpu.vector_store %arg5[%c0_34, %c12], %54 {strides = array<i32>} : memref<98x16xf32, #tpu.memory_space<vmem>>, vector<98x4xf32>,
    return
  }
}

</mosaic_0001>

<llo_original>
// kernel: forward.4
$region0: #{forward.4}
  #allocation0 [shape = 'u32[]', space=smem, size = 0x4, offset = 0x4, fixed_abs, tag = 'smem constant byte address 0x4 - core index']
  #allocation1 [shape = 'u32[144,128]{1,0:T(1,128)}', space=vmem, size = 0x12000, scoped, tag = 'internal scratch']
  %s0 = inlined_call_operand.vmem [shape: f32[392,9], index: 0, kind: input, shape index: {}]
  %s1 = inlined_call_operand.vmem [shape: f32[9,16], index: 1, kind: input, shape index: {}]
  %s2 = inlined_call_operand.vmem [shape: f32[1,16], index: 2, kind: input, shape index: {}]
  %s3 = inlined_call_operand.vmem [shape: f32[392,16], index: 3, kind: output, shape index: {}]
  %s4 = sld [smem:[#allocation0]]
  $region22: #{forward.4} parent=0
    _
  %s6 = ssub.s32 1, %s4
  %s7 = scalar_select 0, %s6, %s4
  // Predicated region
  $region2: #{forward.4} parent=0 // pred_check
    _
  $region3: #{forward.4} parent=0 // pred_check_branch
    %9 = sbr.rel (0) target = $region5
  $region4: #{forward.4} parent=0 // pred_region
    _
  $region5: #{forward.4} parent=0 // pred_fallthru
    _
  // Predicated region
  $region6: #{forward.4} parent=0 // pred_check
    _
  $region7: #{forward.4} parent=0 // pred_check_branch
    %11 = sbr.rel (0) target = $region9
  $region8: #{forward.4} parent=0 // pred_region
    _
  $region9: #{forward.4} parent=0 // pred_fallthru
    _
  // Predicated region
  $region10: #{forward.4} parent=0 // pred_check
    _
  $region11: #{forward.4} parent=0 // pred_check_branch
    %13 = sbr.rel (0) target = $region13
  $region12: #{forward.4} parent=0 // pred_region
    _
  $region13: #{forward.4} parent=0 // pred_fallthru
    _
  %v14 = vld [vmem:[%s0] sm:$0xff]
  %v15 = vld [vmem:[%s0 + $0x8] sm:$0xff]
  %v16 = vld [vmem:[%s0 + $0x10] sm:$0xff]
  %v17 = vld [vmem:[%s0 + $0x18] sm:$0xff]
  %v18 = vld [vmem:[%s0 + $0x20] sm:$0xff]
  %v19 = vld [vmem:[%s0 + $0x28] sm:$0xff]
  %v20 = vld [vmem:[%s0 + $0x30] sm:$0xff]
  %v21 = vld [vmem:[%s0 + $0x38] sm:$0xff]
  %v22 = vld [vmem:[%s0 + $0x40] sm:$0xff]
  %v23 = vld [vmem:[%s0 + $0x48] sm:$0xff]
  %v24 = vld [vmem:[%s0 + $0x50] sm:$0xff]
  %v25 = vld [vmem:[%s0 + $0x58] sm:$0xff]
  %v26 = vld [vmem:[%s0 + $0x60] sm:$0xff]
  %v27 = vld [vmem:[%s0 + $0x68] sm:$0xff]
  %v28 = vld [vmem:[%s0 + $0x70] sm:$0xff]
  %v29 = vld [vmem:[%s0 + $0x78] sm:$0xff]
  %v30 = vld [vmem:[%s0 + $0x80] sm:$0xff]
  %v31 = vld [vmem:[%s0 + $0x88] sm:$0xff]
  %v32 = vld [vmem:[%s0 + $0x90] sm:$0xff]
  %v33 = vld [vmem:[%s0 + $0x98] sm:$0xff]
  %v34 = vld [vmem:[%s0 + $0xa0] sm:$0xff]
  %v35 = vld [vmem:[%s0 + $0xa8] sm:$0xff]
  %v36 = vld [vmem:[%s0 + $0xb0] sm:$0xff]
  %v37 = vld [vmem:[%s0 + $0xb8] sm:$0xff]
  %v38 = vld [vmem:[%s0 + $0xc0] sm:$0xff]
  %v39 = vld [vmem:[%s0 + $0xc8] sm:$0xff]
  %v40 = vld [vmem:[%s0 + $0xd0] sm:$0xff]
  %v41 = vld [vmem:[%s0 + $0xd8] sm:$0xff]
  %v42 = vld [vmem:[%s0 + $0xe0] sm:$0xff]
  %v43 = vld [vmem:[%s0 + $0xe8] sm:$0xff]
  %v44 = vld [vmem:[%s0 + $0xf0] sm:$0xff]
  %v45 = vld [vmem:[%s0 + $0xf8] sm:$0xff]
  %v46 = vld [vmem:[%s0 + $0x100] sm:$0xff]
  %v47 = vld [vmem:[%s0 + $0x108] sm:$0xff]
  %v48 = vld [vmem:[%s0 + $0x110] sm:$0xff]
  %v49 = vld [vmem:[%s0 + $0x118] sm:$0xff]
  %v50 = vld [vmem:[%s0 + $0x120] sm:$0xff]
  %v51 = vld [vmem:[%s0 + $0x128] sm:$0xff]
  %v52 = vld [vmem:[%s0 + $0x130] sm:$0xff]
  %v53 = vld [vmem:[%s0 + $0x138] sm:$0xff]
  %v54 = vld [vmem:[%s0 + $0x140] sm:$0xff]
  %v55 = vld [vmem:[%s0 + $0x148] sm:$0xff]
  %v56 = vld [vmem:[%s0 + $0x150] sm:$0xff]
  %v57 = vld [vmem:[%s0 + $0x158] sm:$0xff]
  %v58 = vld [vmem:[%s0 + $0x160] sm:$0xff]
  %v59 = vld [vmem:[%s0 + $0x168] sm:$0xff]
  %v60 = vld [vmem:[%s0 + $0x170] sm:$0xff]
  %v61 = vld [vmem:[%s0 + $0x178] sm:$0xff]
  %v62 = vld [vmem:[%s0 + $0x180] sm:$0xff]
  %v63 = vld [vmem:[%s1] sm:$0xff]
  %v64 = vld [vmem:[%s1 + $0x8] sm:$0x1]
  %v65 = vld [vmem:[%s2] sm:$0x1]
  %v67 = vlaneseq
  %v68 = vshrl.u32 %v67, 7
  %v69 = vsub.s32 0, %v68
  %v70 = vrot.slane %v65, %v69
  %vm72 = vcmask 72704
  %v74 = vsel %vm72, %v14, 0
  %v77 = vsel %vm72, %v15, 0
  %v80 = vsel %vm72, %v16, 0
  %v83 = vsel %vm72, %v17, 0
  %v86 = vsel %vm72, %v18, 0
  %v89 = vsel %vm72, %v19, 0
  %v92 = vsel %vm72, %v20, 0
  %v95 = vsel %vm72, %v21, 0
  %v98 = vsel %vm72, %v22, 0
  %v101 = vsel %vm72, %v23, 0
  %v104 = vsel %vm72, %v24, 0
  %v107 = vsel %vm72, %v25, 0
  %v110 = vsel %vm72, %v26, 0
  %v113 = vsel %vm72, %v27, 0
  %v116 = vsel %vm72, %v28, 0
  %v119 = vsel %vm72, %v29, 0
  %v122 = vsel %vm72, %v30, 0
  %v125 = vsel %vm72, %v31, 0
  %v128 = vsel %vm72, %v32, 0
  %v131 = vsel %vm72, %v33, 0
  %v134 = vsel %vm72, %v34, 0
  %v137 = vsel %vm72, %v35, 0
  %v140 = vsel %vm72, %v36, 0
  %v143 = vsel %vm72, %v37, 0
  %v146 = vsel %vm72, %v38, 0
  %v149 = vsel %vm72, %v39, 0
  %v152 = vsel %vm72, %v40, 0
  %v155 = vsel %vm72, %v41, 0
  %v158 = vsel %vm72, %v42, 0
  %v161 = vsel %vm72, %v43, 0
  %v164 = vsel %vm72, %v44, 0
  %v167 = vsel %vm72, %v45, 0
  %v170 = vsel %vm72, %v46, 0
  %v173 = vsel %vm72, %v47, 0
  %v176 = vsel %vm72, %v48, 0
  %v179 = vsel %vm72, %v49, 0
  %v182 = vsel %vm72, %v50, 0
  %v185 = vsel %vm72, %v51, 0
  %v188 = vsel %vm72, %v52, 0
  %v191 = vsel %vm72, %v53, 0
  %v194 = vsel %vm72, %v54, 0
  %v197 = vsel %vm72, %v55, 0
  %v200 = vsel %vm72, %v56, 0
  %v203 = vsel %vm72, %v57, 0
  %v206 = vsel %vm72, %v58, 0
  %v209 = vsel %vm72, %v59, 0
  %v212 = vsel %vm72, %v60, 0
  %v215 = vsel %vm72, %v61, 0
  %v218 = vsel %vm72, %v62, 0
  %vm220 = vcmask 1040384
  %v222 = vsel %vm220, %v64, 0
  %224 = vmatprep.subr.mxu0 0.0
  %225 = vmatpush1.msra.mxu0 %v63
  %226 = vmatprep.subr.mxu0 0.0
  %227 = vmatpush1.msra.mxu0 %v222
  %228 = vmatprep.subr.mxu0 0.0
  %229 = vmatpush1.msra.mxu0 0.0
  %230 = vmatprep.subr.mxu0 0.0
  %231 = vmatpush1.msra.mxu0 0.0
  %232 = vmatprep.subr.mxu0 0.0
  %233 = vmatpush1.msra.mxu0 0.0
  %234 = vmatprep.subr.mxu0 0.0
  %235 = vmatpush1.msra.mxu0 0.0
  %236 = vmatprep.subr.mxu0 0.0
  %237 = vmatpush1.msra.mxu0 0.0
  %238 = vmatprep.subr.mxu0 0.0
  %239 = vmatpush1.msra.mxu0 0.0
  %240 = vmatprep.subr.mxu0 0.0
  %241 = vmatpush1.msra.mxu0 0.0
  %242 = vmatprep.subr.mxu0 0.0
  %243 = vmatpush1.msra.mxu0 0.0
  %244 = vmatprep.subr.mxu0 0.0
  %245 = vmatpush1.msra.mxu0 0.0
  %246 = vmatprep.subr.mxu0 0.0
  %247 = vmatpush1.msra.mxu0 0.0
  %248 = vmatprep.subr.mxu0 0.0
  %249 = vmatpush1.msra.mxu0 0.0
  %250 = vmatprep.subr.mxu0 0.0
  %251 = vmatpush1.msra.mxu0 0.0
  %252 = vmatprep.subr.mxu0 0.0
  %253 = vmatpush1.msra.mxu0 0.0
  %254 = vmatprep.subr.mxu0 0.0
  %255 = vmatpush1.msra.mxu0 0.0
  %256 = vmatprep.subr.mxu0 0.0
  %257 = vmatpush1.msra.mxu0 0.0
  %258 = vmatprep.subr.mxu0 0.0
  %259 = vmatpush1.msra.mxu0 0.0
  %260 = vmatprep.subr.mxu0 0.0
  %261 = vmatpush1.msra.mxu0 0.0
  %262 = vmatprep.subr.mxu0 0.0
  %263 = vmatpush1.msra.mxu0 0.0
  %264 = vmatprep.subr.mxu0 0.0
  %265 = vmatpush1.msra.mxu0 0.0
  %266 = vmatprep.subr.mxu0 0.0
  %267 = vmatpush1.msra.mxu0 0.0
  %268 = vmatprep.subr.mxu0 0.0
  %269 = vmatpush1.msra.mxu0 0.0
  %270 = vmatprep.subr.mxu0 0.0
  %271 = vmatpush1.msra.mxu0 0.0
  %272 = vmatprep.subr.mxu0 0.0
  %273 = vmatpush1.msra.mxu0 0.0
  %274 = vmatprep.subr.mxu0 0.0
  %275 = vmatpush1.msra.mxu0 0.0
  %276 = vmatprep.subr.mxu0 0.0
  %277 = vmatpush1.msra.mxu0 0.0
  %278 = vmatprep.subr.mxu0 0.0
  %279 = vmatpush1.msra.mxu0 0.0
  %280 = vmatprep.subr.mxu0 0.0
  %281 = vmatpush1.msra.mxu0 0.0
  %282 = vmatprep.subr.mxu0 0.0
  %283 = vmatpush1.msra.mxu0 0.0
  %284 = vmatprep.subr.mxu0 0.0
  %285 = vmatpush1.msra.mxu0 0.0
  %286 = vmatprep.subr.mxu0 0.0
  %287 = vmatpush1.msra.mxu0 0.0
  %288 = vmatprep.mubr.f32.mxu0 0.0
  %289 = vmatmul.mubr.f32.gmra.mrb[0].mxu0 %v74
  %v290 = vpop.f32.mrb[0].mxu0
  %v291 = vadd.f32 %v70, %v290
  %v292 = vpop.f32.mrb[0].mxu0
  %293 = vmatprep.mubr.f32.mxu0 0.0
  %294 = vmatmul.mubr.f32.gmra.mrb[0].mxu0 %v77
  %v295 = vpop.f32.mrb[0].mxu0
  %v296 = vadd.f32 %v70, %v295
  %v297 = vpop.f32.mrb[0].mxu0
  %298 = vmatprep.mubr.f32.mxu0 0.0
  %299 = vmatmul.mubr.f32.gmra.mrb[0].mxu0 %v80
  %v300 = vpop.f32.mrb[0].mxu0
  %v301 = vadd.f32 %v70, %v300
  %v302 = vpop.f32.mrb[0].mxu0
  %303 = vmatprep.mubr.f32.mxu0 0.0
  %304 = vmatmul.mubr.f32.gmra.mrb[0].mxu0 %v83
  %v305 = vpop.f32.mrb[0].mxu0
  %v306 = vadd.f32 %v70, %v305
  %v307 = vpop.f32.mrb[0].mxu0
  %308 = vmatprep.mubr.f32.mxu0 0.0
  %309 = vmatmul.mubr.f32.gmra.mrb[0].mxu0 %v86
  %v310 = vpop.f32.mrb[0].mxu0
  %v311 = vadd.f32 %v70, %v310
  %v312 = vpop.f32.mrb[0].mxu0
  %313 = vmatprep.mubr.f32.mxu0 0.0
  %314 = vmatmul.mubr.f32.gmra.mrb[0].mxu0 %v89
  %v315 = vpop.f32.mrb[0].mxu0
  %v316 = vadd.f32 %v70, %v315
  %v317 = vpop.f32.mrb[0].mxu0
  %318 = vmatprep.mubr.f32.mxu0 0.0
  %319 = vmatmul.mubr.f32.gmra.mrb[0].mxu0 %v92
  %v320 = vpop.f32.mrb[0].mxu0
  %v321 = vadd.f32 %v70, %v320
  %v322 = vpop.f32.mrb[0].mxu0
  %323 = vmatprep.mubr.f32.mxu0 0.0
  %324 = vmatmul.mubr.f32.gmra.mrb[0].mxu0 %v95
  %v325 = vpop.f32.mrb[0].mxu0
  %v326 = vadd.f32 %v70, %v325
  %v327 = vpop.f32.mrb[0].mxu0
  %328 = vmatprep.mubr.f32.mxu0 0.0
  %329 = vmatmul.mubr.f32.gmra.mrb[0].mxu0 %v98
  %v330 = vpop.f32.mrb[0].mxu0
  %v331 = vadd.f32 %v70, %v330
  %v332 = vpop.f32.mrb[0].mxu0
  %333 = vmatprep.mubr.f32.mxu0 0.0
  %334 = vmatmul.mubr.f32.gmra.mrb[0].mxu0 %v101
  %v335 = vpop.f32.mrb[0].mxu0
  %v336 = vadd.f32 %v70, %v335
  %v337 = vpop.f32.mrb[0].mxu0
  %338 = vmatprep.mubr.f32.mxu0 0.0
  %339 = vmatmul.mubr.f32.gmra.mrb[0].mxu0 %v104
  %v340 = vpop.f32.mrb[0].mxu0
  %v341 = vadd.f32 %v70, %v340
  %v342 = vpop.f32.mrb[0].mxu0
  %343 = vmatprep.mubr.f32.mxu0 0.0
  %344 = vmatmul.mubr.f32.gmra.mrb[0].mxu0 %v107
  %v345 = vpop.f32.mrb[0].mxu0
  %v346 = vadd.f32 %v70, %v345
  %v347 = vpop.f32.mrb[0].mxu0
  %348 = vmatprep.mubr.f32.mxu0 0.0
  %349 = vmatmul.mubr.f32.gmra.mrb[0].mxu0 %v110
  %v350 = vpop.f32.mrb[0].mxu0
  %v351 = vadd.f32 %v70, %v350
  %v352 = vpop.f32.mrb[0].mxu0
  %353 = vmatprep.mubr.f32.mxu0 0.0
  %354 = vmatmul.mubr.f32.gmra.mrb[0].mxu0 %v113
  %v355 = vpop.f32.mrb[0].mxu0
  %v356 = vadd.f32 %v70, %v355
  %v357 = vpop.f32.mrb[0].mxu0
  %358 = vmatprep.mubr.f32.mxu0 0.0
  %359 = vmatmul.mubr.f32.gmra.mrb[0].mxu0 %v116
  %v360 = vpop.f32.mrb[0].mxu0
  %v361 = vadd.f32 %v70, %v360
  %v362 = vpop.f32.mrb[0].mxu0
  %363 = vmatprep.mubr.f32.mxu0 0.0
  %364 = vmatmul.mubr.f32.gmra.mrb[0].mxu0 %v119
  %v365 = vpop.f32.mrb[0].mxu0
  %v366 = vadd.f32 %v70, %v365
  %v367 = vpop.f32.mrb[0].mxu0
  %368 = vmatprep.mubr.f32.mxu0 0.0
  %369 = vmatmul.mubr.f32.gmra.mrb[0].mxu0 %v122
  %v370 = vpop.f32.mrb[0].mxu0
  %v371 = vadd.f32 %v70, %v370
  %v372 = vpop.f32.mrb[0].mxu0
  %373 = vmatprep.mubr.f32.mxu0 0.0
  %374 = vmatmul.mubr.f32.gmra.mrb[0].mxu0 %v125
  %v375 = vpop.f32.mrb[0].mxu0
  %v376 = vadd.f32 %v70, %v375
  %v377 = vpop.f32.mrb[0].mxu0
  %378 = vmatprep.mubr.f32.mxu0 0.0
  %379 = vmatmul.mubr.f32.gmra.mrb[0].mxu0 %v128
  %v380 = vpop.f32.mrb[0].mxu0
  %v381 = vadd.f32 %v70, %v380
  %v382 = vpop.f32.mrb[0].mxu0
  %383 = vmatprep.mubr.f32.mxu0 0.0
  %384 = vmatmul.mubr.f32.gmra.mrb[0].mxu0 %v131
  %v385 = vpop.f32.mrb[0].mxu0
  %v386 = vadd.f32 %v70, %v385
  %v387 = vpop.f32.mrb[0].mxu0
  %388 = vmatprep.mubr.f32.mxu0 0.0
  %389 = vmatmul.mubr.f32.gmra.mrb[0].mxu0 %v134
  %v390 = vpop.f32.mrb[0].mxu0
  %v391 = vadd.f32 %v70, %v390
  %v392 = vpop.f32.mrb[0].mxu0
  %393 = vmatprep.mubr.f32.mxu0 0.0
  %394 = vmatmul.mubr.f32.gmra.mrb[0].mxu0 %v137
  %v395 = vpop.f32.mrb[0].mxu0
  %v396 = vadd.f32 %v70, %v395
  %v397 = vpop.f32.mrb[0].mxu0
  %398 = vmatprep.mubr.f32.mxu0 0.0
  %399 = vmatmul.mubr.f32.gmra.mrb[0].mxu0 %v140
  %v400 = vpop.f32.mrb[0].mxu0
  %v401 = vadd.f32 %v70, %v400
  %v402 = vpop.f32.mrb[0].mxu0
  %403 = vmatprep.mubr.f32.mxu0 0.0
  %404 = vmatmul.mubr.f32.gmra.mrb[0].mxu0 %v143
  %v405 = vpop.f32.mrb[0].mxu0
  %v406 = vadd.f32 %v70, %v405
  %v407 = vpop.f32.mrb[0].mxu0
  %408 = vmatprep.mubr.f32.mxu0 0.0
  %409 = vmatmul.mubr.f32.gmra.mrb[0].mxu0 %v146
  %v410 = vpop.f32.mrb[0].mxu0
  %v411 = vadd.f32 %v70, %v410
  %v412 = vpop.f32.mrb[0].mxu0
  %413 = vmatprep.mubr.f32.mxu0 0.0
  %414 = vmatmul.mubr.f32.gmra.mrb[0].mxu0 %v149
  %v415 = vpop.f32.mrb[0].mxu0
  %v416 = vadd.f32 %v70, %v415
  %v417 = vpop.f32.mrb[0].mxu0
  %418 = vmatprep.mubr.f32.mxu0 0.0
  %419 = vmatmul.mubr.f32.gmra.mrb[0].mxu0 %v152
  %v420 = vpop.f32.mrb[0].mxu0
  %v421 = vadd.f32 %v70, %v420
  %v422 = vpop.f32.mrb[0].mxu0
  %423 = vmatprep.mubr.f32.mxu0 0.0
  %424 = vmatmul.mubr.f32.gmra.mrb[0].mxu0 %v155
  %v425 = vpop.f32.mrb[0].mxu0
  %v426 = vadd.f32 %v70, %v425
  %v427 = vpop.f32.mrb[0].mxu0
  %428 = vmatprep.mubr.f32.mxu0 0.0
  %429 = vmatmul.mubr.f32.gmra.mrb[0].mxu0 %v158
  %v430 = vpop.f32.mrb[0].mxu0
  %v431 = vadd.f32 %v70, %v430
  %v432 = vpop.f32.mrb[0].mxu0
  %433 = vmatprep.mubr.f32.mxu0 0.0
  %434 = vmatmul.mubr.f32.gmra.mrb[0].mxu0 %v161
  %v435 = vpop.f32.mrb[0].mxu0
  %v436 = vadd.f32 %v70, %v435
  %v437 = vpop.f32.mrb[0].mxu0
  %438 = vmatprep.mubr.f32.mxu0 0.0
  %439 = vmatmul.mubr.f32.gmra.mrb[0].mxu0 %v164
  %v440 = vpop.f32.mrb[0].mxu0
  %v441 = vadd.f32 %v70, %v440
  %v442 = vpop.f32.mrb[0].mxu0
  %443 = vmatprep.mubr.f32.mxu0 0.0
  %444 = vmatmul.mubr.f32.gmra.mrb[0].mxu0 %v167
  %v445 = vpop.f32.mrb[0].mxu0
  %v446 = vadd.f32 %v70, %v445
  %v447 = vpop.f32.mrb[0].mxu0
  %448 = vmatprep.mubr.f32.mxu0 0.0
  %449 = vmatmul.mubr.f32.gmra.mrb[0].mxu0 %v170
  %v450 = vpop.f32.mrb[0].mxu0
  %v451 = vadd.f32 %v70, %v450
  %v452 = vpop.f32.mrb[0].mxu0
  %453 = vmatprep.mubr.f32.mxu0 0.0
  %454 = vmatmul.mubr.f32.gmra.mrb[0].mxu0 %v173
  %v455 = vpop.f32.mrb[0].mxu0
  %v456 = vadd.f32 %v70, %v455
  %v457 = vpop.f32.mrb[0].mxu0
  %458 = vmatprep.mubr.f32.mxu0 0.0
  %459 = vmatmul.mubr.f32.gmra.mrb[0].mxu0 %v176
  %v460 = vpop.f32.mrb[0].mxu0
  %v461 = vadd.f32 %v70, %v460
  %v462 = vpop.f32.mrb[0].mxu0
  %463 = vmatprep.mubr.f32.mxu0 0.0
  %464 = vmatmul.mubr.f32.gmra.mrb[0].mxu0 %v179
  %v465 = vpop.f32.mrb[0].mxu0
  %v466 = vadd.f32 %v70, %v465
  %v467 = vpop.f32.mrb[0].mxu0
  %468 = vmatprep.mubr.f32.mxu0 0.0
  %469 = vmatmul.mubr.f32.gmra.mrb[0].mxu0 %v182
  %v470 = vpop.f32.mrb[0].mxu0
  %v471 = vadd.f32 %v70, %v470
  %v472 = vpop.f32.mrb[0].mxu0
  %473 = vmatprep.mubr.f32.mxu0 0.0
  %474 = vmatmul.mubr.f32.gmra.mrb[0].mxu0 %v185
  %v475 = vpop.f32.mrb[0].mxu0
  %v476 = vadd.f32 %v70, %v475
  %v477 = vpop.f32.mrb[0].mxu0
  %478 = vmatprep.mubr.f32.mxu0 0.0
  %479 = vmatmul.mubr.f32.gmra.mrb[0].mxu0 %v188
  %v480 = vpop.f32.mrb[0].mxu0
  %v481 = vadd.f32 %v70, %v480
  %v482 = vpop.f32.mrb[0].mxu0
  %483 = vmatprep.mubr.f32.mxu0 0.0
  %484 = vmatmul.mubr.f32.gmra.mrb[0].mxu0 %v191
  %v485 = vpop.f32.mrb[0].mxu0
  %v486 = vadd.f32 %v70, %v485
  %v487 = vpop.f32.mrb[0].mxu0
  %488 = vmatprep.mubr.f32.mxu0 0.0
  %489 = vmatmul.mubr.f32.gmra.mrb[0].mxu0 %v194
  %v490 = vpop.f32.mrb[0].mxu0
  %v491 = vadd.f32 %v70, %v490
  %v492 = vpop.f32.mrb[0].mxu0
  %493 = vmatprep.mubr.f32.mxu0 0.0
  %494 = vmatmul.mubr.f32.gmra.mrb[0].mxu0 %v197
  %v495 = vpop.f32.mrb[0].mxu0
  %v496 = vadd.f32 %v70, %v495
  %v497 = vpop.f32.mrb[0].mxu0
  %498 = vmatprep.mubr.f32.mxu0 0.0
  %499 = vmatmul.mubr.f32.gmra.mrb[0].mxu0 %v200
  %v500 = vpop.f32.mrb[0].mxu0
  %v501 = vadd.f32 %v70, %v500
  %v502 = vpop.f32.mrb[0].mxu0
  %503 = vmatprep.mubr.f32.mxu0 0.0
  %504 = vmatmul.mubr.f32.gmra.mrb[0].mxu0 %v203
  %v505 = vpop.f32.mrb[0].mxu0
  %v506 = vadd.f32 %v70, %v505
  %v507 = vpop.f32.mrb[0].mxu0
  %508 = vmatprep.mubr.f32.mxu0 0.0
  %509 = vmatmul.mubr.f32.gmra.mrb[0].mxu0 %v206
  %v510 = vpop.f32.mrb[0].mxu0
  %v511 = vadd.f32 %v70, %v510
  %v512 = vpop.f32.mrb[0].mxu0
  %513 = vmatprep.mubr.f32.mxu0 0.0
  %514 = vmatmul.mubr.f32.gmra.mrb[0].mxu0 %v209
  %v515 = vpop.f32.mrb[0].mxu0
  %v516 = vadd.f32 %v70, %v515
  %v517 = vpop.f32.mrb[0].mxu0
  %518 = vmatprep.mubr.f32.mxu0 0.0
  %519 = vmatmul.mubr.f32.gmra.mrb[0].mxu0 %v212
  %v520 = vpop.f32.mrb[0].mxu0
  %v521 = vadd.f32 %v70, %v520
  %v522 = vpop.f32.mrb[0].mxu0
  %523 = vmatprep.mubr.f32.mxu0 0.0
  %524 = vmatmul.mubr.f32.gmra.mrb[0].mxu0 %v215
  %v525 = vpop.f32.mrb[0].mxu0
  %v526 = vadd.f32 %v70, %v525
  %v527 = vpop.f32.mrb[0].mxu0
  %528 = vmatprep.mubr.f32.mxu0 0.0
  %529 = vmatmul.mubr.f32.gmra.mrb[0].mxu0 %v218
  %v530 = vpop.f32.mrb[0].mxu0
  %v531 = vadd.f32 %v70, %v530
  %v532 = vpop.f32.mrb[0].mxu0
  %533 = vdwg.mxu0
  %v534 = vmax.f32 %v291, 0.0
  %v535 = vmax.f32 %v296, 0.0
  %v536 = vmax.f32 %v301, 0.0
  %v537 = vmax.f32 %v306, 0.0
  %v538 = vmax.f32 %v311, 0.0
  %v539 = vmax.f32 %v316, 0.0
  %v540 = vmax.f32 %v321, 0.0
  %v541 = vmax.f32 %v326, 0.0
  %v542 = vmax.f32 %v331, 0.0
  %v543 = vmax.f32 %v336, 0.0
  %v544 = vmax.f32 %v341, 0.0
  %v545 = vmax.f32 %v346, 0.0
  %v546 = vmax.f32 %v351, 0.0
  %v547 = vmax.f32 %v356, 0.0
  %v548 = vmax.f32 %v361, 0.0
  %v549 = vmax.f32 %v366, 0.0
  %v550 = vmax.f32 %v371, 0.0
  %v551 = vmax.f32 %v376, 0.0
  %v552 = vmax.f32 %v381, 0.0
  %v553 = vmax.f32 %v386, 0.0
  %v554 = vmax.f32 %v391, 0.0
  %v555 = vmax.f32 %v396, 0.0
  %v556 = vmax.f32 %v401, 0.0
  %v557 = vmax.f32 %v406, 0.0
  %v558 = vmax.f32 %v411, 0.0
  %v559 = vmax.f32 %v416, 0.0
  %v560 = vmax.f32 %v421, 0.0
  %v561 = vmax.f32 %v426, 0.0
  %v562 = vmax.f32 %v431, 0.0
  %v563 = vmax.f32 %v436, 0.0
  %v564 = vmax.f32 %v441, 0.0
  %v565 = vmax.f32 %v446, 0.0
  %v566 = vmax.f32 %v451, 0.0
  %v567 = vmax.f32 %v456, 0.0
  %v568 = vmax.f32 %v461, 0.0
  %v569 = vmax.f32 %v466, 0.0
  %v570 = vmax.f32 %v471, 0.0
  %v571 = vmax.f32 %v476, 0.0
  %v572 = vmax.f32 %v481, 0.0
  %v573 = vmax.f32 %v486, 0.0
  %v574 = vmax.f32 %v491, 0.0
  %v575 = vmax.f32 %v496, 0.0
  %v576 = vmax.f32 %v501, 0.0
  %v577 = vmax.f32 %v506, 0.0
  %v578 = vmax.f32 %v511, 0.0
  %v579 = vmax.f32 %v516, 0.0
  %v580 = vmax.f32 %v521, 0.0
  %v581 = vmax.f32 %v526, 0.0
  %v582 = vmax.f32 %v531, 0.0
  %vm583 = vcmask 130048
  %584 = vst.msk [vmem:[%s3] sm:$0xff] %vm583, %v534
  %585 = vst.msk [vmem:[%s3 + $0x8] sm:$0xff] %vm583, %v535
  %586 = vst.msk [vmem:[%s3 + $0x10] sm:$0xff] %vm583, %v536
  %587 = vst.msk [vmem:[%s3 + $0x18] sm:$0xff] %vm583, %v537
  %588 = vst.msk [vmem:[%s3 + $0x20] sm:$0xff] %vm583, %v538
  %589 = vst.msk [vmem:[%s3 + $0x28] sm:$0xff] %vm583, %v539
  %590 = vst.msk [vmem:[%s3 + $0x30] sm:$0xff] %vm583, %v540
  %591 = vst.msk [vmem:[%s3 + $0x38] sm:$0xff] %vm583, %v541
  %592 = vst.msk [vmem:[%s3 + $0x40] sm:$0xff] %vm583, %v542
  %593 = vst.msk [vmem:[%s3 + $0x48] sm:$0xff] %vm583, %v543
  %594 = vst.msk [vmem:[%s3 + $0x50] sm:$0xff] %vm583, %v544
  %595 = vst.msk [vmem:[%s3 + $0x58] sm:$0xff] %vm583, %v545
  %596 = vst.msk [vmem:[%s3 + $0x60] sm:$0xff] %vm583, %v546
  %597 = vst.msk [vmem:[%s3 + $0x68] sm:$0xff] %vm583, %v547
  %598 = vst.msk [vmem:[%s3 + $0x70] sm:$0xff] %vm583, %v548
  %599 = vst.msk [vmem:[%s3 + $0x78] sm:$0xff] %vm583, %v549
  %600 = vst.msk [vmem:[%s3 + $0x80] sm:$0xff] %vm583, %v550
  %601 = vst.msk [vmem:[%s3 + $0x88] sm:$0xff] %vm583, %v551
  %602 = vst.msk [vmem:[%s3 + $0x90] sm:$0xff] %vm583, %v552
  %603 = vst.msk [vmem:[%s3 + $0x98] sm:$0xff] %vm583, %v553
  %604 = vst.msk [vmem:[%s3 + $0xa0] sm:$0xff] %vm583, %v554
  %605 = vst.msk [vmem:[%s3 + $0xa8] sm:$0xff] %vm583, %v555
  %606 = vst.msk [vmem:[%s3 + $0xb0] sm:$0xff] %vm583, %v556
  %607 = vst.msk [vmem:[%s3 + $0xb8] sm:$0xff] %vm583, %v557
  %608 = vst.msk [vmem:[%s3 + $0xc0] sm:$0xff] %vm583, %v558
  %609 = vst.msk [vmem:[%s3 + $0xc8] sm:$0xff] %vm583, %v559
  %610 = vst.msk [vmem:[%s3 + $0xd0] sm:$0xff] %vm583, %v560
  %611 = vst.msk [vmem:[%s3 + $0xd8] sm:$0xff] %vm583, %v561
  %612 = vst.msk [vmem:[%s3 + $0xe0] sm:$0xff] %vm583, %v562
  %613 = vst.msk [vmem:[%s3 + $0xe8] sm:$0xff] %vm583, %v563
  %614 = vst.msk [vmem:[%s3 + $0xf0] sm:$0xff] %vm583, %v564
  %615 = vst.msk [vmem:[%s3 + $0xf8] sm:$0xff] %vm583, %v565
  %616 = vst.msk [vmem:[%s3 + $0x100] sm:$0xff] %vm583, %v566
  %617 = vst.msk [vmem:[%s3 + $0x108] sm:$0xff] %vm583, %v567
  %618 = vst.msk [vmem:[%s3 + $0x110] sm:$0xff] %vm583, %v568
  %619 = vst.msk [vmem:[%s3 + $0x118] sm:$0xff] %vm583, %v569
  %620 = vst.msk [vmem:[%s3 + $0x120] sm:$0xff] %vm583, %v570
  %621 = vst.msk [vmem:[%s3 + $0x128] sm:$0xff] %vm583, %v571
  %622 = vst.msk [vmem:[%s3 + $0x130] sm:$0xff] %vm583, %v572
  %623 = vst.msk [vmem:[%s3 + $0x138] sm:$0xff] %vm583, %v573
  %624 = vst.msk [vmem:[%s3 + $0x140] sm:$0xff] %vm583, %v574
  %625 = vst.msk [vmem:[%s3 + $0x148] sm:$0xff] %vm583, %v575
  %626 = vst.msk [vmem:[%s3 + $0x150] sm:$0xff] %vm583, %v576
  %627 = vst.msk [vmem:[%s3 + $0x158] sm:$0xff] %vm583, %v577
  %628 = vst.msk [vmem:[%s3 + $0x160] sm:$0xff] %vm583, %v578
  %629 = vst.msk [vmem:[%s3 + $0x168] sm:$0xff] %vm583, %v579
  %630 = vst.msk [vmem:[%s3 + $0x170] sm:$0xff] %vm583, %v580
  %631 = vst.msk [vmem:[%s3 + $0x178] sm:$0xff] %vm583, %v581
  %632 = vst.msk [vmem:[%s3 + $0x180] sm:$0xff] %vm583, %v582
  // Predicated region
  $region14: #{forward.4} parent=0 // pred_check
    _
  $region15: #{forward.4} parent=0 // pred_check_branch
    %634 = sbr.rel (0) target = $region17
  $region16: #{forward.4} parent=0 // pred_region
    _
  $region17: #{forward.4} parent=0 // pred_fallthru
    _
  // Predicated region
  $region18: #{forward.4} parent=0 // pred_check
    _
  $region19: #{forward.4} parent=0 // pred_check_branch
    %636 = sbr.rel (0) target = $region21
  $region20: #{forward.4} parent=0 // pred_region
    _
  $region21: #{forward.4} parent=0 // pred_fallthru
    _

// kernel: forward.5
$region0: #{forward.5}
  #allocation0 [shape = 'u32[]', space=smem, size = 0x4, offset = 0x4, fixed_abs, tag = 'smem constant byte address 0x4 - core index']
  #allocation1 [shape = 'u32[144,128]{1,0:T(1,128)}', space=vmem, size = 0x12000, scoped, tag = 'internal scratch']
  %s0 = inlined_call_operand.vmem [shape: f32[98,144], index: 0, kind: input, shape index: {}]
  %s1 = inlined_call_operand.vmem [shape: f32[144,32], index: 1, kind: input, shape index: {}]
  %s2 = inlined_call_operand.vmem [shape: f32[1,32], index: 2, kind: input, shape index: {}]
  %s3 = inlined_call_operand.vmem [shape: f32[98,32], index: 3, kind: output, shape index: {}]
  %s4 = sld [smem:[#allocation0]]
  $region22: #{forward.5} parent=0
    _
  %s6 = ssub.s32 1, %s4
  %s7 = scalar_select 0, %s6, %s4
  // Predicated region
  $region2: #{forward.5} parent=0 // pred_check
    _
  $region3: #{forward.5} parent=0 // pred_check_branch
    %9 = sbr.rel (0) target = $region5
  $region4: #{forward.5} parent=0 // pred_region
    _
  $region5: #{forward.5} parent=0 // pred_fallthru
    _
  // Predicated region
  $region6: #{forward.5} parent=0 // pred_check
    _
  $region7: #{forward.5} parent=0 // pred_check_branch
    %11 = sbr.rel (0) target = $region9
  $region8: #{forward.5} parent=0 // pred_region
    _
  $region9: #{forward.5} parent=0 // pred_fallthru
    _
  // Predicated region
  $region10: #{forward.5} parent=0 // pred_check
    _
  $region11: #{forward.5} parent=0 // pred_check_branch
    %13 = sbr.rel (0) target = $region13
  $region12: #{forward.5} parent=0 // pred_region
    _
  $region13: #{forward.5} parent=0 // pred_fallthru
    _
  %v14 = vld [vmem:[%s0] sm:$0xff]
  %v15 = vld [vmem:[%s0 + $0x8] sm:$0xff]
  %v16 = vld [vmem:[%s0 + $0x10] sm:$0xff]
  %v17 = vld [vmem:[%s0 + $0x18] sm:$0xff]
  %v18 = vld [vmem:[%s0 + $0x20] sm:$0xff]
  %v19 = vld [vmem:[%s0 + $0x28] sm:$0xff]
  %v20 = vld [vmem:[%s0 + $0x30] sm:$0xff]
  %v21 = vld [vmem:[%s0 + $0x38] sm:$0xff]
  %v22 = vld [vmem:[%s0 + $0x40] sm:$0xff]
  %v23 = vld [vmem:[%s0 + $0x48] sm:$0xff]
  %v24 = vld [vmem:[%s0 + $0x50] sm:$0xff]
  %v25 = vld [vmem:[%s0 + $0x58] sm:$0xff]
  %v26 = vld [vmem:[%s0 + $0x60] sm:$0xff]
  %v27 = vld [vmem:[%s0 + $0x68] sm:$0xff]
  %v28 = vld [vmem:[%s0 + $0x70] sm:$0xff]
  %v29 = vld [vmem:[%s0 + $0x78] sm:$0xff]
  %v30 = vld [vmem:[%s0 + $0x80] sm:$0xff]
  %v31 = vld [vmem:[%s0 + $0x88] sm:$0xff]
  %v32 = vld [vmem:[%s0 + $0x90] sm:$0xff]
  %v33 = vld [vmem:[%s0 + $0x98] sm:$0xff]
  %v34 = vld [vmem:[%s0 + $0xa0] sm:$0xff]
  %v35 = vld [vmem:[%s0 + $0xa8] sm:$0xff]
  %v36 = vld [vmem:[%s0 + $0xb0] sm:$0xff]
  %v37 = vld [vmem:[%s0 + $0xb8] sm:$0xff]
  %v38 = vld [vmem:[%s0 + $0xc0] sm:$0x3]
  %v39 = vld [vmem:[%s0 + $0xc8] sm:$0x3]
  %v40 = vld [vmem:[%s1] sm:$0xff]
  %v41 = vld [vmem:[%s1 + $0x8] sm:$0xff]
  %v42 = vld [vmem:[%s1 + $0x10] sm:$0xff]
  %v43 = vld [vmem:[%s1 + $0x18] sm:$0xff]
  %v44 = vld [vmem:[%s1 + $0x20] sm:$0xff]
  %v45 = vld [vmem:[%s1 + $0x28] sm:$0xff]
  %v46 = vld [vmem:[%s1 + $0x30] sm:$0xff]
  %v47 = vld [vmem:[%s1 + $0x38] sm:$0xff]
  %v48 = vld [vmem:[%s1 + $0x40] sm:$0xff]
  %v49 = vld [vmem:[%s1 + $0x48] sm:$0xff]
  %v50 = vld [vmem:[%s1 + $0x50] sm:$0xff]
  %v51 = vld [vmem:[%s1 + $0x58] sm:$0xff]
  %v52 = vld [vmem:[%s1 + $0x60] sm:$0xff]
  %v53 = vld [vmem:[%s1 + $0x68] sm:$0xff]
  %v54 = vld [vmem:[%s1 + $0x70] sm:$0xff]
  %v55 = vld [vmem:[%s1 + $0x78] sm:$0xff]
  %v56 = vld [vmem:[%s1 + $0x80] sm:$0xff]
  %v57 = vld [vmem:[%s1 + $0x88] sm:$0xff]
  %v58 = vld [vmem:[%s2] sm:$0x1]
  %v60 = vlaneseq
  %v61 = vshrl.u32 %v60, 7
  %v62 = vsub.s32 0, %v61
  %v63 = vrot.slane %v58, %v62
  %vm65 = vcmask 130048
  %v67 = vsel %vm65, %v15, 0
  %v70 = vsel %vm65, %v17, 0
  %v73 = vsel %vm65, %v19, 0
  %v76 = vsel %vm65, %v21, 0
  %v79 = vsel %vm65, %v23, 0
  %v82 = vsel %vm65, %v25, 0
  %v85 = vsel %vm65, %v27, 0
  %v88 = vsel %vm65, %v29, 0
  %v91 = vsel %vm65, %v31, 0
  %v94 = vsel %vm65, %v33, 0
  %v97 = vsel %vm65, %v35, 0
  %v100 = vsel %vm65, %v37, 0
  %v103 = vsel %vm65, %v39, 0
  %105 = vmatprep.subr.mxu0 0.0
  %106 = vmatpush1.msra.mxu0 %v40
  %107 = vmatprep.subr.mxu0 0.0
  %108 = vmatpush1.msra.mxu0 %v41
  %109 = vmatprep.subr.mxu0 0.0
  %110 = vmatpush1.msra.mxu0 %v42
  %111 = vmatprep.subr.mxu0 0.0
  %112 = vmatpush1.msra.mxu0 %v43
  %113 = vmatprep.subr.mxu0 0.0
  %114 = vmatpush1.msra.mxu0 %v44
  %115 = vmatprep.subr.mxu0 0.0
  %116 = vmatpush1.msra.mxu0 %v45
  %117 = vmatprep.subr.mxu0 0.0
  %118 = vmatpush1.msra.mxu0 %v46
  %119 = vmatprep.subr.mxu0 0.0
  %120 = vmatpush1.msra.mxu0 %v47
  %121 = vmatprep.subr.mxu0 0.0
  %122 = vmatpush1.msra.mxu0 %v48
  %123 = vmatprep.subr.mxu0 0.0
  %124 = vmatpush1.msra.mxu0 %v49
  %125 = vmatprep.subr.mxu0 0.0
  %126 = vmatpush1.msra.mxu0 %v50
  %127 = vmatprep.subr.mxu0 0.0
  %128 = vmatpush1.msra.mxu0 %v51
  %129 = vmatprep.subr.mxu0 0.0
  %130 = vmatpush1.msra.mxu0 %v52
  %131 = vmatprep.subr.mxu0 0.0
  %132 = vmatpush1.msra.mxu0 %v53
  %133 = vmatprep.subr.mxu0 0.0
  %134 = vmatpush1.msra.mxu0 %v54
  %135 = vmatprep.subr.mxu0 0.0
  %136 = vmatpush1.msra.mxu0 %v55
  %137 = vmatprep.subr.mxu0 0.0
  %138 = vmatpush1.msra.mxu0 %v56
  %139 = vmatprep.subr.mxu0 0.0
  %140 = vmatpush1.msra.mxu0 %v57
  %141 = vmatprep.subr.mxu0 0.0
  %142 = vmatpush1.msra.mxu0 0.0
  %143 = vmatprep.subr.mxu0 0.0
  %144 = vmatpush1.msra.mxu0 0.0
  %145 = vmatprep.subr.mxu0 0.0
  %146 = vmatpush1.msra.mxu0 0.0
  %147 = vmatprep.subr.mxu0 0.0
  %148 = vmatpush1.msra.mxu0 0.0
  %149 = vmatprep.subr.mxu0 0.0
  %150 = vmatpush1.msra.mxu0 0.0
  %151 = vmatprep.subr.mxu0 0.0
  %152 = vmatpush1.msra.mxu0 0.0
  %153 = vmatprep.subr.mxu0 0.0
  %154 = vmatpush1.msra.mxu0 0.0
  %155 = vmatprep.subr.mxu0 0.0
  %156 = vmatpush1.msra.mxu0 0.0
  %157 = vmatprep.subr.mxu0 0.0
  %158 = vmatpush1.msra.mxu0 0.0
  %159 = vmatprep.subr.mxu0 0.0
  %160 = vmatpush1.msra.mxu0 0.0
  %161 = vmatprep.subr.mxu0 0.0
  %162 = vmatpush1.msra.mxu0 0.0
  %163 = vmatprep.subr.mxu0 0.0
  %164 = vmatpush1.msra.mxu0 0.0
  %165 = vmatprep.subr.mxu0 0.0
  %166 = vmatpush1.msra.mxu0 0.0
  %167 = vmatprep.subr.mxu0 0.0
  %168 = vmatpush1.msra.mxu0 0.0
  %169 = vmatprep.mubr.f32.mxu0 %v67
  %170 = vmatmul.mubr.f32.gmra.mrb[0].mxu0 %v14
  %v171 = vpop.f32.mrb[0].mxu0
  %v172 = vadd.f32 %v63, %v171
  %v173 = vpop.f32.mrb[0].mxu0
  %174 = vmatprep.mubr.f32.mxu0 %v70
  %175 = vmatmul.mubr.f32.gmra.mrb[0].mxu0 %v16
  %v176 = vpop.f32.mrb[0].mxu0
  %v177 = vadd.f32 %v63, %v176
  %v178 = vpop.f32.mrb[0].mxu0
  %179 = vmatprep.mubr.f32.mxu0 %v73
  %180 = vmatmul.mubr.f32.gmra.mrb[0].mxu0 %v18
  %v181 = vpop.f32.mrb[0].mxu0
  %v182 = vadd.f32 %v63, %v181
  %v183 = vpop.f32.mrb[0].mxu0
  %184 = vmatprep.mubr.f32.mxu0 %v76
  %185 = vmatmul.mubr.f32.gmra.mrb[0].mxu0 %v20
  %v186 = vpop.f32.mrb[0].mxu0
  %v187 = vadd.f32 %v63, %v186
  %v188 = vpop.f32.mrb[0].mxu0
  %189 = vmatprep.mubr.f32.mxu0 %v79
  %190 = vmatmul.mubr.f32.gmra.mrb[0].mxu0 %v22
  %v191 = vpop.f32.mrb[0].mxu0
  %v192 = vadd.f32 %v63, %v191
  %v193 = vpop.f32.mrb[0].mxu0
  %194 = vmatprep.mubr.f32.mxu0 %v82
  %195 = vmatmul.mubr.f32.gmra.mrb[0].mxu0 %v24
  %v196 = vpop.f32.mrb[0].mxu0
  %v197 = vadd.f32 %v63, %v196
  %v198 = vpop.f32.mrb[0].mxu0
  %199 = vmatprep.mubr.f32.mxu0 %v85
  %200 = vmatmul.mubr.f32.gmra.mrb[0].mxu0 %v26
  %v201 = vpop.f32.mrb[0].mxu0
  %v202 = vadd.f32 %v63, %v201
  %v203 = vpop.f32.mrb[0].mxu0
  %204 = vmatprep.mubr.f32.mxu0 %v88
  %205 = vmatmul.mubr.f32.gmra.mrb[0].mxu0 %v28
  %v206 = vpop.f32.mrb[0].mxu0
  %v207 = vadd.f32 %v63, %v206
  %v208 = vpop.f32.mrb[0].mxu0
  %209 = vmatprep.mubr.f32.mxu0 %v91
  %210 = vmatmul.mubr.f32.gmra.mrb[0].mxu0 %v30
  %v211 = vpop.f32.mrb[0].mxu0
  %v212 = vadd.f32 %v63, %v211
  %v213 = vpop.f32.mrb[0].mxu0
  %214 = vmatprep.mubr.f32.mxu0 %v94
  %215 = vmatmul.mubr.f32.gmra.mrb[0].mxu0 %v32
  %v216 = vpop.f32.mrb[0].mxu0
  %v217 = vadd.f32 %v63, %v216
  %v218 = vpop.f32.mrb[0].mxu0
  %219 = vmatprep.mubr.f32.mxu0 %v97
  %220 = vmatmul.mubr.f32.gmra.mrb[0].mxu0 %v34
  %v221 = vpop.f32.mrb[0].mxu0
  %v222 = vadd.f32 %v63, %v221
  %v223 = vpop.f32.mrb[0].mxu0
  %224 = vmatprep.mubr.f32.mxu0 %v100
  %225 = vmatmul.mubr.f32.gmra.mrb[0].mxu0 %v36
  %v226 = vpop.f32.mrb[0].mxu0
  %v227 = vadd.f32 %v63, %v226
  %v228 = vpop.f32.mrb[0].mxu0
  %229 = vmatprep.mubr.f32.mxu0 %v103
  %230 = vmatmul.mubr.f32.gmra.mrb[0].mxu0 %v38
  %v231 = vpop.f32.mrb[0].mxu0
  %v232 = vadd.f32 %v63, %v231
  %v233 = vpop.f32.mrb[0].mxu0
  %234 = vdwg.mxu0
  %v235 = vmax.f32 %v172, 0.0
  %v236 = vmax.f32 %v177, 0.0
  %v237 = vmax.f32 %v182, 0.0
  %v238 = vmax.f32 %v187, 0.0
  %v239 = vmax.f32 %v192, 0.0
  %v240 = vmax.f32 %v197, 0.0
  %v241 = vmax.f32 %v202, 0.0
  %v242 = vmax.f32 %v207, 0.0
  %v243 = vmax.f32 %v212, 0.0
  %v244 = vmax.f32 %v217, 0.0
  %v245 = vmax.f32 %v222, 0.0
  %v246 = vmax.f32 %v227, 0.0
  %v247 = vmax.f32 %v232, 0.0
  %vm248 = vcmask 261120
  %249 = vst.msk [vmem:[%s3] sm:$0xff] %vm248, %v235
  %250 = vst.msk [vmem:[%s3 + $0x8] sm:$0xff] %vm248, %v236
  %251 = vst.msk [vmem:[%s3 + $0x10] sm:$0xff] %vm248, %v237
  %252 = vst.msk [vmem:[%s3 + $0x18] sm:$0xff] %vm248, %v238
  %253 = vst.msk [vmem:[%s3 + $0x20] sm:$0xff] %vm248, %v239
  %254 = vst.msk [vmem:[%s3 + $0x28] sm:$0xff] %vm248, %v240
  %255 = vst.msk [vmem:[%s3 + $0x30] sm:$0xff] %vm248, %v241
  %256 = vst.msk [vmem:[%s3 + $0x38] sm:$0xff] %vm248, %v242
  %257 = vst.msk [vmem:[%s3 + $0x40] sm:$0xff] %vm248, %v243
  %258 = vst.msk [vmem:[%s3 + $0x48] sm:$0xff] %vm248, %v244
  %259 = vst.msk [vmem:[%s3 + $0x50] sm:$0xff] %vm248, %v245
  %260 = vst.msk [vmem:[%s3 + $0x58] sm:$0xff] %vm248, %v246
  %vm261 = vcmask 254976
  %262 = vst.msk [vmem:[%s3 + $0x60] sm:$0x3] %vm261, %v247
  // Predicated region
  $region14: #{forward.5} parent=0 // pred_check
    _
  $region15: #{forward.5} parent=0 // pred_check_branch
    %264 = sbr.rel (0) target = $region17
  $region16: #{forward.5} parent=0 // pred_region
    _
  $region17: #{forward.5} parent=0 // pred_fallthru
    _
  // Predicated region
  $region18: #{forward.5} parent=0 // pred_check
    _
  $region19: #{forward.5} parent=0 // pred_check_branch
    %266 = sbr.rel (0) target = $region21
  $region20: #{forward.5} parent=0 // pred_region
    _
  $region21: #{forward.5} parent=0 // pred_fallthru
    _

// kernel: forward.7
$region0: #{forward.7}
  #allocation0 [shape = 'u32[]', space=smem, size = 0x4, offset = 0x4, fixed_abs, tag = 'smem constant byte address 0x4 - core index']
  #allocation1 [shape = 'u32[144,128]{1,0:T(1,128)}', space=vmem, size = 0x12000, scoped, tag = 'internal scratch']
  %s0 = inlined_call_operand.vmem [shape: f32[98,32], index: 0, kind: input, shape index: {}]
  %s1 = inlined_call_operand.vmem [shape: f32[32,64], index: 1, kind: input, shape index: {}]
  %s2 = inlined_call_operand.vmem [shape: f32[1,64], index: 2, kind: input, shape index: {}]
  %s3 = inlined_call_operand.vmem [shape: f32[16,4], index: 3, kind: input, shape index: {}]
  %s4 = inlined_call_operand.vmem [shape: f32[1,4], index: 4, kind: input, shape index: {}]
  %s5 = inlined_call_operand.vmem [shape: f32[98,16], index: 5, kind: output, shape index: {}]
  %s6 = sld [smem:[#allocation0]]
  $region30: #{forward.7} parent=0
    _
  %s8 = ssub.s32 1, %s6
  %s9 = scalar_select 0, %s8, %s6
  // Predicated region
  $region2: #{forward.7} parent=0 // pred_check
    _
  $region3: #{forward.7} parent=0 // pred_check_branch
    %11 = sbr.rel (0) target = $region5
  $region4: #{forward.7} parent=0 // pred_region
    _
  $region5: #{forward.7} parent=0 // pred_fallthru
    _
  // Predicated region
  $region6: #{forward.7} parent=0 // pred_check
    _
  $region7: #{forward.7} parent=0 // pred_check_branch
    %13 = sbr.rel (0) target = $region9
  $region8: #{forward.7} parent=0 // pred_region
    _
  $region9: #{forward.7} parent=0 // pred_fallthru
    _
  // Predicated region
  $region10: #{forward.7} parent=0 // pred_check
    _
  $region11: #{forward.7} parent=0 // pred_check_branch
    %15 = sbr.rel (0) target = $region13
  $region12: #{forward.7} parent=0 // pred_region
    _
  $region13: #{forward.7} parent=0 // pred_fallthru
    _
  // Predicated region
  $region14: #{forward.7} parent=0 // pred_check
    _
  $region15: #{forward.7} parent=0 // pred_check_branch
    %17 = sbr.rel (0) target = $region17
  $region16: #{forward.7} parent=0 // pred_region
    _
  $region17: #{forward.7} parent=0 // pred_fallthru
    _
  // Predicated region
  $region18: #{forward.7} parent=0 // pred_check
    _
  $region19: #{forward.7} parent=0 // pred_check_branch
    %19 = sbr.rel (0) target = $region21
  $region20: #{forward.7} parent=0 // pred_region
    _
  $region21: #{forward.7} parent=0 // pred_fallthru
    _
  %v20 = vld [vmem:[%s0] sm:$0xff]
  %v21 = vld [vmem:[%s0 + $0x8] sm:$0xff]
  %v22 = vld [vmem:[%s0 + $0x10] sm:$0xff]
  %v23 = vld [vmem:[%s0 + $0x18] sm:$0xff]
  %v24 = vld [vmem:[%s0 + $0x20] sm:$0xff]
  %v25 = vld [vmem:[%s0 + $0x28] sm:$0xff]
  %v26 = vld [vmem:[%s0 + $0x30] sm:$0xff]
  %v27 = vld [vmem:[%s0 + $0x38] sm:$0xff]
  %v28 = vld [vmem:[%s0 + $0x40] sm:$0xff]
  %v29 = vld [vmem:[%s0 + $0x48] sm:$0xff]
  %v30 = vld [vmem:[%s0 + $0x50] sm:$0xff]
  %v31 = vld [vmem:[%s0 + $0x58] sm:$0xff]
  %v32 = vld [vmem:[%s0 + $0x60] sm:$0x3]
  %v33 = vld [vmem:[%s1] sm:$0xff]
  %v34 = vld [vmem:[%s1 + $0x8] sm:$0xff]
  %v35 = vld [vmem:[%s1 + $0x10] sm:$0xff]
  %v36 = vld [vmem:[%s1 + $0x18] sm:$0xff]
  %v37 = vld [vmem:[%s2] sm:$0x1]
  %v39 = vlaneseq
  %v40 = vshrl.u32 %v39, 7
  %v41 = vsub.s32 0, %v40
  %v42 = vrot.slane %v37, %v41
  %vm44 = vcmask 261120
  %v46 = vsel %vm44, %v20, 0
  %v49 = vsel %vm44, %v21, 0
  %v52 = vsel %vm44, %v22, 0
  %v55 = vsel %vm44, %v23, 0
  %v58 = vsel %vm44, %v24, 0
  %v61 = vsel %vm44, %v25, 0
  %v64 = vsel %vm44, %v26, 0
  %v67 = vsel %vm44, %v27, 0
  %v70 = vsel %vm44, %v28, 0
  %v73 = vsel %vm44, %v29, 0
  %v76 = vsel %vm44, %v30, 0
  %v79 = vsel %vm44, %v31, 0
  %v82 = vsel %vm44, %v32, 0
  %84 = vmatprep.subr.mxu0 0.0
  %85 = vmatpush1.msra.mxu0 %v33
  %86 = vmatprep.subr.mxu0 0.0
  %87 = vmatpush1.msra.mxu0 %v34
  %88 = vmatprep.subr.mxu0 0.0
  %89 = vmatpush1.msra.mxu0 %v35
  %90 = vmatprep.subr.mxu0 0.0
  %91 = vmatpush1.msra.mxu0 %v36
  %92 = vmatprep.subr.mxu0 0.0
  %93 = vmatpush1.msra.mxu0 0.0
  %94 = vmatprep.subr.mxu0 0.0
  %95 = vmatpush1.msra.mxu0 0.0
  %96 = vmatprep.subr.mxu0 0.0
  %97 = vmatpush1.msra.mxu0 0.0
  %98 = vmatprep.subr.mxu0 0.0
  %99 = vmatpush1.msra.mxu0 0.0
  %100 = vmatprep.subr.mxu0 0.0
  %101 = vmatpush1.msra.mxu0 0.0
  %102 = vmatprep.subr.mxu0 0.0
  %103 = vmatpush1.msra.mxu0 0.0
  %104 = vmatprep.subr.mxu0 0.0
  %105 = vmatpush1.msra.mxu0 0.0
  %106 = vmatprep.subr.mxu0 0.0
  %107 = vmatpush1.msra.mxu0 0.0
  %108 = vmatprep.subr.mxu0 0.0
  %109 = vmatpush1.msra.mxu0 0.0
  %110 = vmatprep.subr.mxu0 0.0
  %111 = vmatpush1.msra.mxu0 0.0
  %112 = vmatprep.subr.mxu0 0.0
  %113 = vmatpush1.msra.mxu0 0.0
  %114 = vmatprep.subr.mxu0 0.0
  %115 = vmatpush1.msra.mxu0 0.0
  %116 = vmatprep.subr.mxu0 0.0
  %117 = vmatpush1.msra.mxu0 0.0
  %118 = vmatprep.subr.mxu0 0.0
  %119 = vmatpush1.msra.mxu0 0.0
  %120 = vmatprep.subr.mxu0 0.0
  %121 = vmatpush1.msra.mxu0 0.0
  %122 = vmatprep.subr.mxu0 0.0
  %123 = vmatpush1.msra.mxu0 0.0
  %124 = vmatprep.subr.mxu0 0.0
  %125 = vmatpush1.msra.mxu0 0.0
  %126 = vmatprep.subr.mxu0 0.0
  %127 = vmatpush1.msra.mxu0 0.0
  %128 = vmatprep.subr.mxu0 0.0
  %129 = vmatpush1.msra.mxu0 0.0
  %130 = vmatprep.subr.mxu0 0.0
  %131 = vmatpush1.msra.mxu0 0.0
  %132 = vmatprep.subr.mxu0 0.0
  %133 = vmatpush1.msra.mxu0 0.0
  %134 = vmatprep.subr.mxu0 0.0
  %135 = vmatpush1.msra.mxu0 0.0
  %136 = vmatprep.subr.mxu0 0.0
  %137 = vmatpush1.msra.mxu0 0.0
  %138 = vmatprep.subr.mxu0 0.0
  %139 = vmatpush1.msra.mxu0 0.0
  %140 = vmatprep.subr.mxu0 0.0
  %141 = vmatpush1.msra.mxu0 0.0
  %142 = vmatprep.subr.mxu0 0.0
  %143 = vmatpush1.msra.mxu0 0.0
  %144 = vmatprep.subr.mxu0 0.0
  %145 = vmatpush1.msra.mxu0 0.0
  %146 = vmatprep.subr.mxu0 0.0
  %147 = vmatpush1.msra.mxu0 0.0
  %148 = vmatprep.mubr.f32.mxu0 0.0
  %149 = vmatmul.mubr.f32.gmra.mrb[0].mxu0 %v46
  %v150 = vpop.f32.mrb[0].mxu0
  %v151 = vadd.f32 %v42, %v150
  %v152 = vpop.f32.mrb[0].mxu0
  %153 = vmatprep.mubr.f32.mxu0 0.0
  %154 = vmatmul.mubr.f32.gmra.mrb[0].mxu0 %v49
  %v155 = vpop.f32.mrb[0].mxu0
  %v156 = vadd.f32 %v42, %v155
  %v157 = vpop.f32.mrb[0].mxu0
  %158 = vmatprep.mubr.f32.mxu0 0.0
  %159 = vmatmul.mubr.f32.gmra.mrb[0].mxu0 %v52
  %v160 = vpop.f32.mrb[0].mxu0
  %v161 = vadd.f32 %v42, %v160
  %v162 = vpop.f32.mrb[0].mxu0
  %163 = vmatprep.mubr.f32.mxu0 0.0
  %164 = vmatmul.mubr.f32.gmra.mrb[0].mxu0 %v55
  %v165 = vpop.f32.mrb[0].mxu0
  %v166 = vadd.f32 %v42, %v165
  %v167 = vpop.f32.mrb[0].mxu0
  %168 = vmatprep.mubr.f32.mxu0 0.0
  %169 = vmatmul.mubr.f32.gmra.mrb[0].mxu0 %v58
  %v170 = vpop.f32.mrb[0].mxu0
  %v171 = vadd.f32 %v42, %v170
  %v172 = vpop.f32.mrb[0].mxu0
  %173 = vmatprep.mubr.f32.mxu0 0.0
  %174 = vmatmul.mubr.f32.gmra.mrb[0].mxu0 %v61
  %v175 = vpop.f32.mrb[0].mxu0
  %v176 = vadd.f32 %v42, %v175
  %v177 = vpop.f32.mrb[0].mxu0
  %178 = vmatprep.mubr.f32.mxu0 0.0
  %179 = vmatmul.mubr.f32.gmra.mrb[0].mxu0 %v64
  %v180 = vpop.f32.mrb[0].mxu0
  %v181 = vadd.f32 %v42, %v180
  %v182 = vpop.f32.mrb[0].mxu0
  %183 = vmatprep.mubr.f32.mxu0 0.0
  %184 = vmatmul.mubr.f32.gmra.mrb[0].mxu0 %v67
  %v185 = vpop.f32.mrb[0].mxu0
  %v186 = vadd.f32 %v42, %v185
  %v187 = vpop.f32.mrb[0].mxu0
  %188 = vmatprep.mubr.f32.mxu0 0.0
  %189 = vmatmul.mubr.f32.gmra.mrb[0].mxu0 %v70
  %v190 = vpop.f32.mrb[0].mxu0
  %v191 = vadd.f32 %v42, %v190
  %v192 = vpop.f32.mrb[0].mxu0
  %193 = vmatprep.mubr.f32.mxu0 0.0
  %194 = vmatmul.mubr.f32.gmra.mrb[0].mxu0 %v73
  %v195 = vpop.f32.mrb[0].mxu0
  %v196 = vadd.f32 %v42, %v195
  %v197 = vpop.f32.mrb[0].mxu0
  %198 = vmatprep.mubr.f32.mxu0 0.0
  %199 = vmatmul.mubr.f32.gmra.mrb[0].mxu0 %v76
  %v200 = vpop.f32.mrb[0].mxu0
  %v201 = vadd.f32 %v42, %v200
  %v202 = vpop.f32.mrb[0].mxu0
  %203 = vmatprep.mubr.f32.mxu0 0.0
  %204 = vmatmul.mubr.f32.gmra.mrb[0].mxu0 %v79
  %v205 = vpop.f32.mrb[0].mxu0
  %v206 = vadd.f32 %v42, %v205
  %v207 = vpop.f32.mrb[0].mxu0
  %208 = vmatprep.mubr.f32.mxu0 0.0
  %209 = vmatmul.mubr.f32.gmra.mrb[0].mxu0 %v82
  %v210 = vpop.f32.mrb[0].mxu0
  %v211 = vadd.f32 %v42, %v210
  %v212 = vpop.f32.mrb[0].mxu0
  %213 = vdwg.mxu0
  %v214 = vmax.f32 %v151, 0.0
  %v215 = vmax.f32 %v156, 0.0
  %v216 = vmax.f32 %v161, 0.0
  %v217 = vmax.f32 %v166, 0.0
  %v218 = vmax.f32 %v171, 0.0
  %v219 = vmax.f32 %v176, 0.0
  %v220 = vmax.f32 %v181, 0.0
  %v221 = vmax.f32 %v186, 0.0
  %v222 = vmax.f32 %v191, 0.0
  %v223 = vmax.f32 %v196, 0.0
  %v224 = vmax.f32 %v201, 0.0
  %v225 = vmax.f32 %v206, 0.0
  %v226 = vmax.f32 %v211, 0.0
  %v227 = vld [vmem:[%s3] sm:$0xff]
  %v228 = vld [vmem:[%s3 + $0x8] sm:$0xff]
  %v229 = vld [vmem:[%s4] sm:$0x1]
  %v231 = vlaneseq
  %v232 = vshrl.u32 %v231, 7
  %v233 = vsub.s32 0, %v232
  %v234 = vrot.slane %v229, %v233
  %vm236 = vcmask 130048
  %v238 = vsel %vm236, %v214, 0
  %v241 = vsel %vm236, %v215, 0
  %v244 = vsel %vm236, %v216, 0
  %v247 = vsel %vm236, %v217, 0
  %v250 = vsel %vm236, %v218, 0
  %v253 = vsel %vm236, %v219, 0
  %v256 = vsel %vm236, %v220, 0
  %v259 = vsel %vm236, %v221, 0
  %v262 = vsel %vm236, %v222, 0
  %v265 = vsel %vm236, %v223, 0
  %v268 = vsel %vm236, %v224, 0
  %v271 = vsel %vm236, %v225, 0
  %v274 = vsel %vm236, %v226, 0
  %276 = vmatprep.subr.mxu0 0.0
  %277 = vmatpush1.msra.mxu0 %v227
  %278 = vmatprep.subr.mxu0 0.0
  %279 = vmatpush1.msra.mxu0 %v228
  %280 = vmatprep.subr.mxu0 0.0
  %281 = vmatpush1.msra.mxu0 0.0
  %282 = vmatprep.subr.mxu0 0.0
  %283 = vmatpush1.msra.mxu0 0.0
  %284 = vmatprep.subr.mxu0 0.0
  %285 = vmatpush1.msra.mxu0 0.0
  %286 = vmatprep.subr.mxu0 0.0
  %287 = vmatpush1.msra.mxu0 0.0
  %288 = vmatprep.subr.mxu0 0.0
  %289 = vmatpush1.msra.mxu0 0.0
  %290 = vmatprep.subr.mxu0 0.0
  %291 = vmatpush1.msra.mxu0 0.0
  %292 = vmatprep.subr.mxu0 0.0
  %293 = vmatpush1.msra.mxu0 0.0
  %294 = vmatprep.subr.mxu0 0.0
  %295 = vmatpush1.msra.mxu0 0.0
  %296 = vmatprep.subr.mxu0 0.0
  %297 = vmatpush1.msra.mxu0 0.0
  %298 = vmatprep.subr.mxu0 0.0
  %299 = vmatpush1.msra.mxu0 0.0
  %300 = vmatprep.subr.mxu0 0.0
  %301 = vmatpush1.msra.mxu0 0.0
  %302 = vmatprep.subr.mxu0 0.0
  %303 = vmatpush1.msra.mxu0 0.0
  %304 = vmatprep.subr.mxu0 0.0
  %305 = vmatpush1.msra.mxu0 0.0
  %306 = vmatprep.subr.mxu0 0.0
  %307 = vmatpush1.msra.mxu0 0.0
  %308 = vmatprep.subr.mxu0 0.0
  %309 = vmatpush1.msra.mxu0 0.0
  %310 = vmatprep.subr.mxu0 0.0
  %311 = vmatpush1.msra.mxu0 0.0
  %312 = vmatprep.subr.mxu0 0.0
  %313 = vmatpush1.msra.mxu0 0.0
  %314 = vmatprep.subr.mxu0 0.0
  %315 = vmatpush1.msra.mxu0 0.0
  %316 = vmatprep.subr.mxu0 0.0
  %317 = vmatpush1.msra.mxu0 0.0
  %318 = vmatprep.subr.mxu0 0.0
  %319 = vmatpush1.msra.mxu0 0.0
  %320 = vmatprep.subr.mxu0 0.0
  %321 = vmatpush1.msra.mxu0 0.0
  %322 = vmatprep.subr.mxu0 0.0
  %323 = vmatpush1.msra.mxu0 0.0
  %324 = vmatprep.subr.mxu0 0.0
  %325 = vmatpush1.msra.mxu0 0.0
  %326 = vmatprep.subr.mxu0 0.0
  %327 = vmatpush1.msra.mxu0 0.0
  %328 = vmatprep.subr.mxu0 0.0
  %329 = vmatpush1.msra.mxu0 0.0
  %330 = vmatprep.subr.mxu0 0.0
  %331 = vmatpush1.msra.mxu0 0.0
  %332 = vmatprep.subr.mxu0 0.0
  %333 = vmatpush1.msra.mxu0 0.0
  %334 = vmatprep.subr.mxu0 0.0
  %335 = vmatpush1.msra.mxu0 0.0
  %336 = vmatprep.subr.mxu0 0.0
  %337 = vmatpush1.msra.mxu0 0.0
  %338 = vmatprep.subr.mxu0 0.0
  %339 = vmatpush1.msra.mxu0 0.0
  %340 = vmatprep.mubr.f32.mxu0 0.0
  %341 = vmatmul.mubr.f32.gmra.mrb[0].mxu0 %v238
  %v342 = vpop.f32.mrb[0].mxu0
  %v343 = vadd.f32 %v234, %v342
  %v344 = vpop.f32.mrb[0].mxu0
  %345 = vmatprep.mubr.f32.mxu0 0.0
  %346 = vmatmul.mubr.f32.gmra.mrb[0].mxu0 %v241
  %v347 = vpop.f32.mrb[0].mxu0
  %v348 = vadd.f32 %v234, %v347
  %v349 = vpop.f32.mrb[0].mxu0
  %350 = vmatprep.mubr.f32.mxu0 0.0
  %351 = vmatmul.mubr.f32.gmra.mrb[0].mxu0 %v244
  %v352 = vpop.f32.mrb[0].mxu0
  %v353 = vadd.f32 %v234, %v352
  %v354 = vpop.f32.mrb[0].mxu0
  %355 = vmatprep.mubr.f32.mxu0 0.0
  %356 = vmatmul.mubr.f32.gmra.mrb[0].mxu0 %v247
  %v357 = vpop.f32.mrb[0].mxu0
  %v358 = vadd.f32 %v234, %v357
  %v359 = vpop.f32.mrb[0].mxu0
  %360 = vmatprep.mubr.f32.mxu0 0.0
  %361 = vmatmul.mubr.f32.gmra.mrb[0].mxu0 %v250
  %v362 = vpop.f32.mrb[0].mxu0
  %v363 = vadd.f32 %v234, %v362
  %v364 = vpop.f32.mrb[0].mxu0
  %365 = vmatprep.mubr.f32.mxu0 0.0
  %366 = vmatmul.mubr.f32.gmra.mrb[0].mxu0 %v253
  %v367 = vpop.f32.mrb[0].mxu0
  %v368 = vadd.f32 %v234, %v367
  %v369 = vpop.f32.mrb[0].mxu0
  %370 = vmatprep.mubr.f32.mxu0 0.0
  %371 = vmatmul.mubr.f32.gmra.mrb[0].mxu0 %v256
  %v372 = vpop.f32.mrb[0].mxu0
  %v373 = vadd.f32 %v234, %v372
  %v374 = vpop.f32.mrb[0].mxu0
  %375 = vmatprep.mubr.f32.mxu0 0.0
  %376 = vmatmul.mubr.f32.gmra.mrb[0].mxu0 %v259
  %v377 = vpop.f32.mrb[0].mxu0
  %v378 = vadd.f32 %v234, %v377
  %v379 = vpop.f32.mrb[0].mxu0
  %380 = vmatprep.mubr.f32.mxu0 0.0
  %381 = vmatmul.mubr.f32.gmra.mrb[0].mxu0 %v262
  %v382 = vpop.f32.mrb[0].mxu0
  %v383 = vadd.f32 %v234, %v382
  %v384 = vpop.f32.mrb[0].mxu0
  %385 = vmatprep.mubr.f32.mxu0 0.0
  %386 = vmatmul.mubr.f32.gmra.mrb[0].mxu0 %v265
  %v387 = vpop.f32.mrb[0].mxu0
  %v388 = vadd.f32 %v234, %v387
  %v389 = vpop.f32.mrb[0].mxu0
  %390 = vmatprep.mubr.f32.mxu0 0.0
  %391 = vmatmul.mubr.f32.gmra.mrb[0].mxu0 %v268
  %v392 = vpop.f32.mrb[0].mxu0
  %v393 = vadd.f32 %v234, %v392
  %v394 = vpop.f32.mrb[0].mxu0
  %395 = vmatprep.mubr.f32.mxu0 0.0
  %396 = vmatmul.mubr.f32.gmra.mrb[0].mxu0 %v271
  %v397 = vpop.f32.mrb[0].mxu0
  %v398 = vadd.f32 %v234, %v397
  %v399 = vpop.f32.mrb[0].mxu0
  %400 = vmatprep.mubr.f32.mxu0 0.0
  %401 = vmatmul.mubr.f32.gmra.mrb[0].mxu0 %v274
  %v402 = vpop.f32.mrb[0].mxu0
  %v403 = vadd.f32 %v234, %v402
  %v404 = vpop.f32.mrb[0].mxu0
  %405 = vdwg.mxu0
  %v406 = vxor.u32 %v343, 2147483648
  %v407 = vxor.u32 %v348, 2147483648
  %v408 = vxor.u32 %v353, 2147483648
  %v409 = vxor.u32 %v358, 2147483648
  %v410 = vxor.u32 %v363, 2147483648
  %v411 = vxor.u32 %v368, 2147483648
  %v412 = vxor.u32 %v373, 2147483648
  %v413 = vxor.u32 %v378, 2147483648
  %v414 = vxor.u32 %v383, 2147483648
  %v415 = vxor.u32 %v388, 2147483648
  %v416 = vxor.u32 %v393, 2147483648
  %v417 = vxor.u32 %v398, 2147483648
  %v418 = vxor.u32 %v403, 2147483648
  %v419 = vmul.f32 %v406, 1.442695
  %v420 = vpow.pop %v419
  %v421 = vmul.f32 %v407, 1.442695
  %v422 = vpow.pop %v421
  %v423 = vmul.f32 %v408, 1.442695
  %v424 = vpow.pop %v423
  %v425 = vmul.f32 %v409, 1.442695
  %v426 = vpow.pop %v425
  %v427 = vmul.f32 %v410, 1.442695
  %v428 = vpow.pop %v427
  %v429 = vmul.f32 %v411, 1.442695
  %v430 = vpow.pop %v429
  %v431 = vmul.f32 %v412, 1.442695
  %v432 = vpow.pop %v431
  %v433 = vmul.f32 %v413, 1.442695
  %v434 = vpow.pop %v433
  %v435 = vmul.f32 %v414, 1.442695
  %v436 = vpow.pop %v435
  %v437 = vmul.f32 %v415, 1.442695
  %v438 = vpow.pop %v437
  %v439 = vmul.f32 %v416, 1.442695
  %v440 = vpow.pop %v439
  %v441 = vmul.f32 %v417, 1.442695
  %v442 = vpow.pop %v441
  %v443 = vmul.f32 %v418, 1.442695
  %v444 = vpow.pop %v443
  %v445 = vadd.f32 %v420, 1.0
  %v446 = vadd.f32 %v422, 1.0
  %v447 = vadd.f32 %v424, 1.0
  %v448 = vadd.f32 %v426, 1.0
  %v449 = vadd.f32 %v428, 1.0
  %v450 = vadd.f32 %v430, 1.0
  %v451 = vadd.f32 %v432, 1.0
  %v452 = vadd.f32 %v434, 1.0
  %v453 = vadd.f32 %v436, 1.0
  %v454 = vadd.f32 %v438, 1.0
  %v455 = vadd.f32 %v440, 1.0
  %v456 = vadd.f32 %v442, 1.0
  %v457 = vadd.f32 %v444, 1.0
  %v458 = vrcp.pop %v445
  %v459 = vmul.f32 1.0, %v458
  %v460 = vrcp.pop %v446
  %v461 = vmul.f32 1.0, %v460
  %v462 = vrcp.pop %v447
  %v463 = vmul.f32 1.0, %v462
  %v464 = vrcp.pop %v448
  %v465 = vmul.f32 1.0, %v464
  %v466 = vrcp.pop %v449
  %v467 = vmul.f32 1.0, %v466
  %v468 = vrcp.pop %v450
  %v469 = vmul.f32 1.0, %v468
  %v470 = vrcp.pop %v451
  %v471 = vmul.f32 1.0, %v470
  %v472 = vrcp.pop %v452
  %v473 = vmul.f32 1.0, %v472
  %v474 = vrcp.pop %v453
  %v475 = vmul.f32 1.0, %v474
  %v476 = vrcp.pop %v454
  %v477 = vmul.f32 1.0, %v476
  %v478 = vrcp.pop %v455
  %v479 = vmul.f32 1.0, %v478
  %v480 = vrcp.pop %v456
  %v481 = vmul.f32 1.0, %v480
  %v482 = vrcp.pop %v457
  %v483 = vmul.f32 1.0, %v482
  %vm484 = vcmask 31744
  %485 = vst.msk [vmem:[%s5] sm:$0xff] %vm484, %v459
  %486 = vst.msk [vmem:[%s5 + $0x8] sm:$0xff] %vm484, %v461
  %487 = vst.msk [vmem:[%s5 + $0x10] sm:$0xff] %vm484, %v463
  %488 = vst.msk [vmem:[%s5 + $0x18] sm:$0xff] %vm484, %v465
  %489 = vst.msk [vmem:[%s5 + $0x20] sm:$0xff] %vm484, %v467
  %490 = vst.msk [vmem:[%s5 + $0x28] sm:$0xff] %vm484, %v469
  %491 = vst.msk [vmem:[%s5 + $0x30] sm:$0xff] %vm484, %v471
  %492 = vst.msk [vmem:[%s5 + $0x38] sm:$0xff] %vm484, %v473
  %493 = vst.msk [vmem:[%s5 + $0x40] sm:$0xff] %vm484, %v475
  %494 = vst.msk [vmem:[%s5 + $0x48] sm:$0xff] %vm484, %v477
  %495 = vst.msk [vmem:[%s5 + $0x50] sm:$0xff] %vm484, %v479
  %496 = vst.msk [vmem:[%s5 + $0x58] sm:$0xff] %vm484, %v481
  %vm497 = vcmask 25600
  %498 = vst.msk [vmem:[%s5 + $0x60] sm:$0x3] %vm497, %v483
  %v499 = vld [vmem:[%s3] sm:$0xff]
  %v500 = vld [vmem:[%s3 + $0x8] sm:$0xff]
  %v501 = vld [vmem:[%s4] sm:$0x1]
  %v503 = vlaneseq
  %v504 = vshrl.u32 %v503, 7
  %v505 = vsub.s32 0, %v504
  %v506 = vrot.slane %v501, %v505
  %508 = vrot.lane.b32.xlu0 %v214, 112
  %v509 = vpop.permute.xlu0 %508
  %510 = vrot.lane.b32.xlu0 %v215, 112
  %v511 = vpop.permute.xlu0 %510
  %512 = vrot.lane.b32.xlu0 %v216, 112
  %v513 = vpop.permute.xlu0 %512
  %514 = vrot.lane.b32.xlu0 %v217, 112
  %v515 = vpop.permute.xlu0 %514
  %516 = vrot.lane.b32.xlu0 %v218, 112
  %v517 = vpop.permute.xlu0 %516
  %518 = vrot.lane.b32.xlu0 %v219, 112
  %v519 = vpop.permute.xlu0 %518
  %520 = vrot.lane.b32.xlu0 %v220, 112
  %v521 = vpop.permute.xlu0 %520
  %522 = vrot.lane.b32.xlu0 %v221, 112
  %v523 = vpop.permute.xlu0 %522
  %524 = vrot.lane.b32.xlu0 %v222, 112
  %v525 = vpop.permute.xlu0 %524
  %526 = vrot.lane.b32.xlu0 %v223, 112
  %v527 = vpop.permute.xlu0 %526
  %528 = vrot.lane.b32.xlu0 %v224, 112
  %v529 = vpop.permute.xlu0 %528
  %530 = vrot.lane.b32.xlu0 %v225, 112
  %v531 = vpop.permute.xlu0 %530
  %532 = vrot.lane.b32.xlu0 %v226, 112
  %v533 = vpop.permute.xlu0 %532
  %v534 = vsel %vm236, %v509, 0
  %v536 = vsel %vm236, %v511, 0
  %v538 = vsel %vm236, %v513, 0
  %v540 = vsel %vm236, %v515, 0
  %v542 = vsel %vm236, %v517, 0
  %v544 = vsel %vm236, %v519, 0
  %v546 = vsel %vm236, %v521, 0
  %v548 = vsel %vm236, %v523, 0
  %v550 = vsel %vm236, %v525, 0
  %v552 = vsel %vm236, %v527, 0
  %v554 = vsel %vm236, %v529, 0
  %v556 = vsel %vm236, %v531, 0
  %v558 = vsel %vm236, %v533, 0
  %560 = vmatprep.subr.mxu0 0.0
  %561 = vmatpush1.msra.mxu0 %v499
  %562 = vmatprep.subr.mxu0 0.0
  %563 = vmatpush1.msra.mxu0 %v500
  %564 = vmatprep.subr.mxu0 0.0
  %565 = vmatpush1.msra.mxu0 0.0
  %566 = vmatprep.subr.mxu0 0.0
  %567 = vmatpush1.msra.mxu0 0.0
  %568 = vmatprep.subr.mxu0 0.0
  %569 = vmatpush1.msra.mxu0 0.0
  %570 = vmatprep.subr.mxu0 0.0
  %571 = vmatpush1.msra.mxu0 0.0
  %572 = vmatprep.subr.mxu0 0.0
  %573 = vmatpush1.msra.mxu0 0.0
  %574 = vmatprep.subr.mxu0 0.0
  %575 = vmatpush1.msra.mxu0 0.0
  %576 = vmatprep.subr.mxu0 0.0
  %577 = vmatpush1.msra.mxu0 0.0
  %578 = vmatprep.subr.mxu0 0.0
  %579 = vmatpush1.msra.mxu0 0.0
  %580 = vmatprep.subr.mxu0 0.0
  %581 = vmatpush1.msra.mxu0 0.0
  %582 = vmatprep.subr.mxu0 0.0
  %583 = vmatpush1.msra.mxu0 0.0
  %584 = vmatprep.subr.mxu0 0.0
  %585 = vmatpush1.msra.mxu0 0.0
  %586 = vmatprep.subr.mxu0 0.0
  %587 = vmatpush1.msra.mxu0 0.0
  %588 = vmatprep.subr.mxu0 0.0
  %589 = vmatpush1.msra.mxu0 0.0
  %590 = vmatprep.subr.mxu0 0.0
  %591 = vmatpush1.msra.mxu0 0.0
  %592 = vmatprep.subr.mxu0 0.0
  %593 = vmatpush1.msra.mxu0 0.0
  %594 = vmatprep.subr.mxu0 0.0
  %595 = vmatpush1.msra.mxu0 0.0
  %596 = vmatprep.subr.mxu0 0.0
  %597 = vmatpush1.msra.mxu0 0.0
  %598 = vmatprep.subr.mxu0 0.0
  %599 = vmatpush1.msra.mxu0 0.0
  %600 = vmatprep.subr.mxu0 0.0
  %601 = vmatpush1.msra.mxu0 0.0
  %602 = vmatprep.subr.mxu0 0.0
  %603 = vmatpush1.msra.mxu0 0.0
  %604 = vmatprep.subr.mxu0 0.0
  %605 = vmatpush1.msra.mxu0 0.0
  %606 = vmatprep.subr.mxu0 0.0
  %607 = vmatpush1.msra.mxu0 0.0
  %608 = vmatprep.subr.mxu0 0.0
  %609 = vmatpush1.msra.mxu0 0.0
  %610 = vmatprep.subr.mxu0 0.0
  %611 = vmatpush1.msra.mxu0 0.0
  %612 = vmatprep.subr.mxu0 0.0
  %613 = vmatpush1.msra.mxu0 0.0
  %614 = vmatprep.subr.mxu0 0.0
  %615 = vmatpush1.msra.mxu0 0.0
  %616 = vmatprep.subr.mxu0 0.0
  %617 = vmatpush1.msra.mxu0 0.0
  %618 = vmatprep.subr.mxu0 0.0
  %619 = vmatpush1.msra.mxu0 0.0
  %620 = vmatprep.subr.mxu0 0.0
  %621 = vmatpush1.msra.mxu0 0.0
  %622 = vmatprep.subr.mxu0 0.0
  %623 = vmatpush1.msra.mxu0 0.0
  %624 = vmatprep.mubr.f32.mxu0 0.0
  %625 = vmatmul.mubr.f32.gmra.mrb[0].mxu0 %v534
  %v626 = vpop.f32.mrb[0].mxu0
  %v627 = vadd.f32 %v506, %v626
  %v628 = vpop.f32.mrb[0].mxu0
  %629 = vmatprep.mubr.f32.mxu0 0.0
  %630 = vmatmul.mubr.f32.gmra.mrb[0].mxu0 %v536
  %v631 = vpop.f32.mrb[0].mxu0
  %v632 = vadd.f32 %v506, %v631
  %v633 = vpop.f32.mrb[0].mxu0
  %634 = vmatprep.mubr.f32.mxu0 0.0
  %635 = vmatmul.mubr.f32.gmra.mrb[0].mxu0 %v538
  %v636 = vpop.f32.mrb[0].mxu0
  %v637 = vadd.f32 %v506, %v636
  %v638 = vpop.f32.mrb[0].mxu0
  %639 = vmatprep.mubr.f32.mxu0 0.0
  %640 = vmatmul.mubr.f32.gmra.mrb[0].mxu0 %v540
  %v641 = vpop.f32.mrb[0].mxu0
  %v642 = vadd.f32 %v506, %v641
  %v643 = vpop.f32.mrb[0].mxu0
  %644 = vmatprep.mubr.f32.mxu0 0.0
  %645 = vmatmul.mubr.f32.gmra.mrb[0].mxu0 %v542
  %v646 = vpop.f32.mrb[0].mxu0
  %v647 = vadd.f32 %v506, %v646
  %v648 = vpop.f32.mrb[0].mxu0
  %649 = vmatprep.mubr.f32.mxu0 0.0
  %650 = vmatmul.mubr.f32.gmra.mrb[0].mxu0 %v544
  %v651 = vpop.f32.mrb[0].mxu0
  %v652 = vadd.f32 %v506, %v651
  %v653 = vpop.f32.mrb[0].mxu0
  %654 = vmatprep.mubr.f32.mxu0 0.0
  %655 = vmatmul.mubr.f32.gmra.mrb[0].mxu0 %v546
  %v656 = vpop.f32.mrb[0].mxu0
  %v657 = vadd.f32 %v506, %v656
  %v658 = vpop.f32.mrb[0].mxu0
  %659 = vmatprep.mubr.f32.mxu0 0.0
  %660 = vmatmul.mubr.f32.gmra.mrb[0].mxu0 %v548
  %v661 = vpop.f32.mrb[0].mxu0
  %v662 = vadd.f32 %v506, %v661
  %v663 = vpop.f32.mrb[0].mxu0
  %664 = vmatprep.mubr.f32.mxu0 0.0
  %665 = vmatmul.mubr.f32.gmra.mrb[0].mxu0 %v550
  %v666 = vpop.f32.mrb[0].mxu0
  %v667 = vadd.f32 %v506, %v666
  %v668 = vpop.f32.mrb[0].mxu0
  %669 = vmatprep.mubr.f32.mxu0 0.0
  %670 = vmatmul.mubr.f32.gmra.mrb[0].mxu0 %v552
  %v671 = vpop.f32.mrb[0].mxu0
  %v672 = vadd.f32 %v506, %v671
  %v673 = vpop.f32.mrb[0].mxu0
  %674 = vmatprep.mubr.f32.mxu0 0.0
  %675 = vmatmul.mubr.f32.gmra.mrb[0].mxu0 %v554
  %v676 = vpop.f32.mrb[0].mxu0
  %v677 = vadd.f32 %v506, %v676
  %v678 = vpop.f32.mrb[0].mxu0
  %679 = vmatprep.mubr.f32.mxu0 0.0
  %680 = vmatmul.mubr.f32.gmra.mrb[0].mxu0 %v556
  %v681 = vpop.f32.mrb[0].mxu0
  %v682 = vadd.f32 %v506, %v681
  %v683 = vpop.f32.mrb[0].mxu0
  %684 = vmatprep.mubr.f32.mxu0 0.0
  %685 = vmatmul.mubr.f32.gmra.mrb[0].mxu0 %v558
  %v686 = vpop.f32.mrb[0].mxu0
  %v687 = vadd.f32 %v506, %v686
  %v688 = vpop.f32.mrb[0].mxu0
  %689 = vdwg.mxu0
  %v690 = vxor.u32 %v627, 2147483648
  %v691 = vxor.u32 %v632, 2147483648
  %v692 = vxor.u32 %v637, 2147483648
  %v693 = vxor.u32 %v642, 2147483648
  %v694 = vxor.u32 %v647, 2147483648
  %v695 = vxor.u32 %v652, 2147483648
  %v696 = vxor.u32 %v657, 2147483648
  %v697 = vxor.u32 %v662, 2147483648
  %v698 = vxor.u32 %v667, 2147483648
  %v699 = vxor.u32 %v672, 2147483648
  %v700 = vxor.u32 %v677, 2147483648
  %v701 = vxor.u32 %v682, 2147483648
  %v702 = vxor.u32 %v687, 2147483648
  %v703 = vmul.f32 %v690, 1.442695
  %v704 = vpow.pop %v703
  %v705 = vmul.f32 %v691, 1.442695
  %v706 = vpow.pop %v705
  %v707 = vmul.f32 %v692, 1.442695
  %v708 = vpow.pop %v707
  %v709 = vmul.f32 %v693, 1.442695
  %v710 = vpow.pop %v709
  %v711 = vmul.f32 %v694, 1.442695
  %v712 = vpow.pop %v711
  %v713 = vmul.f32 %v695, 1.442695
  %v714 = vpow.pop %v713
  %v715 = vmul.f32 %v696, 1.442695
  %v716 = vpow.pop %v715
  %v717 = vmul.f32 %v697, 1.442695
  %v718 = vpow.pop %v717
  %v719 = vmul.f32 %v698, 1.442695
  %v720 = vpow.pop %v719
  %v721 = vmul.f32 %v699, 1.442695
  %v722 = vpow.pop %v721
  %v723 = vmul.f32 %v700, 1.442695
  %v724 = vpow.pop %v723
  %v725 = vmul.f32 %v701, 1.442695
  %v726 = vpow.pop %v725
  %v727 = vmul.f32 %v702, 1.442695
  %v728 = vpow.pop %v727
  %v729 = vadd.f32 %v704, 1.0
  %v730 = vadd.f32 %v706, 1.0
  %v731 = vadd.f32 %v708, 1.0
  %v732 = vadd.f32 %v710, 1.0
  %v733 = vadd.f32 %v712, 1.0
  %v734 = vadd.f32 %v714, 1.0
  %v735 = vadd.f32 %v716, 1.0
  %v736 = vadd.f32 %v718, 1.0
  %v737 = vadd.f32 %v720, 1.0
  %v738 = vadd.f32 %v722, 1.0
  %v739 = vadd.f32 %v724, 1.0
  %v740 = vadd.f32 %v726, 1.0
  %v741 = vadd.f32 %v728, 1.0
  %v742 = vrcp.pop %v729
  %v743 = vmul.f32 1.0, %v742
  %v744 = vrcp.pop %v730
  %v745 = vmul.f32 1.0, %v744
  %v746 = vrcp.pop %v731
  %v747 = vmul.f32 1.0, %v746
  %v748 = vrcp.pop %v732
  %v749 = vmul.f32 1.0, %v748
  %v750 = vrcp.pop %v733
  %v751 = vmul.f32 1.0, %v750
  %v752 = vrcp.pop %v734
  %v753 = vmul.f32 1.0, %v752
  %v754 = vrcp.pop %v735
  %v755 = vmul.f32 1.0, %v754
  %v756 = vrcp.pop %v736
  %v757 = vmul.f32 1.0, %v756
  %v758 = vrcp.pop %v737
  %v759 = vmul.f32 1.0, %v758
  %v760 = vrcp.pop %v738
  %v761 = vmul.f32 1.0, %v760
  %v762 = vrcp.pop %v739
  %v763 = vmul.f32 1.0, %v762
  %v764 = vrcp.pop %v740
  %v765 = vmul.f32 1.0, %v764
  %v766 = vrcp.pop %v741
  %v767 = vmul.f32 1.0, %v766
  %781 = vrot.lane.b32.xlu0 %v743, 4
  %v782 = vpop.permute.xlu0 %781
  %783 = vrot.lane.b32.xlu0 %v745, 4
  %v784 = vpop.permute.xlu0 %783
  %785 = vrot.lane.b32.xlu0 %v747, 4
  %v786 = vpop.permute.xlu0 %785
  %787 = vrot.lane.b32.xlu0 %v749, 4
  %v788 = vpop.permute.xlu0 %787
  %789 = vrot.lane.b32.xlu0 %v751, 4
  %v790 = vpop.permute.xlu0 %789
  %791 = vrot.lane.b32.xlu0 %v753, 4
  %v792 = vpop.permute.xlu0 %791
  %793 = vrot.lane.b32.xlu0 %v755, 4
  %v794 = vpop.permute.xlu0 %793
  %795 = vrot.lane.b32.xlu0 %v757, 4
  %v796 = vpop.permute.xlu0 %795
  %797 = vrot.lane.b32.xlu0 %v759, 4
  %v798 = vpop.permute.xlu0 %797
  %799 = vrot.lane.b32.xlu0 %v761, 4
  %v800 = vpop.permute.xlu0 %799
  %801 = vrot.lane.b32.xlu0 %v763, 4
  %v802 = vpop.permute.xlu0 %801
  %803 = vrot.lane.b32.xlu0 %v765, 4
  %v804 = vpop.permute.xlu0 %803
  %805 = vrot.lane.b32.xlu0 %v767, 4
  %v806 = vpop.permute.xlu0 %805
  %vm820 = vcmask 64544
  %821 = vst.msk [vmem:[%s5] sm:$0xff] %vm820, %v782
  %822 = vst.msk [vmem:[%s5 + $0x8] sm:$0xff] %vm820, %v784
  %823 = vst.msk [vmem:[%s5 + $0x10] sm:$0xff] %vm820, %v786
  %824 = vst.msk [vmem:[%s5 + $0x18] sm:$0xff] %vm820, %v788
  %825 = vst.msk [vmem:[%s5 + $0x20] sm:$0xff] %vm820, %v790
  %826 = vst.msk [vmem:[%s5 + $0x28] sm:$0xff] %vm820, %v792
  %827 = vst.msk [vmem:[%s5 + $0x30] sm:$0xff] %vm820, %v794
  %828 = vst.msk [vmem:[%s5 + $0x38] sm:$0xff] %vm820, %v796
  %829 = vst.msk [vmem:[%s5 + $0x40] sm:$0xff] %vm820, %v798
  %830 = vst.msk [vmem:[%s5 + $0x48] sm:$0xff] %vm820, %v800
  %831 = vst.msk [vmem:[%s5 + $0x50] sm:$0xff] %vm820, %v802
  %832 = vst.msk [vmem:[%s5 + $0x58] sm:$0xff] %vm820, %v804
  %vm833 = vcmask 58400
  %834 = vst.msk [vmem:[%s5 + $0x60] sm:$0x3] %vm833, %v806
  %v835 = vld [vmem:[%s3] sm:$0xff]
  %v836 = vld [vmem:[%s3 + $0x8] sm:$0xff]
  %v837 = vld [vmem:[%s4] sm:$0x1]
  %v839 = vlaneseq
  %v840 = vshrl.u32 %v839, 7
  %v841 = vsub.s32 0, %v840
  %v842 = vrot.slane %v837, %v841
  %844 = vrot.lane.b32.xlu0 %v214, 96
  %v845 = vpop.permute.xlu0 %844
  %846 = vrot.lane.b32.xlu0 %v215, 96
  %v847 = vpop.permute.xlu0 %846
  %848 = vrot.lane.b32.xlu0 %v216, 96
  %v849 = vpop.permute.xlu0 %848
  %850 = vrot.lane.b32.xlu0 %v217, 96
  %v851 = vpop.permute.xlu0 %850
  %852 = vrot.lane.b32.xlu0 %v218, 96
  %v853 = vpop.permute.xlu0 %852
  %854 = vrot.lane.b32.xlu0 %v219, 96
  %v855 = vpop.permute.xlu0 %854
  %856 = vrot.lane.b32.xlu0 %v220, 96
  %v857 = vpop.permute.xlu0 %856
  %858 = vrot.lane.b32.xlu0 %v221, 96
  %v859 = vpop.permute.xlu0 %858
  %860 = vrot.lane.b32.xlu0 %v222, 96
  %v861 = vpop.permute.xlu0 %860
  %862 = vrot.lane.b32.xlu0 %v223, 96
  %v863 = vpop.permute.xlu0 %862
  %864 = vrot.lane.b32.xlu0 %v224, 96
  %v865 = vpop.permute.xlu0 %864
  %866 = vrot.lane.b32.xlu0 %v225, 96
  %v867 = vpop.permute.xlu0 %866
  %868 = vrot.lane.b32.xlu0 %v226, 96
  %v869 = vpop.permute.xlu0 %868
  %v870 = vsel %vm236, %v845, 0
  %v872 = vsel %vm236, %v847, 0
  %v874 = vsel %vm236, %v849, 0
  %v876 = vsel %vm236, %v851, 0
  %v878 = vsel %vm236, %v853, 0
  %v880 = vsel %vm236, %v855, 0
  %v882 = vsel %vm236, %v857, 0
  %v884 = vsel %vm236, %v859, 0
  %v886 = vsel %vm236, %v861, 0
  %v888 = vsel %vm236, %v863, 0
  %v890 = vsel %vm236, %v865, 0
  %v892 = vsel %vm236, %v867, 0
  %v894 = vsel %vm236, %v869, 0
  %896 = vmatprep.subr.mxu0 0.0
  %897 = vmatpush1.msra.mxu0 %v835
  %898 = vmatprep.subr.mxu0 0.0
  %899 = vmatpush1.msra.mxu0 %v836
  %900 = vmatprep.subr.mxu0 0.0
  %901 = vmatpush1.msra.mxu0 0.0
  %902 = vmatprep.subr.mxu0 0.0
  %903 = vmatpush1.msra.mxu0 0.0
  %904 = vmatprep.subr.mxu0 0.0
  %905 = vmatpush1.msra.mxu0 0.0
  %906 = vmatprep.subr.mxu0 0.0
  %907 = vmatpush1.msra.mxu0 0.0
  %908 = vmatprep.subr.mxu0 0.0
  %909 = vmatpush1.msra.mxu0 0.0
  %910 = vmatprep.subr.mxu0 0.0
  %911 = vmatpush1.msra.mxu0 0.0
  %912 = vmatprep.subr.mxu0 0.0
  %913 = vmatpush1.msra.mxu0 0.0
  %914 = vmatprep.subr.mxu0 0.0
  %915 = vmatpush1.msra.mxu0 0.0
  %916 = vmatprep.subr.mxu0 0.0
  %917 = vmatpush1.msra.mxu0 0.0
  %918 = vmatprep.subr.mxu0 0.0
  %919 = vmatpush1.msra.mxu0 0.0
  %920 = vmatprep.subr.mxu0 0.0
  %921 = vmatpush1.msra.mxu0 0.0
  %922 = vmatprep.subr.mxu0 0.0
  %923 = vmatpush1.msra.mxu0 0.0
  %924 = vmatprep.subr.mxu0 0.0
  %925 = vmatpush1.msra.mxu0 0.0
  %926 = vmatprep.subr.mxu0 0.0
  %927 = vmatpush1.msra.mxu0 0.0
  %928 = vmatprep.subr.mxu0 0.0
  %929 = vmatpush1.msra.mxu0 0.0
  %930 = vmatprep.subr.mxu0 0.0
  %931 = vmatpush1.msra.mxu0 0.0
  %932 = vmatprep.subr.mxu0 0.0
  %933 = vmatpush1.msra.mxu0 0.0
  %934 = vmatprep.subr.mxu0 0.0
  %935 = vmatpush1.msra.mxu0 0.0
  %936 = vmatprep.subr.mxu0 0.0
  %937 = vmatpush1.msra.mxu0 0.0
  %938 = vmatprep.subr.mxu0 0.0
  %939 = vmatpush1.msra.mxu0 0.0
  %940 = vmatprep.subr.mxu0 0.0
  %941 = vmatpush1.msra.mxu0 0.0
  %942 = vmatprep.subr.mxu0 0.0
  %943 = vmatpush1.msra.mxu0 0.0
  %944 = vmatprep.subr.mxu0 0.0
  %945 = vmatpush1.msra.mxu0 0.0
  %946 = vmatprep.subr.mxu0 0.0
  %947 = vmatpush1.msra.mxu0 0.0
  %948 = vmatprep.subr.mxu0 0.0
  %949 = vmatpush1.msra.mxu0 0.0
  %950 = vmatprep.subr.mxu0 0.0
  %951 = vmatpush1.msra.mxu0 0.0
  %952 = vmatprep.subr.mxu0 0.0
  %953 = vmatpush1.msra.mxu0 0.0
  %954 = vmatprep.subr.mxu0 0.0
  %955 = vmatpush1.msra.mxu0 0.0
  %956 = vmatprep.subr.mxu0 0.0
  %957 = vmatpush1.msra.mxu0 0.0
  %958 = vmatprep.subr.mxu0 0.0
  %959 = vmatpush1.msra.mxu0 0.0
  %960 = vmatprep.mubr.f32.mxu0 0.0
  %961 = vmatmul.mubr.f32.gmra.mrb[0].mxu0 %v870
  %v962 = vpop.f32.mrb[0].mxu0
  %v963 = vadd.f32 %v842, %v962
  %v964 = vpop.f32.mrb[0].mxu0
  %965 = vmatprep.mubr.f32.mxu0 0.0
  %966 = vmatmul.mubr.f32.gmra.mrb[0].mxu0 %v872
  %v967 = vpop.f32.mrb[0].mxu0
  %v968 = vadd.f32 %v842, %v967
  %v969 = vpop.f32.mrb[0].mxu0
  %970 = vmatprep.mubr.f32.mxu0 0.0
  %971 = vmatmul.mubr.f32.gmra.mrb[0].mxu0 %v874
  %v972 = vpop.f32.mrb[0].mxu0
  %v973 = vadd.f32 %v842, %v972
  %v974 = vpop.f32.mrb[0].mxu0
  %975 = vmatprep.mubr.f32.mxu0 0.0
  %976 = vmatmul.mubr.f32.gmra.mrb[0].mxu0 %v876
  %v977 = vpop.f32.mrb[0].mxu0
  %v978 = vadd.f32 %v842, %v977
  %v979 = vpop.f32.mrb[0].mxu0
  %980 = vmatprep.mubr.f32.mxu0 0.0
  %981 = vmatmul.mubr.f32.gmra.mrb[0].mxu0 %v878
  %v982 = vpop.f32.mrb[0].mxu0
  %v983 = vadd.f32 %v842, %v982
  %v984 = vpop.f32.mrb[0].mxu0
  %985 = vmatprep.mubr.f32.mxu0 0.0
  %986 = vmatmul.mubr.f32.gmra.mrb[0].mxu0 %v880
  %v987 = vpop.f32.mrb[0].mxu0
  %v988 = vadd.f32 %v842, %v987
  %v989 = vpop.f32.mrb[0].mxu0
  %990 = vmatprep.mubr.f32.mxu0 0.0
  %991 = vmatmul.mubr.f32.gmra.mrb[0].mxu0 %v882
  %v992 = vpop.f32.mrb[0].mxu0
  %v993 = vadd.f32 %v842, %v992
  %v994 = vpop.f32.mrb[0].mxu0
  %995 = vmatprep.mubr.f32.mxu0 0.0
  %996 = vmatmul.mubr.f32.gmra.mrb[0].mxu0 %v884
  %v997 = vpop.f32.mrb[0].mxu0
  %v998 = vadd.f32 %v842, %v997
  %v999 = vpop.f32.mrb[0].mxu0
  %1000 = vmatprep.mubr.f32.mxu0 0.0
  %1001 = vmatmul.mubr.f32.gmra.mrb[0].mxu0 %v886
  %v1002 = vpop.f32.mrb[0].mxu0
  %v1003 = vadd.f32 %v842, %v1002
  %v1004 = vpop.f32.mrb[0].mxu0
  %1005 = vmatprep.mubr.f32.mxu0 0.0
  %1006 = vmatmul.mubr.f32.gmra.mrb[0].mxu0 %v888
  %v1007 = vpop.f32.mrb[0].mxu0
  %v1008 = vadd.f32 %v842, %v1007
  %v1009 = vpop.f32.mrb[0].mxu0
  %1010 = vmatprep.mubr.f32.mxu0 0.0
  %1011 = vmatmul.mubr.f32.gmra.mrb[0].mxu0 %v890
  %v1012 = vpop.f32.mrb[0].mxu0
  %v1013 = vadd.f32 %v842, %v1012
  %v1014 = vpop.f32.mrb[0].mxu0
  %1015 = vmatprep.mubr.f32.mxu0 0.0
  %1016 = vmatmul.mubr.f32.gmra.mrb[0].mxu0 %v892
  %v1017 = vpop.f32.mrb[0].mxu0
  %v1018 = vadd.f32 %v842, %v1017
  %v1019 = vpop.f32.mrb[0].mxu0
  %1020 = vmatprep.mubr.f32.mxu0 0.0
  %1021 = vmatmul.mubr.f32.gmra.mrb[0].mxu0 %v894
  %v1022 = vpop.f32.mrb[0].mxu0
  %v1023 = vadd.f32 %v842, %v1022
  %v1024 = vpop.f32.mrb[0].mxu0
  %1025 = vdwg.mxu0
  %v1026 = vxor.u32 %v963, 2147483648
  %v1027 = vxor.u32 %v968, 2147483648
  %v1028 = vxor.u32 %v973, 2147483648
  %v1029 = vxor.u32 %v978, 2147483648
  %v1030 = vxor.u32 %v983, 2147483648
  %v1031 = vxor.u32 %v988, 2147483648
  %v1032 = vxor.u32 %v993, 2147483648
  %v1033 = vxor.u32 %v998, 2147483648
  %v1034 = vxor.u32 %v1003, 2147483648
  %v1035 = vxor.u32 %v1008, 2147483648
  %v1036 = vxor.u32 %v1013, 2147483648
  %v1037 = vxor.u32 %v1018, 2147483648
  %v1038 = vxor.u32 %v1023, 2147483648
  %v1039 = vmul.f32 %v1026, 1.442695
  %v1040 = vpow.pop %v1039
  %v1041 = vmul.f32 %v1027, 1.442695
  %v1042 = vpow.pop %v1041
  %v1043 = vmul.f32 %v1028, 1.442695
  %v1044 = vpow.pop %v1043
  %v1045 = vmul.f32 %v1029, 1.442695
  %v1046 = vpow.pop %v1045
  %v1047 = vmul.f32 %v1030, 1.442695
  %v1048 = vpow.pop %v1047
  %v1049 = vmul.f32 %v1031, 1.442695
  %v1050 = vpow.pop %v1049
  %v1051 = vmul.f32 %v1032, 1.442695
  %v1052 = vpow.pop %v1051
  %v1053 = vmul.f32 %v1033, 1.442695
  %v1054 = vpow.pop %v1053
  %v1055 = vmul.f32 %v1034, 1.442695
  %v1056 = vpow.pop %v1055
  %v1057 = vmul.f32 %v1035, 1.442695
  %v1058 = vpow.pop %v1057
  %v1059 = vmul.f32 %v1036, 1.442695
  %v1060 = vpow.pop %v1059
  %v1061 = vmul.f32 %v1037, 1.442695
  %v1062 = vpow.pop %v1061
  %v1063 = vmul.f32 %v1038, 1.442695
  %v1064 = vpow.pop %v1063
  %v1065 = vadd.f32 %v1040, 1.0
  %v1066 = vadd.f32 %v1042, 1.0
  %v1067 = vadd.f32 %v1044, 1.0
  %v1068 = vadd.f32 %v1046, 1.0
  %v1069 = vadd.f32 %v1048, 1.0
  %v1070 = vadd.f32 %v1050, 1.0
  %v1071 = vadd.f32 %v1052, 1.0
  %v1072 = vadd.f32 %v1054, 1.0
  %v1073 = vadd.f32 %v1056, 1.0
  %v1074 = vadd.f32 %v1058, 1.0
  %v1075 = vadd.f32 %v1060, 1.0
  %v1076 = vadd.f32 %v1062, 1.0
  %v1077 = vadd.f32 %v1064, 1.0
  %v1078 = vrcp.pop %v1065
  %v1079 = vmul.f32 1.0, %v1078
  %v1080 = vrcp.pop %v1066
  %v1081 = vmul.f32 1.0, %v1080
  %v1082 = vrcp.pop %v1067
  %v1083 = vmul.f32 1.0, %v1082
  %v1084 = vrcp.pop %v1068
  %v1085 = vmul.f32 1.0, %v1084
  %v1086 = vrcp.pop %v1069
  %v1087 = vmul.f32 1.0, %v1086
  %v1088 = vrcp.pop %v1070
  %v1089 = vmul.f32 1.0, %v1088
  %v1090 = vrcp.pop %v1071
  %v1091 = vmul.f32 1.0, %v1090
  %v1092 = vrcp.pop %v1072
  %v1093 = vmul.f32 1.0, %v1092
  %v1094 = vrcp.pop %v1073
  %v1095 = vmul.f32 1.0, %v1094
  %v1096 = vrcp.pop %v1074
  %v1097 = vmul.f32 1.0, %v1096
  %v1098 = vrcp.pop %v1075
  %v1099 = vmul.f32 1.0, %v1098
  %v1100 = vrcp.pop %v1076
  %v1101 = vmul.f32 1.0, %v1100
  %v1102 = vrcp.pop %v1077
  %v1103 = vmul.f32 1.0, %v1102
  %1117 = vrot.lane.b32.xlu0 %v1079, 8
  %v1118 = vpop.permute.xlu0 %1117
  %1119 = vrot.lane.b32.xlu0 %v1081, 8
  %v1120 = vpop.permute.xlu0 %1119
  %1121 = vrot.lane.b32.xlu0 %v1083, 8
  %v1122 = vpop.permute.xlu0 %1121
  %1123 = vrot.lane.b32.xlu0 %v1085, 8
  %v1124 = vpop.permute.xlu0 %1123
  %1125 = vrot.lane.b32.xlu0 %v1087, 8
  %v1126 = vpop.permute.xlu0 %1125
  %1127 = vrot.lane.b32.xlu0 %v1089, 8
  %v1128 = vpop.permute.xlu0 %1127
  %1129 = vrot.lane.b32.xlu0 %v1091, 8
  %v1130 = vpop.permute.xlu0 %1129
  %1131 = vrot.lane.b32.xlu0 %v1093, 8
  %v1132 = vpop.permute.xlu0 %1131
  %1133 = vrot.lane.b32.xlu0 %v1095, 8
  %v1134 = vpop.permute.xlu0 %1133
  %1135 = vrot.lane.b32.xlu0 %v1097, 8
  %v1136 = vpop.permute.xlu0 %1135
  %1137 = vrot.lane.b32.xlu0 %v1099, 8
  %v1138 = vpop.permute.xlu0 %1137
  %1139 = vrot.lane.b32.xlu0 %v1101, 8
  %v1140 = vpop.permute.xlu0 %1139
  %1141 = vrot.lane.b32.xlu0 %v1103, 8
  %v1142 = vpop.permute.xlu0 %1141
  %vm1156 = vcmask 97344
  %1157 = vst.msk [vmem:[%s5] sm:$0xff] %vm1156, %v1118
  %1158 = vst.msk [vmem:[%s5 + $0x8] sm:$0xff] %vm1156, %v1120
  %1159 = vst.msk [vmem:[%s5 + $0x10] sm:$0xff] %vm1156, %v1122
  %1160 = vst.msk [vmem:[%s5 + $0x18] sm:$0xff] %vm1156, %v1124
  %1161 = vst.msk [vmem:[%s5 + $0x20] sm:$0xff] %vm1156, %v1126
  %1162 = vst.msk [vmem:[%s5 + $0x28] sm:$0xff] %vm1156, %v1128
  %1163 = vst.msk [vmem:[%s5 + $0x30] sm:$0xff] %vm1156, %v1130
  %1164 = vst.msk [vmem:[%s5 + $0x38] sm:$0xff] %vm1156, %v1132
  %1165 = vst.msk [vmem:[%s5 + $0x40] sm:$0xff] %vm1156, %v1134
  %1166 = vst.msk [vmem:[%s5 + $0x48] sm:$0xff] %vm1156, %v1136
  %1167 = vst.msk [vmem:[%s5 + $0x50] sm:$0xff] %vm1156, %v1138
  %1168 = vst.msk [vmem:[%s5 + $0x58] sm:$0xff] %vm1156, %v1140
  %vm1169 = vcmask 91200
  %1170 = vst.msk [vmem:[%s5 + $0x60] sm:$0x3] %vm1169, %v1142
  %v1171 = vld [vmem:[%s3] sm:$0xff]
  %v1172 = vld [vmem:[%s3 + $0x8] sm:$0xff]
  %v1173 = vld [vmem:[%s4] sm:$0x1]
  %v1175 = vlaneseq
  %v1176 = vshrl.u32 %v1175, 7
  %v1177 = vsub.s32 0, %v1176
  %v1178 = vrot.slane %v1173, %v1177
  %1180 = vrot.lane.b32.xlu0 %v214, 80
  %v1181 = vpop.permute.xlu0 %1180
  %1182 = vrot.lane.b32.xlu0 %v215, 80
  %v1183 = vpop.permute.xlu0 %1182
  %1184 = vrot.lane.b32.xlu0 %v216, 80
  %v1185 = vpop.permute.xlu0 %1184
  %1186 = vrot.lane.b32.xlu0 %v217, 80
  %v1187 = vpop.permute.xlu0 %1186
  %1188 = vrot.lane.b32.xlu0 %v218, 80
  %v1189 = vpop.permute.xlu0 %1188
  %1190 = vrot.lane.b32.xlu0 %v219, 80
  %v1191 = vpop.permute.xlu0 %1190
  %1192 = vrot.lane.b32.xlu0 %v220, 80
  %v1193 = vpop.permute.xlu0 %1192
  %1194 = vrot.lane.b32.xlu0 %v221, 80
  %v1195 = vpop.permute.xlu0 %1194
  %1196 = vrot.lane.b32.xlu0 %v222, 80
  %v1197 = vpop.permute.xlu0 %1196
  %1198 = vrot.lane.b32.xlu0 %v223, 80
  %v1199 = vpop.permute.xlu0 %1198
  %1200 = vrot.lane.b32.xlu0 %v224, 80
  %v1201 = vpop.permute.xlu0 %1200
  %1202 = vrot.lane.b32.xlu0 %v225, 80
  %v1203 = vpop.permute.xlu0 %1202
  %1204 = vrot.lane.b32.xlu0 %v226, 80
  %v1205 = vpop.permute.xlu0 %1204
  %v1206 = vsel %vm236, %v1181, 0
  %v1208 = vsel %vm236, %v1183, 0
  %v1210 = vsel %vm236, %v1185, 0
  %v1212 = vsel %vm236, %v1187, 0
  %v1214 = vsel %vm236, %v1189, 0
  %v1216 = vsel %vm236, %v1191, 0
  %v1218 = vsel %vm236, %v1193, 0
  %v1220 = vsel %vm236, %v1195, 0
  %v1222 = vsel %vm236, %v1197, 0
  %v1224 = vsel %vm236, %v1199, 0
  %v1226 = vsel %vm236, %v1201, 0
  %v1228 = vsel %vm236, %v1203, 0
  %v1230 = vsel %vm236, %v1205, 0
  %1232 = vmatprep.subr.mxu0 0.0
  %1233 = vmatpush1.msra.mxu0 %v1171
  %1234 = vmatprep.subr.mxu0 0.0
  %1235 = vmatpush1.msra.mxu0 %v1172
  %1236 = vmatprep.subr.mxu0 0.0
  %1237 = vmatpush1.msra.mxu0 0.0
  %1238 = vmatprep.subr.mxu0 0.0
  %1239 = vmatpush1.msra.mxu0 0.0
  %1240 = vmatprep.subr.mxu0 0.0
  %1241 = vmatpush1.msra.mxu0 0.0
  %1242 = vmatprep.subr.mxu0 0.0
  %1243 = vmatpush1.msra.mxu0 0.0
  %1244 = vmatprep.subr.mxu0 0.0
  %1245 = vmatpush1.msra.mxu0 0.0
  %1246 = vmatprep.subr.mxu0 0.0
  %1247 = vmatpush1.msra.mxu0 0.0
  %1248 = vmatprep.subr.mxu0 0.0
  %1249 = vmatpush1.msra.mxu0 0.0
  %1250 = vmatprep.subr.mxu0 0.0
  %1251 = vmatpush1.msra.mxu0 0.0
  %1252 = vmatprep.subr.mxu0 0.0
  %1253 = vmatpush1.msra.mxu0 0.0
  %1254 = vmatprep.subr.mxu0 0.0
  %1255 = vmatpush1.msra.mxu0 0.0
  %1256 = vmatprep.subr.mxu0 0.0
  %1257 = vmatpush1.msra.mxu0 0.0
  %1258 = vmatprep.subr.mxu0 0.0
  %1259 = vmatpush1.msra.mxu0 0.0
  %1260 = vmatprep.subr.mxu0 0.0
  %1261 = vmatpush1.msra.mxu0 0.0
  %1262 = vmatprep.subr.mxu0 0.0
  %1263 = vmatpush1.msra.mxu0 0.0
  %1264 = vmatprep.subr.mxu0 0.0
  %1265 = vmatpush1.msra.mxu0 0.0
  %1266 = vmatprep.subr.mxu0 0.0
  %1267 = vmatpush1.msra.mxu0 0.0
  %1268 = vmatprep.subr.mxu0 0.0
  %1269 = vmatpush1.msra.mxu0 0.0
  %1270 = vmatprep.subr.mxu0 0.0
  %1271 = vmatpush1.msra.mxu0 0.0
  %1272 = vmatprep.subr.mxu0 0.0
  %1273 = vmatpush1.msra.mxu0 0.0
  %1274 = vmatprep.subr.mxu0 0.0
  %1275 = vmatpush1.msra.mxu0 0.0
  %1276 = vmatprep.subr.mxu0 0.0
  %1277 = vmatpush1.msra.mxu0 0.0
  %1278 = vmatprep.subr.mxu0 0.0
  %1279 = vmatpush1.msra.mxu0 0.0
  %1280 = vmatprep.subr.mxu0 0.0
  %1281 = vmatpush1.msra.mxu0 0.0
  %1282 = vmatprep.subr.mxu0 0.0
  %1283 = vmatpush1.msra.mxu0 0.0
  %1284 = vmatprep.subr.mxu0 0.0
  %1285 = vmatpush1.msra.mxu0 0.0
  %1286 = vmatprep.subr.mxu0 0.0
  %1287 = vmatpush1.msra.mxu0 0.0
  %1288 = vmatprep.subr.mxu0 0.0
  %1289 = vmatpush1.msra.mxu0 0.0
  %1290 = vmatprep.subr.mxu0 0.0
  %1291 = vmatpush1.msra.mxu0 0.0
  %1292 = vmatprep.subr.mxu0 0.0
  %1293 = vmatpush1.msra.mxu0 0.0
  %1294 = vmatprep.subr.mxu0 0.0
  %1295 = vmatpush1.msra.mxu0 0.0
  %1296 = vmatprep.mubr.f32.mxu0 0.0
  %1297 = vmatmul.mubr.f32.gmra.mrb[0].mxu0 %v1206
  %v1298 = vpop.f32.mrb[0].mxu0
  %v1299 = vadd.f32 %v1178, %v1298
  %v1300 = vpop.f32.mrb[0].mxu0
  %1301 = vmatprep.mubr.f32.mxu0 0.0
  %1302 = vmatmul.mubr.f32.gmra.mrb[0].mxu0 %v1208
  %v1303 = vpop.f32.mrb[0].mxu0
  %v1304 = vadd.f32 %v1178, %v1303
  %v1305 = vpop.f32.mrb[0].mxu0
  %1306 = vmatprep.mubr.f32.mxu0 0.0
  %1307 = vmatmul.mubr.f32.gmra.mrb[0].mxu0 %v1210
  %v1308 = vpop.f32.mrb[0].mxu0
  %v1309 = vadd.f32 %v1178, %v1308
  %v1310 = vpop.f32.mrb[0].mxu0
  %1311 = vmatprep.mubr.f32.mxu0 0.0
  %1312 = vmatmul.mubr.f32.gmra.mrb[0].mxu0 %v1212
  %v1313 = vpop.f32.mrb[0].mxu0
  %v1314 = vadd.f32 %v1178, %v1313
  %v1315 = vpop.f32.mrb[0].mxu0
  %1316 = vmatprep.mubr.f32.mxu0 0.0
  %1317 = vmatmul.mubr.f32.gmra.mrb[0].mxu0 %v1214
  %v1318 = vpop.f32.mrb[0].mxu0
  %v1319 = vadd.f32 %v1178, %v1318
  %v1320 = vpop.f32.mrb[0].mxu0
  %1321 = vmatprep.mubr.f32.mxu0 0.0
  %1322 = vmatmul.mubr.f32.gmra.mrb[0].mxu0 %v1216
  %v1323 = vpop.f32.mrb[0].mxu0
  %v1324 = vadd.f32 %v1178, %v1323
  %v1325 = vpop.f32.mrb[0].mxu0
  %1326 = vmatprep.mubr.f32.mxu0 0.0
  %1327 = vmatmul.mubr.f32.gmra.mrb[0].mxu0 %v1218
  %v1328 = vpop.f32.mrb[0].mxu0
  %v1329 = vadd.f32 %v1178, %v1328
  %v1330 = vpop.f32.mrb[0].mxu0
  %1331 = vmatprep.mubr.f32.mxu0 0.0
  %1332 = vmatmul.mubr.f32.gmra.mrb[0].mxu0 %v1220
  %v1333 = vpop.f32.mrb[0].mxu0
  %v1334 = vadd.f32 %v1178, %v1333
  %v1335 = vpop.f32.mrb[0].mxu0
  %1336 = vmatprep.mubr.f32.mxu0 0.0
  %1337 = vmatmul.mubr.f32.gmra.mrb[0].mxu0 %v1222
  %v1338 = vpop.f32.mrb[0].mxu0
  %v1339 = vadd.f32 %v1178, %v1338
  %v1340 = vpop.f32.mrb[0].mxu0
  %1341 = vmatprep.mubr.f32.mxu0 0.0
  %1342 = vmatmul.mubr.f32.gmra.mrb[0].mxu0 %v1224
  %v1343 = vpop.f32.mrb[0].mxu0
  %v1344 = vadd.f32 %v1178, %v1343
  %v1345 = vpop.f32.mrb[0].mxu0
  %1346 = vmatprep.mubr.f32.mxu0 0.0
  %1347 = vmatmul.mubr.f32.gmra.mrb[0].mxu0 %v1226
  %v1348 = vpop.f32.mrb[0].mxu0
  %v1349 = vadd.f32 %v1178, %v1348
  %v1350 = vpop.f32.mrb[0].mxu0
  %1351 = vmatprep.mubr.f32.mxu0 0.0
  %1352 = vmatmul.mubr.f32.gmra.mrb[0].mxu0 %v1228
  %v1353 = vpop.f32.mrb[0].mxu0
  %v1354 = vadd.f32 %v1178, %v1353
  %v1355 = vpop.f32.mrb[0].mxu0
  %1356 = vmatprep.mubr.f32.mxu0 0.0
  %1357 = vmatmul.mubr.f32.gmra.mrb[0].mxu0 %v1230
  %v1358 = vpop.f32.mrb[0].mxu0
  %v1359 = vadd.f32 %v1178, %v1358
  %v1360 = vpop.f32.mrb[0].mxu0
  %1361 = vdwg.mxu0
  %v1362 = vxor.u32 %v1299, 2147483648
  %v1363 = vxor.u32 %v1304, 2147483648
  %v1364 = vxor.u32 %v1309, 2147483648
  %v1365 = vxor.u32 %v1314, 2147483648
  %v1366 = vxor.u32 %v1319, 2147483648
  %v1367 = vxor.u32 %v1324, 2147483648
  %v1368 = vxor.u32 %v1329, 2147483648
  %v1369 = vxor.u32 %v1334, 2147483648
  %v1370 = vxor.u32 %v1339, 2147483648
  %v1371 = vxor.u32 %v1344, 2147483648
  %v1372 = vxor.u32 %v1349, 2147483648
  %v1373 = vxor.u32 %v1354, 2147483648
  %v1374 = vxor.u32 %v1359, 2147483648
  %v1375 = vmul.f32 %v1362, 1.442695
  %v1376 = vpow.pop %v1375
  %v1377 = vmul.f32 %v1363, 1.442695
  %v1378 = vpow.pop %v1377
  %v1379 = vmul.f32 %v1364, 1.442695
  %v1380 = vpow.pop %v1379
  %v1381 = vmul.f32 %v1365, 1.442695
  %v1382 = vpow.pop %v1381
  %v1383 = vmul.f32 %v1366, 1.442695
  %v1384 = vpow.pop %v1383
  %v1385 = vmul.f32 %v1367, 1.442695
  %v1386 = vpow.pop %v1385
  %v1387 = vmul.f32 %v1368, 1.442695
  %v1388 = vpow.pop %v1387
  %v1389 = vmul.f32 %v1369, 1.442695
  %v1390 = vpow.pop %v1389
  %v1391 = vmul.f32 %v1370, 1.442695
  %v1392 = vpow.pop %v1391
  %v1393 = vmul.f32 %v1371, 1.442695
  %v1394 = vpow.pop %v1393
  %v1395 = vmul.f32 %v1372, 1.442695
  %v1396 = vpow.pop %v1395
  %v1397 = vmul.f32 %v1373, 1.442695
  %v1398 = vpow.pop %v1397
  %v1399 = vmul.f32 %v1374, 1.442695
  %v1400 = vpow.pop %v1399
  %v1401 = vadd.f32 %v1376, 1.0
  %v1402 = vadd.f32 %v1378, 1.0
  %v1403 = vadd.f32 %v1380, 1.0
  %v1404 = vadd.f32 %v1382, 1.0
  %v1405 = vadd.f32 %v1384, 1.0
  %v1406 = vadd.f32 %v1386, 1.0
  %v1407 = vadd.f32 %v1388, 1.0
  %v1408 = vadd.f32 %v1390, 1.0
  %v1409 = vadd.f32 %v1392, 1.0
  %v1410 = vadd.f32 %v1394, 1.0
  %v1411 = vadd.f32 %v1396, 1.0
  %v1412 = vadd.f32 %v1398, 1.0
  %v1413 = vadd.f32 %v1400, 1.0
  %v1414 = vrcp.pop %v1401
  %v1415 = vmul.f32 1.0, %v1414
  %v1416 = vrcp.pop %v1402
  %v1417 = vmul.f32 1.0, %v1416
  %v1418 = vrcp.pop %v1403
  %v1419 = vmul.f32 1.0, %v1418
  %v1420 = vrcp.pop %v1404
  %v1421 = vmul.f32 1.0, %v1420
  %v1422 = vrcp.pop %v1405
  %v1423 = vmul.f32 1.0, %v1422
  %v1424 = vrcp.pop %v1406
  %v1425 = vmul.f32 1.0, %v1424
  %v1426 = vrcp.pop %v1407
  %v1427 = vmul.f32 1.0, %v1426
  %v1428 = vrcp.pop %v1408
  %v1429 = vmul.f32 1.0, %v1428
  %v1430 = vrcp.pop %v1409
  %v1431 = vmul.f32 1.0, %v1430
  %v1432 = vrcp.pop %v1410
  %v1433 = vmul.f32 1.0, %v1432
  %v1434 = vrcp.pop %v1411
  %v1435 = vmul.f32 1.0, %v1434
  %v1436 = vrcp.pop %v1412
  %v1437 = vmul.f32 1.0, %v1436
  %v1438 = vrcp.pop %v1413
  %v1439 = vmul.f32 1.0, %v1438
  %1453 = vrot.lane.b32.xlu0 %v1415, 12
  %v1454 = vpop.permute.xlu0 %1453
  %1455 = vrot.lane.b32.xlu0 %v1417, 12
  %v1456 = vpop.permute.xlu0 %1455
  %1457 = vrot.lane.b32.xlu0 %v1419, 12
  %v1458 = vpop.permute.xlu0 %1457
  %1459 = vrot.lane.b32.xlu0 %v1421, 12
  %v1460 = vpop.permute.xlu0 %1459
  %1461 = vrot.lane.b32.xlu0 %v1423, 12
  %v1462 = vpop.permute.xlu0 %1461
  %1463 = vrot.lane.b32.xlu0 %v1425, 12
  %v1464 = vpop.permute.xlu0 %1463
  %1465 = vrot.lane.b32.xlu0 %v1427, 12
  %v1466 = vpop.permute.xlu0 %1465
  %1467 = vrot.lane.b32.xlu0 %v1429, 12
  %v1468 = vpop.permute.xlu0 %1467
  %1469 = vrot.lane.b32.xlu0 %v1431, 12
  %v1470 = vpop.permute.xlu0 %1469
  %1471 = vrot.lane.b32.xlu0 %v1433, 12
  %v1472 = vpop.permute.xlu0 %1471
  %1473 = vrot.lane.b32.xlu0 %v1435, 12
  %v1474 = vpop.permute.xlu0 %1473
  %1475 = vrot.lane.b32.xlu0 %v1437, 12
  %v1476 = vpop.permute.xlu0 %1475
  %1477 = vrot.lane.b32.xlu0 %v1439, 12
  %v1478 = vpop.permute.xlu0 %1477
  %vm1492 = vcmask 130144
  %1493 = vst.msk [vmem:[%s5] sm:$0xff] %vm1492, %v1454
  %1494 = vst.msk [vmem:[%s5 + $0x8] sm:$0xff] %vm1492, %v1456
  %1495 = vst.msk [vmem:[%s5 + $0x10] sm:$0xff] %vm1492, %v1458
  %1496 = vst.msk [vmem:[%s5 + $0x18] sm:$0xff] %vm1492, %v1460
  %1497 = vst.msk [vmem:[%s5 + $0x20] sm:$0xff] %vm1492, %v1462
  %1498 = vst.msk [vmem:[%s5 + $0x28] sm:$0xff] %vm1492, %v1464
  %1499 = vst.msk [vmem:[%s5 + $0x30] sm:$0xff] %vm1492, %v1466
  %1500 = vst.msk [vmem:[%s5 + $0x38] sm:$0xff] %vm1492, %v1468
  %1501 = vst.msk [vmem:[%s5 + $0x40] sm:$0xff] %vm1492, %v1470
  %1502 = vst.msk [vmem:[%s5 + $0x48] sm:$0xff] %vm1492, %v1472
  %1503 = vst.msk [vmem:[%s5 + $0x50] sm:$0xff] %vm1492, %v1474
  %1504 = vst.msk [vmem:[%s5 + $0x58] sm:$0xff] %vm1492, %v1476
  %vm1505 = vcmask 124000
  %1506 = vst.msk [vmem:[%s5 + $0x60] sm:$0x3] %vm1505, %v1478
  // Predicated region
  $region22: #{forward.7} parent=0 // pred_check
    _
  $region23: #{forward.7} parent=0 // pred_check_branch
    %1508 = sbr.rel (0) target = $region25
  $region24: #{forward.7} parent=0 // pred_region
    _
  $region25: #{forward.7} parent=0 // pred_fallthru
    _
  // Predicated region
  $region26: #{forward.7} parent=0 // pred_check
    _
  $region27: #{forward.7} parent=0 // pred_check_branch
    %1510 = sbr.rel (0) target = $region29
  $region28: #{forward.7} parent=0 // pred_region
    _
  $region29: #{forward.7} parent=0 // pred_fallthru
    _

// kernel: forward.6
$region0: #{forward.6}
  #allocation0 [shape = 'u32[]', space=smem, size = 0x4, offset = 0x4, fixed_abs, tag = 'smem constant byte address 0x4 - core index']
  #allocation1 [shape = 'u32[144,128]{1,0:T(1,128)}', space=vmem, size = 0x12000, scoped, tag = 'internal scratch']
  %s0 = inlined_call_operand.smem [shape: u32[31], index: -1, kind: input, shape index: {}]
  %s1 = sld [smem:[%s0]]
  %s2 = scalar_lea.smem %s0, 1
  %s3 = sld [smem:[%s2]]
  %s4 = scalar_lea.smem %s0, 2
  %s5 = sld [smem:[%s4]]
  %s6 = scalar_lea.smem %s0, 3
  %s7 = sld [smem:[%s6]]
  %s8 = scalar_lea.smem %s0, 4
  %s9 = sld [smem:[%s8]]
  %s10 = scalar_lea.smem %s0, 5
  %s11 = sld [smem:[%s10]]
  %s12 = scalar_lea.smem %s0, 6
  %s13 = sld [smem:[%s12]]
  %s14 = scalar_lea.smem %s0, 7
  %s15 = sld [smem:[%s14]]
  %s16 = scalar_lea.smem %s0, 8
  %s17 = sld [smem:[%s16]]
  %s18 = scalar_lea.smem %s0, 9
  %s19 = sld [smem:[%s18]]
  %s20 = scalar_lea.smem %s0, 10
  %s21 = sld [smem:[%s20]]
  %s22 = scalar_lea.smem %s0, 11
  %s23 = sld [smem:[%s22]]
  %s24 = scalar_lea.smem %s0, 12
  %s25 = sld [smem:[%s24]]
  %s26 = scalar_lea.smem %s0, 13
  %s27 = sld [smem:[%s26]]
  %s28 = scalar_lea.smem %s0, 14
  %s29 = sld [smem:[%s28]]
  %s30 = scalar_lea.smem %s0, 15
  %s31 = sld [smem:[%s30]]
  %s32 = scalar_lea.smem %s0, 16
  %s33 = sld [smem:[%s32]]
  %s34 = scalar_lea.smem %s0, 17
  %s35 = sld [smem:[%s34]]
  %s36 = scalar_lea.smem %s0, 18
  %s37 = sld [smem:[%s36]]
  %s38 = scalar_lea.smem %s0, 19
  %s39 = sld [smem:[%s38]]
  %s40 = scalar_lea.smem %s0, 20
  %s41 = sld [smem:[%s40]]
  %s42 = scalar_lea.smem %s0, 21
  %s43 = sld [smem:[%s42]]
  %s44 = scalar_lea.smem %s0, 22
  %s45 = sld [smem:[%s44]]
  %s46 = scalar_lea.smem %s0, 23
  %s47 = sld [smem:[%s46]]
  %s48 = scalar_lea.smem %s0, 24
  %s49 = sld [smem:[%s48]]
  %s50 = scalar_lea.smem %s0, 25
  %s51 = sld [smem:[%s50]]
  %s52 = scalar_lea.smem %s0, 26
  %s53 = sld [smem:[%s52]]
  %s54 = scalar_lea.smem %s0, 27
  %s55 = sld [smem:[%s54]]
  %s56 = scalar_lea.smem %s0, 28
  %s57 = sld [smem:[%s56]]
  %s58 = scalar_lea.smem %s0, 29
  %s59 = sld [smem:[%s58]]
  %s60 = scalar_lea.smem %s0, 30
  %s61 = sld [smem:[%s60]]
  %62 = xla_tuple %s53, %s55, %s57, %s59, %s61
  %s63 = sld [smem:[#allocation0]]
  $region146: #{forward.6} parent=0
    _
  %s65 = ssub.s32 1, %s63
  %s66 = scalar_select 0, %s65, %s63
  $region1: #{forward.6} parent=0
    #allocation2 [shape = 'u8[1024]{0}', space=vmem, size = 0x400, scoped, tag = 'output window, operand 0, single buffered']
    #allocation3 [shape = 's32[1]{0}', space=sflag, size = 0x4, scoped, tag = 'scoped memory for forward.6']
    #allocation4 [shape = 'u8[1024]{0}', space=vmem, size = 0x400, scoped, tag = 'output window, operand 1, single buffered']
    #allocation5 [shape = 's32[1]{0}', space=sflag, size = 0x4, scoped, tag = 'scoped memory for forward.6']
    #allocation6 [shape = 'u8[1024]{0}', space=vmem, size = 0x400, scoped, tag = 'output window, operand 2, single buffered']
    %67 = vsyncpa [#allocation3], 0
    %68 = vsyncpa [#allocation5], 0
    // Predicated region
    $region2: #{forward.6} parent=1 // pred_check
      _
    $region3: #{forward.6} parent=1 // pred_check_branch
      %70 = sbr.rel (0) target = $region5
    $region4: #{forward.6} parent=1 // pred_region
      _
    $region5: #{forward.6} parent=1 // pred_fallthru
      _
    // Predicated region
    $region6: #{forward.6} parent=1 // pred_check
      _
    $region7: #{forward.6} parent=1 // pred_check_branch
      %72 = sbr.rel (0) target = $region9
    $region8: #{forward.6} parent=1 // pred_region
      _
    $region9: #{forward.6} parent=1 // pred_fallthru
      _
    // Predicated region
    $region10: #{forward.6} parent=1 // pred_check
      _
    $region11: #{forward.6} parent=1 // pred_check_branch
      %74 = sbr.rel (0) target = $region13
    $region12: #{forward.6} parent=1 // pred_region
      _
    $region13: #{forward.6} parent=1 // pred_fallthru
      _
    // Predicated region
    $region14: #{forward.6} parent=1 // pred_check
      _
    $region15: #{forward.6} parent=1 // pred_check_branch
      %76 = sbr.rel (0) target = $region17
    $region16: #{forward.6} parent=1 // pred_region
      _
    $region17: #{forward.6} parent=1 // pred_fallthru
      _
    // Predicated region
    $region18: #{forward.6} parent=1 // pred_check
      _
    $region19: #{forward.6} parent=1 // pred_check_branch
      %78 = sbr.rel (0) target = $region21
    $region20: #{forward.6} parent=1 // pred_region
      _
    $region21: #{forward.6} parent=1 // pred_fallthru
      _
    // Predicated region
    $region22: #{forward.6} parent=1 // pred_check
      _
    $region23: #{forward.6} parent=1 // pred_check_branch
      %80 = sbr.rel (0) target = $region25
    $region24: #{forward.6} parent=1 // pred_region
      _
    $region25: #{forward.6} parent=1 // pred_fallthru
      _
    // Predicated region
    $region26: #{forward.6} parent=1 // pred_check
      _
    $region27: #{forward.6} parent=1 // pred_check_branch
      %82 = sbr.rel (0) target = $region29
    $region28: #{forward.6} parent=1 // pred_region
      _
    $region29: #{forward.6} parent=1 // pred_fallthru
      _
    // Predicated region
    $region30: #{forward.6} parent=1 // pred_check
      _
    $region31: #{forward.6} parent=1 // pred_check_branch
      %84 = sbr.rel (0) target = $region33
    $region32: #{forward.6} parent=1 // pred_region
      _
    $region33: #{forward.6} parent=1 // pred_fallthru
      _
    // Predicated region
    $region34: #{forward.6} parent=1 // pred_check
      _
    $region35: #{forward.6} parent=1 // pred_check_branch
      %86 = sbr.rel (0) target = $region37
    $region36: #{forward.6} parent=1 // pred_region
      _
    $region37: #{forward.6} parent=1 // pred_fallthru
      _
    // Predicated region
    $region38: #{forward.6} parent=1 // pred_check
      _
    $region39: #{forward.6} parent=1 // pred_check_branch
      %88 = sbr.rel (0) target = $region41
    $region40: #{forward.6} parent=1 // pred_region
      _
    $region41: #{forward.6} parent=1 // pred_fallthru
      _
    // Predicated region
    $region42: #{forward.6} parent=1 // pred_check
      _
    $region43: #{forward.6} parent=1 // pred_check_branch
      %90 = sbr.rel (0) target = $region45
    $region44: #{forward.6} parent=1 // pred_region
      _
    $region45: #{forward.6} parent=1 // pred_fallthru
      _
    // Predicated region
    $region46: #{forward.6} parent=1 // pred_check
      _
    $region47: #{forward.6} parent=1 // pred_check_branch
      %92 = sbr.rel (0) target = $region49
    $region48: #{forward.6} parent=1 // pred_region
      _
    $region49: #{forward.6} parent=1 // pred_fallthru
      _
    // Predicated region
    $region50: #{forward.6} parent=1 // pred_check
      _
    $region51: #{forward.6} parent=1 // pred_check_branch
      %94 = sbr.rel (0) target = $region53
    $region52: #{forward.6} parent=1 // pred_region
      _
    $region53: #{forward.6} parent=1 // pred_fallthru
      _
    // Predicated region
    $region54: #{forward.6} parent=1 // pred_check
      _
    $region55: #{forward.6} parent=1 // pred_check_branch
      %96 = sbr.rel (0) target = $region57
    $region56: #{forward.6} parent=1 // pred_region
      _
    $region57: #{forward.6} parent=1 // pred_fallthru
      _
    // Predicated region
    $region58: #{forward.6} parent=1 // pred_check
      _
    $region59: #{forward.6} parent=1 // pred_check_branch
      %98 = sbr.rel (0) target = $region61
    $region60: #{forward.6} parent=1 // pred_region
      _
    $region61: #{forward.6} parent=1 // pred_fallthru
      _
    // Predicated region
    $region62: #{forward.6} parent=1 // pred_check
      _
    $region63: #{forward.6} parent=1 // pred_check_branch
      %100 = sbr.rel (0) target = $region65
    $region64: #{forward.6} parent=1 // pred_region
      _
    $region65: #{forward.6} parent=1 // pred_fallthru
      _
    // Predicated region
    $region66: #{forward.6} parent=1 // pred_check
      _
    $region67: #{forward.6} parent=1 // pred_check_branch
      %102 = sbr.rel (0) target = $region69
    $region68: #{forward.6} parent=1 // pred_region
      _
    $region69: #{forward.6} parent=1 // pred_fallthru
      _
    // Predicated region
    $region70: #{forward.6} parent=1 // pred_check
      _
    $region71: #{forward.6} parent=1 // pred_check_branch
      %104 = sbr.rel (0) target = $region73
    $region72: #{forward.6} parent=1 // pred_region
      _
    $region73: #{forward.6} parent=1 // pred_fallthru
      _
    // Predicated region
    $region74: #{forward.6} parent=1 // pred_check
      _
    $region75: #{forward.6} parent=1 // pred_check_branch
      %106 = sbr.rel (0) target = $region77
    $region76: #{forward.6} parent=1 // pred_region
      _
    $region77: #{forward.6} parent=1 // pred_fallthru
      _
    // Predicated region
    $region78: #{forward.6} parent=1 // pred_check
      _
    $region79: #{forward.6} parent=1 // pred_check_branch
      %108 = sbr.rel (0) target = $region81
    $region80: #{forward.6} parent=1 // pred_region
      _
    $region81: #{forward.6} parent=1 // pred_fallthru
      _
    // Predicated region
    $region82: #{forward.6} parent=1 // pred_check
      _
    $region83: #{forward.6} parent=1 // pred_check_branch
      %110 = sbr.rel (0) target = $region85
    $region84: #{forward.6} parent=1 // pred_region
      _
    $region85: #{forward.6} parent=1 // pred_fallthru
      _
    // Predicated region
    $region86: #{forward.6} parent=1 // pred_check
      _
    $region87: #{forward.6} parent=1 // pred_check_branch
      %112 = sbr.rel (0) target = $region89
    $region88: #{forward.6} parent=1 // pred_region
      _
    $region89: #{forward.6} parent=1 // pred_fallthru
      _
    // Predicated region
    $region90: #{forward.6} parent=1 // pred_check
      _
    $region91: #{forward.6} parent=1 // pred_check_branch
      %114 = sbr.rel (0) target = $region93
    $region92: #{forward.6} parent=1 // pred_region
      _
    $region93: #{forward.6} parent=1 // pred_fallthru
      _
    // Predicated region
    $region94: #{forward.6} parent=1 // pred_check
      _
    $region95: #{forward.6} parent=1 // pred_check_branch
      %116 = sbr.rel (0) target = $region97
    $region96: #{forward.6} parent=1 // pred_region
      _
    $region97: #{forward.6} parent=1 // pred_fallthru
      _
    // Predicated region
    $region98: #{forward.6} parent=1 // pred_check
      _
    $region99: #{forward.6} parent=1 // pred_check_branch
      %118 = sbr.rel (0) target = $region101
    $region100: #{forward.6} parent=1 // pred_region
      _
    $region101: #{forward.6} parent=1 // pred_fallthru
      _
    // Predicated region
    $region102: #{forward.6} parent=1 // pred_check
      _
    $region103: #{forward.6} parent=1 // pred_check_branch
      %120 = sbr.rel (0) target = $region105
    $region104: #{forward.6} parent=1 // pred_region
      _
    $region105: #{forward.6} parent=1 // pred_fallthru
      _
    %v121 = vld [vmem:[%s1] sm:$0xff]
    %v122 = vld [vmem:[%s1 + $0x8] sm:$0xff]
    %v123 = vld [vmem:[%s1 + $0x10] sm:$0xff]
    %v124 = vld [vmem:[%s1 + $0x18] sm:$0x3]
    %v125 = vld [vmem:[%s5] sm:$0xff]
    %v126 = vld [vmem:[%s5 + $0x8] sm:$0xff]
    %v127 = vld [vmem:[%s5 + $0x10] sm:$0xff]
    %v128 = vld [vmem:[%s5 + $0x18] sm:$0xff]
    %v129 = vld [vmem:[%s5 + $0x20] sm:$0xff]
    %v130 = vld [vmem:[%s5 + $0x28] sm:$0xff]
    %v131 = vld [vmem:[%s5 + $0x30] sm:$0xff]
    %v132 = vld [vmem:[%s5 + $0x38] sm:$0xff]
    %v133 = vld [vmem:[%s5 + $0x40] sm:$0xff]
    %v134 = vld [vmem:[%s5 + $0x48] sm:$0xff]
    %v135 = vld [vmem:[%s5 + $0x50] sm:$0xff]
    %v136 = vld [vmem:[%s5 + $0x58] sm:$0xff]
    %v137 = vld [vmem:[%s5 + $0x60] sm:$0xff]
    %v138 = vld [vmem:[%s5 + $0x68] sm:$0xff]
    %v139 = vld [vmem:[%s5 + $0x70] sm:$0xff]
    %v140 = vld [vmem:[%s5 + $0x78] sm:$0xff]
    %v141 = vld [vmem:[%s5 + $0x80] sm:$0xff]
    %v142 = vld [vmem:[%s5 + $0x88] sm:$0xff]
    %v143 = vld [vmem:[%s5 + $0x90] sm:$0xff]
    %v144 = vld [vmem:[%s5 + $0x98] sm:$0xff]
    %v145 = vld [vmem:[%s5 + $0xa0] sm:$0xff]
    %v146 = vld [vmem:[%s5 + $0xa8] sm:$0xff]
    %v147 = vld [vmem:[%s5 + $0xb0] sm:$0xff]
    %v148 = vld [vmem:[%s5 + $0xb8] sm:$0xff]
    %v149 = vld [vmem:[%s5 + $0xc0] sm:$0xff]
    %v150 = vld [vmem:[%s5 + $0xc8] sm:$0xff]
    %v151 = vld [vmem:[%s5 + $0xd0] sm:$0xff]
    %v152 = vld [vmem:[%s5 + $0xd8] sm:$0xff]
    %v153 = vld [vmem:[%s5 + $0xe0] sm:$0xff]
    %v154 = vld [vmem:[%s5 + $0xe8] sm:$0xff]
    %v155 = vld [vmem:[%s5 + $0xf0] sm:$0xff]
    %v156 = vld [vmem:[%s5 + $0xf8] sm:$0xff]
    %v157 = vld [vmem:[%s5 + $0x100] sm:$0xff]
    %v158 = vld [vmem:[%s5 + $0x108] sm:$0xff]
    %v159 = vld [vmem:[%s5 + $0x110] sm:$0xff]
    %v160 = vld [vmem:[%s5 + $0x118] sm:$0xff]
    %v161 = vld [vmem:[%s5 + $0x120] sm:$0xff]
    %v162 = vld [vmem:[%s5 + $0x128] sm:$0xff]
    %v163 = vld [vmem:[%s5 + $0x130] sm:$0xff]
    %v164 = vld [vmem:[%s5 + $0x138] sm:$0xff]
    %v165 = vld [vmem:[%s5 + $0x140] sm:$0xff]
    %v166 = vld [vmem:[%s5 + $0x148] sm:$0xff]
    %v167 = vld [vmem:[%s5 + $0x150] sm:$0xff]
    %v168 = vld [vmem:[%s5 + $0x158] sm:$0xff]
    %v169 = vld [vmem:[%s5 + $0x160] sm:$0xff]
    %v170 = vld [vmem:[%s5 + $0x168] sm:$0xff]
    %v171 = vld [vmem:[%s5 + $0x170] sm:$0xff]
    %v172 = vld [vmem:[%s5 + $0x178] sm:$0xff]
    %v173 = vld [vmem:[%s5 + $0x180] sm:$0xff]
    %v174 = vld [vmem:[%s5 + $0x188] sm:$0xff]
    %v175 = vld [vmem:[%s5 + $0x190] sm:$0xff]
    %v176 = vld [vmem:[%s5 + $0x198] sm:$0xff]
    %v177 = vld [vmem:[%s5 + $0x1a0] sm:$0xff]
    %v178 = vld [vmem:[%s5 + $0x1a8] sm:$0xff]
    %v179 = vld [vmem:[%s5 + $0x1b0] sm:$0xff]
    %v180 = vld [vmem:[%s5 + $0x1b8] sm:$0xff]
    %v181 = vld [vmem:[%s5 + $0x1c0] sm:$0xff]
    %v182 = vld [vmem:[%s5 + $0x1c8] sm:$0xff]
    %v183 = vld [vmem:[%s5 + $0x1d0] sm:$0xff]
    %v184 = vld [vmem:[%s5 + $0x1d8] sm:$0xff]
    %v185 = vld [vmem:[%s5 + $0x1e0] sm:$0xff]
    %v186 = vld [vmem:[%s5 + $0x1e8] sm:$0xff]
    %v187 = vld [vmem:[%s5 + $0x1f0] sm:$0xff]
    %v188 = vld [vmem:[%s5 + $0x1f8] sm:$0xff]
    %v189 = vld [vmem:[%s5 + $0x200] sm:$0xff]
    %v190 = vld [vmem:[%s5 + $0x208] sm:$0xff]
    %v191 = vld [vmem:[%s5 + $0x210] sm:$0xff]
    %v192 = vld [vmem:[%s5 + $0x218] sm:$0xff]
    %v193 = vld [vmem:[%s5 + $0x220] sm:$0xff]
    %v194 = vld [vmem:[%s5 + $0x228] sm:$0xff]
    %v195 = vld [vmem:[%s5 + $0x230] sm:$0xff]
    %v196 = vld [vmem:[%s5 + $0x238] sm:$0xff]
    %v197 = vld [vmem:[%s5 + $0x240] sm:$0xff]
    %v198 = vld [vmem:[%s5 + $0x248] sm:$0xff]
    %v199 = vld [vmem:[%s5 + $0x250] sm:$0xff]
    %v200 = vld [vmem:[%s5 + $0x258] sm:$0xff]
    %v201 = vld [vmem:[%s5 + $0x260] sm:$0xff]
    %v202 = vld [vmem:[%s5 + $0x268] sm:$0xff]
    %v203 = vld [vmem:[%s5 + $0x270] sm:$0xff]
    %v204 = vld [vmem:[%s5 + $0x278] sm:$0xff]
    %v205 = vld [vmem:[%s5 + $0x280] sm:$0xff]
    %v206 = vld [vmem:[%s5 + $0x288] sm:$0xff]
    %v207 = vld [vmem:[%s5 + $0x290] sm:$0xff]
    %v208 = vld [vmem:[%s5 + $0x298] sm:$0xff]
    %v209 = vld [vmem:[%s5 + $0x2a0] sm:$0xff]
    %v210 = vld [vmem:[%s5 + $0x2a8] sm:$0xff]
    %v211 = vld [vmem:[%s5 + $0x2b0] sm:$0xff]
    %v212 = vld [vmem:[%s5 + $0x2b8] sm:$0xff]
    %v213 = vld [vmem:[%s5 + $0x2c0] sm:$0xff]
    %v214 = vld [vmem:[%s5 + $0x2c8] sm:$0xff]
    %v215 = vld [vmem:[%s5 + $0x2d0] sm:$0xff]
    %v216 = vld [vmem:[%s5 + $0x2d8] sm:$0xff]
    %v217 = vld [vmem:[%s5 + $0x2e0] sm:$0xff]
    %v218 = vld [vmem:[%s5 + $0x2e8] sm:$0xff]
    %v219 = vld [vmem:[%s5 + $0x2f0] sm:$0xff]
    %v220 = vld [vmem:[%s5 + $0x2f8] sm:$0xff]
    %v221 = vld [vmem:[%s5 + $0x300] sm:$0xff]
    %v222 = vld [vmem:[%s5 + $0x308] sm:$0xff]
    %v223 = vld [vmem:[%s5 + $0x310] sm:$0xff]
    %v224 = vld [vmem:[%s5 + $0x318] sm:$0xff]
    %v225 = vld [vmem:[%s5 + $0x320] sm:$0xff]
    %v226 = vld [vmem:[%s5 + $0x328] sm:$0xff]
    %v227 = vld [vmem:[%s5 + $0x330] sm:$0xff]
    %v228 = vld [vmem:[%s5 + $0x338] sm:$0xff]
    %v229 = vld [vmem:[%s5 + $0x340] sm:$0xff]
    %v230 = vld [vmem:[%s5 + $0x348] sm:$0xff]
    %v231 = vld [vmem:[%s5 + $0x350] sm:$0xff]
    %v232 = vld [vmem:[%s5 + $0x358] sm:$0xff]
    %v233 = vld [vmem:[%s5 + $0x360] sm:$0xff]
    %v234 = vld [vmem:[%s5 + $0x368] sm:$0xff]
    %v235 = vld [vmem:[%s5 + $0x370] sm:$0xff]
    %v236 = vld [vmem:[%s5 + $0x378] sm:$0xff]
    %v237 = vld [vmem:[%s5 + $0x380] sm:$0xff]
    %v238 = vld [vmem:[%s5 + $0x388] sm:$0xff]
    %v239 = vld [vmem:[%s5 + $0x390] sm:$0xff]
    %v240 = vld [vmem:[%s5 + $0x398] sm:$0xff]
    %v241 = vld [vmem:[%s5 + $0x3a0] sm:$0xff]
    %v242 = vld [vmem:[%s5 + $0x3a8] sm:$0xff]
    %v243 = vld [vmem:[%s5 + $0x3b0] sm:$0xff]
    %v244 = vld [vmem:[%s5 + $0x3b8] sm:$0xff]
    %v245 = vld [vmem:[%s5 + $0x3c0] sm:$0xff]
    %v246 = vld [vmem:[%s5 + $0x3c8] sm:$0xff]
    %v247 = vld [vmem:[%s5 + $0x3d0] sm:$0xff]
    %v248 = vld [vmem:[%s5 + $0x3d8] sm:$0xff]
    %v249 = vld [vmem:[%s5 + $0x3e0] sm:$0xff]
    %v250 = vld [vmem:[%s5 + $0x3e8] sm:$0xff]
    %v251 = vld [vmem:[%s5 + $0x3f0] sm:$0xff]
    %v252 = vld [vmem:[%s5 + $0x3f8] sm:$0xff]
    %v253 = vld [vmem:[%s5 + $0x400] sm:$0xff]
    %v254 = vld [vmem:[%s5 + $0x408] sm:$0xff]
    %v255 = vld [vmem:[%s5 + $0x410] sm:$0xff]
    %v256 = vld [vmem:[%s5 + $0x418] sm:$0xff]
    %v257 = vld [vmem:[%s5 + $0x420] sm:$0xff]
    %v258 = vld [vmem:[%s5 + $0x428] sm:$0xff]
    %v259 = vld [vmem:[%s5 + $0x430] sm:$0xff]
    %v260 = vld [vmem:[%s5 + $0x438] sm:$0xff]
    %v261 = vld [vmem:[%s5 + $0x440] sm:$0xff]
    %v262 = vld [vmem:[%s5 + $0x448] sm:$0xff]
    %v263 = vld [vmem:[%s5 + $0x450] sm:$0xff]
    %v264 = vld [vmem:[%s5 + $0x458] sm:$0xff]
    %v265 = vld [vmem:[%s5 + $0x460] sm:$0xff]
    %v266 = vld [vmem:[%s5 + $0x468] sm:$0xff]
    %v267 = vld [vmem:[%s5 + $0x470] sm:$0xff]
    %v268 = vld [vmem:[%s5 + $0x478] sm:$0xff]
    %v269 = vld [vmem:[%s5 + $0x480] sm:$0xff]
    %v270 = vld [vmem:[%s5 + $0x488] sm:$0xff]
    %v271 = vld [vmem:[%s5 + $0x490] sm:$0xff]
    %v272 = vld [vmem:[%s5 + $0x498] sm:$0xff]
    %v273 = vld [vmem:[%s5 + $0x4a0] sm:$0xff]
    %v274 = vld [vmem:[%s5 + $0x4a8] sm:$0xff]
    %v275 = vld [vmem:[%s5 + $0x4b0] sm:$0xff]
    %v276 = vld [vmem:[%s5 + $0x4b8] sm:$0xff]
    %v277 = vld [vmem:[%s5 + $0x4c0] sm:$0xff]
    %v278 = vld [vmem:[%s5 + $0x4c8] sm:$0xff]
    %v279 = vld [vmem:[%s5 + $0x4d0] sm:$0xff]
    %v280 = vld [vmem:[%s5 + $0x4d8] sm:$0xff]
    %v281 = vld [vmem:[%s5 + $0x4e0] sm:$0xff]
    %v282 = vld [vmem:[%s5 + $0x4e8] sm:$0xff]
    %v283 = vld [vmem:[%s5 + $0x4f0] sm:$0xff]
    %v284 = vld [vmem:[%s5 + $0x4f8] sm:$0xff]
    %v285 = vld [vmem:[%s5 + $0x500] sm:$0xff]
    %v286 = vld [vmem:[%s5 + $0x508] sm:$0xff]
    %v287 = vld [vmem:[%s5 + $0x510] sm:$0xff]
    %v288 = vld [vmem:[%s5 + $0x518] sm:$0xff]
    %v289 = vld [vmem:[%s5 + $0x520] sm:$0xff]
    %v290 = vld [vmem:[%s5 + $0x528] sm:$0xff]
    %v291 = vld [vmem:[%s5 + $0x530] sm:$0xff]
    %v292 = vld [vmem:[%s5 + $0x538] sm:$0xff]
    %v293 = vld [vmem:[%s5 + $0x540] sm:$0xff]
    %v294 = vld [vmem:[%s5 + $0x548] sm:$0xff]
    %v295 = vld [vmem:[%s5 + $0x550] sm:$0xff]
    %v296 = vld [vmem:[%s5 + $0x558] sm:$0xff]
    %v297 = vld [vmem:[%s5 + $0x560] sm:$0xff]
    %v298 = vld [vmem:[%s5 + $0x568] sm:$0xff]
    %v299 = vld [vmem:[%s5 + $0x570] sm:$0xff]
    %v300 = vld [vmem:[%s5 + $0x578] sm:$0xff]
    %v301 = vld [vmem:[%s5 + $0x580] sm:$0xff]
    %v302 = vld [vmem:[%s5 + $0x588] sm:$0xff]
    %v303 = vld [vmem:[%s5 + $0x590] sm:$0xff]
    %v304 = vld [vmem:[%s5 + $0x598] sm:$0xff]
    %v305 = vld [vmem:[%s5 + $0x5a0] sm:$0xff]
    %v306 = vld [vmem:[%s5 + $0x5a8] sm:$0xff]
    %v307 = vld [vmem:[%s5 + $0x5b0] sm:$0xff]
    %v308 = vld [vmem:[%s5 + $0x5b8] sm:$0xff]
    %v309 = vld [vmem:[%s5 + $0x5c0] sm:$0xff]
    %v310 = vld [vmem:[%s5 + $0x5c8] sm:$0xff]
    %v311 = vld [vmem:[%s5 + $0x5d0] sm:$0xff]
    %v312 = vld [vmem:[%s5 + $0x5d8] sm:$0xff]
    %v313 = vld [vmem:[%s5 + $0x5e0] sm:$0xff]
    %v314 = vld [vmem:[%s5 + $0x5e8] sm:$0xff]
    %v315 = vld [vmem:[%s5 + $0x5f0] sm:$0xff]
    %v316 = vld [vmem:[%s5 + $0x5f8] sm:$0xff]
    %v317 = vld [vmem:[%s5 + $0x600] sm:$0xff]
    %v318 = vld [vmem:[%s5 + $0x608] sm:$0xff]
    %v319 = vld [vmem:[%s5 + $0x610] sm:$0xff]
    %v320 = vld [vmem:[%s5 + $0x618] sm:$0xff]
    %v321 = vld [vmem:[%s7] sm:$0x1]
    %v323 = vlaneseq
    %v324 = vshrl.u32 %v323, 7
    %v325 = vsub.s32 0, %v324
    %v326 = vrot.slane %v321, %v325
    %v332 = vcombine.high %v121, %v121
    %v334 = vunpack.c.l.s4 1983009808
    %v335 = vunpack.c.0.s8 %v334
    %v336 = vlaneseq
    %v337 = vshrl.u32 %v336, 7
    %v338 = vsub.s32 %v335, %v337
    %v339 = vrot.slane %v121, %v338
    %v341 = vunpack.c.l.s4 1983009808
    %v342 = vunpack.c.0.s8 %v341
    %v343 = vlaneseq
    %v344 = vshrl.u32 %v343, 7
    %v345 = vsub.s32 %v342, %v344
    %v346 = vrot.slane %v332, %v345
    %v347 = vcombine.high %v339, %v339
    %v348 = vcombine.high %v346, %v346
    %v349 = vcombine.high %v122, %v122
    %v351 = vunpack.c.l.s4 1983009808
    %v352 = vunpack.c.0.s8 %v351
    %v353 = vlaneseq
    %v354 = vshrl.u32 %v353, 7
    %v355 = vsub.s32 %v352, %v354
    %v356 = vrot.slane %v122, %v355
    %v358 = vunpack.c.l.s4 1983009808
    %v359 = vunpack.c.0.s8 %v358
    %v360 = vlaneseq
    %v361 = vshrl.u32 %v360, 7
    %v362 = vsub.s32 %v359, %v361
    %v363 = vrot.slane %v349, %v362
    %v364 = vcombine.high %v356, %v356
    %v365 = vcombine.high %v363, %v363
    %v366 = vcombine.high %v123, %v123
    %v368 = vunpack.c.l.s4 1983009808
    %v369 = vunpack.c.0.s8 %v368
    %v370 = vlaneseq
    %v371 = vshrl.u32 %v370, 7
    %v372 = vsub.s32 %v369, %v371
    %v373 = vrot.slane %v123, %v372
    %v375 = vunpack.c.l.s4 1983009808
    %v376 = vunpack.c.0.s8 %v375
    %v377 = vlaneseq
    %v378 = vshrl.u32 %v377, 7
    %v379 = vsub.s32 %v376, %v378
    %v380 = vrot.slane %v366, %v379
    %v381 = vcombine.high %v373, %v373
    %v382 = vcombine.high %v380, %v380
    %v384 = vunpack.c.l.s4 1983009808
    %v385 = vunpack.c.0.s8 %v384
    %v386 = vlaneseq
    %v387 = vshrl.u32 %v386, 7
    %v388 = vsub.s32 %v385, %v387
    %v389 = vrot.slane %v124, %v388
    %vm402 = vcmask 261120
    %v403 = vsel %vm402, %v389, 0
    %405 = vmatprep.subr.mxu0 0.0
    %406 = vmatpush1.msra.mxu0 %v125
    %407 = vmatprep.subr.mxu0 0.0
    %408 = vmatpush1.msra.mxu0 %v126
    %409 = vmatprep.subr.mxu0 0.0
    %410 = vmatpush1.msra.mxu0 %v127
    %411 = vmatprep.subr.mxu0 0.0
    %412 = vmatpush1.msra.mxu0 %v128
    %413 = vmatprep.subr.mxu0 0.0
    %414 = vmatpush1.msra.mxu0 %v129
    %415 = vmatprep.subr.mxu0 0.0
    %416 = vmatpush1.msra.mxu0 %v130
    %417 = vmatprep.subr.mxu0 0.0
    %418 = vmatpush1.msra.mxu0 %v131
    %419 = vmatprep.subr.mxu0 0.0
    %420 = vmatpush1.msra.mxu0 %v132
    %421 = vmatprep.subr.mxu0 0.0
    %422 = vmatpush1.msra.mxu0 %v133
    %423 = vmatprep.subr.mxu0 0.0
    %424 = vmatpush1.msra.mxu0 %v134
    %425 = vmatprep.subr.mxu0 0.0
    %426 = vmatpush1.msra.mxu0 %v135
    %427 = vmatprep.subr.mxu0 0.0
    %428 = vmatpush1.msra.mxu0 %v136
    %429 = vmatprep.subr.mxu0 0.0
    %430 = vmatpush1.msra.mxu0 %v137
    %431 = vmatprep.subr.mxu0 0.0
    %432 = vmatpush1.msra.mxu0 %v138
    %433 = vmatprep.subr.mxu0 0.0
    %434 = vmatpush1.msra.mxu0 %v139
    %435 = vmatprep.subr.mxu0 0.0
    %436 = vmatpush1.msra.mxu0 %v140
    %437 = vmatprep.subr.mxu0 0.0
    %438 = vmatpush1.msra.mxu0 %v141
    %439 = vmatprep.subr.mxu0 0.0
    %440 = vmatpush1.msra.mxu0 %v142
    %441 = vmatprep.subr.mxu0 0.0
    %442 = vmatpush1.msra.mxu0 %v143
    %443 = vmatprep.subr.mxu0 0.0
    %444 = vmatpush1.msra.mxu0 %v144
    %445 = vmatprep.subr.mxu0 0.0
    %446 = vmatpush1.msra.mxu0 %v145
    %447 = vmatprep.subr.mxu0 0.0
    %448 = vmatpush1.msra.mxu0 %v146
    %449 = vmatprep.subr.mxu0 0.0
    %450 = vmatpush1.msra.mxu0 %v147
    %451 = vmatprep.subr.mxu0 0.0
    %452 = vmatpush1.msra.mxu0 %v148
    %453 = vmatprep.subr.mxu0 0.0
    %454 = vmatpush1.msra.mxu0 %v149
    %455 = vmatprep.subr.mxu0 0.0
    %456 = vmatpush1.msra.mxu0 %v150
    %457 = vmatprep.subr.mxu0 0.0
    %458 = vmatpush1.msra.mxu0 %v151
    %459 = vmatprep.subr.mxu0 0.0
    %460 = vmatpush1.msra.mxu0 %v152
    %461 = vmatprep.subr.mxu0 0.0
    %462 = vmatpush1.msra.mxu0 %v153
    %463 = vmatprep.subr.mxu0 0.0
    %464 = vmatpush1.msra.mxu0 %v154
    %465 = vmatprep.subr.mxu0 0.0
    %466 = vmatpush1.msra.mxu0 %v155
    %467 = vmatprep.subr.mxu0 0.0
    %468 = vmatpush1.msra.mxu0 %v156
    %469 = vmatprep.mubr.f32.mxu0 %v347
    %470 = vmatmul.mubr.f32.gmra.mrb[0].mxu0 %v339
    %v471 = vpop.f32.mrb[0].mxu0
    %v472 = vadd.f32 %v326, %v471
    %v473 = vpop.f32.mrb[0].mxu0
    %474 = vdwg.mxu0
    %475 = vmatprep.subr.mxu0 0.0
    %476 = vmatpush1.msra.mxu0 %v157
    %477 = vmatprep.subr.mxu0 0.0
    %478 = vmatpush1.msra.mxu0 %v158
    %479 = vmatprep.subr.mxu0 0.0
    %480 = vmatpush1.msra.mxu0 %v159
    %481 = vmatprep.subr.mxu0 0.0
    %482 = vmatpush1.msra.mxu0 %v160
    %483 = vmatprep.subr.mxu0 0.0
    %484 = vmatpush1.msra.mxu0 %v161
    %485 = vmatprep.subr.mxu0 0.0
    %486 = vmatpush1.msra.mxu0 %v162
    %487 = vmatprep.subr.mxu0 0.0
    %488 = vmatpush1.msra.mxu0 %v163
    %489 = vmatprep.subr.mxu0 0.0
    %490 = vmatpush1.msra.mxu0 %v164
    %491 = vmatprep.subr.mxu0 0.0
    %492 = vmatpush1.msra.mxu0 %v165
    %493 = vmatprep.subr.mxu0 0.0
    %494 = vmatpush1.msra.mxu0 %v166
    %495 = vmatprep.subr.mxu0 0.0
    %496 = vmatpush1.msra.mxu0 %v167
    %497 = vmatprep.subr.mxu0 0.0
    %498 = vmatpush1.msra.mxu0 %v168
    %499 = vmatprep.subr.mxu0 0.0
    %500 = vmatpush1.msra.mxu0 %v169
    %501 = vmatprep.subr.mxu0 0.0
    %502 = vmatpush1.msra.mxu0 %v170
    %503 = vmatprep.subr.mxu0 0.0
    %504 = vmatpush1.msra.mxu0 %v171
    %505 = vmatprep.subr.mxu0 0.0
    %506 = vmatpush1.msra.mxu0 %v172
    %507 = vmatprep.subr.mxu0 0.0
    %508 = vmatpush1.msra.mxu0 %v173
    %509 = vmatprep.subr.mxu0 0.0
    %510 = vmatpush1.msra.mxu0 %v174
    %511 = vmatprep.subr.mxu0 0.0
    %512 = vmatpush1.msra.mxu0 %v175
    %513 = vmatprep.subr.mxu0 0.0
    %514 = vmatpush1.msra.mxu0 %v176
    %515 = vmatprep.subr.mxu0 0.0
    %516 = vmatpush1.msra.mxu0 %v177
    %517 = vmatprep.subr.mxu0 0.0
    %518 = vmatpush1.msra.mxu0 %v178
    %519 = vmatprep.subr.mxu0 0.0
    %520 = vmatpush1.msra.mxu0 %v179
    %521 = vmatprep.subr.mxu0 0.0
    %522 = vmatpush1.msra.mxu0 %v180
    %523 = vmatprep.subr.mxu0 0.0
    %524 = vmatpush1.msra.mxu0 %v181
    %525 = vmatprep.subr.mxu0 0.0
    %526 = vmatpush1.msra.mxu0 %v182
    %527 = vmatprep.subr.mxu0 0.0
    %528 = vmatpush1.msra.mxu0 %v183
    %529 = vmatprep.subr.mxu0 0.0
    %530 = vmatpush1.msra.mxu0 %v184
    %531 = vmatprep.subr.mxu0 0.0
    %532 = vmatpush1.msra.mxu0 %v185
    %533 = vmatprep.subr.mxu0 0.0
    %534 = vmatpush1.msra.mxu0 %v186
    %535 = vmatprep.subr.mxu0 0.0
    %536 = vmatpush1.msra.mxu0 %v187
    %537 = vmatprep.subr.mxu0 0.0
    %538 = vmatpush1.msra.mxu0 %v188
    %539 = vmatprep.mubr.f32.mxu0 %v348
    %540 = vmatmul.mubr.f32.gmra.mrb[0].mxu0 %v346
    %v541 = vpop.f32.mrb[0].mxu0
    %v542 = vadd.f32 %v472, %v541
    %v543 = vpop.f32.mrb[0].mxu0
    %544 = vdwg.mxu0
    %545 = vmatprep.subr.mxu0 0.0
    %546 = vmatpush1.msra.mxu0 %v189
    %547 = vmatprep.subr.mxu0 0.0
    %548 = vmatpush1.msra.mxu0 %v190
    %549 = vmatprep.subr.mxu0 0.0
    %550 = vmatpush1.msra.mxu0 %v191
    %551 = vmatprep.subr.mxu0 0.0
    %552 = vmatpush1.msra.mxu0 %v192
    %553 = vmatprep.subr.mxu0 0.0
    %554 = vmatpush1.msra.mxu0 %v193
    %555 = vmatprep.subr.mxu0 0.0
    %556 = vmatpush1.msra.mxu0 %v194
    %557 = vmatprep.subr.mxu0 0.0
    %558 = vmatpush1.msra.mxu0 %v195
    %559 = vmatprep.subr.mxu0 0.0
    %560 = vmatpush1.msra.mxu0 %v196
    %561 = vmatprep.subr.mxu0 0.0
    %562 = vmatpush1.msra.mxu0 %v197
    %563 = vmatprep.subr.mxu0 0.0
    %564 = vmatpush1.msra.mxu0 %v198
    %565 = vmatprep.subr.mxu0 0.0
    %566 = vmatpush1.msra.mxu0 %v199
    %567 = vmatprep.subr.mxu0 0.0
    %568 = vmatpush1.msra.mxu0 %v200
    %569 = vmatprep.subr.mxu0 0.0
    %570 = vmatpush1.msra.mxu0 %v201
    %571 = vmatprep.subr.mxu0 0.0
    %572 = vmatpush1.msra.mxu0 %v202
    %573 = vmatprep.subr.mxu0 0.0
    %574 = vmatpush1.msra.mxu0 %v203
    %575 = vmatprep.subr.mxu0 0.0
    %576 = vmatpush1.msra.mxu0 %v204
    %577 = vmatprep.subr.mxu0 0.0
    %578 = vmatpush1.msra.mxu0 %v205
    %579 = vmatprep.subr.mxu0 0.0
    %580 = vmatpush1.msra.mxu0 %v206
    %581 = vmatprep.subr.mxu0 0.0
    %582 = vmatpush1.msra.mxu0 %v207
    %583 = vmatprep.subr.mxu0 0.0
    %584 = vmatpush1.msra.mxu0 %v208
    %585 = vmatprep.subr.mxu0 0.0
    %586 = vmatpush1.msra.mxu0 %v209
    %587 = vmatprep.subr.mxu0 0.0
    %588 = vmatpush1.msra.mxu0 %v210
    %589 = vmatprep.subr.mxu0 0.0
    %590 = vmatpush1.msra.mxu0 %v211
    %591 = vmatprep.subr.mxu0 0.0
    %592 = vmatpush1.msra.mxu0 %v212
    %593 = vmatprep.subr.mxu0 0.0
    %594 = vmatpush1.msra.mxu0 %v213
    %595 = vmatprep.subr.mxu0 0.0
    %596 = vmatpush1.msra.mxu0 %v214
    %597 = vmatprep.subr.mxu0 0.0
    %598 = vmatpush1.msra.mxu0 %v215
    %599 = vmatprep.subr.mxu0 0.0
    %600 = vmatpush1.msra.mxu0 %v216
    %601 = vmatprep.subr.mxu0 0.0
    %602 = vmatpush1.msra.mxu0 %v217
    %603 = vmatprep.subr.mxu0 0.0
    %604 = vmatpush1.msra.mxu0 %v218
    %605 = vmatprep.subr.mxu0 0.0
    %606 = vmatpush1.msra.mxu0 %v219
    %607 = vmatprep.subr.mxu0 0.0
    %608 = vmatpush1.msra.mxu0 %v220
    %609 = vmatprep.mubr.f32.mxu0 %v364
    %610 = vmatmul.mubr.f32.gmra.mrb[0].mxu0 %v356
    %v611 = vpop.f32.mrb[0].mxu0
    %v612 = vadd.f32 %v542, %v611
    %v613 = vpop.f32.mrb[0].mxu0
    %614 = vdwg.mxu0
    %615 = vmatprep.subr.mxu0 0.0
    %616 = vmatpush1.msra.mxu0 %v221
    %617 = vmatprep.subr.mxu0 0.0
    %618 = vmatpush1.msra.mxu0 %v222
    %619 = vmatprep.subr.mxu0 0.0
    %620 = vmatpush1.msra.mxu0 %v223
    %621 = vmatprep.subr.mxu0 0.0
    %622 = vmatpush1.msra.mxu0 %v224
    %623 = vmatprep.subr.mxu0 0.0
    %624 = vmatpush1.msra.mxu0 %v225
    %625 = vmatprep.subr.mxu0 0.0
    %626 = vmatpush1.msra.mxu0 %v226
    %627 = vmatprep.subr.mxu0 0.0
    %628 = vmatpush1.msra.mxu0 %v227
    %629 = vmatprep.subr.mxu0 0.0
    %630 = vmatpush1.msra.mxu0 %v228
    %631 = vmatprep.subr.mxu0 0.0
    %632 = vmatpush1.msra.mxu0 %v229
    %633 = vmatprep.subr.mxu0 0.0
    %634 = vmatpush1.msra.mxu0 %v230
    %635 = vmatprep.subr.mxu0 0.0
    %636 = vmatpush1.msra.mxu0 %v231
    %637 = vmatprep.subr.mxu0 0.0
    %638 = vmatpush1.msra.mxu0 %v232
    %639 = vmatprep.subr.mxu0 0.0
    %640 = vmatpush1.msra.mxu0 %v233
    %641 = vmatprep.subr.mxu0 0.0
    %642 = vmatpush1.msra.mxu0 %v234
    %643 = vmatprep.subr.mxu0 0.0
    %644 = vmatpush1.msra.mxu0 %v235
    %645 = vmatprep.subr.mxu0 0.0
    %646 = vmatpush1.msra.mxu0 %v236
    %647 = vmatprep.subr.mxu0 0.0
    %648 = vmatpush1.msra.mxu0 %v237
    %649 = vmatprep.subr.mxu0 0.0
    %650 = vmatpush1.msra.mxu0 %v238
    %651 = vmatprep.subr.mxu0 0.0
    %652 = vmatpush1.msra.mxu0 %v239
    %653 = vmatprep.subr.mxu0 0.0
    %654 = vmatpush1.msra.mxu0 %v240
    %655 = vmatprep.subr.mxu0 0.0
    %656 = vmatpush1.msra.mxu0 %v241
    %657 = vmatprep.subr.mxu0 0.0
    %658 = vmatpush1.msra.mxu0 %v242
    %659 = vmatprep.subr.mxu0 0.0
    %660 = vmatpush1.msra.mxu0 %v243
    %661 = vmatprep.subr.mxu0 0.0
    %662 = vmatpush1.msra.mxu0 %v244
    %663 = vmatprep.subr.mxu0 0.0
    %664 = vmatpush1.msra.mxu0 %v245
    %665 = vmatprep.subr.mxu0 0.0
    %666 = vmatpush1.msra.mxu0 %v246
    %667 = vmatprep.subr.mxu0 0.0
    %668 = vmatpush1.msra.mxu0 %v247
    %669 = vmatprep.subr.mxu0 0.0
    %670 = vmatpush1.msra.mxu0 %v248
    %671 = vmatprep.subr.mxu0 0.0
    %672 = vmatpush1.msra.mxu0 %v249
    %673 = vmatprep.subr.mxu0 0.0
    %674 = vmatpush1.msra.mxu0 %v250
    %675 = vmatprep.subr.mxu0 0.0
    %676 = vmatpush1.msra.mxu0 %v251
    %677 = vmatprep.subr.mxu0 0.0
    %678 = vmatpush1.msra.mxu0 %v252
    %679 = vmatprep.mubr.f32.mxu0 %v365
    %680 = vmatmul.mubr.f32.gmra.mrb[0].mxu0 %v363
    %v681 = vpop.f32.mrb[0].mxu0
    %v682 = vadd.f32 %v612, %v681
    %v683 = vpop.f32.mrb[0].mxu0
    %684 = vdwg.mxu0
    %685 = vmatprep.subr.mxu0 0.0
    %686 = vmatpush1.msra.mxu0 %v253
    %687 = vmatprep.subr.mxu0 0.0
    %688 = vmatpush1.msra.mxu0 %v254
    %689 = vmatprep.subr.mxu0 0.0
    %690 = vmatpush1.msra.mxu0 %v255
    %691 = vmatprep.subr.mxu0 0.0
    %692 = vmatpush1.msra.mxu0 %v256
    %693 = vmatprep.subr.mxu0 0.0
    %694 = vmatpush1.msra.mxu0 %v257
    %695 = vmatprep.subr.mxu0 0.0
    %696 = vmatpush1.msra.mxu0 %v258
    %697 = vmatprep.subr.mxu0 0.0
    %698 = vmatpush1.msra.mxu0 %v259
    %699 = vmatprep.subr.mxu0 0.0
    %700 = vmatpush1.msra.mxu0 %v260
    %701 = vmatprep.subr.mxu0 0.0
    %702 = vmatpush1.msra.mxu0 %v261
    %703 = vmatprep.subr.mxu0 0.0
    %704 = vmatpush1.msra.mxu0 %v262
    %705 = vmatprep.subr.mxu0 0.0
    %706 = vmatpush1.msra.mxu0 %v263
    %707 = vmatprep.subr.mxu0 0.0
    %708 = vmatpush1.msra.mxu0 %v264
    %709 = vmatprep.subr.mxu0 0.0
    %710 = vmatpush1.msra.mxu0 %v265
    %711 = vmatprep.subr.mxu0 0.0
    %712 = vmatpush1.msra.mxu0 %v266
    %713 = vmatprep.subr.mxu0 0.0
    %714 = vmatpush1.msra.mxu0 %v267
    %715 = vmatprep.subr.mxu0 0.0
    %716 = vmatpush1.msra.mxu0 %v268
    %717 = vmatprep.subr.mxu0 0.0
    %718 = vmatpush1.msra.mxu0 %v269
    %719 = vmatprep.subr.mxu0 0.0
    %720 = vmatpush1.msra.mxu0 %v270
    %721 = vmatprep.subr.mxu0 0.0
    %722 = vmatpush1.msra.mxu0 %v271
    %723 = vmatprep.subr.mxu0 0.0
    %724 = vmatpush1.msra.mxu0 %v272
    %725 = vmatprep.subr.mxu0 0.0
    %726 = vmatpush1.msra.mxu0 %v273
    %727 = vmatprep.subr.mxu0 0.0
    %728 = vmatpush1.msra.mxu0 %v274
    %729 = vmatprep.subr.mxu0 0.0
    %730 = vmatpush1.msra.mxu0 %v275
    %731 = vmatprep.subr.mxu0 0.0
    %732 = vmatpush1.msra.mxu0 %v276
    %733 = vmatprep.subr.mxu0 0.0
    %734 = vmatpush1.msra.mxu0 %v277
    %735 = vmatprep.subr.mxu0 0.0
    %736 = vmatpush1.msra.mxu0 %v278
    %737 = vmatprep.subr.mxu0 0.0
    %738 = vmatpush1.msra.mxu0 %v279
    %739 = vmatprep.subr.mxu0 0.0
    %740 = vmatpush1.msra.mxu0 %v280
    %741 = vmatprep.subr.mxu0 0.0
    %742 = vmatpush1.msra.mxu0 %v281
    %743 = vmatprep.subr.mxu0 0.0
    %744 = vmatpush1.msra.mxu0 %v282
    %745 = vmatprep.subr.mxu0 0.0
    %746 = vmatpush1.msra.mxu0 %v283
    %747 = vmatprep.subr.mxu0 0.0
    %748 = vmatpush1.msra.mxu0 %v284
    %749 = vmatprep.mubr.f32.mxu0 %v381
    %750 = vmatmul.mubr.f32.gmra.mrb[0].mxu0 %v373
    %v751 = vpop.f32.mrb[0].mxu0
    %v752 = vadd.f32 %v682, %v751
    %v753 = vpop.f32.mrb[0].mxu0
    %754 = vdwg.mxu0
    %755 = vmatprep.subr.mxu0 0.0
    %756 = vmatpush1.msra.mxu0 %v285
    %757 = vmatprep.subr.mxu0 0.0
    %758 = vmatpush1.msra.mxu0 %v286
    %759 = vmatprep.subr.mxu0 0.0
    %760 = vmatpush1.msra.mxu0 %v287
    %761 = vmatprep.subr.mxu0 0.0
    %762 = vmatpush1.msra.mxu0 %v288
    %763 = vmatprep.subr.mxu0 0.0
    %764 = vmatpush1.msra.mxu0 %v289
    %765 = vmatprep.subr.mxu0 0.0
    %766 = vmatpush1.msra.mxu0 %v290
    %767 = vmatprep.subr.mxu0 0.0
    %768 = vmatpush1.msra.mxu0 %v291
    %769 = vmatprep.subr.mxu0 0.0
    %770 = vmatpush1.msra.mxu0 %v292
    %771 = vmatprep.subr.mxu0 0.0
    %772 = vmatpush1.msra.mxu0 %v293
    %773 = vmatprep.subr.mxu0 0.0
    %774 = vmatpush1.msra.mxu0 %v294
    %775 = vmatprep.subr.mxu0 0.0
    %776 = vmatpush1.msra.mxu0 %v295
    %777 = vmatprep.subr.mxu0 0.0
    %778 = vmatpush1.msra.mxu0 %v296
    %779 = vmatprep.subr.mxu0 0.0
    %780 = vmatpush1.msra.mxu0 %v297
    %781 = vmatprep.subr.mxu0 0.0
    %782 = vmatpush1.msra.mxu0 %v298
    %783 = vmatprep.subr.mxu0 0.0
    %784 = vmatpush1.msra.mxu0 %v299
    %785 = vmatprep.subr.mxu0 0.0
    %786 = vmatpush1.msra.mxu0 %v300
    %787 = vmatprep.subr.mxu0 0.0
    %788 = vmatpush1.msra.mxu0 %v301
    %789 = vmatprep.subr.mxu0 0.0
    %790 = vmatpush1.msra.mxu0 %v302
    %791 = vmatprep.subr.mxu0 0.0
    %792 = vmatpush1.msra.mxu0 %v303
    %793 = vmatprep.subr.mxu0 0.0
    %794 = vmatpush1.msra.mxu0 %v304
    %795 = vmatprep.subr.mxu0 0.0
    %796 = vmatpush1.msra.mxu0 %v305
    %797 = vmatprep.subr.mxu0 0.0
    %798 = vmatpush1.msra.mxu0 %v306
    %799 = vmatprep.subr.mxu0 0.0
    %800 = vmatpush1.msra.mxu0 %v307
    %801 = vmatprep.subr.mxu0 0.0
    %802 = vmatpush1.msra.mxu0 %v308
    %803 = vmatprep.subr.mxu0 0.0
    %804 = vmatpush1.msra.mxu0 %v309
    %805 = vmatprep.subr.mxu0 0.0
    %806 = vmatpush1.msra.mxu0 %v310
    %807 = vmatprep.subr.mxu0 0.0
    %808 = vmatpush1.msra.mxu0 %v311
    %809 = vmatprep.subr.mxu0 0.0
    %810 = vmatpush1.msra.mxu0 %v312
    %811 = vmatprep.subr.mxu0 0.0
    %812 = vmatpush1.msra.mxu0 %v313
    %813 = vmatprep.subr.mxu0 0.0
    %814 = vmatpush1.msra.mxu0 %v314
    %815 = vmatprep.subr.mxu0 0.0
    %816 = vmatpush1.msra.mxu0 %v315
    %817 = vmatprep.subr.mxu0 0.0
    %818 = vmatpush1.msra.mxu0 %v316
    %819 = vmatprep.mubr.f32.mxu0 %v382
    %820 = vmatmul.mubr.f32.gmra.mrb[0].mxu0 %v380
    %v821 = vpop.f32.mrb[0].mxu0
    %v822 = vadd.f32 %v752, %v821
    %v823 = vpop.f32.mrb[0].mxu0
    %824 = vdwg.mxu0
    %825 = vmatprep.subr.mxu0 0.0
    %826 = vmatpush1.msra.mxu0 %v317
    %827 = vmatprep.subr.mxu0 0.0
    %828 = vmatpush1.msra.mxu0 %v318
    %829 = vmatprep.subr.mxu0 0.0
    %830 = vmatpush1.msra.mxu0 %v319
    %831 = vmatprep.subr.mxu0 0.0
    %832 = vmatpush1.msra.mxu0 %v320
    %833 = vmatprep.subr.mxu0 0.0
    %834 = vmatpush1.msra.mxu0 0.0
    %835 = vmatprep.subr.mxu0 0.0
    %836 = vmatpush1.msra.mxu0 0.0
    %837 = vmatprep.subr.mxu0 0.0
    %838 = vmatpush1.msra.mxu0 0.0
    %839 = vmatprep.subr.mxu0 0.0
    %840 = vmatpush1.msra.mxu0 0.0
    %841 = vmatprep.subr.mxu0 0.0
    %842 = vmatpush1.msra.mxu0 0.0
    %843 = vmatprep.subr.mxu0 0.0
    %844 = vmatpush1.msra.mxu0 0.0
    %845 = vmatprep.subr.mxu0 0.0
    %846 = vmatpush1.msra.mxu0 0.0
    %847 = vmatprep.subr.mxu0 0.0
    %848 = vmatpush1.msra.mxu0 0.0
    %849 = vmatprep.subr.mxu0 0.0
    %850 = vmatpush1.msra.mxu0 0.0
    %851 = vmatprep.subr.mxu0 0.0
    %852 = vmatpush1.msra.mxu0 0.0
    %853 = vmatprep.subr.mxu0 0.0
    %854 = vmatpush1.msra.mxu0 0.0
    %855 = vmatprep.subr.mxu0 0.0
    %856 = vmatpush1.msra.mxu0 0.0
    %857 = vmatprep.subr.mxu0 0.0
    %858 = vmatpush1.msra.mxu0 0.0
    %859 = vmatprep.subr.mxu0 0.0
    %860 = vmatpush1.msra.mxu0 0.0
    %861 = vmatprep.subr.mxu0 0.0
    %862 = vmatpush1.msra.mxu0 0.0
    %863 = vmatprep.subr.mxu0 0.0
    %864 = vmatpush1.msra.mxu0 0.0
    %865 = vmatprep.subr.mxu0 0.0
    %866 = vmatpush1.msra.mxu0 0.0
    %867 = vmatprep.subr.mxu0 0.0
    %868 = vmatpush1.msra.mxu0 0.0
    %869 = vmatprep.subr.mxu0 0.0
    %870 = vmatpush1.msra.mxu0 0.0
    %871 = vmatprep.subr.mxu0 0.0
    %872 = vmatpush1.msra.mxu0 0.0
    %873 = vmatprep.subr.mxu0 0.0
    %874 = vmatpush1.msra.mxu0 0.0
    %875 = vmatprep.subr.mxu0 0.0
    %876 = vmatpush1.msra.mxu0 0.0
    %877 = vmatprep.subr.mxu0 0.0
    %878 = vmatpush1.msra.mxu0 0.0
    %879 = vmatprep.subr.mxu0 0.0
    %880 = vmatpush1.msra.mxu0 0.0
    %881 = vmatprep.subr.mxu0 0.0
    %882 = vmatpush1.msra.mxu0 0.0
    %883 = vmatprep.subr.mxu0 0.0
    %884 = vmatpush1.msra.mxu0 0.0
    %885 = vmatprep.subr.mxu0 0.0
    %886 = vmatpush1.msra.mxu0 0.0
    %887 = vmatprep.subr.mxu0 0.0
    %888 = vmatpush1.msra.mxu0 0.0
    %889 = vmatprep.mubr.f32.mxu0 0.0
    %890 = vmatmul.mubr.f32.gmra.mrb[0].mxu0 %v403
    %v891 = vpop.f32.mrb[0].mxu0
    %v892 = vadd.f32 %v822, %v891
    %v893 = vpop.f32.mrb[0].mxu0
    %894 = vdwg.mxu0
    %895 = vst [vmem:[#allocation2] sm:$0x3] %v892
    %v896 = vld [vmem:[%s3] sm:$0xff]
    %v897 = vld [vmem:[%s3 + $0x8] sm:$0x3f]
    %v898 = vld [vmem:[%s9] sm:$0xff]
    %v899 = vld [vmem:[%s9 + $0x8] sm:$0xff]
    %v900 = vld [vmem:[%s9 + $0x10] sm:$0xff]
    %v901 = vld [vmem:[%s9 + $0x18] sm:$0xff]
    %v902 = vld [vmem:[%s9 + $0x20] sm:$0xff]
    %v903 = vld [vmem:[%s9 + $0x28] sm:$0xff]
    %v904 = vld [vmem:[%s9 + $0x30] sm:$0xff]
    %v905 = vld [vmem:[%s9 + $0x38] sm:$0xff]
    %v906 = vld [vmem:[%s11] sm:$0x3]
    %v908 = vlaneseq
    %v909 = vshrl.u32 %v908, 7
    %v910 = vsub.s32 0, %v909
    %v911 = vrot.slane %v906, %v910
    %v912 = vlaneseq
    %v913 = vshrl.u32 %v912, 7
    %v914 = vsub.s32 1, %v913
    %v915 = vrot.slane %v906, %v914
    %v919 = vsel %vm402, %v896, 0
    %v922 = vsel %vm402, %v897, 0
    %924 = vmatprep.subr.mxu0 %v899
    %925 = vmatpush1.msra.mxu0 %v898
    %926 = vmatprep.subr.mxu0 %v901
    %927 = vmatpush1.msra.mxu0 %v900
    %928 = vmatprep.subr.mxu0 %v903
    %929 = vmatpush1.msra.mxu0 %v902
    %930 = vmatprep.subr.mxu0 %v905
    %931 = vmatpush1.msra.mxu0 %v904
    %932 = vmatprep.subr.mxu0 0.0
    %933 = vmatpush1.msra.mxu0 0.0
    %934 = vmatprep.subr.mxu0 0.0
    %935 = vmatpush1.msra.mxu0 0.0
    %936 = vmatprep.subr.mxu0 0.0
    %937 = vmatpush1.msra.mxu0 0.0
    %938 = vmatprep.subr.mxu0 0.0
    %939 = vmatpush1.msra.mxu0 0.0
    %940 = vmatprep.subr.mxu0 0.0
    %941 = vmatpush1.msra.mxu0 0.0
    %942 = vmatprep.subr.mxu0 0.0
    %943 = vmatpush1.msra.mxu0 0.0
    %944 = vmatprep.subr.mxu0 0.0
    %945 = vmatpush1.msra.mxu0 0.0
    %946 = vmatprep.subr.mxu0 0.0
    %947 = vmatpush1.msra.mxu0 0.0
    %948 = vmatprep.subr.mxu0 0.0
    %949 = vmatpush1.msra.mxu0 0.0
    %950 = vmatprep.subr.mxu0 0.0
    %951 = vmatpush1.msra.mxu0 0.0
    %952 = vmatprep.subr.mxu0 0.0
    %953 = vmatpush1.msra.mxu0 0.0
    %954 = vmatprep.subr.mxu0 0.0
    %955 = vmatpush1.msra.mxu0 0.0
    %956 = vmatprep.subr.mxu0 0.0
    %957 = vmatpush1.msra.mxu0 0.0
    %958 = vmatprep.subr.mxu0 0.0
    %959 = vmatpush1.msra.mxu0 0.0
    %960 = vmatprep.subr.mxu0 0.0
    %961 = vmatpush1.msra.mxu0 0.0
    %962 = vmatprep.subr.mxu0 0.0
    %963 = vmatpush1.msra.mxu0 0.0
    %964 = vmatprep.subr.mxu0 0.0
    %965 = vmatpush1.msra.mxu0 0.0
    %966 = vmatprep.subr.mxu0 0.0
    %967 = vmatpush1.msra.mxu0 0.0
    %968 = vmatprep.subr.mxu0 0.0
    %969 = vmatpush1.msra.mxu0 0.0
    %970 = vmatprep.subr.mxu0 0.0
    %971 = vmatpush1.msra.mxu0 0.0
    %972 = vmatprep.subr.mxu0 0.0
    %973 = vmatpush1.msra.mxu0 0.0
    %974 = vmatprep.subr.mxu0 0.0
    %975 = vmatpush1.msra.mxu0 0.0
    %976 = vmatprep.subr.mxu0 0.0
    %977 = vmatpush1.msra.mxu0 0.0
    %978 = vmatprep.subr.mxu0 0.0
    %979 = vmatpush1.msra.mxu0 0.0
    %980 = vmatprep.subr.mxu0 0.0
    %981 = vmatpush1.msra.mxu0 0.0
    %982 = vmatprep.subr.mxu0 0.0
    %983 = vmatpush1.msra.mxu0 0.0
    %984 = vmatprep.subr.mxu0 0.0
    %985 = vmatpush1.msra.mxu0 0.0
    %986 = vmatprep.subr.mxu0 0.0
    %987 = vmatpush1.msra.mxu0 0.0
    %988 = vmatprep.mubr.f32.mxu0 0.0
    %989 = vmatmul.mubr.f32.gmra.mrb[0].mxu0 %v919
    %v990 = vpop.f32.mrb[0].mxu0
    %v991 = vadd.f32 %v911, %v990
    %v992 = vpop.f32.mrb[0].mxu0
    %v993 = vadd.f32 %v915, %v992
    %994 = vmatprep.mubr.f32.mxu0 0.0
    %995 = vmatmul.mubr.f32.gmra.mrb[0].mxu0 %v922
    %v996 = vpop.f32.mrb[0].mxu0
    %v997 = vadd.f32 %v911, %v996
    %v998 = vpop.f32.mrb[0].mxu0
    %v999 = vadd.f32 %v915, %v998
    %1000 = vdwg.mxu0
    %v1001 = vld [vmem:[%s13] sm:$0xff]
    %v1002 = vld [vmem:[%s13 + $0x8] sm:$0xff]
    %v1003 = vld [vmem:[%s13 + $0x10] sm:$0xff]
    %v1004 = vld [vmem:[%s13 + $0x18] sm:$0xff]
    %v1005 = vld [vmem:[%s13 + $0x20] sm:$0xff]
    %v1006 = vld [vmem:[%s13 + $0x28] sm:$0xff]
    %v1007 = vld [vmem:[%s13 + $0x30] sm:$0xff]
    %v1008 = vld [vmem:[%s13 + $0x38] sm:$0xff]
    %v1009 = vld [vmem:[%s13 + $0x40] sm:$0xff]
    %v1010 = vld [vmem:[%s13 + $0x48] sm:$0xff]
    %v1011 = vld [vmem:[%s13 + $0x50] sm:$0xff]
    %v1012 = vld [vmem:[%s13 + $0x58] sm:$0xff]
    %v1013 = vld [vmem:[%s13 + $0x60] sm:$0xff]
    %v1014 = vld [vmem:[%s13 + $0x68] sm:$0xff]
    %v1015 = vld [vmem:[%s13 + $0x70] sm:$0xff]
    %v1016 = vld [vmem:[%s13 + $0x78] sm:$0xff]
    %v1017 = vld [vmem:[%s15] sm:$0x3]
    %v1019 = vlaneseq
    %v1020 = vshrl.u32 %v1019, 7
    %v1021 = vsub.s32 0, %v1020
    %v1022 = vrot.slane %v1017, %v1021
    %v1023 = vlaneseq
    %v1024 = vshrl.u32 %v1023, 7
    %v1025 = vsub.s32 1, %v1024
    %v1026 = vrot.slane %v1017, %v1025
    %vm1029 = vcmask 523264
    %v1031 = vsel %vm1029, 0.0, 0
    %1033 = vmatprep.subr.mxu0 %v1002
    %1034 = vmatpush1.msra.mxu0 %v1001
    %1035 = vmatprep.subr.mxu0 %v1004
    %1036 = vmatpush1.msra.mxu0 %v1003
    %1037 = vmatprep.subr.mxu0 %v1006
    %1038 = vmatpush1.msra.mxu0 %v1005
    %1039 = vmatprep.subr.mxu0 %v1008
    %1040 = vmatpush1.msra.mxu0 %v1007
    %1041 = vmatprep.subr.mxu0 %v1010
    %1042 = vmatpush1.msra.mxu0 %v1009
    %1043 = vmatprep.subr.mxu0 %v1012
    %1044 = vmatpush1.msra.mxu0 %v1011
    %1045 = vmatprep.subr.mxu0 %v1014
    %1046 = vmatpush1.msra.mxu0 %v1013
    %1047 = vmatprep.subr.mxu0 %v1016
    %1048 = vmatpush1.msra.mxu0 %v1015
    %1049 = vmatprep.subr.mxu0 0.0
    %1050 = vmatpush1.msra.mxu0 0.0
    %1051 = vmatprep.subr.mxu0 0.0
    %1052 = vmatpush1.msra.mxu0 0.0
    %1053 = vmatprep.subr.mxu0 0.0
    %1054 = vmatpush1.msra.mxu0 0.0
    %1055 = vmatprep.subr.mxu0 0.0
    %1056 = vmatpush1.msra.mxu0 0.0
    %1057 = vmatprep.subr.mxu0 0.0
    %1058 = vmatpush1.msra.mxu0 0.0
    %1059 = vmatprep.subr.mxu0 0.0
    %1060 = vmatpush1.msra.mxu0 0.0
    %1061 = vmatprep.subr.mxu0 0.0
    %1062 = vmatpush1.msra.mxu0 0.0
    %1063 = vmatprep.subr.mxu0 0.0
    %1064 = vmatpush1.msra.mxu0 0.0
    %1065 = vmatprep.subr.mxu0 0.0
    %1066 = vmatpush1.msra.mxu0 0.0
    %1067 = vmatprep.subr.mxu0 0.0
    %1068 = vmatpush1.msra.mxu0 0.0
    %1069 = vmatprep.subr.mxu0 0.0
    %1070 = vmatpush1.msra.mxu0 0.0
    %1071 = vmatprep.subr.mxu0 0.0
    %1072 = vmatpush1.msra.mxu0 0.0
    %1073 = vmatprep.subr.mxu0 0.0
    %1074 = vmatpush1.msra.mxu0 0.0
    %1075 = vmatprep.subr.mxu0 0.0
    %1076 = vmatpush1.msra.mxu0 0.0
    %1077 = vmatprep.subr.mxu0 0.0
    %1078 = vmatpush1.msra.mxu0 0.0
    %1079 = vmatprep.subr.mxu0 0.0
    %1080 = vmatpush1.msra.mxu0 0.0
    %1081 = vmatprep.subr.mxu0 0.0
    %1082 = vmatpush1.msra.mxu0 0.0
    %1083 = vmatprep.subr.mxu0 0.0
    %1084 = vmatpush1.msra.mxu0 0.0
    %1085 = vmatprep.subr.mxu0 0.0
    %1086 = vmatpush1.msra.mxu0 0.0
    %1087 = vmatprep.subr.mxu0 0.0
    %1088 = vmatpush1.msra.mxu0 0.0
    %1089 = vmatprep.subr.mxu0 0.0
    %1090 = vmatpush1.msra.mxu0 0.0
    %1091 = vmatprep.subr.mxu0 0.0
    %1092 = vmatpush1.msra.mxu0 0.0
    %1093 = vmatprep.subr.mxu0 0.0
    %1094 = vmatpush1.msra.mxu0 0.0
    %1095 = vmatprep.subr.mxu0 0.0
    %1096 = vmatpush1.msra.mxu0 0.0
    %1097 = vmatprep.mubr.f32.mxu0 0.0
    %1098 = vmatmul.mubr.f32.gmra.mrb[0].mxu0 %v1031
    %v1099 = vpop.f32.mrb[0].mxu0
    %v1100 = vadd.f32 %v1022, %v1099
    %v1101 = vpop.f32.mrb[0].mxu0
    %v1102 = vadd.f32 %v1026, %v1101
    %1103 = vdwg.mxu0
    %v1104 = vadd.f32 %v991, %v1100
    %v1105 = vxor.u32 %v1104, 2147483648
    %v1106 = vmul.f32 %v1105, 1.442695
    %v1107 = vpow.pop %v1106
    %v1108 = vadd.f32 %v1107, 1.0
    %v1109 = vrcp.pop %v1108
    %v1110 = vmul.f32 1.0, %v1109
    %v1111 = vmul.f32 %v1110, %v1102
    %v1112 = vadd.f32 %v993, %v1111
    %v1113 = vtanh.pop %v1112
    %v1114 = vsub.f32 1.0, %v1110
    %1116 = vrot.lane.b32.xlu0 %v1113, 64
    %v1117 = vpop.permute.xlu0 %1116
    %v1119 = vmul.f32 %v1114, %v1117
    %v1120 = vmul.f32 %v1110, 0.0
    %v1121 = vadd.f32 %v1119, %v1120
    %1123 = vrot.lane.b32.xlu0 %v1121, 64
    %v1124 = vpop.permute.xlu0 %1123
    %v1125 = vsel %vm1029, %v1124, 0
    %1127 = vmatprep.subr.mxu0 %v1002
    %1128 = vmatpush1.msra.mxu0 %v1001
    %1129 = vmatprep.subr.mxu0 %v1004
    %1130 = vmatpush1.msra.mxu0 %v1003
    %1131 = vmatprep.subr.mxu0 %v1006
    %1132 = vmatpush1.msra.mxu0 %v1005
    %1133 = vmatprep.subr.mxu0 %v1008
    %1134 = vmatpush1.msra.mxu0 %v1007
    %1135 = vmatprep.subr.mxu0 %v1010
    %1136 = vmatpush1.msra.mxu0 %v1009
    %1137 = vmatprep.subr.mxu0 %v1012
    %1138 = vmatpush1.msra.mxu0 %v1011
    %1139 = vmatprep.subr.mxu0 %v1014
    %1140 = vmatpush1.msra.mxu0 %v1013
    %1141 = vmatprep.subr.mxu0 %v1016
    %1142 = vmatpush1.msra.mxu0 %v1015
    %1143 = vmatprep.subr.mxu0 0.0
    %1144 = vmatpush1.msra.mxu0 0.0
    %1145 = vmatprep.subr.mxu0 0.0
    %1146 = vmatpush1.msra.mxu0 0.0
    %1147 = vmatprep.subr.mxu0 0.0
    %1148 = vmatpush1.msra.mxu0 0.0
    %1149 = vmatprep.subr.mxu0 0.0
    %1150 = vmatpush1.msra.mxu0 0.0
    %1151 = vmatprep.subr.mxu0 0.0
    %1152 = vmatpush1.msra.mxu0 0.0
    %1153 = vmatprep.subr.mxu0 0.0
    %1154 = vmatpush1.msra.mxu0 0.0
    %1155 = vmatprep.subr.mxu0 0.0
    %1156 = vmatpush1.msra.mxu0 0.0
    %1157 = vmatprep.subr.mxu0 0.0
    %1158 = vmatpush1.msra.mxu0 0.0
    %1159 = vmatprep.subr.mxu0 0.0
    %1160 = vmatpush1.msra.mxu0 0.0
    %1161 = vmatprep.subr.mxu0 0.0
    %1162 = vmatpush1.msra.mxu0 0.0
    %1163 = vmatprep.subr.mxu0 0.0
    %1164 = vmatpush1.msra.mxu0 0.0
    %1165 = vmatprep.subr.mxu0 0.0
    %1166 = vmatpush1.msra.mxu0 0.0
    %1167 = vmatprep.subr.mxu0 0.0
    %1168 = vmatpush1.msra.mxu0 0.0
    %1169 = vmatprep.subr.mxu0 0.0
    %1170 = vmatpush1.msra.mxu0 0.0
    %1171 = vmatprep.subr.mxu0 0.0
    %1172 = vmatpush1.msra.mxu0 0.0
    %1173 = vmatprep.subr.mxu0 0.0
    %1174 = vmatpush1.msra.mxu0 0.0
    %1175 = vmatprep.subr.mxu0 0.0
    %1176 = vmatpush1.msra.mxu0 0.0
    %1177 = vmatprep.subr.mxu0 0.0
    %1178 = vmatpush1.msra.mxu0 0.0
    %1179 = vmatprep.subr.mxu0 0.0
    %1180 = vmatpush1.msra.mxu0 0.0
    %1181 = vmatprep.subr.mxu0 0.0
    %1182 = vmatpush1.msra.mxu0 0.0
    %1183 = vmatprep.subr.mxu0 0.0
    %1184 = vmatpush1.msra.mxu0 0.0
    %1185 = vmatprep.subr.mxu0 0.0
    %1186 = vmatpush1.msra.mxu0 0.0
    %1187 = vmatprep.subr.mxu0 0.0
    %1188 = vmatpush1.msra.mxu0 0.0
    %1189 = vmatprep.subr.mxu0 0.0
    %1190 = vmatpush1.msra.mxu0 0.0
    %1191 = vmatprep.mubr.f32.mxu0 0.0
    %1192 = vmatmul.mubr.f32.gmra.mrb[0].mxu0 %v1125
    %v1193 = vpop.f32.mrb[0].mxu0
    %v1194 = vadd.f32 %v1022, %v1193
    %v1195 = vpop.f32.mrb[0].mxu0
    %v1196 = vadd.f32 %v1026, %v1195
    %1197 = vdwg.mxu0
    %v1199 = vrot.slane %v1194, 6
    %v1201 = vadd.f32 %v991, %v1199
    %v1202 = vxor.u32 %v1201, 2147483648
    %v1203 = vmul.f32 %v1202, 1.442695
    %v1204 = vpow.pop %v1203
    %v1205 = vadd.f32 %v1204, 1.0
    %v1206 = vrcp.pop %v1205
    %v1207 = vmul.f32 1.0, %v1206
    %v1209 = vrot.slane %v1196, 6
    %v1211 = vmul.f32 %v1207, %v1209
    %v1212 = vadd.f32 %v993, %v1211
    %v1213 = vtanh.pop %v1212
    %v1214 = vsub.f32 1.0, %v1207
    %1216 = vrot.lane.b32.xlu0 %v1213, 64
    %v1217 = vpop.permute.xlu0 %1216
    %v1219 = vmul.f32 %v1214, %v1217
    %v1220 = vrot.slane %v1121, 6
    %v1222 = vmul.f32 %v1207, %v1220
    %v1223 = vadd.f32 %v1219, %v1222
    %v1225 = vrot.slane %v1223, 2
    %1226 = vrot.lane.b32.xlu0 %v1225, 64
    %v1227 = vpop.permute.xlu0 %1226
    %v1228 = vsel %vm1029, %v1227, 0
    %1230 = vmatprep.subr.mxu0 %v1002
    %1231 = vmatpush1.msra.mxu0 %v1001
    %1232 = vmatprep.subr.mxu0 %v1004
    %1233 = vmatpush1.msra.mxu0 %v1003
    %1234 = vmatprep.subr.mxu0 %v1006
    %1235 = vmatpush1.msra.mxu0 %v1005
    %1236 = vmatprep.subr.mxu0 %v1008
    %1237 = vmatpush1.msra.mxu0 %v1007
    %1238 = vmatprep.subr.mxu0 %v1010
    %1239 = vmatpush1.msra.mxu0 %v1009
    %1240 = vmatprep.subr.mxu0 %v1012
    %1241 = vmatpush1.msra.mxu0 %v1011
    %1242 = vmatprep.subr.mxu0 %v1014
    %1243 = vmatpush1.msra.mxu0 %v1013
    %1244 = vmatprep.subr.mxu0 %v1016
    %1245 = vmatpush1.msra.mxu0 %v1015
    %1246 = vmatprep.subr.mxu0 0.0
    %1247 = vmatpush1.msra.mxu0 0.0
    %1248 = vmatprep.subr.mxu0 0.0
    %1249 = vmatpush1.msra.mxu0 0.0
    %1250 = vmatprep.subr.mxu0 0.0
    %1251 = vmatpush1.msra.mxu0 0.0
    %1252 = vmatprep.subr.mxu0 0.0
    %1253 = vmatpush1.msra.mxu0 0.0
    %1254 = vmatprep.subr.mxu0 0.0
    %1255 = vmatpush1.msra.mxu0 0.0
    %1256 = vmatprep.subr.mxu0 0.0
    %1257 = vmatpush1.msra.mxu0 0.0
    %1258 = vmatprep.subr.mxu0 0.0
    %1259 = vmatpush1.msra.mxu0 0.0
    %1260 = vmatprep.subr.mxu0 0.0
    %1261 = vmatpush1.msra.mxu0 0.0
    %1262 = vmatprep.subr.mxu0 0.0
    %1263 = vmatpush1.msra.mxu0 0.0
    %1264 = vmatprep.subr.mxu0 0.0
    %1265 = vmatpush1.msra.mxu0 0.0
    %1266 = vmatprep.subr.mxu0 0.0
    %1267 = vmatpush1.msra.mxu0 0.0
    %1268 = vmatprep.subr.mxu0 0.0
    %1269 = vmatpush1.msra.mxu0 0.0
    %1270 = vmatprep.subr.mxu0 0.0
    %1271 = vmatpush1.msra.mxu0 0.0
    %1272 = vmatprep.subr.mxu0 0.0
    %1273 = vmatpush1.msra.mxu0 0.0
    %1274 = vmatprep.subr.mxu0 0.0
    %1275 = vmatpush1.msra.mxu0 0.0
    %1276 = vmatprep.subr.mxu0 0.0
    %1277 = vmatpush1.msra.mxu0 0.0
    %1278 = vmatprep.subr.mxu0 0.0
    %1279 = vmatpush1.msra.mxu0 0.0
    %1280 = vmatprep.subr.mxu0 0.0
    %1281 = vmatpush1.msra.mxu0 0.0
    %1282 = vmatprep.subr.mxu0 0.0
    %1283 = vmatpush1.msra.mxu0 0.0
    %1284 = vmatprep.subr.mxu0 0.0
    %1285 = vmatpush1.msra.mxu0 0.0
    %1286 = vmatprep.subr.mxu0 0.0
    %1287 = vmatpush1.msra.mxu0 0.0
    %1288 = vmatprep.subr.mxu0 0.0
    %1289 = vmatpush1.msra.mxu0 0.0
    %1290 = vmatprep.subr.mxu0 0.0
    %1291 = vmatpush1.msra.mxu0 0.0
    %1292 = vmatprep.subr.mxu0 0.0
    %1293 = vmatpush1.msra.mxu0 0.0
    %1294 = vmatprep.mubr.f32.mxu0 0.0
    %1295 = vmatmul.mubr.f32.gmra.mrb[0].mxu0 %v1228
    %v1296 = vpop.f32.mrb[0].mxu0
    %v1297 = vadd.f32 %v1022, %v1296
    %v1298 = vpop.f32.mrb[0].mxu0
    %v1299 = vadd.f32 %v1026, %v1298
    %1300 = vdwg.mxu0
    %v1302 = vrot.slane %v1297, 4
    %v1304 = vadd.f32 %v991, %v1302
    %v1305 = vxor.u32 %v1304, 2147483648
    %v1306 = vmul.f32 %v1305, 1.442695
    %v1307 = vpow.pop %v1306
    %v1308 = vadd.f32 %v1307, 1.0
    %v1309 = vrcp.pop %v1308
    %v1310 = vmul.f32 1.0, %v1309
    %v1312 = vrot.slane %v1299, 4
    %v1314 = vmul.f32 %v1310, %v1312
    %v1315 = vadd.f32 %v993, %v1314
    %v1316 = vtanh.pop %v1315
    %v1317 = vsub.f32 1.0, %v1310
    %1319 = vrot.lane.b32.xlu0 %v1316, 64
    %v1320 = vpop.permute.xlu0 %1319
    %v1322 = vmul.f32 %v1317, %v1320
    %v1323 = vrot.slane %v1223, 6
    %v1325 = vmul.f32 %v1310, %v1323
    %v1326 = vadd.f32 %v1322, %v1325
    %v1328 = vrot.slane %v1326, 4
    %1329 = vrot.lane.b32.xlu0 %v1328, 64
    %v1330 = vpop.permute.xlu0 %1329
    %v1331 = vsel %vm1029, %v1330, 0
    %1333 = vmatprep.subr.mxu0 %v1002
    %1334 = vmatpush1.msra.mxu0 %v1001
    %1335 = vmatprep.subr.mxu0 %v1004
    %1336 = vmatpush1.msra.mxu0 %v1003
    %1337 = vmatprep.subr.mxu0 %v1006
    %1338 = vmatpush1.msra.mxu0 %v1005
    %1339 = vmatprep.subr.mxu0 %v1008
    %1340 = vmatpush1.msra.mxu0 %v1007
    %1341 = vmatprep.subr.mxu0 %v1010
    %1342 = vmatpush1.msra.mxu0 %v1009
    %1343 = vmatprep.subr.mxu0 %v1012
    %1344 = vmatpush1.msra.mxu0 %v1011
    %1345 = vmatprep.subr.mxu0 %v1014
    %1346 = vmatpush1.msra.mxu0 %v1013
    %1347 = vmatprep.subr.mxu0 %v1016
    %1348 = vmatpush1.msra.mxu0 %v1015
    %1349 = vmatprep.subr.mxu0 0.0
    %1350 = vmatpush1.msra.mxu0 0.0
    %1351 = vmatprep.subr.mxu0 0.0
    %1352 = vmatpush1.msra.mxu0 0.0
    %1353 = vmatprep.subr.mxu0 0.0
    %1354 = vmatpush1.msra.mxu0 0.0
    %1355 = vmatprep.subr.mxu0 0.0
    %1356 = vmatpush1.msra.mxu0 0.0
    %1357 = vmatprep.subr.mxu0 0.0
    %1358 = vmatpush1.msra.mxu0 0.0
    %1359 = vmatprep.subr.mxu0 0.0
    %1360 = vmatpush1.msra.mxu0 0.0
    %1361 = vmatprep.subr.mxu0 0.0
    %1362 = vmatpush1.msra.mxu0 0.0
    %1363 = vmatprep.subr.mxu0 0.0
    %1364 = vmatpush1.msra.mxu0 0.0
    %1365 = vmatprep.subr.mxu0 0.0
    %1366 = vmatpush1.msra.mxu0 0.0
    %1367 = vmatprep.subr.mxu0 0.0
    %1368 = vmatpush1.msra.mxu0 0.0
    %1369 = vmatprep.subr.mxu0 0.0
    %1370 = vmatpush1.msra.mxu0 0.0
    %1371 = vmatprep.subr.mxu0 0.0
    %1372 = vmatpush1.msra.mxu0 0.0
    %1373 = vmatprep.subr.mxu0 0.0
    %1374 = vmatpush1.msra.mxu0 0.0
    %1375 = vmatprep.subr.mxu0 0.0
    %1376 = vmatpush1.msra.mxu0 0.0
    %1377 = vmatprep.subr.mxu0 0.0
    %1378 = vmatpush1.msra.mxu0 0.0
    %1379 = vmatprep.subr.mxu0 0.0
    %1380 = vmatpush1.msra.mxu0 0.0
    %1381 = vmatprep.subr.mxu0 0.0
    %1382 = vmatpush1.msra.mxu0 0.0
    %1383 = vmatprep.subr.mxu0 0.0
    %1384 = vmatpush1.msra.mxu0 0.0
    %1385 = vmatprep.subr.mxu0 0.0
    %1386 = vmatpush1.msra.mxu0 0.0
    %1387 = vmatprep.subr.mxu0 0.0
    %1388 = vmatpush1.msra.mxu0 0.0
    %1389 = vmatprep.subr.mxu0 0.0
    %1390 = vmatpush1.msra.mxu0 0.0
    %1391 = vmatprep.subr.mxu0 0.0
    %1392 = vmatpush1.msra.mxu0 0.0
    %1393 = vmatprep.subr.mxu0 0.0
    %1394 = vmatpush1.msra.mxu0 0.0
    %1395 = vmatprep.subr.mxu0 0.0
    %1396 = vmatpush1.msra.mxu0 0.0
    %1397 = vmatprep.mubr.f32.mxu0 0.0
    %1398 = vmatmul.mubr.f32.gmra.mrb[0].mxu0 %v1331
    %v1399 = vpop.f32.mrb[0].mxu0
    %v1400 = vadd.f32 %v1022, %v1399
    %v1401 = vpop.f32.mrb[0].mxu0
    %v1402 = vadd.f32 %v1026, %v1401
    %1403 = vdwg.mxu0
    %v1405 = vrot.slane %v1400, 2
    %v1407 = vadd.f32 %v991, %v1405
    %v1408 = vxor.u32 %v1407, 2147483648
    %v1409 = vmul.f32 %v1408, 1.442695
    %v1410 = vpow.pop %v1409
    %v1411 = vadd.f32 %v1410, 1.0
    %v1412 = vrcp.pop %v1411
    %v1413 = vmul.f32 1.0, %v1412
    %v1415 = vrot.slane %v1402, 2
    %v1417 = vmul.f32 %v1413, %v1415
    %v1418 = vadd.f32 %v993, %v1417
    %v1419 = vtanh.pop %v1418
    %v1420 = vsub.f32 1.0, %v1413
    %1422 = vrot.lane.b32.xlu0 %v1419, 64
    %v1423 = vpop.permute.xlu0 %1422
    %v1425 = vmul.f32 %v1420, %v1423
    %v1426 = vrot.slane %v1326, 6
    %v1428 = vmul.f32 %v1413, %v1426
    %v1429 = vadd.f32 %v1425, %v1428
    %v1431 = vrot.slane %v1429, 6
    %1432 = vrot.lane.b32.xlu0 %v1431, 64
    %v1433 = vpop.permute.xlu0 %1432
    %v1434 = vsel %vm1029, %v1433, 0
    %1436 = vmatprep.subr.mxu0 %v1002
    %1437 = vmatpush1.msra.mxu0 %v1001
    %1438 = vmatprep.subr.mxu0 %v1004
    %1439 = vmatpush1.msra.mxu0 %v1003
    %1440 = vmatprep.subr.mxu0 %v1006
    %1441 = vmatpush1.msra.mxu0 %v1005
    %1442 = vmatprep.subr.mxu0 %v1008
    %1443 = vmatpush1.msra.mxu0 %v1007
    %1444 = vmatprep.subr.mxu0 %v1010
    %1445 = vmatpush1.msra.mxu0 %v1009
    %1446 = vmatprep.subr.mxu0 %v1012
    %1447 = vmatpush1.msra.mxu0 %v1011
    %1448 = vmatprep.subr.mxu0 %v1014
    %1449 = vmatpush1.msra.mxu0 %v1013
    %1450 = vmatprep.subr.mxu0 %v1016
    %1451 = vmatpush1.msra.mxu0 %v1015
    %1452 = vmatprep.subr.mxu0 0.0
    %1453 = vmatpush1.msra.mxu0 0.0
    %1454 = vmatprep.subr.mxu0 0.0
    %1455 = vmatpush1.msra.mxu0 0.0
    %1456 = vmatprep.subr.mxu0 0.0
    %1457 = vmatpush1.msra.mxu0 0.0
    %1458 = vmatprep.subr.mxu0 0.0
    %1459 = vmatpush1.msra.mxu0 0.0
    %1460 = vmatprep.subr.mxu0 0.0
    %1461 = vmatpush1.msra.mxu0 0.0
    %1462 = vmatprep.subr.mxu0 0.0
    %1463 = vmatpush1.msra.mxu0 0.0
    %1464 = vmatprep.subr.mxu0 0.0
    %1465 = vmatpush1.msra.mxu0 0.0
    %1466 = vmatprep.subr.mxu0 0.0
    %1467 = vmatpush1.msra.mxu0 0.0
    %1468 = vmatprep.subr.mxu0 0.0
    %1469 = vmatpush1.msra.mxu0 0.0
    %1470 = vmatprep.subr.mxu0 0.0
    %1471 = vmatpush1.msra.mxu0 0.0
    %1472 = vmatprep.subr.mxu0 0.0
    %1473 = vmatpush1.msra.mxu0 0.0
    %1474 = vmatprep.subr.mxu0 0.0
    %1475 = vmatpush1.msra.mxu0 0.0
    %1476 = vmatprep.subr.mxu0 0.0
    %1477 = vmatpush1.msra.mxu0 0.0
    %1478 = vmatprep.subr.mxu0 0.0
    %1479 = vmatpush1.msra.mxu0 0.0
    %1480 = vmatprep.subr.mxu0 0.0
    %1481 = vmatpush1.msra.mxu0 0.0
    %1482 = vmatprep.subr.mxu0 0.0
    %1483 = vmatpush1.msra.mxu0 0.0
    %1484 = vmatprep.subr.mxu0 0.0
    %1485 = vmatpush1.msra.mxu0 0.0
    %1486 = vmatprep.subr.mxu0 0.0
    %1487 = vmatpush1.msra.mxu0 0.0
    %1488 = vmatprep.subr.mxu0 0.0
    %1489 = vmatpush1.msra.mxu0 0.0
    %1490 = vmatprep.subr.mxu0 0.0
    %1491 = vmatpush1.msra.mxu0 0.0
    %1492 = vmatprep.subr.mxu0 0.0
    %1493 = vmatpush1.msra.mxu0 0.0
    %1494 = vmatprep.subr.mxu0 0.0
    %1495 = vmatpush1.msra.mxu0 0.0
    %1496 = vmatprep.subr.mxu0 0.0
    %1497 = vmatpush1.msra.mxu0 0.0
    %1498 = vmatprep.subr.mxu0 0.0
    %1499 = vmatpush1.msra.mxu0 0.0
    %1500 = vmatprep.mubr.f32.mxu0 0.0
    %1501 = vmatmul.mubr.f32.gmra.mrb[0].mxu0 %v1434
    %v1502 = vpop.f32.mrb[0].mxu0
    %v1503 = vadd.f32 %v1022, %v1502
    %v1504 = vpop.f32.mrb[0].mxu0
    %v1505 = vadd.f32 %v1026, %v1504
    %1506 = vdwg.mxu0
    %v1507 = vadd.f32 %v997, %v1503
    %v1508 = vxor.u32 %v1507, 2147483648
    %v1509 = vmul.f32 %v1508, 1.442695
    %v1510 = vpow.pop %v1509
    %v1511 = vadd.f32 %v1510, 1.0
    %v1512 = vrcp.pop %v1511
    %v1513 = vmul.f32 1.0, %v1512
    %v1514 = vmul.f32 %v1513, %v1505
    %v1515 = vadd.f32 %v999, %v1514
    %v1516 = vtanh.pop %v1515
    %v1517 = vsub.f32 1.0, %v1513
    %1519 = vrot.lane.b32.xlu0 %v1516, 64
    %v1520 = vpop.permute.xlu0 %1519
    %v1522 = vmul.f32 %v1517, %v1520
    %v1524 = vmul.f32 %v1513, %v1431
    %v1525 = vadd.f32 %v1522, %v1524
    %1527 = vrot.lane.b32.xlu0 %v1525, 64
    %v1528 = vpop.permute.xlu0 %1527
    %v1529 = vsel %vm1029, %v1528, 0
    %1531 = vmatprep.subr.mxu0 %v1002
    %1532 = vmatpush1.msra.mxu0 %v1001
    %1533 = vmatprep.subr.mxu0 %v1004
    %1534 = vmatpush1.msra.mxu0 %v1003
    %1535 = vmatprep.subr.mxu0 %v1006
    %1536 = vmatpush1.msra.mxu0 %v1005
    %1537 = vmatprep.subr.mxu0 %v1008
    %1538 = vmatpush1.msra.mxu0 %v1007
    %1539 = vmatprep.subr.mxu0 %v1010
    %1540 = vmatpush1.msra.mxu0 %v1009
    %1541 = vmatprep.subr.mxu0 %v1012
    %1542 = vmatpush1.msra.mxu0 %v1011
    %1543 = vmatprep.subr.mxu0 %v1014
    %1544 = vmatpush1.msra.mxu0 %v1013
    %1545 = vmatprep.subr.mxu0 %v1016
    %1546 = vmatpush1.msra.mxu0 %v1015
    %1547 = vmatprep.subr.mxu0 0.0
    %1548 = vmatpush1.msra.mxu0 0.0
    %1549 = vmatprep.subr.mxu0 0.0
    %1550 = vmatpush1.msra.mxu0 0.0
    %1551 = vmatprep.subr.mxu0 0.0
    %1552 = vmatpush1.msra.mxu0 0.0
    %1553 = vmatprep.subr.mxu0 0.0
    %1554 = vmatpush1.msra.mxu0 0.0
    %1555 = vmatprep.subr.mxu0 0.0
    %1556 = vmatpush1.msra.mxu0 0.0
    %1557 = vmatprep.subr.mxu0 0.0
    %1558 = vmatpush1.msra.mxu0 0.0
    %1559 = vmatprep.subr.mxu0 0.0
    %1560 = vmatpush1.msra.mxu0 0.0
    %1561 = vmatprep.subr.mxu0 0.0
    %1562 = vmatpush1.msra.mxu0 0.0
    %1563 = vmatprep.subr.mxu0 0.0
    %1564 = vmatpush1.msra.mxu0 0.0
    %1565 = vmatprep.subr.mxu0 0.0
    %1566 = vmatpush1.msra.mxu0 0.0
    %1567 = vmatprep.subr.mxu0 0.0
    %1568 = vmatpush1.msra.mxu0 0.0
    %1569 = vmatprep.subr.mxu0 0.0
    %1570 = vmatpush1.msra.mxu0 0.0
    %1571 = vmatprep.subr.mxu0 0.0
    %1572 = vmatpush1.msra.mxu0 0.0
    %1573 = vmatprep.subr.mxu0 0.0
    %1574 = vmatpush1.msra.mxu0 0.0
    %1575 = vmatprep.subr.mxu0 0.0
    %1576 = vmatpush1.msra.mxu0 0.0
    %1577 = vmatprep.subr.mxu0 0.0
    %1578 = vmatpush1.msra.mxu0 0.0
    %1579 = vmatprep.subr.mxu0 0.0
    %1580 = vmatpush1.msra.mxu0 0.0
    %1581 = vmatprep.subr.mxu0 0.0
    %1582 = vmatpush1.msra.mxu0 0.0
    %1583 = vmatprep.subr.mxu0 0.0
    %1584 = vmatpush1.msra.mxu0 0.0
    %1585 = vmatprep.subr.mxu0 0.0
    %1586 = vmatpush1.msra.mxu0 0.0
    %1587 = vmatprep.subr.mxu0 0.0
    %1588 = vmatpush1.msra.mxu0 0.0
    %1589 = vmatprep.subr.mxu0 0.0
    %1590 = vmatpush1.msra.mxu0 0.0
    %1591 = vmatprep.subr.mxu0 0.0
    %1592 = vmatpush1.msra.mxu0 0.0
    %1593 = vmatprep.subr.mxu0 0.0
    %1594 = vmatpush1.msra.mxu0 0.0
    %1595 = vmatprep.mubr.f32.mxu0 0.0
    %1596 = vmatmul.mubr.f32.gmra.mrb[0].mxu0 %v1529
    %v1597 = vpop.f32.mrb[0].mxu0
    %v1598 = vadd.f32 %v1022, %v1597
    %v1599 = vpop.f32.mrb[0].mxu0
    %v1600 = vadd.f32 %v1026, %v1599
    %1601 = vdwg.mxu0
    %v1603 = vrot.slane %v1598, 6
    %v1605 = vadd.f32 %v997, %v1603
    %v1606 = vxor.u32 %v1605, 2147483648
    %v1607 = vmul.f32 %v1606, 1.442695
    %v1608 = vpow.pop %v1607
    %v1609 = vadd.f32 %v1608, 1.0
    %v1610 = vrcp.pop %v1609
    %v1611 = vmul.f32 1.0, %v1610
    %v1613 = vrot.slane %v1600, 6
    %v1615 = vmul.f32 %v1611, %v1613
    %v1616 = vadd.f32 %v999, %v1615
    %v1617 = vtanh.pop %v1616
    %v1618 = vsub.f32 1.0, %v1611
    %1620 = vrot.lane.b32.xlu0 %v1617, 64
    %v1621 = vpop.permute.xlu0 %1620
    %v1623 = vmul.f32 %v1618, %v1621
    %v1624 = vrot.slane %v1525, 6
    %v1626 = vmul.f32 %v1611, %v1624
    %v1627 = vadd.f32 %v1623, %v1626
    %v1629 = vrot.slane %v1627, 2
    %1630 = vrot.lane.b32.xlu0 %v1629, 64
    %v1631 = vpop.permute.xlu0 %1630
    %v1632 = vsel %vm1029, %v1631, 0
    %1634 = vmatprep.subr.mxu0 %v1002
    %1635 = vmatpush1.msra.mxu0 %v1001
    %1636 = vmatprep.subr.mxu0 %v1004
    %1637 = vmatpush1.msra.mxu0 %v1003
    %1638 = vmatprep.subr.mxu0 %v1006
    %1639 = vmatpush1.msra.mxu0 %v1005
    %1640 = vmatprep.subr.mxu0 %v1008
    %1641 = vmatpush1.msra.mxu0 %v1007
    %1642 = vmatprep.subr.mxu0 %v1010
    %1643 = vmatpush1.msra.mxu0 %v1009
    %1644 = vmatprep.subr.mxu0 %v1012
    %1645 = vmatpush1.msra.mxu0 %v1011
    %1646 = vmatprep.subr.mxu0 %v1014
    %1647 = vmatpush1.msra.mxu0 %v1013
    %1648 = vmatprep.subr.mxu0 %v1016
    %1649 = vmatpush1.msra.mxu0 %v1015
    %1650 = vmatprep.subr.mxu0 0.0
    %1651 = vmatpush1.msra.mxu0 0.0
    %1652 = vmatprep.subr.mxu0 0.0
    %1653 = vmatpush1.msra.mxu0 0.0
    %1654 = vmatprep.subr.mxu0 0.0
    %1655 = vmatpush1.msra.mxu0 0.0
    %1656 = vmatprep.subr.mxu0 0.0
    %1657 = vmatpush1.msra.mxu0 0.0
    %1658 = vmatprep.subr.mxu0 0.0
    %1659 = vmatpush1.msra.mxu0 0.0
    %1660 = vmatprep.subr.mxu0 0.0
    %1661 = vmatpush1.msra.mxu0 0.0
    %1662 = vmatprep.subr.mxu0 0.0
    %1663 = vmatpush1.msra.mxu0 0.0
    %1664 = vmatprep.subr.mxu0 0.0
    %1665 = vmatpush1.msra.mxu0 0.0
    %1666 = vmatprep.subr.mxu0 0.0
    %1667 = vmatpush1.msra.mxu0 0.0
    %1668 = vmatprep.subr.mxu0 0.0
    %1669 = vmatpush1.msra.mxu0 0.0
    %1670 = vmatprep.subr.mxu0 0.0
    %1671 = vmatpush1.msra.mxu0 0.0
    %1672 = vmatprep.subr.mxu0 0.0
    %1673 = vmatpush1.msra.mxu0 0.0
    %1674 = vmatprep.subr.mxu0 0.0
    %1675 = vmatpush1.msra.mxu0 0.0
    %1676 = vmatprep.subr.mxu0 0.0
    %1677 = vmatpush1.msra.mxu0 0.0
    %1678 = vmatprep.subr.mxu0 0.0
    %1679 = vmatpush1.msra.mxu0 0.0
    %1680 = vmatprep.subr.mxu0 0.0
    %1681 = vmatpush1.msra.mxu0 0.0
    %1682 = vmatprep.subr.mxu0 0.0
    %1683 = vmatpush1.msra.mxu0 0.0
    %1684 = vmatprep.subr.mxu0 0.0
    %1685 = vmatpush1.msra.mxu0 0.0
    %1686 = vmatprep.subr.mxu0 0.0
    %1687 = vmatpush1.msra.mxu0 0.0
    %1688 = vmatprep.subr.mxu0 0.0
    %1689 = vmatpush1.msra.mxu0 0.0
    %1690 = vmatprep.subr.mxu0 0.0
    %1691 = vmatpush1.msra.mxu0 0.0
    %1692 = vmatprep.subr.mxu0 0.0
    %1693 = vmatpush1.msra.mxu0 0.0
    %1694 = vmatprep.subr.mxu0 0.0
    %1695 = vmatpush1.msra.mxu0 0.0
    %1696 = vmatprep.subr.mxu0 0.0
    %1697 = vmatpush1.msra.mxu0 0.0
    %1698 = vmatprep.mubr.f32.mxu0 0.0
    %1699 = vmatmul.mubr.f32.gmra.mrb[0].mxu0 %v1632
    %v1700 = vpop.f32.mrb[0].mxu0
    %v1701 = vadd.f32 %v1022, %v1700
    %v1702 = vpop.f32.mrb[0].mxu0
    %v1703 = vadd.f32 %v1026, %v1702
    %1704 = vdwg.mxu0
    %v1706 = vrot.slane %v1701, 4
    %v1708 = vadd.f32 %v997, %v1706
    %v1709 = vxor.u32 %v1708, 2147483648
    %v1710 = vmul.f32 %v1709, 1.442695
    %v1711 = vpow.pop %v1710
    %v1712 = vadd.f32 %v1711, 1.0
    %v1713 = vrcp.pop %v1712
    %v1714 = vmul.f32 1.0, %v1713
    %v1716 = vrot.slane %v1703, 4
    %v1718 = vmul.f32 %v1714, %v1716
    %v1719 = vadd.f32 %v999, %v1718
    %v1720 = vtanh.pop %v1719
    %v1721 = vsub.f32 1.0, %v1714
    %1723 = vrot.lane.b32.xlu0 %v1720, 64
    %v1724 = vpop.permute.xlu0 %1723
    %v1726 = vmul.f32 %v1721, %v1724
    %v1727 = vrot.slane %v1627, 6
    %v1729 = vmul.f32 %v1714, %v1727
    %v1730 = vadd.f32 %v1726, %v1729
    %v1731 = vld [vmem:[%s17] sm:$0xff]
    %v1732 = vld [vmem:[%s17 + $0x8] sm:$0xff]
    %v1733 = vld [vmem:[%s17 + $0x10] sm:$0xff]
    %v1734 = vld [vmem:[%s17 + $0x18] sm:$0xff]
    %v1735 = vld [vmem:[%s17 + $0x20] sm:$0xff]
    %v1736 = vld [vmem:[%s17 + $0x28] sm:$0xff]
    %v1737 = vld [vmem:[%s17 + $0x30] sm:$0xff]
    %v1738 = vld [vmem:[%s17 + $0x38] sm:$0xff]
    %v1739 = vld [vmem:[%s19] sm:$0x1]
    %v1741 = vlaneseq
    %v1742 = vshrl.u32 %v1741, 7
    %v1743 = vsub.s32 0, %v1742
    %v1744 = vrot.slane %v1739, %v1743
    %v1747 = vrot.slane %v1730, 4
    %1748 = vrot.lane.b32.xlu0 %v1747, 64
    %v1749 = vpop.permute.xlu0 %1748
    %v1750 = vsel %vm1029, %v1749, 0
    %1752 = vmatprep.subr.mxu0 0.0
    %1753 = vmatpush1.msra.mxu0 %v1731
    %1754 = vmatprep.subr.mxu0 0.0
    %1755 = vmatpush1.msra.mxu0 %v1732
    %1756 = vmatprep.subr.mxu0 0.0
    %1757 = vmatpush1.msra.mxu0 %v1733
    %1758 = vmatprep.subr.mxu0 0.0
    %1759 = vmatpush1.msra.mxu0 %v1734
    %1760 = vmatprep.subr.mxu0 0.0
    %1761 = vmatpush1.msra.mxu0 %v1735
    %1762 = vmatprep.subr.mxu0 0.0
    %1763 = vmatpush1.msra.mxu0 %v1736
    %1764 = vmatprep.subr.mxu0 0.0
    %1765 = vmatpush1.msra.mxu0 %v1737
    %1766 = vmatprep.subr.mxu0 0.0
    %1767 = vmatpush1.msra.mxu0 %v1738
    %1768 = vmatprep.subr.mxu0 0.0
    %1769 = vmatpush1.msra.mxu0 0.0
    %1770 = vmatprep.subr.mxu0 0.0
    %1771 = vmatpush1.msra.mxu0 0.0
    %1772 = vmatprep.subr.mxu0 0.0
    %1773 = vmatpush1.msra.mxu0 0.0
    %1774 = vmatprep.subr.mxu0 0.0
    %1775 = vmatpush1.msra.mxu0 0.0
    %1776 = vmatprep.subr.mxu0 0.0
    %1777 = vmatpush1.msra.mxu0 0.0
    %1778 = vmatprep.subr.mxu0 0.0
    %1779 = vmatpush1.msra.mxu0 0.0
    %1780 = vmatprep.subr.mxu0 0.0
    %1781 = vmatpush1.msra.mxu0 0.0
    %1782 = vmatprep.subr.mxu0 0.0
    %1783 = vmatpush1.msra.mxu0 0.0
    %1784 = vmatprep.subr.mxu0 0.0
    %1785 = vmatpush1.msra.mxu0 0.0
    %1786 = vmatprep.subr.mxu0 0.0
    %1787 = vmatpush1.msra.mxu0 0.0
    %1788 = vmatprep.subr.mxu0 0.0
    %1789 = vmatpush1.msra.mxu0 0.0
    %1790 = vmatprep.subr.mxu0 0.0
    %1791 = vmatpush1.msra.mxu0 0.0
    %1792 = vmatprep.subr.mxu0 0.0
    %1793 = vmatpush1.msra.mxu0 0.0
    %1794 = vmatprep.subr.mxu0 0.0
    %1795 = vmatpush1.msra.mxu0 0.0
    %1796 = vmatprep.subr.mxu0 0.0
    %1797 = vmatpush1.msra.mxu0 0.0
    %1798 = vmatprep.subr.mxu0 0.0
    %1799 = vmatpush1.msra.mxu0 0.0
    %1800 = vmatprep.subr.mxu0 0.0
    %1801 = vmatpush1.msra.mxu0 0.0
    %1802 = vmatprep.subr.mxu0 0.0
    %1803 = vmatpush1.msra.mxu0 0.0
    %1804 = vmatprep.subr.mxu0 0.0
    %1805 = vmatpush1.msra.mxu0 0.0
    %1806 = vmatprep.subr.mxu0 0.0
    %1807 = vmatpush1.msra.mxu0 0.0
    %1808 = vmatprep.subr.mxu0 0.0
    %1809 = vmatpush1.msra.mxu0 0.0
    %1810 = vmatprep.subr.mxu0 0.0
    %1811 = vmatpush1.msra.mxu0 0.0
    %1812 = vmatprep.subr.mxu0 0.0
    %1813 = vmatpush1.msra.mxu0 0.0
    %1814 = vmatprep.subr.mxu0 0.0
    %1815 = vmatpush1.msra.mxu0 0.0
    %1816 = vmatprep.mubr.f32.mxu0 0.0
    %1817 = vmatmul.mubr.f32.gmra.mrb[0].mxu0 %v1750
    %v1818 = vpop.f32.mrb[0].mxu0
    %v1819 = vadd.f32 %v1744, %v1818
    %v1820 = vpop.f32.mrb[0].mxu0
    %1821 = vdwg.mxu0
    %1822 = vst [vmem:[#allocation4] sm:$0x3] %v1819
    %v1823 = vld [vmem:[%s21] sm:$0xff]
    %v1824 = vld [vmem:[%s21 + $0x8] sm:$0xff]
    %v1825 = vld [vmem:[%s21 + $0x10] sm:$0xff]
    %v1826 = vld [vmem:[%s21 + $0x18] sm:$0xff]
    %v1827 = vld [vmem:[%s21 + $0x20] sm:$0xff]
    %v1828 = vld [vmem:[%s21 + $0x28] sm:$0xff]
    %v1829 = vld [vmem:[%s21 + $0x30] sm:$0xff]
    %v1830 = vld [vmem:[%s21 + $0x38] sm:$0xff]
    %v1831 = vld [vmem:[%s21 + $0x40] sm:$0xff]
    %v1832 = vld [vmem:[%s21 + $0x48] sm:$0xff]
    %v1833 = vld [vmem:[%s21 + $0x50] sm:$0xff]
    %v1834 = vld [vmem:[%s21 + $0x58] sm:$0xff]
    %v1835 = vld [vmem:[%s21 + $0x60] sm:$0xff]
    %v1836 = vld [vmem:[%s21 + $0x68] sm:$0xff]
    %v1837 = vld [vmem:[%s21 + $0x70] sm:$0xff]
    %v1838 = vld [vmem:[%s21 + $0x78] sm:$0xff]
    %v1839 = vld [vmem:[%s21 + $0x80] sm:$0xff]
    %v1840 = vld [vmem:[%s21 + $0x88] sm:$0xff]
    %v1841 = vld [vmem:[%s21 + $0x90] sm:$0xff]
    %v1842 = vld [vmem:[%s21 + $0x98] sm:$0xff]
    %v1843 = vld [vmem:[%s21 + $0xa0] sm:$0xff]
    %v1844 = vld [vmem:[%s21 + $0xa8] sm:$0xff]
    %v1845 = vld [vmem:[%s21 + $0xb0] sm:$0xff]
    %v1846 = vld [vmem:[%s21 + $0xb8] sm:$0xff]
    %v1847 = vld [vmem:[%s21 + $0xc0] sm:$0xff]
    %v1848 = vld [vmem:[%s21 + $0xc8] sm:$0xff]
    %v1849 = vld [vmem:[%s21 + $0xd0] sm:$0xff]
    %v1850 = vld [vmem:[%s21 + $0xd8] sm:$0xff]
    %v1851 = vld [vmem:[%s21 + $0xe0] sm:$0xff]
    %v1852 = vld [vmem:[%s21 + $0xe8] sm:$0xff]
    %v1853 = vld [vmem:[%s21 + $0xf0] sm:$0xff]
    %v1854 = vld [vmem:[%s21 + $0xf8] sm:$0xff]
    %v1855 = vld [vmem:[%s21 + $0x100] sm:$0xff]
    %v1856 = vld [vmem:[%s21 + $0x108] sm:$0xff]
    %v1857 = vld [vmem:[%s21 + $0x110] sm:$0xff]
    %v1858 = vld [vmem:[%s21 + $0x118] sm:$0xff]
    %v1859 = vld [vmem:[%s21 + $0x120] sm:$0xff]
    %v1860 = vld [vmem:[%s21 + $0x128] sm:$0xff]
    %v1861 = vld [vmem:[%s21 + $0x130] sm:$0xff]
    %v1862 = vld [vmem:[%s21 + $0x138] sm:$0xff]
    %v1863 = vld [vmem:[%s21 + $0x140] sm:$0xff]
    %v1864 = vld [vmem:[%s21 + $0x148] sm:$0xff]
    %v1865 = vld [vmem:[%s21 + $0x150] sm:$0xff]
    %v1866 = vld [vmem:[%s21 + $0x158] sm:$0xff]
    %v1867 = vld [vmem:[%s21 + $0x160] sm:$0xff]
    %v1868 = vld [vmem:[%s21 + $0x168] sm:$0xff]
    %v1869 = vld [vmem:[%s21 + $0x170] sm:$0xff]
    %v1870 = vld [vmem:[%s21 + $0x178] sm:$0xff]
    %v1871 = vld [vmem:[%s23] sm:$0x7]
    %v1873 = vlaneseq
    %v1874 = vshrl.u32 %v1873, 7
    %v1875 = vsub.s32 0, %v1874
    %v1876 = vrot.slane %v1871, %v1875
    %v1877 = vlaneseq
    %v1878 = vshrl.u32 %v1877, 7
    %v1879 = vsub.s32 1, %v1878
    %v1880 = vrot.slane %v1871, %v1879
    %v1881 = vlaneseq
    %v1882 = vshrl.u32 %v1881, 7
    %v1883 = vsub.s32 2, %v1882
    %v1884 = vrot.slane %v1871, %v1883
    %1888 = vmatprep.subr.mxu0 %v1824
    %1889 = vmatpush1.msra.mxu0 %v1823
    %1890 = vmatprep.subr.mxu0 %v1827
    %1891 = vmatpush1.msra.mxu0 %v1826
    %1892 = vmatprep.subr.mxu0 %v1830
    %1893 = vmatpush1.msra.mxu0 %v1829
    %1894 = vmatprep.subr.mxu0 %v1833
    %1895 = vmatpush1.msra.mxu0 %v1832
    %1896 = vmatprep.subr.mxu0 %v1836
    %1897 = vmatpush1.msra.mxu0 %v1835
    %1898 = vmatprep.subr.mxu0 %v1839
    %1899 = vmatpush1.msra.mxu0 %v1838
    %1900 = vmatprep.subr.mxu0 %v1842
    %1901 = vmatpush1.msra.mxu0 %v1841
    %1902 = vmatprep.subr.mxu0 %v1845
    %1903 = vmatpush1.msra.mxu0 %v1844
    %1904 = vmatprep.subr.mxu0 %v1848
    %1905 = vmatpush1.msra.mxu0 %v1847
    %1906 = vmatprep.subr.mxu0 %v1851
    %1907 = vmatpush1.msra.mxu0 %v1850
    %1908 = vmatprep.subr.mxu0 %v1854
    %1909 = vmatpush1.msra.mxu0 %v1853
    %1910 = vmatprep.subr.mxu0 %v1857
    %1911 = vmatpush1.msra.mxu0 %v1856
    %1912 = vmatprep.subr.mxu0 %v1860
    %1913 = vmatpush1.msra.mxu0 %v1859
    %1914 = vmatprep.subr.mxu0 %v1863
    %1915 = vmatpush1.msra.mxu0 %v1862
    %1916 = vmatprep.subr.mxu0 %v1866
    %1917 = vmatpush1.msra.mxu0 %v1865
    %1918 = vmatprep.subr.mxu0 %v1869
    %1919 = vmatpush1.msra.mxu0 %v1868
    %1920 = vmatprep.subr.mxu0 0.0
    %1921 = vmatpush1.msra.mxu0 0.0
    %1922 = vmatprep.subr.mxu0 0.0
    %1923 = vmatpush1.msra.mxu0 0.0
    %1924 = vmatprep.subr.mxu0 0.0
    %1925 = vmatpush1.msra.mxu0 0.0
    %1926 = vmatprep.subr.mxu0 0.0
    %1927 = vmatpush1.msra.mxu0 0.0
    %1928 = vmatprep.subr.mxu0 0.0
    %1929 = vmatpush1.msra.mxu0 0.0
    %1930 = vmatprep.subr.mxu0 0.0
    %1931 = vmatpush1.msra.mxu0 0.0
    %1932 = vmatprep.subr.mxu0 0.0
    %1933 = vmatpush1.msra.mxu0 0.0
    %1934 = vmatprep.subr.mxu0 0.0
    %1935 = vmatpush1.msra.mxu0 0.0
    %1936 = vmatprep.subr.mxu0 0.0
    %1937 = vmatpush1.msra.mxu0 0.0
    %1938 = vmatprep.subr.mxu0 0.0
    %1939 = vmatpush1.msra.mxu0 0.0
    %1940 = vmatprep.subr.mxu0 0.0
    %1941 = vmatpush1.msra.mxu0 0.0
    %1942 = vmatprep.subr.mxu0 0.0
    %1943 = vmatpush1.msra.mxu0 0.0
    %1944 = vmatprep.subr.mxu0 0.0
    %1945 = vmatpush1.msra.mxu0 0.0
    %1946 = vmatprep.subr.mxu0 0.0
    %1947 = vmatpush1.msra.mxu0 0.0
    %1948 = vmatprep.subr.mxu0 0.0
    %1949 = vmatpush1.msra.mxu0 0.0
    %1950 = vmatprep.subr.mxu0 0.0
    %1951 = vmatpush1.msra.mxu0 0.0
    %1952 = vmatprep.mubr.f32.mxu0 0.0
    %1953 = vmatmul.mubr.f32.gmra.mrb[0].mxu0 %v892
    %v1954 = vpop.f32.mrb[0].mxu0
    %v1955 = vadd.f32 %v1876, %v1954
    %v1956 = vpop.f32.mrb[0].mxu0
    %v1957 = vadd.f32 %v1880, %v1956
    %1958 = vdwg.mxu0
    %1959 = vmatprep.subr.mxu0 0.0
    %1960 = vmatpush1.msra.mxu0 %v1825
    %1961 = vmatprep.subr.mxu0 0.0
    %1962 = vmatpush1.msra.mxu0 %v1828
    %1963 = vmatprep.subr.mxu0 0.0
    %1964 = vmatpush1.msra.mxu0 %v1831
    %1965 = vmatprep.subr.mxu0 0.0
    %1966 = vmatpush1.msra.mxu0 %v1834
    %1967 = vmatprep.subr.mxu0 0.0
    %1968 = vmatpush1.msra.mxu0 %v1837
    %1969 = vmatprep.subr.mxu0 0.0
    %1970 = vmatpush1.msra.mxu0 %v1840
    %1971 = vmatprep.subr.mxu0 0.0
    %1972 = vmatpush1.msra.mxu0 %v1843
    %1973 = vmatprep.subr.mxu0 0.0
    %1974 = vmatpush1.msra.mxu0 %v1846
    %1975 = vmatprep.subr.mxu0 0.0
    %1976 = vmatpush1.msra.mxu0 %v1849
    %1977 = vmatprep.subr.mxu0 0.0
    %1978 = vmatpush1.msra.mxu0 %v1852
    %1979 = vmatprep.subr.mxu0 0.0
    %1980 = vmatpush1.msra.mxu0 %v1855
    %1981 = vmatprep.subr.mxu0 0.0
    %1982 = vmatpush1.msra.mxu0 %v1858
    %1983 = vmatprep.subr.mxu0 0.0
    %1984 = vmatpush1.msra.mxu0 %v1861
    %1985 = vmatprep.subr.mxu0 0.0
    %1986 = vmatpush1.msra.mxu0 %v1864
    %1987 = vmatprep.subr.mxu0 0.0
    %1988 = vmatpush1.msra.mxu0 %v1867
    %1989 = vmatprep.subr.mxu0 0.0
    %1990 = vmatpush1.msra.mxu0 %v1870
    %1991 = vmatprep.subr.mxu0 0.0
    %1992 = vmatpush1.msra.mxu0 0.0
    %1993 = vmatprep.subr.mxu0 0.0
    %1994 = vmatpush1.msra.mxu0 0.0
    %1995 = vmatprep.subr.mxu0 0.0
    %1996 = vmatpush1.msra.mxu0 0.0
    %1997 = vmatprep.subr.mxu0 0.0
    %1998 = vmatpush1.msra.mxu0 0.0
    %1999 = vmatprep.subr.mxu0 0.0
    %2000 = vmatpush1.msra.mxu0 0.0
    %2001 = vmatprep.subr.mxu0 0.0
    %2002 = vmatpush1.msra.mxu0 0.0
    %2003 = vmatprep.subr.mxu0 0.0
    %2004 = vmatpush1.msra.mxu0 0.0
    %2005 = vmatprep.subr.mxu0 0.0
    %2006 = vmatpush1.msra.mxu0 0.0
    %2007 = vmatprep.subr.mxu0 0.0
    %2008 = vmatpush1.msra.mxu0 0.0
    %2009 = vmatprep.subr.mxu0 0.0
    %2010 = vmatpush1.msra.mxu0 0.0
    %2011 = vmatprep.subr.mxu0 0.0
    %2012 = vmatpush1.msra.mxu0 0.0
    %2013 = vmatprep.subr.mxu0 0.0
    %2014 = vmatpush1.msra.mxu0 0.0
    %2015 = vmatprep.subr.mxu0 0.0
    %2016 = vmatpush1.msra.mxu0 0.0
    %2017 = vmatprep.subr.mxu0 0.0
    %2018 = vmatpush1.msra.mxu0 0.0
    %2019 = vmatprep.subr.mxu0 0.0
    %2020 = vmatpush1.msra.mxu0 0.0
    %2021 = vmatprep.subr.mxu0 0.0
    %2022 = vmatpush1.msra.mxu0 0.0
    %2023 = vmatprep.mubr.f32.mxu0 0.0
    %2024 = vmatmul.mubr.f32.gmra.mrb[0].mxu0 %v892
    %v2025 = vpop.f32.mrb[0].mxu0
    %v2026 = vadd.f32 %v1884, %v2025
    %v2027 = vpop.f32.mrb[0].mxu0
    %2028 = vdwg.mxu0
    %2029 = vmatprep.subr.mxu0 %v1824
    %2030 = vmatpush1.msra.mxu0 %v1823
    %2031 = vmatprep.subr.mxu0 %v1827
    %2032 = vmatpush1.msra.mxu0 %v1826
    %2033 = vmatprep.subr.mxu0 %v1830
    %2034 = vmatpush1.msra.mxu0 %v1829
    %2035 = vmatprep.subr.mxu0 %v1833
    %2036 = vmatpush1.msra.mxu0 %v1832
    %2037 = vmatprep.subr.mxu0 %v1836
    %2038 = vmatpush1.msra.mxu0 %v1835
    %2039 = vmatprep.subr.mxu0 %v1839
    %2040 = vmatpush1.msra.mxu0 %v1838
    %2041 = vmatprep.subr.mxu0 %v1842
    %2042 = vmatpush1.msra.mxu0 %v1841
    %2043 = vmatprep.subr.mxu0 %v1845
    %2044 = vmatpush1.msra.mxu0 %v1844
    %2045 = vmatprep.subr.mxu0 %v1848
    %2046 = vmatpush1.msra.mxu0 %v1847
    %2047 = vmatprep.subr.mxu0 %v1851
    %2048 = vmatpush1.msra.mxu0 %v1850
    %2049 = vmatprep.subr.mxu0 %v1854
    %2050 = vmatpush1.msra.mxu0 %v1853
    %2051 = vmatprep.subr.mxu0 %v1857
    %2052 = vmatpush1.msra.mxu0 %v1856
    %2053 = vmatprep.subr.mxu0 %v1860
    %2054 = vmatpush1.msra.mxu0 %v1859
    %2055 = vmatprep.subr.mxu0 %v1863
    %2056 = vmatpush1.msra.mxu0 %v1862
    %2057 = vmatprep.subr.mxu0 %v1866
    %2058 = vmatpush1.msra.mxu0 %v1865
    %2059 = vmatprep.subr.mxu0 %v1869
    %2060 = vmatpush1.msra.mxu0 %v1868
    %2061 = vmatprep.subr.mxu0 0.0
    %2062 = vmatpush1.msra.mxu0 0.0
    %2063 = vmatprep.subr.mxu0 0.0
    %2064 = vmatpush1.msra.mxu0 0.0
    %2065 = vmatprep.subr.mxu0 0.0
    %2066 = vmatpush1.msra.mxu0 0.0
    %2067 = vmatprep.subr.mxu0 0.0
    %2068 = vmatpush1.msra.mxu0 0.0
    %2069 = vmatprep.subr.mxu0 0.0
    %2070 = vmatpush1.msra.mxu0 0.0
    %2071 = vmatprep.subr.mxu0 0.0
    %2072 = vmatpush1.msra.mxu0 0.0
    %2073 = vmatprep.subr.mxu0 0.0
    %2074 = vmatpush1.msra.mxu0 0.0
    %2075 = vmatprep.subr.mxu0 0.0
    %2076 = vmatpush1.msra.mxu0 0.0
    %2077 = vmatprep.subr.mxu0 0.0
    %2078 = vmatpush1.msra.mxu0 0.0
    %2079 = vmatprep.subr.mxu0 0.0
    %2080 = vmatpush1.msra.mxu0 0.0
    %2081 = vmatprep.subr.mxu0 0.0
    %2082 = vmatpush1.msra.mxu0 0.0
    %2083 = vmatprep.subr.mxu0 0.0
    %2084 = vmatpush1.msra.mxu0 0.0
    %2085 = vmatprep.subr.mxu0 0.0
    %2086 = vmatpush1.msra.mxu0 0.0
    %2087 = vmatprep.subr.mxu0 0.0
    %2088 = vmatpush1.msra.mxu0 0.0
    %2089 = vmatprep.subr.mxu0 0.0
    %2090 = vmatpush1.msra.mxu0 0.0
    %2091 = vmatprep.subr.mxu0 0.0
    %2092 = vmatpush1.msra.mxu0 0.0
    %2093 = vmatprep.mubr.f32.mxu0 0.0
    %2094 = vmatmul.mubr.f32.gmra.mrb[0].mxu0 %v1819
    %v2095 = vpop.f32.mrb[0].mxu0
    %v2096 = vadd.f32 %v1876, %v2095
    %v2097 = vpop.f32.mrb[0].mxu0
    %v2098 = vadd.f32 %v1880, %v2097
    %2099 = vdwg.mxu0
    %2100 = vmatprep.subr.mxu0 0.0
    %2101 = vmatpush1.msra.mxu0 %v1825
    %2102 = vmatprep.subr.mxu0 0.0
    %2103 = vmatpush1.msra.mxu0 %v1828
    %2104 = vmatprep.subr.mxu0 0.0
    %2105 = vmatpush1.msra.mxu0 %v1831
    %2106 = vmatprep.subr.mxu0 0.0
    %2107 = vmatpush1.msra.mxu0 %v1834
    %2108 = vmatprep.subr.mxu0 0.0
    %2109 = vmatpush1.msra.mxu0 %v1837
    %2110 = vmatprep.subr.mxu0 0.0
    %2111 = vmatpush1.msra.mxu0 %v1840
    %2112 = vmatprep.subr.mxu0 0.0
    %2113 = vmatpush1.msra.mxu0 %v1843
    %2114 = vmatprep.subr.mxu0 0.0
    %2115 = vmatpush1.msra.mxu0 %v1846
    %2116 = vmatprep.subr.mxu0 0.0
    %2117 = vmatpush1.msra.mxu0 %v1849
    %2118 = vmatprep.subr.mxu0 0.0
    %2119 = vmatpush1.msra.mxu0 %v1852
    %2120 = vmatprep.subr.mxu0 0.0
    %2121 = vmatpush1.msra.mxu0 %v1855
    %2122 = vmatprep.subr.mxu0 0.0
    %2123 = vmatpush1.msra.mxu0 %v1858
    %2124 = vmatprep.subr.mxu0 0.0
    %2125 = vmatpush1.msra.mxu0 %v1861
    %2126 = vmatprep.subr.mxu0 0.0
    %2127 = vmatpush1.msra.mxu0 %v1864
    %2128 = vmatprep.subr.mxu0 0.0
    %2129 = vmatpush1.msra.mxu0 %v1867
    %2130 = vmatprep.subr.mxu0 0.0
    %2131 = vmatpush1.msra.mxu0 %v1870
    %2132 = vmatprep.subr.mxu0 0.0
    %2133 = vmatpush1.msra.mxu0 0.0
    %2134 = vmatprep.subr.mxu0 0.0
    %2135 = vmatpush1.msra.mxu0 0.0
    %2136 = vmatprep.subr.mxu0 0.0
    %2137 = vmatpush1.msra.mxu0 0.0
    %2138 = vmatprep.subr.mxu0 0.0
    %2139 = vmatpush1.msra.mxu0 0.0
    %2140 = vmatprep.subr.mxu0 0.0
    %2141 = vmatpush1.msra.mxu0 0.0
    %2142 = vmatprep.subr.mxu0 0.0
    %2143 = vmatpush1.msra.mxu0 0.0
    %2144 = vmatprep.subr.mxu0 0.0
    %2145 = vmatpush1.msra.mxu0 0.0
    %2146 = vmatprep.subr.mxu0 0.0
    %2147 = vmatpush1.msra.mxu0 0.0
    %2148 = vmatprep.subr.mxu0 0.0
    %2149 = vmatpush1.msra.mxu0 0.0
    %2150 = vmatprep.subr.mxu0 0.0
    %2151 = vmatpush1.msra.mxu0 0.0
    %2152 = vmatprep.subr.mxu0 0.0
    %2153 = vmatpush1.msra.mxu0 0.0
    %2154 = vmatprep.subr.mxu0 0.0
    %2155 = vmatpush1.msra.mxu0 0.0
    %2156 = vmatprep.subr.mxu0 0.0
    %2157 = vmatpush1.msra.mxu0 0.0
    %2158 = vmatprep.subr.mxu0 0.0
    %2159 = vmatpush1.msra.mxu0 0.0
    %2160 = vmatprep.subr.mxu0 0.0
    %2161 = vmatpush1.msra.mxu0 0.0
    %2162 = vmatprep.subr.mxu0 0.0
    %2163 = vmatpush1.msra.mxu0 0.0
    %2164 = vmatprep.mubr.f32.mxu0 0.0
    %2165 = vmatmul.mubr.f32.gmra.mrb[0].mxu0 %v1819
    %v2166 = vpop.f32.mrb[0].mxu0
    %v2167 = vadd.f32 %v1884, %v2166
    %v2168 = vpop.f32.mrb[0].mxu0
    %2169 = vdwg.mxu0
    %v2170 = vld [vmem:[%s29] sm:$0xff]
    %v2171 = vld [vmem:[%s29 + $0x8] sm:$0xff]
    %v2172 = vld [vmem:[%s29 + $0x10] sm:$0xff]
    %v2173 = vld [vmem:[%s29 + $0x18] sm:$0xff]
    %v2174 = vld [vmem:[%s29 + $0x20] sm:$0xff]
    %v2175 = vld [vmem:[%s29 + $0x28] sm:$0xff]
    %v2176 = vld [vmem:[%s29 + $0x30] sm:$0xff]
    %v2177 = vld [vmem:[%s29 + $0x38] sm:$0xff]
    %v2178 = vld [vmem:[%s29 + $0x40] sm:$0xff]
    %v2179 = vld [vmem:[%s29 + $0x48] sm:$0xff]
    %v2180 = vld [vmem:[%s29 + $0x50] sm:$0xff]
    %v2181 = vld [vmem:[%s29 + $0x58] sm:$0xff]
    %v2182 = vld [vmem:[%s29 + $0x60] sm:$0xff]
    %v2183 = vld [vmem:[%s29 + $0x68] sm:$0xff]
    %v2184 = vld [vmem:[%s29 + $0x70] sm:$0xff]
    %v2185 = vld [vmem:[%s29 + $0x78] sm:$0xff]
    %v2186 = vld [vmem:[%s31] sm:$0xf]
    %v2187 = vmul.f32 %v1955, %v1957
    %2188 = vmatprep.subr.mxu0 0.0
    %2189 = vmatpush1.msra.mxu0 %v2170
    %2190 = vmatprep.subr.mxu0 0.0
    %2191 = vmatpush1.msra.mxu0 %v2171
    %2192 = vmatprep.subr.mxu0 0.0
    %2193 = vmatpush1.msra.mxu0 %v2172
    %2194 = vmatprep.subr.mxu0 0.0
    %2195 = vmatpush1.msra.mxu0 %v2173
    %2196 = vmatprep.subr.mxu0 0.0
    %2197 = vmatpush1.msra.mxu0 %v2174
    %2198 = vmatprep.subr.mxu0 0.0
    %2199 = vmatpush1.msra.mxu0 %v2175
    %2200 = vmatprep.subr.mxu0 0.0
    %2201 = vmatpush1.msra.mxu0 %v2176
    %2202 = vmatprep.subr.mxu0 0.0
    %2203 = vmatpush1.msra.mxu0 %v2177
    %2204 = vmatprep.subr.mxu0 0.0
    %2205 = vmatpush1.msra.mxu0 %v2178
    %2206 = vmatprep.subr.mxu0 0.0
    %2207 = vmatpush1.msra.mxu0 %v2179
    %2208 = vmatprep.subr.mxu0 0.0
    %2209 = vmatpush1.msra.mxu0 %v2180
    %2210 = vmatprep.subr.mxu0 0.0
    %2211 = vmatpush1.msra.mxu0 %v2181
    %2212 = vmatprep.subr.mxu0 0.0
    %2213 = vmatpush1.msra.mxu0 %v2182
    %2214 = vmatprep.subr.mxu0 0.0
    %2215 = vmatpush1.msra.mxu0 %v2183
    %2216 = vmatprep.subr.mxu0 0.0
    %2217 = vmatpush1.msra.mxu0 %v2184
    %2218 = vmatprep.subr.mxu0 0.0
    %2219 = vmatpush1.msra.mxu0 %v2185
    %2220 = vmatprep.subr.mxu0 0.0
    %2221 = vmatpush1.msra.mxu0 0.0
    %2222 = vmatprep.subr.mxu0 0.0
    %2223 = vmatpush1.msra.mxu0 0.0
    %2224 = vmatprep.subr.mxu0 0.0
    %2225 = vmatpush1.msra.mxu0 0.0
    %2226 = vmatprep.subr.mxu0 0.0
    %2227 = vmatpush1.msra.mxu0 0.0
    %2228 = vmatprep.subr.mxu0 0.0
    %2229 = vmatpush1.msra.mxu0 0.0
    %2230 = vmatprep.subr.mxu0 0.0
    %2231 = vmatpush1.msra.mxu0 0.0
    %2232 = vmatprep.subr.mxu0 0.0
    %2233 = vmatpush1.msra.mxu0 0.0
    %2234 = vmatprep.subr.mxu0 0.0
    %2235 = vmatpush1.msra.mxu0 0.0
    %2236 = vmatprep.subr.mxu0 0.0
    %2237 = vmatpush1.msra.mxu0 0.0
    %2238 = vmatprep.subr.mxu0 0.0
    %2239 = vmatpush1.msra.mxu0 0.0
    %2240 = vmatprep.subr.mxu0 0.0
    %2241 = vmatpush1.msra.mxu0 0.0
    %2242 = vmatprep.subr.mxu0 0.0
    %2243 = vmatpush1.msra.mxu0 0.0
    %2244 = vmatprep.subr.mxu0 0.0
    %2245 = vmatpush1.msra.mxu0 0.0
    %2246 = vmatprep.subr.mxu0 0.0
    %2247 = vmatpush1.msra.mxu0 0.0
    %2248 = vmatprep.subr.mxu0 0.0
    %2249 = vmatpush1.msra.mxu0 0.0
    %2250 = vmatprep.subr.mxu0 0.0
    %2251 = vmatpush1.msra.mxu0 0.0
    %2252 = vmatprep.mubr.f32.mxu0 0.0
    %2253 = vmatmul.mubr.f32.gmra.mrb[0].mxu0 %v2187
    %v2254 = vpop.f32.mrb[0].mxu0
    %v2255 = vadd.f32 0.0, %v2254
    %v2256 = vpop.f32.mrb[0].mxu0
    %2257 = vdwg.mxu0
    %v2258 = vmul.f32 %v2255, 0.17677669
    %v2259 = vmul.f32 %v1955, %v2098
    %2260 = vmatprep.subr.mxu0 0.0
    %2261 = vmatpush1.msra.mxu0 %v2170
    %2262 = vmatprep.subr.mxu0 0.0
    %2263 = vmatpush1.msra.mxu0 %v2171
    %2264 = vmatprep.subr.mxu0 0.0
    %2265 = vmatpush1.msra.mxu0 %v2172
    %2266 = vmatprep.subr.mxu0 0.0
    %2267 = vmatpush1.msra.mxu0 %v2173
    %2268 = vmatprep.subr.mxu0 0.0
    %2269 = vmatpush1.msra.mxu0 %v2174
    %2270 = vmatprep.subr.mxu0 0.0
    %2271 = vmatpush1.msra.mxu0 %v2175
    %2272 = vmatprep.subr.mxu0 0.0
    %2273 = vmatpush1.msra.mxu0 %v2176
    %2274 = vmatprep.subr.mxu0 0.0
    %2275 = vmatpush1.msra.mxu0 %v2177
    %2276 = vmatprep.subr.mxu0 0.0
    %2277 = vmatpush1.msra.mxu0 %v2178
    %2278 = vmatprep.subr.mxu0 0.0
    %2279 = vmatpush1.msra.mxu0 %v2179
    %2280 = vmatprep.subr.mxu0 0.0
    %2281 = vmatpush1.msra.mxu0 %v2180
    %2282 = vmatprep.subr.mxu0 0.0
    %2283 = vmatpush1.msra.mxu0 %v2181
    %2284 = vmatprep.subr.mxu0 0.0
    %2285 = vmatpush1.msra.mxu0 %v2182
    %2286 = vmatprep.subr.mxu0 0.0
    %2287 = vmatpush1.msra.mxu0 %v2183
    %2288 = vmatprep.subr.mxu0 0.0
    %2289 = vmatpush1.msra.mxu0 %v2184
    %2290 = vmatprep.subr.mxu0 0.0
    %2291 = vmatpush1.msra.mxu0 %v2185
    %2292 = vmatprep.subr.mxu0 0.0
    %2293 = vmatpush1.msra.mxu0 0.0
    %2294 = vmatprep.subr.mxu0 0.0
    %2295 = vmatpush1.msra.mxu0 0.0
    %2296 = vmatprep.subr.mxu0 0.0
    %2297 = vmatpush1.msra.mxu0 0.0
    %2298 = vmatprep.subr.mxu0 0.0
    %2299 = vmatpush1.msra.mxu0 0.0
    %2300 = vmatprep.subr.mxu0 0.0
    %2301 = vmatpush1.msra.mxu0 0.0
    %2302 = vmatprep.subr.mxu0 0.0
    %2303 = vmatpush1.msra.mxu0 0.0
    %2304 = vmatprep.subr.mxu0 0.0
    %2305 = vmatpush1.msra.mxu0 0.0
    %2306 = vmatprep.subr.mxu0 0.0
    %2307 = vmatpush1.msra.mxu0 0.0
    %2308 = vmatprep.subr.mxu0 0.0
    %2309 = vmatpush1.msra.mxu0 0.0
    %2310 = vmatprep.subr.mxu0 0.0
    %2311 = vmatpush1.msra.mxu0 0.0
    %2312 = vmatprep.subr.mxu0 0.0
    %2313 = vmatpush1.msra.mxu0 0.0
    %2314 = vmatprep.subr.mxu0 0.0
    %2315 = vmatpush1.msra.mxu0 0.0
    %2316 = vmatprep.subr.mxu0 0.0
    %2317 = vmatpush1.msra.mxu0 0.0
    %2318 = vmatprep.subr.mxu0 0.0
    %2319 = vmatpush1.msra.mxu0 0.0
    %2320 = vmatprep.subr.mxu0 0.0
    %2321 = vmatpush1.msra.mxu0 0.0
    %2322 = vmatprep.subr.mxu0 0.0
    %2323 = vmatpush1.msra.mxu0 0.0
    %2324 = vmatprep.mubr.f32.mxu0 0.0
    %2325 = vmatmul.mubr.f32.gmra.mrb[0].mxu0 %v2259
    %v2326 = vpop.f32.mrb[0].mxu0
    %v2327 = vadd.f32 0.0, %v2326
    %v2328 = vpop.f32.mrb[0].mxu0
    %2329 = vdwg.mxu0
    %v2330 = vmul.f32 %v2327, 0.17677669
    %v2331 = vmul.f32 %v2096, %v1957
    %2332 = vmatprep.subr.mxu0 0.0
    %2333 = vmatpush1.msra.mxu0 %v2170
    %2334 = vmatprep.subr.mxu0 0.0
    %2335 = vmatpush1.msra.mxu0 %v2171
    %2336 = vmatprep.subr.mxu0 0.0
    %2337 = vmatpush1.msra.mxu0 %v2172
    %2338 = vmatprep.subr.mxu0 0.0
    %2339 = vmatpush1.msra.mxu0 %v2173
    %2340 = vmatprep.subr.mxu0 0.0
    %2341 = vmatpush1.msra.mxu0 %v2174
    %2342 = vmatprep.subr.mxu0 0.0
    %2343 = vmatpush1.msra.mxu0 %v2175
    %2344 = vmatprep.subr.mxu0 0.0
    %2345 = vmatpush1.msra.mxu0 %v2176
    %2346 = vmatprep.subr.mxu0 0.0
    %2347 = vmatpush1.msra.mxu0 %v2177
    %2348 = vmatprep.subr.mxu0 0.0
    %2349 = vmatpush1.msra.mxu0 %v2178
    %2350 = vmatprep.subr.mxu0 0.0
    %2351 = vmatpush1.msra.mxu0 %v2179
    %2352 = vmatprep.subr.mxu0 0.0
    %2353 = vmatpush1.msra.mxu0 %v2180
    %2354 = vmatprep.subr.mxu0 0.0
    %2355 = vmatpush1.msra.mxu0 %v2181
    %2356 = vmatprep.subr.mxu0 0.0
    %2357 = vmatpush1.msra.mxu0 %v2182
    %2358 = vmatprep.subr.mxu0 0.0
    %2359 = vmatpush1.msra.mxu0 %v2183
    %2360 = vmatprep.subr.mxu0 0.0
    %2361 = vmatpush1.msra.mxu0 %v2184
    %2362 = vmatprep.subr.mxu0 0.0
    %2363 = vmatpush1.msra.mxu0 %v2185
    %2364 = vmatprep.subr.mxu0 0.0
    %2365 = vmatpush1.msra.mxu0 0.0
    %2366 = vmatprep.subr.mxu0 0.0
    %2367 = vmatpush1.msra.mxu0 0.0
    %2368 = vmatprep.subr.mxu0 0.0
    %2369 = vmatpush1.msra.mxu0 0.0
    %2370 = vmatprep.subr.mxu0 0.0
    %2371 = vmatpush1.msra.mxu0 0.0
    %2372 = vmatprep.subr.mxu0 0.0
    %2373 = vmatpush1.msra.mxu0 0.0
    %2374 = vmatprep.subr.mxu0 0.0
    %2375 = vmatpush1.msra.mxu0 0.0
    %2376 = vmatprep.subr.mxu0 0.0
    %2377 = vmatpush1.msra.mxu0 0.0
    %2378 = vmatprep.subr.mxu0 0.0
    %2379 = vmatpush1.msra.mxu0 0.0
    %2380 = vmatprep.subr.mxu0 0.0
    %2381 = vmatpush1.msra.mxu0 0.0
    %2382 = vmatprep.subr.mxu0 0.0
    %2383 = vmatpush1.msra.mxu0 0.0
    %2384 = vmatprep.subr.mxu0 0.0
    %2385 = vmatpush1.msra.mxu0 0.0
    %2386 = vmatprep.subr.mxu0 0.0
    %2387 = vmatpush1.msra.mxu0 0.0
    %2388 = vmatprep.subr.mxu0 0.0
    %2389 = vmatpush1.msra.mxu0 0.0
    %2390 = vmatprep.subr.mxu0 0.0
    %2391 = vmatpush1.msra.mxu0 0.0
    %2392 = vmatprep.subr.mxu0 0.0
    %2393 = vmatpush1.msra.mxu0 0.0
    %2394 = vmatprep.subr.mxu0 0.0
    %2395 = vmatpush1.msra.mxu0 0.0
    %2396 = vmatprep.mubr.f32.mxu0 0.0
    %2397 = vmatmul.mubr.f32.gmra.mrb[0].mxu0 %v2331
    %v2398 = vpop.f32.mrb[0].mxu0
    %v2399 = vadd.f32 0.0, %v2398
    %v2400 = vpop.f32.mrb[0].mxu0
    %2401 = vdwg.mxu0
    %v2402 = vmul.f32 %v2399, 0.17677669
    %v2403 = vmul.f32 %v2096, %v2098
    %2404 = vmatprep.subr.mxu0 0.0
    %2405 = vmatpush1.msra.mxu0 %v2170
    %2406 = vmatprep.subr.mxu0 0.0
    %2407 = vmatpush1.msra.mxu0 %v2171
    %2408 = vmatprep.subr.mxu0 0.0
    %2409 = vmatpush1.msra.mxu0 %v2172
    %2410 = vmatprep.subr.mxu0 0.0
    %2411 = vmatpush1.msra.mxu0 %v2173
    %2412 = vmatprep.subr.mxu0 0.0
    %2413 = vmatpush1.msra.mxu0 %v2174
    %2414 = vmatprep.subr.mxu0 0.0
    %2415 = vmatpush1.msra.mxu0 %v2175
    %2416 = vmatprep.subr.mxu0 0.0
    %2417 = vmatpush1.msra.mxu0 %v2176
    %2418 = vmatprep.subr.mxu0 0.0
    %2419 = vmatpush1.msra.mxu0 %v2177
    %2420 = vmatprep.subr.mxu0 0.0
    %2421 = vmatpush1.msra.mxu0 %v2178
    %2422 = vmatprep.subr.mxu0 0.0
    %2423 = vmatpush1.msra.mxu0 %v2179
    %2424 = vmatprep.subr.mxu0 0.0
    %2425 = vmatpush1.msra.mxu0 %v2180
    %2426 = vmatprep.subr.mxu0 0.0
    %2427 = vmatpush1.msra.mxu0 %v2181
    %2428 = vmatprep.subr.mxu0 0.0
    %2429 = vmatpush1.msra.mxu0 %v2182
    %2430 = vmatprep.subr.mxu0 0.0
    %2431 = vmatpush1.msra.mxu0 %v2183
    %2432 = vmatprep.subr.mxu0 0.0
    %2433 = vmatpush1.msra.mxu0 %v2184
    %2434 = vmatprep.subr.mxu0 0.0
    %2435 = vmatpush1.msra.mxu0 %v2185
    %2436 = vmatprep.subr.mxu0 0.0
    %2437 = vmatpush1.msra.mxu0 0.0
    %2438 = vmatprep.subr.mxu0 0.0
    %2439 = vmatpush1.msra.mxu0 0.0
    %2440 = vmatprep.subr.mxu0 0.0
    %2441 = vmatpush1.msra.mxu0 0.0
    %2442 = vmatprep.subr.mxu0 0.0
    %2443 = vmatpush1.msra.mxu0 0.0
    %2444 = vmatprep.subr.mxu0 0.0
    %2445 = vmatpush1.msra.mxu0 0.0
    %2446 = vmatprep.subr.mxu0 0.0
    %2447 = vmatpush1.msra.mxu0 0.0
    %2448 = vmatprep.subr.mxu0 0.0
    %2449 = vmatpush1.msra.mxu0 0.0
    %2450 = vmatprep.subr.mxu0 0.0
    %2451 = vmatpush1.msra.mxu0 0.0
    %2452 = vmatprep.subr.mxu0 0.0
    %2453 = vmatpush1.msra.mxu0 0.0
    %2454 = vmatprep.subr.mxu0 0.0
    %2455 = vmatpush1.msra.mxu0 0.0
    %2456 = vmatprep.subr.mxu0 0.0
    %2457 = vmatpush1.msra.mxu0 0.0
    %2458 = vmatprep.subr.mxu0 0.0
    %2459 = vmatpush1.msra.mxu0 0.0
    %2460 = vmatprep.subr.mxu0 0.0
    %2461 = vmatpush1.msra.mxu0 0.0
    %2462 = vmatprep.subr.mxu0 0.0
    %2463 = vmatpush1.msra.mxu0 0.0
    %2464 = vmatprep.subr.mxu0 0.0
    %2465 = vmatpush1.msra.mxu0 0.0
    %2466 = vmatprep.subr.mxu0 0.0
    %2467 = vmatpush1.msra.mxu0 0.0
    %2468 = vmatprep.mubr.f32.mxu0 0.0
    %2469 = vmatmul.mubr.f32.gmra.mrb[0].mxu0 %v2403
    %v2470 = vpop.f32.mrb[0].mxu0
    %v2471 = vadd.f32 0.0, %v2470
    %v2472 = vpop.f32.mrb[0].mxu0
    %2473 = vdwg.mxu0
    %v2474 = vmul.f32 %v2471, 0.17677669
    %v2475 = vmax.f32 %v2258, %v2330
    %v2476 = vsub.f32 %v2258, %v2475
    %v2477 = vmul.f32 %v2476, 1.442695
    %v2478 = vpow.pop %v2477
    %v2479 = vsub.f32 %v2330, %v2475
    %v2480 = vmul.f32 %v2479, 1.442695
    %v2481 = vpow.pop %v2480
    %v2482 = vadd.f32 %v2478, %v2481
    %v2483 = vrcp.pop %v2482
    %v2484 = vmul.f32 1.0, %v2483
    %v2485 = vmul.f32 %v2478, %v2484
    %v2486 = vmul.f32 %v2481, %v2484
    %v2487 = vmax.f32 %v2402, %v2474
    %v2488 = vsub.f32 %v2402, %v2487
    %v2489 = vmul.f32 %v2488, 1.442695
    %v2490 = vpow.pop %v2489
    %v2491 = vsub.f32 %v2474, %v2487
    %v2492 = vmul.f32 %v2491, 1.442695
    %v2493 = vpow.pop %v2492
    %v2494 = vadd.f32 %v2490, %v2493
    %v2495 = vrcp.pop %v2494
    %v2496 = vmul.f32 1.0, %v2495
    %v2497 = vmul.f32 %v2490, %v2496
    %v2498 = vmul.f32 %v2493, %v2496
    %vm2499 = vcmask 31744
    %v2501 = vsel %vm2499, %v2485, 0
    %vm2503 = vcmask 1043456
    %v2505 = vsel %vm2503, %v2186, 0
    %2507 = vmatprep.subr.mxu0 0.0
    %2508 = vmatpush1.msra.mxu0 %v2505
    %2509 = vmatprep.subr.mxu0 0.0
    %2510 = vmatpush1.msra.mxu0 0.0
    %2511 = vmatprep.subr.mxu0 0.0
    %2512 = vmatpush1.msra.mxu0 0.0
    %2513 = vmatprep.subr.mxu0 0.0
    %2514 = vmatpush1.msra.mxu0 0.0
    %2515 = vmatprep.subr.mxu0 0.0
    %2516 = vmatpush1.msra.mxu0 0.0
    %2517 = vmatprep.subr.mxu0 0.0
    %2518 = vmatpush1.msra.mxu0 0.0
    %2519 = vmatprep.subr.mxu0 0.0
    %2520 = vmatpush1.msra.mxu0 0.0
    %2521 = vmatprep.subr.mxu0 0.0
    %2522 = vmatpush1.msra.mxu0 0.0
    %2523 = vmatprep.subr.mxu0 0.0
    %2524 = vmatpush1.msra.mxu0 0.0
    %2525 = vmatprep.subr.mxu0 0.0
    %2526 = vmatpush1.msra.mxu0 0.0
    %2527 = vmatprep.subr.mxu0 0.0
    %2528 = vmatpush1.msra.mxu0 0.0
    %2529 = vmatprep.subr.mxu0 0.0
    %2530 = vmatpush1.msra.mxu0 0.0
    %2531 = vmatprep.subr.mxu0 0.0
    %2532 = vmatpush1.msra.mxu0 0.0
    %2533 = vmatprep.subr.mxu0 0.0
    %2534 = vmatpush1.msra.mxu0 0.0
    %2535 = vmatprep.subr.mxu0 0.0
    %2536 = vmatpush1.msra.mxu0 0.0
    %2537 = vmatprep.subr.mxu0 0.0
    %2538 = vmatpush1.msra.mxu0 0.0
    %2539 = vmatprep.subr.mxu0 0.0
    %2540 = vmatpush1.msra.mxu0 0.0
    %2541 = vmatprep.subr.mxu0 0.0
    %2542 = vmatpush1.msra.mxu0 0.0
    %2543 = vmatprep.subr.mxu0 0.0
    %2544 = vmatpush1.msra.mxu0 0.0
    %2545 = vmatprep.subr.mxu0 0.0
    %2546 = vmatpush1.msra.mxu0 0.0
    %2547 = vmatprep.subr.mxu0 0.0
    %2548 = vmatpush1.msra.mxu0 0.0
    %2549 = vmatprep.subr.mxu0 0.0
    %2550 = vmatpush1.msra.mxu0 0.0
    %2551 = vmatprep.subr.mxu0 0.0
    %2552 = vmatpush1.msra.mxu0 0.0
    %2553 = vmatprep.subr.mxu0 0.0
    %2554 = vmatpush1.msra.mxu0 0.0
    %2555 = vmatprep.subr.mxu0 0.0
    %2556 = vmatpush1.msra.mxu0 0.0
    %2557 = vmatprep.subr.mxu0 0.0
    %2558 = vmatpush1.msra.mxu0 0.0
    %2559 = vmatprep.subr.mxu0 0.0
    %2560 = vmatpush1.msra.mxu0 0.0
    %2561 = vmatprep.subr.mxu0 0.0
    %2562 = vmatpush1.msra.mxu0 0.0
    %2563 = vmatprep.subr.mxu0 0.0
    %2564 = vmatpush1.msra.mxu0 0.0
    %2565 = vmatprep.subr.mxu0 0.0
    %2566 = vmatpush1.msra.mxu0 0.0
    %2567 = vmatprep.subr.mxu0 0.0
    %2568 = vmatpush1.msra.mxu0 0.0
    %2569 = vmatprep.subr.mxu0 0.0
    %2570 = vmatpush1.msra.mxu0 0.0
    %2571 = vmatprep.mubr.f32.mxu0 0.0
    %2572 = vmatmul.mubr.f32.gmra.mrb[0].mxu0 %v2501
    %v2573 = vpop.f32.mrb[0].mxu0
    %v2574 = vadd.f32 0.0, %v2573
    %v2575 = vpop.f32.mrb[0].mxu0
    %2576 = vdwg.mxu0
    %v2577 = vmul.f32 %v2574, %v2026
    %v2579 = vsel %vm2499, %v2486, 0
    %2581 = vmatprep.subr.mxu0 0.0
    %2582 = vmatpush1.msra.mxu0 %v2505
    %2583 = vmatprep.subr.mxu0 0.0
    %2584 = vmatpush1.msra.mxu0 0.0
    %2585 = vmatprep.subr.mxu0 0.0
    %2586 = vmatpush1.msra.mxu0 0.0
    %2587 = vmatprep.subr.mxu0 0.0
    %2588 = vmatpush1.msra.mxu0 0.0
    %2589 = vmatprep.subr.mxu0 0.0
    %2590 = vmatpush1.msra.mxu0 0.0
    %2591 = vmatprep.subr.mxu0 0.0
    %2592 = vmatpush1.msra.mxu0 0.0
    %2593 = vmatprep.subr.mxu0 0.0
    %2594 = vmatpush1.msra.mxu0 0.0
    %2595 = vmatprep.subr.mxu0 0.0
    %2596 = vmatpush1.msra.mxu0 0.0
    %2597 = vmatprep.subr.mxu0 0.0
    %2598 = vmatpush1.msra.mxu0 0.0
    %2599 = vmatprep.subr.mxu0 0.0
    %2600 = vmatpush1.msra.mxu0 0.0
    %2601 = vmatprep.subr.mxu0 0.0
    %2602 = vmatpush1.msra.mxu0 0.0
    %2603 = vmatprep.subr.mxu0 0.0
    %2604 = vmatpush1.msra.mxu0 0.0
    %2605 = vmatprep.subr.mxu0 0.0
    %2606 = vmatpush1.msra.mxu0 0.0
    %2607 = vmatprep.subr.mxu0 0.0
    %2608 = vmatpush1.msra.mxu0 0.0
    %2609 = vmatprep.subr.mxu0 0.0
    %2610 = vmatpush1.msra.mxu0 0.0
    %2611 = vmatprep.subr.mxu0 0.0
    %2612 = vmatpush1.msra.mxu0 0.0
    %2613 = vmatprep.subr.mxu0 0.0
    %2614 = vmatpush1.msra.mxu0 0.0
    %2615 = vmatprep.subr.mxu0 0.0
    %2616 = vmatpush1.msra.mxu0 0.0
    %2617 = vmatprep.subr.mxu0 0.0
    %2618 = vmatpush1.msra.mxu0 0.0
    %2619 = vmatprep.subr.mxu0 0.0
    %2620 = vmatpush1.msra.mxu0 0.0
    %2621 = vmatprep.subr.mxu0 0.0
    %2622 = vmatpush1.msra.mxu0 0.0
    %2623 = vmatprep.subr.mxu0 0.0
    %2624 = vmatpush1.msra.mxu0 0.0
    %2625 = vmatprep.subr.mxu0 0.0
    %2626 = vmatpush1.msra.mxu0 0.0
    %2627 = vmatprep.subr.mxu0 0.0
    %2628 = vmatpush1.msra.mxu0 0.0
    %2629 = vmatprep.subr.mxu0 0.0
    %2630 = vmatpush1.msra.mxu0 0.0
    %2631 = vmatprep.subr.mxu0 0.0
    %2632 = vmatpush1.msra.mxu0 0.0
    %2633 = vmatprep.subr.mxu0 0.0
    %2634 = vmatpush1.msra.mxu0 0.0
    %2635 = vmatprep.subr.mxu0 0.0
    %2636 = vmatpush1.msra.mxu0 0.0
    %2637 = vmatprep.subr.mxu0 0.0
    %2638 = vmatpush1.msra.mxu0 0.0
    %2639 = vmatprep.subr.mxu0 0.0
    %2640 = vmatpush1.msra.mxu0 0.0
    %2641 = vmatprep.subr.mxu0 0.0
    %2642 = vmatpush1.msra.mxu0 0.0
    %2643 = vmatprep.subr.mxu0 0.0
    %2644 = vmatpush1.msra.mxu0 0.0
    %2645 = vmatprep.mubr.f32.mxu0 0.0
    %2646 = vmatmul.mubr.f32.gmra.mrb[0].mxu0 %v2579
    %v2647 = vpop.f32.mrb[0].mxu0
    %v2648 = vadd.f32 0.0, %v2647
    %v2649 = vpop.f32.mrb[0].mxu0
    %2650 = vdwg.mxu0
    %v2651 = vmul.f32 %v2648, %v2167
    %v2652 = vadd.f32 %v2577, %v2651
    %v2654 = vsel %vm2499, %v2497, 0
    %2656 = vmatprep.subr.mxu0 0.0
    %2657 = vmatpush1.msra.mxu0 %v2505
    %2658 = vmatprep.subr.mxu0 0.0
    %2659 = vmatpush1.msra.mxu0 0.0
    %2660 = vmatprep.subr.mxu0 0.0
    %2661 = vmatpush1.msra.mxu0 0.0
    %2662 = vmatprep.subr.mxu0 0.0
    %2663 = vmatpush1.msra.mxu0 0.0
    %2664 = vmatprep.subr.mxu0 0.0
    %2665 = vmatpush1.msra.mxu0 0.0
    %2666 = vmatprep.subr.mxu0 0.0
    %2667 = vmatpush1.msra.mxu0 0.0
    %2668 = vmatprep.subr.mxu0 0.0
    %2669 = vmatpush1.msra.mxu0 0.0
    %2670 = vmatprep.subr.mxu0 0.0
    %2671 = vmatpush1.msra.mxu0 0.0
    %2672 = vmatprep.subr.mxu0 0.0
    %2673 = vmatpush1.msra.mxu0 0.0
    %2674 = vmatprep.subr.mxu0 0.0
    %2675 = vmatpush1.msra.mxu0 0.0
    %2676 = vmatprep.subr.mxu0 0.0
    %2677 = vmatpush1.msra.mxu0 0.0
    %2678 = vmatprep.subr.mxu0 0.0
    %2679 = vmatpush1.msra.mxu0 0.0
    %2680 = vmatprep.subr.mxu0 0.0
    %2681 = vmatpush1.msra.mxu0 0.0
    %2682 = vmatprep.subr.mxu0 0.0
    %2683 = vmatpush1.msra.mxu0 0.0
    %2684 = vmatprep.subr.mxu0 0.0
    %2685 = vmatpush1.msra.mxu0 0.0
    %2686 = vmatprep.subr.mxu0 0.0
    %2687 = vmatpush1.msra.mxu0 0.0
    %2688 = vmatprep.subr.mxu0 0.0
    %2689 = vmatpush1.msra.mxu0 0.0
    %2690 = vmatprep.subr.mxu0 0.0
    %2691 = vmatpush1.msra.mxu0 0.0
    %2692 = vmatprep.subr.mxu0 0.0
    %2693 = vmatpush1.msra.mxu0 0.0
    %2694 = vmatprep.subr.mxu0 0.0
    %2695 = vmatpush1.msra.mxu0 0.0
    %2696 = vmatprep.subr.mxu0 0.0
    %2697 = vmatpush1.msra.mxu0 0.0
    %2698 = vmatprep.subr.mxu0 0.0
    %2699 = vmatpush1.msra.mxu0 0.0
    %2700 = vmatprep.subr.mxu0 0.0
    %2701 = vmatpush1.msra.mxu0 0.0
    %2702 = vmatprep.subr.mxu0 0.0
    %2703 = vmatpush1.msra.mxu0 0.0
    %2704 = vmatprep.subr.mxu0 0.0
    %2705 = vmatpush1.msra.mxu0 0.0
    %2706 = vmatprep.subr.mxu0 0.0
    %2707 = vmatpush1.msra.mxu0 0.0
    %2708 = vmatprep.subr.mxu0 0.0
    %2709 = vmatpush1.msra.mxu0 0.0
    %2710 = vmatprep.subr.mxu0 0.0
    %2711 = vmatpush1.msra.mxu0 0.0
    %2712 = vmatprep.subr.mxu0 0.0
    %2713 = vmatpush1.msra.mxu0 0.0
    %2714 = vmatprep.subr.mxu0 0.0
    %2715 = vmatpush1.msra.mxu0 0.0
    %2716 = vmatprep.subr.mxu0 0.0
    %2717 = vmatpush1.msra.mxu0 0.0
    %2718 = vmatprep.subr.mxu0 0.0
    %2719 = vmatpush1.msra.mxu0 0.0
    %2720 = vmatprep.mubr.f32.mxu0 0.0
    %2721 = vmatmul.mubr.f32.gmra.mrb[0].mxu0 %v2654
    %v2722 = vpop.f32.mrb[0].mxu0
    %v2723 = vadd.f32 0.0, %v2722
    %v2724 = vpop.f32.mrb[0].mxu0
    %2725 = vdwg.mxu0
    %v2726 = vmul.f32 %v2723, %v2026
    %v2728 = vsel %vm2499, %v2498, 0
    %2730 = vmatprep.subr.mxu0 0.0
    %2731 = vmatpush1.msra.mxu0 %v2505
    %2732 = vmatprep.subr.mxu0 0.0
    %2733 = vmatpush1.msra.mxu0 0.0
    %2734 = vmatprep.subr.mxu0 0.0
    %2735 = vmatpush1.msra.mxu0 0.0
    %2736 = vmatprep.subr.mxu0 0.0
    %2737 = vmatpush1.msra.mxu0 0.0
    %2738 = vmatprep.subr.mxu0 0.0
    %2739 = vmatpush1.msra.mxu0 0.0
    %2740 = vmatprep.subr.mxu0 0.0
    %2741 = vmatpush1.msra.mxu0 0.0
    %2742 = vmatprep.subr.mxu0 0.0
    %2743 = vmatpush1.msra.mxu0 0.0
    %2744 = vmatprep.subr.mxu0 0.0
    %2745 = vmatpush1.msra.mxu0 0.0
    %2746 = vmatprep.subr.mxu0 0.0
    %2747 = vmatpush1.msra.mxu0 0.0
    %2748 = vmatprep.subr.mxu0 0.0
    %2749 = vmatpush1.msra.mxu0 0.0
    %2750 = vmatprep.subr.mxu0 0.0
    %2751 = vmatpush1.msra.mxu0 0.0
    %2752 = vmatprep.subr.mxu0 0.0
    %2753 = vmatpush1.msra.mxu0 0.0
    %2754 = vmatprep.subr.mxu0 0.0
    %2755 = vmatpush1.msra.mxu0 0.0
    %2756 = vmatprep.subr.mxu0 0.0
    %2757 = vmatpush1.msra.mxu0 0.0
    %2758 = vmatprep.subr.mxu0 0.0
    %2759 = vmatpush1.msra.mxu0 0.0
    %2760 = vmatprep.subr.mxu0 0.0
    %2761 = vmatpush1.msra.mxu0 0.0
    %2762 = vmatprep.subr.mxu0 0.0
    %2763 = vmatpush1.msra.mxu0 0.0
    %2764 = vmatprep.subr.mxu0 0.0
    %2765 = vmatpush1.msra.mxu0 0.0
    %2766 = vmatprep.subr.mxu0 0.0
    %2767 = vmatpush1.msra.mxu0 0.0
    %2768 = vmatprep.subr.mxu0 0.0
    %2769 = vmatpush1.msra.mxu0 0.0
    %2770 = vmatprep.subr.mxu0 0.0
    %2771 = vmatpush1.msra.mxu0 0.0
    %2772 = vmatprep.subr.mxu0 0.0
    %2773 = vmatpush1.msra.mxu0 0.0
    %2774 = vmatprep.subr.mxu0 0.0
    %2775 = vmatpush1.msra.mxu0 0.0
    %2776 = vmatprep.subr.mxu0 0.0
    %2777 = vmatpush1.msra.mxu0 0.0
    %2778 = vmatprep.subr.mxu0 0.0
    %2779 = vmatpush1.msra.mxu0 0.0
    %2780 = vmatprep.subr.mxu0 0.0
    %2781 = vmatpush1.msra.mxu0 0.0
    %2782 = vmatprep.subr.mxu0 0.0
    %2783 = vmatpush1.msra.mxu0 0.0
    %2784 = vmatprep.subr.mxu0 0.0
    %2785 = vmatpush1.msra.mxu0 0.0
    %2786 = vmatprep.subr.mxu0 0.0
    %2787 = vmatpush1.msra.mxu0 0.0
    %2788 = vmatprep.subr.mxu0 0.0
    %2789 = vmatpush1.msra.mxu0 0.0
    %2790 = vmatprep.subr.mxu0 0.0
    %2791 = vmatpush1.msra.mxu0 0.0
    %2792 = vmatprep.subr.mxu0 0.0
    %2793 = vmatpush1.msra.mxu0 0.0
    %2794 = vmatprep.mubr.f32.mxu0 0.0
    %2795 = vmatmul.mubr.f32.gmra.mrb[0].mxu0 %v2728
    %v2796 = vpop.f32.mrb[0].mxu0
    %v2797 = vadd.f32 0.0, %v2796
    %v2798 = vpop.f32.mrb[0].mxu0
    %2799 = vdwg.mxu0
    %v2800 = vmul.f32 %v2797, %v2167
    %v2801 = vadd.f32 %v2726, %v2800
    %v2802 = vld [vmem:[%s25] sm:$0xff]
    %v2803 = vld [vmem:[%s25 + $0x8] sm:$0xff]
    %v2804 = vld [vmem:[%s25 + $0x10] sm:$0xff]
    %v2805 = vld [vmem:[%s25 + $0x18] sm:$0xff]
    %v2806 = vld [vmem:[%s25 + $0x20] sm:$0xff]
    %v2807 = vld [vmem:[%s25 + $0x28] sm:$0xff]
    %v2808 = vld [vmem:[%s25 + $0x30] sm:$0xff]
    %v2809 = vld [vmem:[%s25 + $0x38] sm:$0xff]
    %v2810 = vld [vmem:[%s25 + $0x40] sm:$0xff]
    %v2811 = vld [vmem:[%s25 + $0x48] sm:$0xff]
    %v2812 = vld [vmem:[%s25 + $0x50] sm:$0xff]
    %v2813 = vld [vmem:[%s25 + $0x58] sm:$0xff]
    %v2814 = vld [vmem:[%s25 + $0x60] sm:$0xff]
    %v2815 = vld [vmem:[%s25 + $0x68] sm:$0xff]
    %v2816 = vld [vmem:[%s25 + $0x70] sm:$0xff]
    %v2817 = vld [vmem:[%s25 + $0x78] sm:$0xff]
    %v2818 = vld [vmem:[%s27] sm:$0x1]
    %v2820 = vlaneseq
    %v2821 = vshrl.u32 %v2820, 7
    %v2822 = vsub.s32 0, %v2821
    %v2823 = vrot.slane %v2818, %v2822
    %2825 = vmatprep.subr.mxu0 0.0
    %2826 = vmatpush1.msra.mxu0 %v2802
    %2827 = vmatprep.subr.mxu0 0.0
    %2828 = vmatpush1.msra.mxu0 %v2803
    %2829 = vmatprep.subr.mxu0 0.0
    %2830 = vmatpush1.msra.mxu0 %v2804
    %2831 = vmatprep.subr.mxu0 0.0
    %2832 = vmatpush1.msra.mxu0 %v2805
    %2833 = vmatprep.subr.mxu0 0.0
    %2834 = vmatpush1.msra.mxu0 %v2806
    %2835 = vmatprep.subr.mxu0 0.0
    %2836 = vmatpush1.msra.mxu0 %v2807
    %2837 = vmatprep.subr.mxu0 0.0
    %2838 = vmatpush1.msra.mxu0 %v2808
    %2839 = vmatprep.subr.mxu0 0.0
    %2840 = vmatpush1.msra.mxu0 %v2809
    %2841 = vmatprep.subr.mxu0 0.0
    %2842 = vmatpush1.msra.mxu0 %v2810
    %2843 = vmatprep.subr.mxu0 0.0
    %2844 = vmatpush1.msra.mxu0 %v2811
    %2845 = vmatprep.subr.mxu0 0.0
    %2846 = vmatpush1.msra.mxu0 %v2812
    %2847 = vmatprep.subr.mxu0 0.0
    %2848 = vmatpush1.msra.mxu0 %v2813
    %2849 = vmatprep.subr.mxu0 0.0
    %2850 = vmatpush1.msra.mxu0 %v2814
    %2851 = vmatprep.subr.mxu0 0.0
    %2852 = vmatpush1.msra.mxu0 %v2815
    %2853 = vmatprep.subr.mxu0 0.0
    %2854 = vmatpush1.msra.mxu0 %v2816
    %2855 = vmatprep.subr.mxu0 0.0
    %2856 = vmatpush1.msra.mxu0 %v2817
    %2857 = vmatprep.subr.mxu0 0.0
    %2858 = vmatpush1.msra.mxu0 0.0
    %2859 = vmatprep.subr.mxu0 0.0
    %2860 = vmatpush1.msra.mxu0 0.0
    %2861 = vmatprep.subr.mxu0 0.0
    %2862 = vmatpush1.msra.mxu0 0.0
    %2863 = vmatprep.subr.mxu0 0.0
    %2864 = vmatpush1.msra.mxu0 0.0
    %2865 = vmatprep.subr.mxu0 0.0
    %2866 = vmatpush1.msra.mxu0 0.0
    %2867 = vmatprep.subr.mxu0 0.0
    %2868 = vmatpush1.msra.mxu0 0.0
    %2869 = vmatprep.subr.mxu0 0.0
    %2870 = vmatpush1.msra.mxu0 0.0
    %2871 = vmatprep.subr.mxu0 0.0
    %2872 = vmatpush1.msra.mxu0 0.0
    %2873 = vmatprep.subr.mxu0 0.0
    %2874 = vmatpush1.msra.mxu0 0.0
    %2875 = vmatprep.subr.mxu0 0.0
    %2876 = vmatpush1.msra.mxu0 0.0
    %2877 = vmatprep.subr.mxu0 0.0
    %2878 = vmatpush1.msra.mxu0 0.0
    %2879 = vmatprep.subr.mxu0 0.0
    %2880 = vmatpush1.msra.mxu0 0.0
    %2881 = vmatprep.subr.mxu0 0.0
    %2882 = vmatpush1.msra.mxu0 0.0
    %2883 = vmatprep.subr.mxu0 0.0
    %2884 = vmatpush1.msra.mxu0 0.0
    %2885 = vmatprep.subr.mxu0 0.0
    %2886 = vmatpush1.msra.mxu0 0.0
    %2887 = vmatprep.subr.mxu0 0.0
    %2888 = vmatpush1.msra.mxu0 0.0
    %2889 = vmatprep.mubr.f32.mxu0 0.0
    %2890 = vmatmul.mubr.f32.gmra.mrb[0].mxu0 %v2652
    %v2891 = vpop.f32.mrb[0].mxu0
    %v2892 = vadd.f32 %v2823, %v2891
    %v2893 = vpop.f32.mrb[0].mxu0
    %2894 = vdwg.mxu0
    %2895 = vmatprep.subr.mxu0 0.0
    %2896 = vmatpush1.msra.mxu0 %v2802
    %2897 = vmatprep.subr.mxu0 0.0
    %2898 = vmatpush1.msra.mxu0 %v2803
    %2899 = vmatprep.subr.mxu0 0.0
    %2900 = vmatpush1.msra.mxu0 %v2804
    %2901 = vmatprep.subr.mxu0 0.0
    %2902 = vmatpush1.msra.mxu0 %v2805
    %2903 = vmatprep.subr.mxu0 0.0
    %2904 = vmatpush1.msra.mxu0 %v2806
    %2905 = vmatprep.subr.mxu0 0.0
    %2906 = vmatpush1.msra.mxu0 %v2807
    %2907 = vmatprep.subr.mxu0 0.0
    %2908 = vmatpush1.msra.mxu0 %v2808
    %2909 = vmatprep.subr.mxu0 0.0
    %2910 = vmatpush1.msra.mxu0 %v2809
    %2911 = vmatprep.subr.mxu0 0.0
    %2912 = vmatpush1.msra.mxu0 %v2810
    %2913 = vmatprep.subr.mxu0 0.0
    %2914 = vmatpush1.msra.mxu0 %v2811
    %2915 = vmatprep.subr.mxu0 0.0
    %2916 = vmatpush1.msra.mxu0 %v2812
    %2917 = vmatprep.subr.mxu0 0.0
    %2918 = vmatpush1.msra.mxu0 %v2813
    %2919 = vmatprep.subr.mxu0 0.0
    %2920 = vmatpush1.msra.mxu0 %v2814
    %2921 = vmatprep.subr.mxu0 0.0
    %2922 = vmatpush1.msra.mxu0 %v2815
    %2923 = vmatprep.subr.mxu0 0.0
    %2924 = vmatpush1.msra.mxu0 %v2816
    %2925 = vmatprep.subr.mxu0 0.0
    %2926 = vmatpush1.msra.mxu0 %v2817
    %2927 = vmatprep.subr.mxu0 0.0
    %2928 = vmatpush1.msra.mxu0 0.0
    %2929 = vmatprep.subr.mxu0 0.0
    %2930 = vmatpush1.msra.mxu0 0.0
    %2931 = vmatprep.subr.mxu0 0.0
    %2932 = vmatpush1.msra.mxu0 0.0
    %2933 = vmatprep.subr.mxu0 0.0
    %2934 = vmatpush1.msra.mxu0 0.0
    %2935 = vmatprep.subr.mxu0 0.0
    %2936 = vmatpush1.msra.mxu0 0.0
    %2937 = vmatprep.subr.mxu0 0.0
    %2938 = vmatpush1.msra.mxu0 0.0
    %2939 = vmatprep.subr.mxu0 0.0
    %2940 = vmatpush1.msra.mxu0 0.0
    %2941 = vmatprep.subr.mxu0 0.0
    %2942 = vmatpush1.msra.mxu0 0.0
    %2943 = vmatprep.subr.mxu0 0.0
    %2944 = vmatpush1.msra.mxu0 0.0
    %2945 = vmatprep.subr.mxu0 0.0
    %2946 = vmatpush1.msra.mxu0 0.0
    %2947 = vmatprep.subr.mxu0 0.0
    %2948 = vmatpush1.msra.mxu0 0.0
    %2949 = vmatprep.subr.mxu0 0.0
    %2950 = vmatpush1.msra.mxu0 0.0
    %2951 = vmatprep.subr.mxu0 0.0
    %2952 = vmatpush1.msra.mxu0 0.0
    %2953 = vmatprep.subr.mxu0 0.0
    %2954 = vmatpush1.msra.mxu0 0.0
    %2955 = vmatprep.subr.mxu0 0.0
    %2956 = vmatpush1.msra.mxu0 0.0
    %2957 = vmatprep.subr.mxu0 0.0
    %2958 = vmatpush1.msra.mxu0 0.0
    %2959 = vmatprep.mubr.f32.mxu0 0.0
    %2960 = vmatmul.mubr.f32.gmra.mrb[0].mxu0 %v2801
    %v2961 = vpop.f32.mrb[0].mxu0
    %v2962 = vadd.f32 %v2823, %v2961
    %v2963 = vpop.f32.mrb[0].mxu0
    %2964 = vdwg.mxu0
    %v2965 = vadd.f32 %v2892, %v2962
    %v2966 = vmul.f32 %v2965, 0.5
    %v2967 = vld [vmem:[%s33] sm:$0xff]
    %v2968 = vld [vmem:[%s33 + $0x8] sm:$0xff]
    %v2969 = vld [vmem:[%s33 + $0x10] sm:$0xff]
    %v2970 = vld [vmem:[%s33 + $0x18] sm:$0xff]
    %v2971 = vld [vmem:[%s33 + $0x20] sm:$0xff]
    %v2972 = vld [vmem:[%s33 + $0x28] sm:$0xff]
    %v2973 = vld [vmem:[%s33 + $0x30] sm:$0xff]
    %v2974 = vld [vmem:[%s33 + $0x38] sm:$0xff]
    %v2975 = vld [vmem:[%s33 + $0x40] sm:$0xff]
    %v2976 = vld [vmem:[%s33 + $0x48] sm:$0xff]
    %v2977 = vld [vmem:[%s33 + $0x50] sm:$0xff]
    %v2978 = vld [vmem:[%s33 + $0x58] sm:$0xff]
    %v2979 = vld [vmem:[%s33 + $0x60] sm:$0xff]
    %v2980 = vld [vmem:[%s33 + $0x68] sm:$0xff]
    %v2981 = vld [vmem:[%s33 + $0x70] sm:$0xff]
    %v2982 = vld [vmem:[%s33 + $0x78] sm:$0xff]
    %v2983 = vld [vmem:[%s33 + $0x80] sm:$0xff]
    %v2984 = vld [vmem:[%s33 + $0x88] sm:$0xff]
    %v2985 = vld [vmem:[%s33 + $0x90] sm:$0xff]
    %v2986 = vld [vmem:[%s33 + $0x98] sm:$0xff]
    %v2987 = vld [vmem:[%s33 + $0xa0] sm:$0xff]
    %v2988 = vld [vmem:[%s33 + $0xa8] sm:$0xff]
    %v2989 = vld [vmem:[%s33 + $0xb0] sm:$0xff]
    %v2990 = vld [vmem:[%s33 + $0xb8] sm:$0xff]
    %v2991 = vld [vmem:[%s33 + $0xc0] sm:$0xff]
    %v2992 = vld [vmem:[%s33 + $0xc8] sm:$0xff]
    %v2993 = vld [vmem:[%s33 + $0xd0] sm:$0xff]
    %v2994 = vld [vmem:[%s33 + $0xd8] sm:$0xff]
    %v2995 = vld [vmem:[%s33 + $0xe0] sm:$0xff]
    %v2996 = vld [vmem:[%s33 + $0xe8] sm:$0xff]
    %v2997 = vld [vmem:[%s33 + $0xf0] sm:$0xff]
    %v2998 = vld [vmem:[%s33 + $0xf8] sm:$0xff]
    %v2999 = vld [vmem:[%s33 + $0x100] sm:$0xff]
    %v3000 = vld [vmem:[%s33 + $0x108] sm:$0xff]
    %v3001 = vld [vmem:[%s33 + $0x110] sm:$0xff]
    %v3002 = vld [vmem:[%s33 + $0x118] sm:$0xff]
    %v3003 = vld [vmem:[%s33 + $0x120] sm:$0xff]
    %v3004 = vld [vmem:[%s33 + $0x128] sm:$0xff]
    %v3005 = vld [vmem:[%s33 + $0x130] sm:$0xff]
    %v3006 = vld [vmem:[%s33 + $0x138] sm:$0xff]
    %v3007 = vld [vmem:[%s33 + $0x140] sm:$0xff]
    %v3008 = vld [vmem:[%s33 + $0x148] sm:$0xff]
    %v3009 = vld [vmem:[%s33 + $0x150] sm:$0xff]
    %v3010 = vld [vmem:[%s33 + $0x158] sm:$0xff]
    %v3011 = vld [vmem:[%s33 + $0x160] sm:$0xff]
    %v3012 = vld [vmem:[%s33 + $0x168] sm:$0xff]
    %v3013 = vld [vmem:[%s33 + $0x170] sm:$0xff]
    %v3014 = vld [vmem:[%s33 + $0x178] sm:$0xff]
    %v3015 = vld [vmem:[%s33 + $0x180] sm:$0xff]
    %v3016 = vld [vmem:[%s33 + $0x188] sm:$0xff]
    %v3017 = vld [vmem:[%s33 + $0x190] sm:$0xff]
    %v3018 = vld [vmem:[%s33 + $0x198] sm:$0xff]
    %v3019 = vld [vmem:[%s33 + $0x1a0] sm:$0xff]
    %v3020 = vld [vmem:[%s33 + $0x1a8] sm:$0xff]
    %v3021 = vld [vmem:[%s33 + $0x1b0] sm:$0xff]
    %v3022 = vld [vmem:[%s33 + $0x1b8] sm:$0xff]
    %v3023 = vld [vmem:[%s33 + $0x1c0] sm:$0xff]
    %v3024 = vld [vmem:[%s33 + $0x1c8] sm:$0xff]
    %v3025 = vld [vmem:[%s33 + $0x1d0] sm:$0xff]
    %v3026 = vld [vmem:[%s33 + $0x1d8] sm:$0xff]
    %v3027 = vld [vmem:[%s33 + $0x1e0] sm:$0xff]
    %v3028 = vld [vmem:[%s33 + $0x1e8] sm:$0xff]
    %v3029 = vld [vmem:[%s33 + $0x1f0] sm:$0xff]
    %v3030 = vld [vmem:[%s33 + $0x1f8] sm:$0xff]
    %v3031 = vld [vmem:[%s33 + $0x200] sm:$0xff]
    %v3032 = vld [vmem:[%s33 + $0x208] sm:$0xff]
    %v3033 = vld [vmem:[%s33 + $0x210] sm:$0xff]
    %v3034 = vld [vmem:[%s33 + $0x218] sm:$0xff]
    %v3035 = vld [vmem:[%s33 + $0x220] sm:$0xff]
    %v3036 = vld [vmem:[%s33 + $0x228] sm:$0xff]
    %v3037 = vld [vmem:[%s33 + $0x230] sm:$0xff]
    %v3038 = vld [vmem:[%s33 + $0x238] sm:$0xff]
    %v3039 = vld [vmem:[%s33 + $0x240] sm:$0xff]
    %v3040 = vld [vmem:[%s33 + $0x248] sm:$0xff]
    %v3041 = vld [vmem:[%s33 + $0x250] sm:$0xff]
    %v3042 = vld [vmem:[%s33 + $0x258] sm:$0xff]
    %v3043 = vld [vmem:[%s33 + $0x260] sm:$0xff]
    %v3044 = vld [vmem:[%s33 + $0x268] sm:$0xff]
    %v3045 = vld [vmem:[%s33 + $0x270] sm:$0xff]
    %v3046 = vld [vmem:[%s33 + $0x278] sm:$0xff]
    %v3047 = vld [vmem:[%s33 + $0x280] sm:$0xff]
    %v3048 = vld [vmem:[%s33 + $0x288] sm:$0xff]
    %v3049 = vld [vmem:[%s33 + $0x290] sm:$0xff]
    %v3050 = vld [vmem:[%s33 + $0x298] sm:$0xff]
    %v3051 = vld [vmem:[%s33 + $0x2a0] sm:$0xff]
    %v3052 = vld [vmem:[%s33 + $0x2a8] sm:$0xff]
    %v3053 = vld [vmem:[%s33 + $0x2b0] sm:$0xff]
    %v3054 = vld [vmem:[%s33 + $0x2b8] sm:$0xff]
    %v3055 = vld [vmem:[%s33 + $0x2c0] sm:$0xff]
    %v3056 = vld [vmem:[%s33 + $0x2c8] sm:$0xff]
    %v3057 = vld [vmem:[%s33 + $0x2d0] sm:$0xff]
    %v3058 = vld [vmem:[%s33 + $0x2d8] sm:$0xff]
    %v3059 = vld [vmem:[%s33 + $0x2e0] sm:$0xff]
    %v3060 = vld [vmem:[%s33 + $0x2e8] sm:$0xff]
    %v3061 = vld [vmem:[%s33 + $0x2f0] sm:$0xff]
    %v3062 = vld [vmem:[%s33 + $0x2f8] sm:$0xff]
    %v3063 = vld [vmem:[%s33 + $0x300] sm:$0xff]
    %v3064 = vld [vmem:[%s33 + $0x308] sm:$0xff]
    %v3065 = vld [vmem:[%s33 + $0x310] sm:$0xff]
    %v3066 = vld [vmem:[%s33 + $0x318] sm:$0xff]
    %v3067 = vld [vmem:[%s33 + $0x320] sm:$0xff]
    %v3068 = vld [vmem:[%s33 + $0x328] sm:$0xff]
    %v3069 = vld [vmem:[%s33 + $0x330] sm:$0xff]
    %v3070 = vld [vmem:[%s33 + $0x338] sm:$0xff]
    %v3071 = vld [vmem:[%s33 + $0x340] sm:$0xff]
    %v3072 = vld [vmem:[%s33 + $0x348] sm:$0xff]
    %v3073 = vld [vmem:[%s33 + $0x350] sm:$0xff]
    %v3074 = vld [vmem:[%s33 + $0x358] sm:$0xff]
    %v3075 = vld [vmem:[%s33 + $0x360] sm:$0xff]
    %v3076 = vld [vmem:[%s33 + $0x368] sm:$0xff]
    %v3077 = vld [vmem:[%s33 + $0x370] sm:$0xff]
    %v3078 = vld [vmem:[%s33 + $0x378] sm:$0xff]
    %v3079 = vld [vmem:[%s33 + $0x380] sm:$0xff]
    %v3080 = vld [vmem:[%s33 + $0x388] sm:$0xff]
    %v3081 = vld [vmem:[%s33 + $0x390] sm:$0xff]
    %v3082 = vld [vmem:[%s33 + $0x398] sm:$0xff]
    %v3083 = vld [vmem:[%s33 + $0x3a0] sm:$0xff]
    %v3084 = vld [vmem:[%s33 + $0x3a8] sm:$0xff]
    %v3085 = vld [vmem:[%s33 + $0x3b0] sm:$0xff]
    %v3086 = vld [vmem:[%s33 + $0x3b8] sm:$0xff]
    %v3087 = vld [vmem:[%s33 + $0x3c0] sm:$0xff]
    %v3088 = vld [vmem:[%s33 + $0x3c8] sm:$0xff]
    %v3089 = vld [vmem:[%s33 + $0x3d0] sm:$0xff]
    %v3090 = vld [vmem:[%s33 + $0x3d8] sm:$0xff]
    %v3091 = vld [vmem:[%s33 + $0x3e0] sm:$0xff]
    %v3092 = vld [vmem:[%s33 + $0x3e8] sm:$0xff]
    %v3093 = vld [vmem:[%s33 + $0x3f0] sm:$0xff]
    %v3094 = vld [vmem:[%s33 + $0x3f8] sm:$0xff]
    %v3095 = vld [vmem:[%s33 + $0x400] sm:$0xff]
    %v3096 = vld [vmem:[%s33 + $0x408] sm:$0xff]
    %v3097 = vld [vmem:[%s33 + $0x410] sm:$0xff]
    %v3098 = vld [vmem:[%s33 + $0x418] sm:$0xff]
    %v3099 = vld [vmem:[%s33 + $0x420] sm:$0xff]
    %v3100 = vld [vmem:[%s33 + $0x428] sm:$0xff]
    %v3101 = vld [vmem:[%s33 + $0x430] sm:$0xff]
    %v3102 = vld [vmem:[%s33 + $0x438] sm:$0xff]
    %v3103 = vld [vmem:[%s33 + $0x440] sm:$0xff]
    %v3104 = vld [vmem:[%s33 + $0x448] sm:$0xff]
    %v3105 = vld [vmem:[%s33 + $0x450] sm:$0xff]
    %v3106 = vld [vmem:[%s33 + $0x458] sm:$0xff]
    %v3107 = vld [vmem:[%s33 + $0x460] sm:$0xff]
    %v3108 = vld [vmem:[%s33 + $0x468] sm:$0xff]
    %v3109 = vld [vmem:[%s33 + $0x470] sm:$0xff]
    %v3110 = vld [vmem:[%s33 + $0x478] sm:$0xff]
    %v3111 = vld [vmem:[%s33 + $0x480] sm:$0xff]
    %v3112 = vld [vmem:[%s33 + $0x488] sm:$0xff]
    %v3113 = vld [vmem:[%s33 + $0x490] sm:$0xff]
    %v3114 = vld [vmem:[%s33 + $0x498] sm:$0xff]
    %v3115 = vld [vmem:[%s33 + $0x4a0] sm:$0xff]
    %v3116 = vld [vmem:[%s33 + $0x4a8] sm:$0xff]
    %v3117 = vld [vmem:[%s33 + $0x4b0] sm:$0xff]
    %v3118 = vld [vmem:[%s33 + $0x4b8] sm:$0xff]
    %v3119 = vld [vmem:[%s33 + $0x4c0] sm:$0xff]
    %v3120 = vld [vmem:[%s33 + $0x4c8] sm:$0xff]
    %v3121 = vld [vmem:[%s33 + $0x4d0] sm:$0xff]
    %v3122 = vld [vmem:[%s33 + $0x4d8] sm:$0xff]
    %v3123 = vld [vmem:[%s33 + $0x4e0] sm:$0xff]
    %v3124 = vld [vmem:[%s33 + $0x4e8] sm:$0xff]
    %v3125 = vld [vmem:[%s33 + $0x4f0] sm:$0xff]
    %v3126 = vld [vmem:[%s33 + $0x4f8] sm:$0xff]
    %v3127 = vld [vmem:[%s33 + $0x500] sm:$0xff]
    %v3128 = vld [vmem:[%s33 + $0x508] sm:$0xff]
    %v3129 = vld [vmem:[%s33 + $0x510] sm:$0xff]
    %v3130 = vld [vmem:[%s33 + $0x518] sm:$0xff]
    %v3131 = vld [vmem:[%s33 + $0x520] sm:$0xff]
    %v3132 = vld [vmem:[%s33 + $0x528] sm:$0xff]
    %v3133 = vld [vmem:[%s33 + $0x530] sm:$0xff]
    %v3134 = vld [vmem:[%s33 + $0x538] sm:$0xff]
    %v3135 = vld [vmem:[%s33 + $0x540] sm:$0xff]
    %v3136 = vld [vmem:[%s33 + $0x548] sm:$0xff]
    %v3137 = vld [vmem:[%s33 + $0x550] sm:$0xff]
    %v3138 = vld [vmem:[%s33 + $0x558] sm:$0xff]
    %v3139 = vld [vmem:[%s33 + $0x560] sm:$0xff]
    %v3140 = vld [vmem:[%s33 + $0x568] sm:$0xff]
    %v3141 = vld [vmem:[%s33 + $0x570] sm:$0xff]
    %v3142 = vld [vmem:[%s33 + $0x578] sm:$0xff]
    %v3143 = vld [vmem:[%s33 + $0x580] sm:$0xff]
    %v3144 = vld [vmem:[%s33 + $0x588] sm:$0xff]
    %v3145 = vld [vmem:[%s33 + $0x590] sm:$0xff]
    %v3146 = vld [vmem:[%s33 + $0x598] sm:$0xff]
    %v3147 = vld [vmem:[%s33 + $0x5a0] sm:$0xff]
    %v3148 = vld [vmem:[%s33 + $0x5a8] sm:$0xff]
    %v3149 = vld [vmem:[%s33 + $0x5b0] sm:$0xff]
    %v3150 = vld [vmem:[%s33 + $0x5b8] sm:$0xff]
    %v3151 = vld [vmem:[%s33 + $0x5c0] sm:$0xff]
    %v3152 = vld [vmem:[%s33 + $0x5c8] sm:$0xff]
    %v3153 = vld [vmem:[%s33 + $0x5d0] sm:$0xff]
    %v3154 = vld [vmem:[%s33 + $0x5d8] sm:$0xff]
    %v3155 = vld [vmem:[%s33 + $0x5e0] sm:$0xff]
    %v3156 = vld [vmem:[%s33 + $0x5e8] sm:$0xff]
    %v3157 = vld [vmem:[%s33 + $0x5f0] sm:$0xff]
    %v3158 = vld [vmem:[%s33 + $0x5f8] sm:$0xff]
    %v3159 = vld [vmem:[%s33 + $0x600] sm:$0xff]
    %v3160 = vld [vmem:[%s33 + $0x608] sm:$0xff]
    %v3161 = vld [vmem:[%s33 + $0x610] sm:$0xff]
    %v3162 = vld [vmem:[%s33 + $0x618] sm:$0xff]
    %v3163 = vld [vmem:[%s33 + $0x620] sm:$0xff]
    %v3164 = vld [vmem:[%s33 + $0x628] sm:$0xff]
    %v3165 = vld [vmem:[%s33 + $0x630] sm:$0xff]
    %v3166 = vld [vmem:[%s33 + $0x638] sm:$0xff]
    %v3167 = vld [vmem:[%s33 + $0x640] sm:$0xff]
    %v3168 = vld [vmem:[%s33 + $0x648] sm:$0xff]
    %v3169 = vld [vmem:[%s33 + $0x650] sm:$0xff]
    %v3170 = vld [vmem:[%s33 + $0x658] sm:$0xff]
    %v3171 = vld [vmem:[%s33 + $0x660] sm:$0xff]
    %v3172 = vld [vmem:[%s33 + $0x668] sm:$0xff]
    %v3173 = vld [vmem:[%s33 + $0x670] sm:$0xff]
    %v3174 = vld [vmem:[%s33 + $0x678] sm:$0xff]
    %v3175 = vld [vmem:[%s33 + $0x680] sm:$0xff]
    %v3176 = vld [vmem:[%s33 + $0x688] sm:$0xff]
    %v3177 = vld [vmem:[%s33 + $0x690] sm:$0xff]
    %v3178 = vld [vmem:[%s33 + $0x698] sm:$0xff]
    %v3179 = vld [vmem:[%s33 + $0x6a0] sm:$0xff]
    %v3180 = vld [vmem:[%s33 + $0x6a8] sm:$0xff]
    %v3181 = vld [vmem:[%s33 + $0x6b0] sm:$0xff]
    %v3182 = vld [vmem:[%s33 + $0x6b8] sm:$0xff]
    %v3183 = vld [vmem:[%s33 + $0x6c0] sm:$0xff]
    %v3184 = vld [vmem:[%s33 + $0x6c8] sm:$0xff]
    %v3185 = vld [vmem:[%s33 + $0x6d0] sm:$0xff]
    %v3186 = vld [vmem:[%s33 + $0x6d8] sm:$0xff]
    %v3187 = vld [vmem:[%s33 + $0x6e0] sm:$0xff]
    %v3188 = vld [vmem:[%s33 + $0x6e8] sm:$0xff]
    %v3189 = vld [vmem:[%s33 + $0x6f0] sm:$0xff]
    %v3190 = vld [vmem:[%s33 + $0x6f8] sm:$0xff]
    %v3191 = vld [vmem:[%s35] sm:$0xff]
    %v3192 = vld [vmem:[%s35 + $0x8] sm:$0x3f]
    %v3195 = vlaneseq
    %v3196 = vshrl.u32 %v3195, 7
    %v3197 = vsub.s32 0, %v3196
    %v3198 = vrot.slane %v3191, %v3197
    %v3199 = vlaneseq
    %v3200 = vshrl.u32 %v3199, 7
    %v3201 = vsub.s32 1, %v3200
    %v3202 = vrot.slane %v3191, %v3201
    %v3203 = vlaneseq
    %v3204 = vshrl.u32 %v3203, 7
    %v3205 = vsub.s32 2, %v3204
    %v3206 = vrot.slane %v3191, %v3205
    %v3207 = vlaneseq
    %v3208 = vshrl.u32 %v3207, 7
    %v3209 = vsub.s32 3, %v3208
    %v3210 = vrot.slane %v3191, %v3209
    %v3211 = vlaneseq
    %v3212 = vshrl.u32 %v3211, 7
    %v3213 = vsub.s32 4, %v3212
    %v3214 = vrot.slane %v3191, %v3213
    %v3215 = vlaneseq
    %v3216 = vshrl.u32 %v3215, 7
    %v3217 = vsub.s32 5, %v3216
    %v3218 = vrot.slane %v3191, %v3217
    %v3219 = vlaneseq
    %v3220 = vshrl.u32 %v3219, 7
    %v3221 = vsub.s32 6, %v3220
    %v3222 = vrot.slane %v3191, %v3221
    %v3223 = vlaneseq
    %v3224 = vshrl.u32 %v3223, 7
    %v3225 = vsub.s32 7, %v3224
    %v3226 = vrot.slane %v3191, %v3225
    %v3227 = vlaneseq
    %v3228 = vshrl.u32 %v3227, 7
    %v3229 = vsub.s32 0, %v3228
    %v3230 = vrot.slane %v3192, %v3229
    %v3231 = vlaneseq
    %v3232 = vshrl.u32 %v3231, 7
    %v3233 = vsub.s32 1, %v3232
    %v3234 = vrot.slane %v3192, %v3233
    %v3235 = vlaneseq
    %v3236 = vshrl.u32 %v3235, 7
    %v3237 = vsub.s32 2, %v3236
    %v3238 = vrot.slane %v3192, %v3237
    %v3239 = vlaneseq
    %v3240 = vshrl.u32 %v3239, 7
    %v3241 = vsub.s32 3, %v3240
    %v3242 = vrot.slane %v3192, %v3241
    %v3243 = vlaneseq
    %v3244 = vshrl.u32 %v3243, 7
    %v3245 = vsub.s32 4, %v3244
    %v3246 = vrot.slane %v3192, %v3245
    %v3247 = vlaneseq
    %v3248 = vshrl.u32 %v3247, 7
    %v3249 = vsub.s32 5, %v3248
    %v3250 = vrot.slane %v3192, %v3249
    %3265 = vmatprep.subr.mxu0 %v2968
    %3266 = vmatpush1.msra.mxu0 %v2967
    %3267 = vmatprep.subr.mxu0 %v2982
    %3268 = vmatpush1.msra.mxu0 %v2981
    %3269 = vmatprep.subr.mxu0 %v2996
    %3270 = vmatpush1.msra.mxu0 %v2995
    %3271 = vmatprep.subr.mxu0 %v3010
    %3272 = vmatpush1.msra.mxu0 %v3009
    %3273 = vmatprep.subr.mxu0 %v3024
    %3274 = vmatpush1.msra.mxu0 %v3023
    %3275 = vmatprep.subr.mxu0 %v3038
    %3276 = vmatpush1.msra.mxu0 %v3037
    %3277 = vmatprep.subr.mxu0 %v3052
    %3278 = vmatpush1.msra.mxu0 %v3051
    %3279 = vmatprep.subr.mxu0 %v3066
    %3280 = vmatpush1.msra.mxu0 %v3065
    %3281 = vmatprep.subr.mxu0 %v3080
    %3282 = vmatpush1.msra.mxu0 %v3079
    %3283 = vmatprep.subr.mxu0 %v3094
    %3284 = vmatpush1.msra.mxu0 %v3093
    %3285 = vmatprep.subr.mxu0 %v3108
    %3286 = vmatpush1.msra.mxu0 %v3107
    %3287 = vmatprep.subr.mxu0 %v3122
    %3288 = vmatpush1.msra.mxu0 %v3121
    %3289 = vmatprep.subr.mxu0 %v3136
    %3290 = vmatpush1.msra.mxu0 %v3135
    %3291 = vmatprep.subr.mxu0 %v3150
    %3292 = vmatpush1.msra.mxu0 %v3149
    %3293 = vmatprep.subr.mxu0 %v3164
    %3294 = vmatpush1.msra.mxu0 %v3163
    %3295 = vmatprep.subr.mxu0 %v3178
    %3296 = vmatpush1.msra.mxu0 %v3177
    %3297 = vmatprep.subr.mxu0 0.0
    %3298 = vmatpush1.msra.mxu0 0.0
    %3299 = vmatprep.subr.mxu0 0.0
    %3300 = vmatpush1.msra.mxu0 0.0
    %3301 = vmatprep.subr.mxu0 0.0
    %3302 = vmatpush1.msra.mxu0 0.0
    %3303 = vmatprep.subr.mxu0 0.0
    %3304 = vmatpush1.msra.mxu0 0.0
    %3305 = vmatprep.subr.mxu0 0.0
    %3306 = vmatpush1.msra.mxu0 0.0
    %3307 = vmatprep.subr.mxu0 0.0
    %3308 = vmatpush1.msra.mxu0 0.0
    %3309 = vmatprep.subr.mxu0 0.0
    %3310 = vmatpush1.msra.mxu0 0.0
    %3311 = vmatprep.subr.mxu0 0.0
    %3312 = vmatpush1.msra.mxu0 0.0
    %3313 = vmatprep.subr.mxu0 0.0
    %3314 = vmatpush1.msra.mxu0 0.0
    %3315 = vmatprep.subr.mxu0 0.0
    %3316 = vmatpush1.msra.mxu0 0.0
    %3317 = vmatprep.subr.mxu0 0.0
    %3318 = vmatpush1.msra.mxu0 0.0
    %3319 = vmatprep.subr.mxu0 0.0
    %3320 = vmatpush1.msra.mxu0 0.0
    %3321 = vmatprep.subr.mxu0 0.0
    %3322 = vmatpush1.msra.mxu0 0.0
    %3323 = vmatprep.subr.mxu0 0.0
    %3324 = vmatpush1.msra.mxu0 0.0
    %3325 = vmatprep.subr.mxu0 0.0
    %3326 = vmatpush1.msra.mxu0 0.0
    %3327 = vmatprep.subr.mxu0 0.0
    %3328 = vmatpush1.msra.mxu0 0.0
    %3329 = vmatprep.mubr.f32.mxu0 0.0
    %3330 = vmatmul.mubr.f32.gmra.mrb[0].mxu0 %v2966
    %v3331 = vpop.f32.mrb[0].mxu0
    %v3332 = vadd.f32 %v3198, %v3331
    %v3333 = vpop.f32.mrb[0].mxu0
    %v3334 = vadd.f32 %v3202, %v3333
    %3335 = vdwg.mxu0
    %3336 = vmatprep.subr.mxu0 %v2970
    %3337 = vmatpush1.msra.mxu0 %v2969
    %3338 = vmatprep.subr.mxu0 %v2984
    %3339 = vmatpush1.msra.mxu0 %v2983
    %3340 = vmatprep.subr.mxu0 %v2998
    %3341 = vmatpush1.msra.mxu0 %v2997
    %3342 = vmatprep.subr.mxu0 %v3012
    %3343 = vmatpush1.msra.mxu0 %v3011
    %3344 = vmatprep.subr.mxu0 %v3026
    %3345 = vmatpush1.msra.mxu0 %v3025
    %3346 = vmatprep.subr.mxu0 %v3040
    %3347 = vmatpush1.msra.mxu0 %v3039
    %3348 = vmatprep.subr.mxu0 %v3054
    %3349 = vmatpush1.msra.mxu0 %v3053
    %3350 = vmatprep.subr.mxu0 %v3068
    %3351 = vmatpush1.msra.mxu0 %v3067
    %3352 = vmatprep.subr.mxu0 %v3082
    %3353 = vmatpush1.msra.mxu0 %v3081
    %3354 = vmatprep.subr.mxu0 %v3096
    %3355 = vmatpush1.msra.mxu0 %v3095
    %3356 = vmatprep.subr.mxu0 %v3110
    %3357 = vmatpush1.msra.mxu0 %v3109
    %3358 = vmatprep.subr.mxu0 %v3124
    %3359 = vmatpush1.msra.mxu0 %v3123
    %3360 = vmatprep.subr.mxu0 %v3138
    %3361 = vmatpush1.msra.mxu0 %v3137
    %3362 = vmatprep.subr.mxu0 %v3152
    %3363 = vmatpush1.msra.mxu0 %v3151
    %3364 = vmatprep.subr.mxu0 %v3166
    %3365 = vmatpush1.msra.mxu0 %v3165
    %3366 = vmatprep.subr.mxu0 %v3180
    %3367 = vmatpush1.msra.mxu0 %v3179
    %3368 = vmatprep.subr.mxu0 0.0
    %3369 = vmatpush1.msra.mxu0 0.0
    %3370 = vmatprep.subr.mxu0 0.0
    %3371 = vmatpush1.msra.mxu0 0.0
    %3372 = vmatprep.subr.mxu0 0.0
    %3373 = vmatpush1.msra.mxu0 0.0
    %3374 = vmatprep.subr.mxu0 0.0
    %3375 = vmatpush1.msra.mxu0 0.0
    %3376 = vmatprep.subr.mxu0 0.0
    %3377 = vmatpush1.msra.mxu0 0.0
    %3378 = vmatprep.subr.mxu0 0.0
    %3379 = vmatpush1.msra.mxu0 0.0
    %3380 = vmatprep.subr.mxu0 0.0
    %3381 = vmatpush1.msra.mxu0 0.0
    %3382 = vmatprep.subr.mxu0 0.0
    %3383 = vmatpush1.msra.mxu0 0.0
    %3384 = vmatprep.subr.mxu0 0.0
    %3385 = vmatpush1.msra.mxu0 0.0
    %3386 = vmatprep.subr.mxu0 0.0
    %3387 = vmatpush1.msra.mxu0 0.0
    %3388 = vmatprep.subr.mxu0 0.0
    %3389 = vmatpush1.msra.mxu0 0.0
    %3390 = vmatprep.subr.mxu0 0.0
    %3391 = vmatpush1.msra.mxu0 0.0
    %3392 = vmatprep.subr.mxu0 0.0
    %3393 = vmatpush1.msra.mxu0 0.0
    %3394 = vmatprep.subr.mxu0 0.0
    %3395 = vmatpush1.msra.mxu0 0.0
    %3396 = vmatprep.subr.mxu0 0.0
    %3397 = vmatpush1.msra.mxu0 0.0
    %3398 = vmatprep.subr.mxu0 0.0
    %3399 = vmatpush1.msra.mxu0 0.0
    %3400 = vmatprep.mubr.f32.mxu0 0.0
    %3401 = vmatmul.mubr.f32.gmra.mrb[0].mxu0 %v2966
    %v3402 = vpop.f32.mrb[0].mxu0
    %v3403 = vadd.f32 %v3206, %v3402
    %v3404 = vpop.f32.mrb[0].mxu0
    %v3405 = vadd.f32 %v3210, %v3404
    %3406 = vdwg.mxu0
    %3407 = vmatprep.subr.mxu0 %v2972
    %3408 = vmatpush1.msra.mxu0 %v2971
    %3409 = vmatprep.subr.mxu0 %v2986
    %3410 = vmatpush1.msra.mxu0 %v2985
    %3411 = vmatprep.subr.mxu0 %v3000
    %3412 = vmatpush1.msra.mxu0 %v2999
    %3413 = vmatprep.subr.mxu0 %v3014
    %3414 = vmatpush1.msra.mxu0 %v3013
    %3415 = vmatprep.subr.mxu0 %v3028
    %3416 = vmatpush1.msra.mxu0 %v3027
    %3417 = vmatprep.subr.mxu0 %v3042
    %3418 = vmatpush1.msra.mxu0 %v3041
    %3419 = vmatprep.subr.mxu0 %v3056
    %3420 = vmatpush1.msra.mxu0 %v3055
    %3421 = vmatprep.subr.mxu0 %v3070
    %3422 = vmatpush1.msra.mxu0 %v3069
    %3423 = vmatprep.subr.mxu0 %v3084
    %3424 = vmatpush1.msra.mxu0 %v3083
    %3425 = vmatprep.subr.mxu0 %v3098
    %3426 = vmatpush1.msra.mxu0 %v3097
    %3427 = vmatprep.subr.mxu0 %v3112
    %3428 = vmatpush1.msra.mxu0 %v3111
    %3429 = vmatprep.subr.mxu0 %v3126
    %3430 = vmatpush1.msra.mxu0 %v3125
    %3431 = vmatprep.subr.mxu0 %v3140
    %3432 = vmatpush1.msra.mxu0 %v3139
    %3433 = vmatprep.subr.mxu0 %v3154
    %3434 = vmatpush1.msra.mxu0 %v3153
    %3435 = vmatprep.subr.mxu0 %v3168
    %3436 = vmatpush1.msra.mxu0 %v3167
    %3437 = vmatprep.subr.mxu0 %v3182
    %3438 = vmatpush1.msra.mxu0 %v3181
    %3439 = vmatprep.subr.mxu0 0.0
    %3440 = vmatpush1.msra.mxu0 0.0
    %3441 = vmatprep.subr.mxu0 0.0
    %3442 = vmatpush1.msra.mxu0 0.0
    %3443 = vmatprep.subr.mxu0 0.0
    %3444 = vmatpush1.msra.mxu0 0.0
    %3445 = vmatprep.subr.mxu0 0.0
    %3446 = vmatpush1.msra.mxu0 0.0
    %3447 = vmatprep.subr.mxu0 0.0
    %3448 = vmatpush1.msra.mxu0 0.0
    %3449 = vmatprep.subr.mxu0 0.0
    %3450 = vmatpush1.msra.mxu0 0.0
    %3451 = vmatprep.subr.mxu0 0.0
    %3452 = vmatpush1.msra.mxu0 0.0
    %3453 = vmatprep.subr.mxu0 0.0
    %3454 = vmatpush1.msra.mxu0 0.0
    %3455 = vmatprep.subr.mxu0 0.0
    %3456 = vmatpush1.msra.mxu0 0.0
    %3457 = vmatprep.subr.mxu0 0.0
    %3458 = vmatpush1.msra.mxu0 0.0
    %3459 = vmatprep.subr.mxu0 0.0
    %3460 = vmatpush1.msra.mxu0 0.0
    %3461 = vmatprep.subr.mxu0 0.0
    %3462 = vmatpush1.msra.mxu0 0.0
    %3463 = vmatprep.subr.mxu0 0.0
    %3464 = vmatpush1.msra.mxu0 0.0
    %3465 = vmatprep.subr.mxu0 0.0
    %3466 = vmatpush1.msra.mxu0 0.0
    %3467 = vmatprep.subr.mxu0 0.0
    %3468 = vmatpush1.msra.mxu0 0.0
    %3469 = vmatprep.subr.mxu0 0.0
    %3470 = vmatpush1.msra.mxu0 0.0
    %3471 = vmatprep.mubr.f32.mxu0 0.0
    %3472 = vmatmul.mubr.f32.gmra.mrb[0].mxu0 %v2966
    %v3473 = vpop.f32.mrb[0].mxu0
    %v3474 = vadd.f32 %v3214, %v3473
    %v3475 = vpop.f32.mrb[0].mxu0
    %v3476 = vadd.f32 %v3218, %v3475
    %3477 = vdwg.mxu0
    %3478 = vmatprep.subr.mxu0 %v2974
    %3479 = vmatpush1.msra.mxu0 %v2973
    %3480 = vmatprep.subr.mxu0 %v2988
    %3481 = vmatpush1.msra.mxu0 %v2987
    %3482 = vmatprep.subr.mxu0 %v3002
    %3483 = vmatpush1.msra.mxu0 %v3001
    %3484 = vmatprep.subr.mxu0 %v3016
    %3485 = vmatpush1.msra.mxu0 %v3015
    %3486 = vmatprep.subr.mxu0 %v3030
    %3487 = vmatpush1.msra.mxu0 %v3029
    %3488 = vmatprep.subr.mxu0 %v3044
    %3489 = vmatpush1.msra.mxu0 %v3043
    %3490 = vmatprep.subr.mxu0 %v3058
    %3491 = vmatpush1.msra.mxu0 %v3057
    %3492 = vmatprep.subr.mxu0 %v3072
    %3493 = vmatpush1.msra.mxu0 %v3071
    %3494 = vmatprep.subr.mxu0 %v3086
    %3495 = vmatpush1.msra.mxu0 %v3085
    %3496 = vmatprep.subr.mxu0 %v3100
    %3497 = vmatpush1.msra.mxu0 %v3099
    %3498 = vmatprep.subr.mxu0 %v3114
    %3499 = vmatpush1.msra.mxu0 %v3113
    %3500 = vmatprep.subr.mxu0 %v3128
    %3501 = vmatpush1.msra.mxu0 %v3127
    %3502 = vmatprep.subr.mxu0 %v3142
    %3503 = vmatpush1.msra.mxu0 %v3141
    %3504 = vmatprep.subr.mxu0 %v3156
    %3505 = vmatpush1.msra.mxu0 %v3155
    %3506 = vmatprep.subr.mxu0 %v3170
    %3507 = vmatpush1.msra.mxu0 %v3169
    %3508 = vmatprep.subr.mxu0 %v3184
    %3509 = vmatpush1.msra.mxu0 %v3183
    %3510 = vmatprep.subr.mxu0 0.0
    %3511 = vmatpush1.msra.mxu0 0.0
    %3512 = vmatprep.subr.mxu0 0.0
    %3513 = vmatpush1.msra.mxu0 0.0
    %3514 = vmatprep.subr.mxu0 0.0
    %3515 = vmatpush1.msra.mxu0 0.0
    %3516 = vmatprep.subr.mxu0 0.0
    %3517 = vmatpush1.msra.mxu0 0.0
    %3518 = vmatprep.subr.mxu0 0.0
    %3519 = vmatpush1.msra.mxu0 0.0
    %3520 = vmatprep.subr.mxu0 0.0
    %3521 = vmatpush1.msra.mxu0 0.0
    %3522 = vmatprep.subr.mxu0 0.0
    %3523 = vmatpush1.msra.mxu0 0.0
    %3524 = vmatprep.subr.mxu0 0.0
    %3525 = vmatpush1.msra.mxu0 0.0
    %3526 = vmatprep.subr.mxu0 0.0
    %3527 = vmatpush1.msra.mxu0 0.0
    %3528 = vmatprep.subr.mxu0 0.0
    %3529 = vmatpush1.msra.mxu0 0.0
    %3530 = vmatprep.subr.mxu0 0.0
    %3531 = vmatpush1.msra.mxu0 0.0
    %3532 = vmatprep.subr.mxu0 0.0
    %3533 = vmatpush1.msra.mxu0 0.0
    %3534 = vmatprep.subr.mxu0 0.0
    %3535 = vmatpush1.msra.mxu0 0.0
    %3536 = vmatprep.subr.mxu0 0.0
    %3537 = vmatpush1.msra.mxu0 0.0
    %3538 = vmatprep.subr.mxu0 0.0
    %3539 = vmatpush1.msra.mxu0 0.0
    %3540 = vmatprep.subr.mxu0 0.0
    %3541 = vmatpush1.msra.mxu0 0.0
    %3542 = vmatprep.mubr.f32.mxu0 0.0
    %3543 = vmatmul.mubr.f32.gmra.mrb[0].mxu0 %v2966
    %v3544 = vpop.f32.mrb[0].mxu0
    %v3545 = vadd.f32 %v3222, %v3544
    %v3546 = vpop.f32.mrb[0].mxu0
    %v3547 = vadd.f32 %v3226, %v3546
    %3548 = vdwg.mxu0
    %3549 = vmatprep.subr.mxu0 %v2976
    %3550 = vmatpush1.msra.mxu0 %v2975
    %3551 = vmatprep.subr.mxu0 %v2990
    %3552 = vmatpush1.msra.mxu0 %v2989
    %3553 = vmatprep.subr.mxu0 %v3004
    %3554 = vmatpush1.msra.mxu0 %v3003
    %3555 = vmatprep.subr.mxu0 %v3018
    %3556 = vmatpush1.msra.mxu0 %v3017
    %3557 = vmatprep.subr.mxu0 %v3032
    %3558 = vmatpush1.msra.mxu0 %v3031
    %3559 = vmatprep.subr.mxu0 %v3046
    %3560 = vmatpush1.msra.mxu0 %v3045
    %3561 = vmatprep.subr.mxu0 %v3060
    %3562 = vmatpush1.msra.mxu0 %v3059
    %3563 = vmatprep.subr.mxu0 %v3074
    %3564 = vmatpush1.msra.mxu0 %v3073
    %3565 = vmatprep.subr.mxu0 %v3088
    %3566 = vmatpush1.msra.mxu0 %v3087
    %3567 = vmatprep.subr.mxu0 %v3102
    %3568 = vmatpush1.msra.mxu0 %v3101
    %3569 = vmatprep.subr.mxu0 %v3116
    %3570 = vmatpush1.msra.mxu0 %v3115
    %3571 = vmatprep.subr.mxu0 %v3130
    %3572 = vmatpush1.msra.mxu0 %v3129
    %3573 = vmatprep.subr.mxu0 %v3144
    %3574 = vmatpush1.msra.mxu0 %v3143
    %3575 = vmatprep.subr.mxu0 %v3158
    %3576 = vmatpush1.msra.mxu0 %v3157
    %3577 = vmatprep.subr.mxu0 %v3172
    %3578 = vmatpush1.msra.mxu0 %v3171
    %3579 = vmatprep.subr.mxu0 %v3186
    %3580 = vmatpush1.msra.mxu0 %v3185
    %3581 = vmatprep.subr.mxu0 0.0
    %3582 = vmatpush1.msra.mxu0 0.0
    %3583 = vmatprep.subr.mxu0 0.0
    %3584 = vmatpush1.msra.mxu0 0.0
    %3585 = vmatprep.subr.mxu0 0.0
    %3586 = vmatpush1.msra.mxu0 0.0
    %3587 = vmatprep.subr.mxu0 0.0
    %3588 = vmatpush1.msra.mxu0 0.0
    %3589 = vmatprep.subr.mxu0 0.0
    %3590 = vmatpush1.msra.mxu0 0.0
    %3591 = vmatprep.subr.mxu0 0.0
    %3592 = vmatpush1.msra.mxu0 0.0
    %3593 = vmatprep.subr.mxu0 0.0
    %3594 = vmatpush1.msra.mxu0 0.0
    %3595 = vmatprep.subr.mxu0 0.0
    %3596 = vmatpush1.msra.mxu0 0.0
    %3597 = vmatprep.subr.mxu0 0.0
    %3598 = vmatpush1.msra.mxu0 0.0
    %3599 = vmatprep.subr.mxu0 0.0
    %3600 = vmatpush1.msra.mxu0 0.0
    %3601 = vmatprep.subr.mxu0 0.0
    %3602 = vmatpush1.msra.mxu0 0.0
    %3603 = vmatprep.subr.mxu0 0.0
    %3604 = vmatpush1.msra.mxu0 0.0
    %3605 = vmatprep.subr.mxu0 0.0
    %3606 = vmatpush1.msra.mxu0 0.0
    %3607 = vmatprep.subr.mxu0 0.0
    %3608 = vmatpush1.msra.mxu0 0.0
    %3609 = vmatprep.subr.mxu0 0.0
    %3610 = vmatpush1.msra.mxu0 0.0
    %3611 = vmatprep.subr.mxu0 0.0
    %3612 = vmatpush1.msra.mxu0 0.0
    %3613 = vmatprep.mubr.f32.mxu0 0.0
    %3614 = vmatmul.mubr.f32.gmra.mrb[0].mxu0 %v2966
    %v3615 = vpop.f32.mrb[0].mxu0
    %v3616 = vadd.f32 %v3230, %v3615
    %v3617 = vpop.f32.mrb[0].mxu0
    %v3618 = vadd.f32 %v3234, %v3617
    %3619 = vdwg.mxu0
    %3620 = vmatprep.subr.mxu0 %v2978
    %3621 = vmatpush1.msra.mxu0 %v2977
    %3622 = vmatprep.subr.mxu0 %v2992
    %3623 = vmatpush1.msra.mxu0 %v2991
    %3624 = vmatprep.subr.mxu0 %v3006
    %3625 = vmatpush1.msra.mxu0 %v3005
    %3626 = vmatprep.subr.mxu0 %v3020
    %3627 = vmatpush1.msra.mxu0 %v3019
    %3628 = vmatprep.subr.mxu0 %v3034
    %3629 = vmatpush1.msra.mxu0 %v3033
    %3630 = vmatprep.subr.mxu0 %v3048
    %3631 = vmatpush1.msra.mxu0 %v3047
    %3632 = vmatprep.subr.mxu0 %v3062
    %3633 = vmatpush1.msra.mxu0 %v3061
    %3634 = vmatprep.subr.mxu0 %v3076
    %3635 = vmatpush1.msra.mxu0 %v3075
    %3636 = vmatprep.subr.mxu0 %v3090
    %3637 = vmatpush1.msra.mxu0 %v3089
    %3638 = vmatprep.subr.mxu0 %v3104
    %3639 = vmatpush1.msra.mxu0 %v3103
    %3640 = vmatprep.subr.mxu0 %v3118
    %3641 = vmatpush1.msra.mxu0 %v3117
    %3642 = vmatprep.subr.mxu0 %v3132
    %3643 = vmatpush1.msra.mxu0 %v3131
    %3644 = vmatprep.subr.mxu0 %v3146
    %3645 = vmatpush1.msra.mxu0 %v3145
    %3646 = vmatprep.subr.mxu0 %v3160
    %3647 = vmatpush1.msra.mxu0 %v3159
    %3648 = vmatprep.subr.mxu0 %v3174
    %3649 = vmatpush1.msra.mxu0 %v3173
    %3650 = vmatprep.subr.mxu0 %v3188
    %3651 = vmatpush1.msra.mxu0 %v3187
    %3652 = vmatprep.subr.mxu0 0.0
    %3653 = vmatpush1.msra.mxu0 0.0
    %3654 = vmatprep.subr.mxu0 0.0
    %3655 = vmatpush1.msra.mxu0 0.0
    %3656 = vmatprep.subr.mxu0 0.0
    %3657 = vmatpush1.msra.mxu0 0.0
    %3658 = vmatprep.subr.mxu0 0.0
    %3659 = vmatpush1.msra.mxu0 0.0
    %3660 = vmatprep.subr.mxu0 0.0
    %3661 = vmatpush1.msra.mxu0 0.0
    %3662 = vmatprep.subr.mxu0 0.0
    %3663 = vmatpush1.msra.mxu0 0.0
    %3664 = vmatprep.subr.mxu0 0.0
    %3665 = vmatpush1.msra.mxu0 0.0
    %3666 = vmatprep.subr.mxu0 0.0
    %3667 = vmatpush1.msra.mxu0 0.0
    %3668 = vmatprep.subr.mxu0 0.0
    %3669 = vmatpush1.msra.mxu0 0.0
    %3670 = vmatprep.subr.mxu0 0.0
    %3671 = vmatpush1.msra.mxu0 0.0
    %3672 = vmatprep.subr.mxu0 0.0
    %3673 = vmatpush1.msra.mxu0 0.0
    %3674 = vmatprep.subr.mxu0 0.0
    %3675 = vmatpush1.msra.mxu0 0.0
    %3676 = vmatprep.subr.mxu0 0.0
    %3677 = vmatpush1.msra.mxu0 0.0
    %3678 = vmatprep.subr.mxu0 0.0
    %3679 = vmatpush1.msra.mxu0 0.0
    %3680 = vmatprep.subr.mxu0 0.0
    %3681 = vmatpush1.msra.mxu0 0.0
    %3682 = vmatprep.subr.mxu0 0.0
    %3683 = vmatpush1.msra.mxu0 0.0
    %3684 = vmatprep.mubr.f32.mxu0 0.0
    %3685 = vmatmul.mubr.f32.gmra.mrb[0].mxu0 %v2966
    %v3686 = vpop.f32.mrb[0].mxu0
    %v3687 = vadd.f32 %v3238, %v3686
    %v3688 = vpop.f32.mrb[0].mxu0
    %v3689 = vadd.f32 %v3242, %v3688
    %3690 = vdwg.mxu0
    %3691 = vmatprep.subr.mxu0 %v2980
    %3692 = vmatpush1.msra.mxu0 %v2979
    %3693 = vmatprep.subr.mxu0 %v2994
    %3694 = vmatpush1.msra.mxu0 %v2993
    %3695 = vmatprep.subr.mxu0 %v3008
    %3696 = vmatpush1.msra.mxu0 %v3007
    %3697 = vmatprep.subr.mxu0 %v3022
    %3698 = vmatpush1.msra.mxu0 %v3021
    %3699 = vmatprep.subr.mxu0 %v3036
    %3700 = vmatpush1.msra.mxu0 %v3035
    %3701 = vmatprep.subr.mxu0 %v3050
    %3702 = vmatpush1.msra.mxu0 %v3049
    %3703 = vmatprep.subr.mxu0 %v3064
    %3704 = vmatpush1.msra.mxu0 %v3063
    %3705 = vmatprep.subr.mxu0 %v3078
    %3706 = vmatpush1.msra.mxu0 %v3077
    %3707 = vmatprep.subr.mxu0 %v3092
    %3708 = vmatpush1.msra.mxu0 %v3091
    %3709 = vmatprep.subr.mxu0 %v3106
    %3710 = vmatpush1.msra.mxu0 %v3105
    %3711 = vmatprep.subr.mxu0 %v3120
    %3712 = vmatpush1.msra.mxu0 %v3119
    %3713 = vmatprep.subr.mxu0 %v3134
    %3714 = vmatpush1.msra.mxu0 %v3133
    %3715 = vmatprep.subr.mxu0 %v3148
    %3716 = vmatpush1.msra.mxu0 %v3147
    %3717 = vmatprep.subr.mxu0 %v3162
    %3718 = vmatpush1.msra.mxu0 %v3161
    %3719 = vmatprep.subr.mxu0 %v3176
    %3720 = vmatpush1.msra.mxu0 %v3175
    %3721 = vmatprep.subr.mxu0 %v3190
    %3722 = vmatpush1.msra.mxu0 %v3189
    %3723 = vmatprep.subr.mxu0 0.0
    %3724 = vmatpush1.msra.mxu0 0.0
    %3725 = vmatprep.subr.mxu0 0.0
    %3726 = vmatpush1.msra.mxu0 0.0
    %3727 = vmatprep.subr.mxu0 0.0
    %3728 = vmatpush1.msra.mxu0 0.0
    %3729 = vmatprep.subr.mxu0 0.0
    %3730 = vmatpush1.msra.mxu0 0.0
    %3731 = vmatprep.subr.mxu0 0.0
    %3732 = vmatpush1.msra.mxu0 0.0
    %3733 = vmatprep.subr.mxu0 0.0
    %3734 = vmatpush1.msra.mxu0 0.0
    %3735 = vmatprep.subr.mxu0 0.0
    %3736 = vmatpush1.msra.mxu0 0.0
    %3737 = vmatprep.subr.mxu0 0.0
    %3738 = vmatpush1.msra.mxu0 0.0
    %3739 = vmatprep.subr.mxu0 0.0
    %3740 = vmatpush1.msra.mxu0 0.0
    %3741 = vmatprep.subr.mxu0 0.0
    %3742 = vmatpush1.msra.mxu0 0.0
    %3743 = vmatprep.subr.mxu0 0.0
    %3744 = vmatpush1.msra.mxu0 0.0
    %3745 = vmatprep.subr.mxu0 0.0
    %3746 = vmatpush1.msra.mxu0 0.0
    %3747 = vmatprep.subr.mxu0 0.0
    %3748 = vmatpush1.msra.mxu0 0.0
    %3749 = vmatprep.subr.mxu0 0.0
    %3750 = vmatpush1.msra.mxu0 0.0
    %3751 = vmatprep.subr.mxu0 0.0
    %3752 = vmatpush1.msra.mxu0 0.0
    %3753 = vmatprep.subr.mxu0 0.0
    %3754 = vmatpush1.msra.mxu0 0.0
    %3755 = vmatprep.mubr.f32.mxu0 0.0
    %3756 = vmatmul.mubr.f32.gmra.mrb[0].mxu0 %v2966
    %v3757 = vpop.f32.mrb[0].mxu0
    %v3758 = vadd.f32 %v3246, %v3757
    %v3759 = vpop.f32.mrb[0].mxu0
    %v3760 = vadd.f32 %v3250, %v3759
    %3761 = vdwg.mxu0
    %v3762 = vmax.f32 %v3332, 0.0
    %v3763 = vmax.f32 %v3334, 0.0
    %v3764 = vmax.f32 %v3403, 0.0
    %v3765 = vmax.f32 %v3405, 0.0
    %v3766 = vmax.f32 %v3474, 0.0
    %v3767 = vmax.f32 %v3476, 0.0
    %v3768 = vmax.f32 %v3545, 0.0
    %v3769 = vmax.f32 %v3547, 0.0
    %v3770 = vmax.f32 %v3616, 0.0
    %v3771 = vmax.f32 %v3618, 0.0
    %v3772 = vmax.f32 %v3687, 0.0
    %v3773 = vmax.f32 %v3689, 0.0
    %v3774 = vmax.f32 %v3758, 0.0
    %v3775 = vtanh.pop %v3758
    %v3776 = vtanh.pop %v3760
    %v3790 = vcombine.low %v3762, %v3763
    %v3791 = vcombine.low %v3764, %v3765
    %v3793 = vunpack.c.l.s4 1983009808
    %v3794 = vunpack.c.0.s8 %v3793
    %v3795 = vlaneseq
    %v3796 = vshrl.u32 %v3795, 7
    %v3797 = vsub.s32 %v3794, %v3796
    %v3798 = vrot.slane %v3790, %v3797
    %v3800 = vunpack.c.l.s4 1983009808
    %v3801 = vunpack.c.0.s8 %v3800
    %v3802 = vlaneseq
    %v3803 = vshrl.u32 %v3802, 7
    %v3804 = vsub.s32 %v3801, %v3803
    %v3805 = vrot.slane %v3791, %v3804
    %v3806 = vcombine.low %v3798, %v3805
    %v3807 = vcombine.low %v3766, %v3767
    %v3808 = vcombine.low %v3768, %v3769
    %v3810 = vunpack.c.l.s4 1983009808
    %v3811 = vunpack.c.0.s8 %v3810
    %v3812 = vlaneseq
    %v3813 = vshrl.u32 %v3812, 7
    %v3814 = vsub.s32 %v3811, %v3813
    %v3815 = vrot.slane %v3807, %v3814
    %v3817 = vunpack.c.l.s4 1983009808
    %v3818 = vunpack.c.0.s8 %v3817
    %v3819 = vlaneseq
    %v3820 = vshrl.u32 %v3819, 7
    %v3821 = vsub.s32 %v3818, %v3820
    %v3822 = vrot.slane %v3808, %v3821
    %v3823 = vcombine.low %v3815, %v3822
    %v3824 = vcombine.low %v3770, %v3771
    %v3825 = vcombine.low %v3772, %v3773
    %v3827 = vunpack.c.l.s4 1983009808
    %v3828 = vunpack.c.0.s8 %v3827
    %v3829 = vlaneseq
    %v3830 = vshrl.u32 %v3829, 7
    %v3831 = vsub.s32 %v3828, %v3830
    %v3832 = vrot.slane %v3824, %v3831
    %v3834 = vunpack.c.l.s4 1983009808
    %v3835 = vunpack.c.0.s8 %v3834
    %v3836 = vlaneseq
    %v3837 = vshrl.u32 %v3836, 7
    %v3838 = vsub.s32 %v3835, %v3837
    %v3839 = vrot.slane %v3825, %v3838
    %v3840 = vcombine.low %v3832, %v3839
    %v3842 = vunpack.c.l.s4 1983009808
    %v3843 = vunpack.c.0.s8 %v3842
    %v3844 = vlaneseq
    %v3845 = vshrl.u32 %v3844, 7
    %v3846 = vsub.s32 %v3843, %v3845
    %v3847 = vrot.slane %v3774, %v3846
    %3852 = vst [vmem:[%s59] sm:$0xff] %v3806
    %3853 = vst [vmem:[%s59 + $0x8] sm:$0xff] %v3823
    %3854 = vst [vmem:[%s59 + $0x10] sm:$0xff] %v3840
    %vm3855 = vcmask 254976
    %3856 = vst.msk [vmem:[%s59 + $0x18] sm:$0x3] %vm3855, %v3847
    %v3857 = vld [vmem:[%s37] sm:$0xff]
    %v3858 = vld [vmem:[%s37 + $0x8] sm:$0xff]
    %v3859 = vld [vmem:[%s37 + $0x10] sm:$0xff]
    %v3860 = vld [vmem:[%s37 + $0x18] sm:$0xff]
    %v3861 = vld [vmem:[%s37 + $0x20] sm:$0xff]
    %v3862 = vld [vmem:[%s37 + $0x28] sm:$0xff]
    %v3863 = vld [vmem:[%s37 + $0x30] sm:$0xff]
    %v3864 = vld [vmem:[%s37 + $0x38] sm:$0xff]
    %v3865 = vld [vmem:[%s39] sm:$0x1]
    %v3867 = vlaneseq
    %v3868 = vshrl.u32 %v3867, 7
    %v3869 = vsub.s32 0, %v3868
    %v3870 = vrot.slane %v3865, %v3869
    %3872 = vrot.lane.b32.xlu0 %v3774, 96
    %v3873 = vpop.permute.xlu0 %3872
    %v3874 = vsel %vm1029, %v3873, 0
    %3876 = vmatprep.subr.mxu0 0.0
    %3877 = vmatpush1.msra.mxu0 %v3857
    %3878 = vmatprep.subr.mxu0 0.0
    %3879 = vmatpush1.msra.mxu0 %v3858
    %3880 = vmatprep.subr.mxu0 0.0
    %3881 = vmatpush1.msra.mxu0 %v3859
    %3882 = vmatprep.subr.mxu0 0.0
    %3883 = vmatpush1.msra.mxu0 %v3860
    %3884 = vmatprep.subr.mxu0 0.0
    %3885 = vmatpush1.msra.mxu0 %v3861
    %3886 = vmatprep.subr.mxu0 0.0
    %3887 = vmatpush1.msra.mxu0 %v3862
    %3888 = vmatprep.subr.mxu0 0.0
    %3889 = vmatpush1.msra.mxu0 %v3863
    %3890 = vmatprep.subr.mxu0 0.0
    %3891 = vmatpush1.msra.mxu0 %v3864
    %3892 = vmatprep.subr.mxu0 0.0
    %3893 = vmatpush1.msra.mxu0 0.0
    %3894 = vmatprep.subr.mxu0 0.0
    %3895 = vmatpush1.msra.mxu0 0.0
    %3896 = vmatprep.subr.mxu0 0.0
    %3897 = vmatpush1.msra.mxu0 0.0
    %3898 = vmatprep.subr.mxu0 0.0
    %3899 = vmatpush1.msra.mxu0 0.0
    %3900 = vmatprep.subr.mxu0 0.0
    %3901 = vmatpush1.msra.mxu0 0.0
    %3902 = vmatprep.subr.mxu0 0.0
    %3903 = vmatpush1.msra.mxu0 0.0
    %3904 = vmatprep.subr.mxu0 0.0
    %3905 = vmatpush1.msra.mxu0 0.0
    %3906 = vmatprep.subr.mxu0 0.0
    %3907 = vmatpush1.msra.mxu0 0.0
    %3908 = vmatprep.subr.mxu0 0.0
    %3909 = vmatpush1.msra.mxu0 0.0
    %3910 = vmatprep.subr.mxu0 0.0
    %3911 = vmatpush1.msra.mxu0 0.0
    %3912 = vmatprep.subr.mxu0 0.0
    %3913 = vmatpush1.msra.mxu0 0.0
    %3914 = vmatprep.subr.mxu0 0.0
    %3915 = vmatpush1.msra.mxu0 0.0
    %3916 = vmatprep.subr.mxu0 0.0
    %3917 = vmatpush1.msra.mxu0 0.0
    %3918 = vmatprep.subr.mxu0 0.0
    %3919 = vmatpush1.msra.mxu0 0.0
    %3920 = vmatprep.subr.mxu0 0.0
    %3921 = vmatpush1.msra.mxu0 0.0
    %3922 = vmatprep.subr.mxu0 0.0
    %3923 = vmatpush1.msra.mxu0 0.0
    %3924 = vmatprep.subr.mxu0 0.0
    %3925 = vmatpush1.msra.mxu0 0.0
    %3926 = vmatprep.subr.mxu0 0.0
    %3927 = vmatpush1.msra.mxu0 0.0
    %3928 = vmatprep.subr.mxu0 0.0
    %3929 = vmatpush1.msra.mxu0 0.0
    %3930 = vmatprep.subr.mxu0 0.0
    %3931 = vmatpush1.msra.mxu0 0.0
    %3932 = vmatprep.subr.mxu0 0.0
    %3933 = vmatpush1.msra.mxu0 0.0
    %3934 = vmatprep.subr.mxu0 0.0
    %3935 = vmatpush1.msra.mxu0 0.0
    %3936 = vmatprep.subr.mxu0 0.0
    %3937 = vmatpush1.msra.mxu0 0.0
    %3938 = vmatprep.subr.mxu0 0.0
    %3939 = vmatpush1.msra.mxu0 0.0
    %3940 = vmatprep.mubr.f32.mxu0 0.0
    %3941 = vmatmul.mubr.f32.gmra.mrb[0].mxu0 %v3874
    %v3942 = vpop.f32.mrb[0].mxu0
    %v3943 = vadd.f32 %v3870, %v3942
    %v3944 = vpop.f32.mrb[0].mxu0
    %3945 = vdwg.mxu0
    %vm3946 = vcmask 74752
    %3947 = vst.msk [vmem:[#allocation6] sm:$0x3] %vm3946, %v3943
    %v3948 = vld [vmem:[%s41] sm:$0xff]
    %v3949 = vld [vmem:[%s41 + $0x8] sm:$0xff]
    %v3950 = vld [vmem:[%s41 + $0x10] sm:$0xff]
    %v3951 = vld [vmem:[%s41 + $0x18] sm:$0xff]
    %v3952 = vld [vmem:[%s41 + $0x20] sm:$0xff]
    %v3953 = vld [vmem:[%s41 + $0x28] sm:$0xff]
    %v3954 = vld [vmem:[%s41 + $0x30] sm:$0xff]
    %v3955 = vld [vmem:[%s41 + $0x38] sm:$0xff]
    %v3956 = vld [vmem:[%s43] sm:$0x3]
    %v3958 = vlaneseq
    %v3959 = vshrl.u32 %v3958, 7
    %v3960 = vsub.s32 0, %v3959
    %v3961 = vrot.slane %v3956, %v3960
    %v3962 = vlaneseq
    %v3963 = vshrl.u32 %v3962, 7
    %v3964 = vsub.s32 1, %v3963
    %v3965 = vrot.slane %v3956, %v3964
    %3969 = vrot.lane.b32.xlu0 %v3760, 96
    %v3970 = vpop.permute.xlu0 %3969
    %v3971 = vsel %vm402, %v3970, 0
    %3973 = vmatprep.subr.mxu0 %v3949
    %3974 = vmatpush1.msra.mxu0 %v3948
    %3975 = vmatprep.subr.mxu0 %v3951
    %3976 = vmatpush1.msra.mxu0 %v3950
    %3977 = vmatprep.subr.mxu0 %v3953
    %3978 = vmatpush1.msra.mxu0 %v3952
    %3979 = vmatprep.subr.mxu0 %v3955
    %3980 = vmatpush1.msra.mxu0 %v3954
    %3981 = vmatprep.subr.mxu0 0.0
    %3982 = vmatpush1.msra.mxu0 0.0
    %3983 = vmatprep.subr.mxu0 0.0
    %3984 = vmatpush1.msra.mxu0 0.0
    %3985 = vmatprep.subr.mxu0 0.0
    %3986 = vmatpush1.msra.mxu0 0.0
    %3987 = vmatprep.subr.mxu0 0.0
    %3988 = vmatpush1.msra.mxu0 0.0
    %3989 = vmatprep.subr.mxu0 0.0
    %3990 = vmatpush1.msra.mxu0 0.0
    %3991 = vmatprep.subr.mxu0 0.0
    %3992 = vmatpush1.msra.mxu0 0.0
    %3993 = vmatprep.subr.mxu0 0.0
    %3994 = vmatpush1.msra.mxu0 0.0
    %3995 = vmatprep.subr.mxu0 0.0
    %3996 = vmatpush1.msra.mxu0 0.0
    %3997 = vmatprep.subr.mxu0 0.0
    %3998 = vmatpush1.msra.mxu0 0.0
    %3999 = vmatprep.subr.mxu0 0.0
    %4000 = vmatpush1.msra.mxu0 0.0
    %4001 = vmatprep.subr.mxu0 0.0
    %4002 = vmatpush1.msra.mxu0 0.0
    %4003 = vmatprep.subr.mxu0 0.0
    %4004 = vmatpush1.msra.mxu0 0.0
    %4005 = vmatprep.subr.mxu0 0.0
    %4006 = vmatpush1.msra.mxu0 0.0
    %4007 = vmatprep.subr.mxu0 0.0
    %4008 = vmatpush1.msra.mxu0 0.0
    %4009 = vmatprep.subr.mxu0 0.0
    %4010 = vmatpush1.msra.mxu0 0.0
    %4011 = vmatprep.subr.mxu0 0.0
    %4012 = vmatpush1.msra.mxu0 0.0
    %4013 = vmatprep.subr.mxu0 0.0
    %4014 = vmatpush1.msra.mxu0 0.0
    %4015 = vmatprep.subr.mxu0 0.0
    %4016 = vmatpush1.msra.mxu0 0.0
    %4017 = vmatprep.subr.mxu0 0.0
    %4018 = vmatpush1.msra.mxu0 0.0
    %4019 = vmatprep.subr.mxu0 0.0
    %4020 = vmatpush1.msra.mxu0 0.0
    %4021 = vmatprep.subr.mxu0 0.0
    %4022 = vmatpush1.msra.mxu0 0.0
    %4023 = vmatprep.subr.mxu0 0.0
    %4024 = vmatpush1.msra.mxu0 0.0
    %4025 = vmatprep.subr.mxu0 0.0
    %4026 = vmatpush1.msra.mxu0 0.0
    %4027 = vmatprep.subr.mxu0 0.0
    %4028 = vmatpush1.msra.mxu0 0.0
    %4029 = vmatprep.subr.mxu0 0.0
    %4030 = vmatpush1.msra.mxu0 0.0
    %4031 = vmatprep.subr.mxu0 0.0
    %4032 = vmatpush1.msra.mxu0 0.0
    %4033 = vmatprep.subr.mxu0 0.0
    %4034 = vmatpush1.msra.mxu0 0.0
    %4035 = vmatprep.subr.mxu0 0.0
    %4036 = vmatpush1.msra.mxu0 0.0
    %4037 = vmatprep.mubr.f32.mxu0 0.0
    %4038 = vmatmul.mubr.f32.gmra.mrb[0].mxu0 %v3971
    %v4039 = vpop.f32.mrb[0].mxu0
    %v4040 = vadd.f32 %v3961, %v4039
    %v4041 = vpop.f32.mrb[0].mxu0
    %v4042 = vadd.f32 %v3965, %v4041
    %4043 = vdwg.mxu0
    %v4044 = vld [vmem:[%s45] sm:$0xff]
    %v4045 = vld [vmem:[%s45 + $0x8] sm:$0xff]
    %v4046 = vld [vmem:[%s45 + $0x10] sm:$0xff]
    %v4047 = vld [vmem:[%s45 + $0x18] sm:$0xff]
    %v4048 = vld [vmem:[%s45 + $0x20] sm:$0xff]
    %v4049 = vld [vmem:[%s45 + $0x28] sm:$0xff]
    %v4050 = vld [vmem:[%s45 + $0x30] sm:$0xff]
    %v4051 = vld [vmem:[%s45 + $0x38] sm:$0xff]
    %v4052 = vld [vmem:[%s45 + $0x40] sm:$0xff]
    %v4053 = vld [vmem:[%s45 + $0x48] sm:$0xff]
    %v4054 = vld [vmem:[%s45 + $0x50] sm:$0xff]
    %v4055 = vld [vmem:[%s45 + $0x58] sm:$0xff]
    %v4056 = vld [vmem:[%s45 + $0x60] sm:$0xff]
    %v4057 = vld [vmem:[%s45 + $0x68] sm:$0xff]
    %v4058 = vld [vmem:[%s45 + $0x70] sm:$0xff]
    %v4059 = vld [vmem:[%s45 + $0x78] sm:$0xff]
    %v4060 = vld [vmem:[%s47] sm:$0x3]
    %v4061 = vld [vmem:[%s49] sm:$0xff]
    %v4062 = vld [vmem:[%s49 + $0x8] sm:$0xff]
    %v4063 = vld [vmem:[%s49 + $0x10] sm:$0xff]
    %v4064 = vld [vmem:[%s49 + $0x18] sm:$0xff]
    %v4065 = vld [vmem:[%s49 + $0x20] sm:$0xff]
    %v4066 = vld [vmem:[%s49 + $0x28] sm:$0xff]
    %v4067 = vld [vmem:[%s49 + $0x30] sm:$0xff]
    %v4068 = vld [vmem:[%s49 + $0x38] sm:$0xff]
    %v4069 = vld [vmem:[%s51] sm:$0x1]
    %v4071 = vlaneseq
    %v4072 = vshrl.u32 %v4071, 7
    %v4073 = vsub.s32 0, %v4072
    %v4074 = vrot.slane %v4060, %v4073
    %v4075 = vlaneseq
    %v4076 = vshrl.u32 %v4075, 7
    %v4077 = vsub.s32 1, %v4076
    %v4078 = vrot.slane %v4060, %v4077
    %4083 = vrot.lane.b32.xlu0 %v3775, 32
    %v4084 = vpop.permute.xlu0 %4083
    %4085 = vrot.lane.b32.xlu0 %v3776, 32
    %v4086 = vpop.permute.xlu0 %4085
    %v4087 = vsel %vm402, %v4084, %v4086
    %v4088 = vsel %vm1029, %v4087, 0
    %4090 = vmatprep.subr.mxu0 %v4045
    %4091 = vmatpush1.msra.mxu0 %v4044
    %4092 = vmatprep.subr.mxu0 %v4047
    %4093 = vmatpush1.msra.mxu0 %v4046
    %4094 = vmatprep.subr.mxu0 %v4049
    %4095 = vmatpush1.msra.mxu0 %v4048
    %4096 = vmatprep.subr.mxu0 %v4051
    %4097 = vmatpush1.msra.mxu0 %v4050
    %4098 = vmatprep.subr.mxu0 %v4053
    %4099 = vmatpush1.msra.mxu0 %v4052
    %4100 = vmatprep.subr.mxu0 %v4055
    %4101 = vmatpush1.msra.mxu0 %v4054
    %4102 = vmatprep.subr.mxu0 %v4057
    %4103 = vmatpush1.msra.mxu0 %v4056
    %4104 = vmatprep.subr.mxu0 %v4059
    %4105 = vmatpush1.msra.mxu0 %v4058
    %4106 = vmatprep.subr.mxu0 0.0
    %4107 = vmatpush1.msra.mxu0 0.0
    %4108 = vmatprep.subr.mxu0 0.0
    %4109 = vmatpush1.msra.mxu0 0.0
    %4110 = vmatprep.subr.mxu0 0.0
    %4111 = vmatpush1.msra.mxu0 0.0
    %4112 = vmatprep.subr.mxu0 0.0
    %4113 = vmatpush1.msra.mxu0 0.0
    %4114 = vmatprep.subr.mxu0 0.0
    %4115 = vmatpush1.msra.mxu0 0.0
    %4116 = vmatprep.subr.mxu0 0.0
    %4117 = vmatpush1.msra.mxu0 0.0
    %4118 = vmatprep.subr.mxu0 0.0
    %4119 = vmatpush1.msra.mxu0 0.0
    %4120 = vmatprep.subr.mxu0 0.0
    %4121 = vmatpush1.msra.mxu0 0.0
    %4122 = vmatprep.subr.mxu0 0.0
    %4123 = vmatpush1.msra.mxu0 0.0
    %4124 = vmatprep.subr.mxu0 0.0
    %4125 = vmatpush1.msra.mxu0 0.0
    %4126 = vmatprep.subr.mxu0 0.0
    %4127 = vmatpush1.msra.mxu0 0.0
    %4128 = vmatprep.subr.mxu0 0.0
    %4129 = vmatpush1.msra.mxu0 0.0
    %4130 = vmatprep.subr.mxu0 0.0
    %4131 = vmatpush1.msra.mxu0 0.0
    %4132 = vmatprep.subr.mxu0 0.0
    %4133 = vmatpush1.msra.mxu0 0.0
    %4134 = vmatprep.subr.mxu0 0.0
    %4135 = vmatpush1.msra.mxu0 0.0
    %4136 = vmatprep.subr.mxu0 0.0
    %4137 = vmatpush1.msra.mxu0 0.0
    %4138 = vmatprep.subr.mxu0 0.0
    %4139 = vmatpush1.msra.mxu0 0.0
    %4140 = vmatprep.subr.mxu0 0.0
    %4141 = vmatpush1.msra.mxu0 0.0
    %4142 = vmatprep.subr.mxu0 0.0
    %4143 = vmatpush1.msra.mxu0 0.0
    %4144 = vmatprep.subr.mxu0 0.0
    %4145 = vmatpush1.msra.mxu0 0.0
    %4146 = vmatprep.subr.mxu0 0.0
    %4147 = vmatpush1.msra.mxu0 0.0
    %4148 = vmatprep.subr.mxu0 0.0
    %4149 = vmatpush1.msra.mxu0 0.0
    %4150 = vmatprep.subr.mxu0 0.0
    %4151 = vmatpush1.msra.mxu0 0.0
    %4152 = vmatprep.subr.mxu0 0.0
    %4153 = vmatpush1.msra.mxu0 0.0
    %4154 = vmatprep.mubr.f32.mxu0 0.0
    %4155 = vmatmul.mubr.f32.gmra.mrb[0].mxu0 %v4088
    %v4156 = vpop.f32.mrb[0].mxu0
    %v4157 = vadd.f32 %v4074, %v4156
    %v4158 = vpop.f32.mrb[0].mxu0
    %v4159 = vadd.f32 %v4078, %v4158
    %4160 = vdwg.mxu0
    %v4161 = vadd.f32 %v4040, %v4157
    %v4162 = vxor.u32 %v4161, 2147483648
    %v4163 = vmul.f32 %v4162, 1.442695
    %v4164 = vpow.pop %v4163
    %v4165 = vadd.f32 %v4164, 1.0
    %v4166 = vrcp.pop %v4165
    %v4167 = vmul.f32 1.0, %v4166
    %v4168 = vmul.f32 %v4167, %v4159
    %v4169 = vadd.f32 %v4042, %v4168
    %v4170 = vtanh.pop %v4169
    %v4171 = vsub.f32 1.0, %v4167
    %4173 = vrot.lane.b32.xlu0 %v4170, 64
    %v4174 = vpop.permute.xlu0 %4173
    %v4176 = vmul.f32 %v4171, %v4174
    %4177 = vrot.lane.b32.xlu0 %v3775, 96
    %v4178 = vpop.permute.xlu0 %4177
    %4179 = vrot.lane.b32.xlu0 %v3776, 96
    %v4180 = vpop.permute.xlu0 %4179
    %vm4181 = vcmask 785408
    %v4182 = vsel %vm4181, %v4178, %v4180
    %v4184 = vmul.f32 %v4167, %v4182
    %v4185 = vadd.f32 %v4176, %v4184
    %v4187 = vlaneseq
    %v4188 = vshrl.u32 %v4187, 7
    %v4189 = vsub.s32 0, %v4188
    %v4190 = vrot.slane %v4069, %v4189
    %4193 = vrot.lane.b32.xlu0 %v4185, 64
    %v4194 = vpop.permute.xlu0 %4193
    %v4195 = vsel %vm1029, %v4194, 0
    %4197 = vmatprep.subr.mxu0 0.0
    %4198 = vmatpush1.msra.mxu0 %v4061
    %4199 = vmatprep.subr.mxu0 0.0
    %4200 = vmatpush1.msra.mxu0 %v4062
    %4201 = vmatprep.subr.mxu0 0.0
    %4202 = vmatpush1.msra.mxu0 %v4063
    %4203 = vmatprep.subr.mxu0 0.0
    %4204 = vmatpush1.msra.mxu0 %v4064
    %4205 = vmatprep.subr.mxu0 0.0
    %4206 = vmatpush1.msra.mxu0 %v4065
    %4207 = vmatprep.subr.mxu0 0.0
    %4208 = vmatpush1.msra.mxu0 %v4066
    %4209 = vmatprep.subr.mxu0 0.0
    %4210 = vmatpush1.msra.mxu0 %v4067
    %4211 = vmatprep.subr.mxu0 0.0
    %4212 = vmatpush1.msra.mxu0 %v4068
    %4213 = vmatprep.subr.mxu0 0.0
    %4214 = vmatpush1.msra.mxu0 0.0
    %4215 = vmatprep.subr.mxu0 0.0
    %4216 = vmatpush1.msra.mxu0 0.0
    %4217 = vmatprep.subr.mxu0 0.0
    %4218 = vmatpush1.msra.mxu0 0.0
    %4219 = vmatprep.subr.mxu0 0.0
    %4220 = vmatpush1.msra.mxu0 0.0
    %4221 = vmatprep.subr.mxu0 0.0
    %4222 = vmatpush1.msra.mxu0 0.0
    %4223 = vmatprep.subr.mxu0 0.0
    %4224 = vmatpush1.msra.mxu0 0.0
    %4225 = vmatprep.subr.mxu0 0.0
    %4226 = vmatpush1.msra.mxu0 0.0
    %4227 = vmatprep.subr.mxu0 0.0
    %4228 = vmatpush1.msra.mxu0 0.0
    %4229 = vmatprep.subr.mxu0 0.0
    %4230 = vmatpush1.msra.mxu0 0.0
    %4231 = vmatprep.subr.mxu0 0.0
    %4232 = vmatpush1.msra.mxu0 0.0
    %4233 = vmatprep.subr.mxu0 0.0
    %4234 = vmatpush1.msra.mxu0 0.0
    %4235 = vmatprep.subr.mxu0 0.0
    %4236 = vmatpush1.msra.mxu0 0.0
    %4237 = vmatprep.subr.mxu0 0.0
    %4238 = vmatpush1.msra.mxu0 0.0
    %4239 = vmatprep.subr.mxu0 0.0
    %4240 = vmatpush1.msra.mxu0 0.0
    %4241 = vmatprep.subr.mxu0 0.0
    %4242 = vmatpush1.msra.mxu0 0.0
    %4243 = vmatprep.subr.mxu0 0.0
    %4244 = vmatpush1.msra.mxu0 0.0
    %4245 = vmatprep.subr.mxu0 0.0
    %4246 = vmatpush1.msra.mxu0 0.0
    %4247 = vmatprep.subr.mxu0 0.0
    %4248 = vmatpush1.msra.mxu0 0.0
    %4249 = vmatprep.subr.mxu0 0.0
    %4250 = vmatpush1.msra.mxu0 0.0
    %4251 = vmatprep.subr.mxu0 0.0
    %4252 = vmatpush1.msra.mxu0 0.0
    %4253 = vmatprep.subr.mxu0 0.0
    %4254 = vmatpush1.msra.mxu0 0.0
    %4255 = vmatprep.subr.mxu0 0.0
    %4256 = vmatpush1.msra.mxu0 0.0
    %4257 = vmatprep.subr.mxu0 0.0
    %4258 = vmatpush1.msra.mxu0 0.0
    %4259 = vmatprep.subr.mxu0 0.0
    %4260 = vmatpush1.msra.mxu0 0.0
    %4261 = vmatprep.mubr.f32.mxu0 0.0
    %4262 = vmatmul.mubr.f32.gmra.mrb[0].mxu0 %v4195
    %v4263 = vpop.f32.mrb[0].mxu0
    %v4264 = vadd.f32 %v4190, %v4263
    %v4265 = vpop.f32.mrb[0].mxu0
    %4266 = vdwg.mxu0
    %vm4267 = vcmask 123904
    %4268 = vst.msk [vmem:[%s61] sm:$0x3] %vm4267, %v4264
    %4269 = vmatprep.subr.mxu0 %v4045
    %4270 = vmatpush1.msra.mxu0 %v4044
    %4271 = vmatprep.subr.mxu0 %v4047
    %4272 = vmatpush1.msra.mxu0 %v4046
    %4273 = vmatprep.subr.mxu0 %v4049
    %4274 = vmatpush1.msra.mxu0 %v4048
    %4275 = vmatprep.subr.mxu0 %v4051
    %4276 = vmatpush1.msra.mxu0 %v4050
    %4277 = vmatprep.subr.mxu0 %v4053
    %4278 = vmatpush1.msra.mxu0 %v4052
    %4279 = vmatprep.subr.mxu0 %v4055
    %4280 = vmatpush1.msra.mxu0 %v4054
    %4281 = vmatprep.subr.mxu0 %v4057
    %4282 = vmatpush1.msra.mxu0 %v4056
    %4283 = vmatprep.subr.mxu0 %v4059
    %4284 = vmatpush1.msra.mxu0 %v4058
    %4285 = vmatprep.subr.mxu0 0.0
    %4286 = vmatpush1.msra.mxu0 0.0
    %4287 = vmatprep.subr.mxu0 0.0
    %4288 = vmatpush1.msra.mxu0 0.0
    %4289 = vmatprep.subr.mxu0 0.0
    %4290 = vmatpush1.msra.mxu0 0.0
    %4291 = vmatprep.subr.mxu0 0.0
    %4292 = vmatpush1.msra.mxu0 0.0
    %4293 = vmatprep.subr.mxu0 0.0
    %4294 = vmatpush1.msra.mxu0 0.0
    %4295 = vmatprep.subr.mxu0 0.0
    %4296 = vmatpush1.msra.mxu0 0.0
    %4297 = vmatprep.subr.mxu0 0.0
    %4298 = vmatpush1.msra.mxu0 0.0
    %4299 = vmatprep.subr.mxu0 0.0
    %4300 = vmatpush1.msra.mxu0 0.0
    %4301 = vmatprep.subr.mxu0 0.0
    %4302 = vmatpush1.msra.mxu0 0.0
    %4303 = vmatprep.subr.mxu0 0.0
    %4304 = vmatpush1.msra.mxu0 0.0
    %4305 = vmatprep.subr.mxu0 0.0
    %4306 = vmatpush1.msra.mxu0 0.0
    %4307 = vmatprep.subr.mxu0 0.0
    %4308 = vmatpush1.msra.mxu0 0.0
    %4309 = vmatprep.subr.mxu0 0.0
    %4310 = vmatpush1.msra.mxu0 0.0
    %4311 = vmatprep.subr.mxu0 0.0
    %4312 = vmatpush1.msra.mxu0 0.0
    %4313 = vmatprep.subr.mxu0 0.0
    %4314 = vmatpush1.msra.mxu0 0.0
    %4315 = vmatprep.subr.mxu0 0.0
    %4316 = vmatpush1.msra.mxu0 0.0
    %4317 = vmatprep.subr.mxu0 0.0
    %4318 = vmatpush1.msra.mxu0 0.0
    %4319 = vmatprep.subr.mxu0 0.0
    %4320 = vmatpush1.msra.mxu0 0.0
    %4321 = vmatprep.subr.mxu0 0.0
    %4322 = vmatpush1.msra.mxu0 0.0
    %4323 = vmatprep.subr.mxu0 0.0
    %4324 = vmatpush1.msra.mxu0 0.0
    %4325 = vmatprep.subr.mxu0 0.0
    %4326 = vmatpush1.msra.mxu0 0.0
    %4327 = vmatprep.subr.mxu0 0.0
    %4328 = vmatpush1.msra.mxu0 0.0
    %4329 = vmatprep.subr.mxu0 0.0
    %4330 = vmatpush1.msra.mxu0 0.0
    %4331 = vmatprep.subr.mxu0 0.0
    %4332 = vmatpush1.msra.mxu0 0.0
    %4333 = vmatprep.mubr.f32.mxu0 0.0
    %4334 = vmatmul.mubr.f32.gmra.mrb[0].mxu0 %v4195
    %v4335 = vpop.f32.mrb[0].mxu0
    %v4336 = vadd.f32 %v4074, %v4335
    %v4337 = vpop.f32.mrb[0].mxu0
    %v4338 = vadd.f32 %v4078, %v4337
    %4339 = vdwg.mxu0
    %v4340 = vadd.f32 %v4040, %v4336
    %v4341 = vxor.u32 %v4340, 2147483648
    %v4342 = vmul.f32 %v4341, 1.442695
    %v4343 = vpow.pop %v4342
    %v4344 = vadd.f32 %v4343, 1.0
    %v4345 = vrcp.pop %v4344
    %v4346 = vmul.f32 1.0, %v4345
    %v4347 = vmul.f32 %v4346, %v4338
    %v4348 = vadd.f32 %v4042, %v4347
    %v4349 = vtanh.pop %v4348
    %v4350 = vsub.f32 1.0, %v4346
    %4352 = vrot.lane.b32.xlu0 %v4349, 64
    %v4353 = vpop.permute.xlu0 %4352
    %v4355 = vmul.f32 %v4350, %v4353
    %v4356 = vmul.f32 %v4346, %v4185
    %v4357 = vadd.f32 %v4355, %v4356
    %4359 = vrot.lane.b32.xlu0 %v4357, 64
    %v4360 = vpop.permute.xlu0 %4359
    %v4361 = vsel %vm1029, %v4360, 0
    %4363 = vmatprep.subr.mxu0 0.0
    %4364 = vmatpush1.msra.mxu0 %v4061
    %4365 = vmatprep.subr.mxu0 0.0
    %4366 = vmatpush1.msra.mxu0 %v4062
    %4367 = vmatprep.subr.mxu0 0.0
    %4368 = vmatpush1.msra.mxu0 %v4063
    %4369 = vmatprep.subr.mxu0 0.0
    %4370 = vmatpush1.msra.mxu0 %v4064
    %4371 = vmatprep.subr.mxu0 0.0
    %4372 = vmatpush1.msra.mxu0 %v4065
    %4373 = vmatprep.subr.mxu0 0.0
    %4374 = vmatpush1.msra.mxu0 %v4066
    %4375 = vmatprep.subr.mxu0 0.0
    %4376 = vmatpush1.msra.mxu0 %v4067
    %4377 = vmatprep.subr.mxu0 0.0
    %4378 = vmatpush1.msra.mxu0 %v4068
    %4379 = vmatprep.subr.mxu0 0.0
    %4380 = vmatpush1.msra.mxu0 0.0
    %4381 = vmatprep.subr.mxu0 0.0
    %4382 = vmatpush1.msra.mxu0 0.0
    %4383 = vmatprep.subr.mxu0 0.0
    %4384 = vmatpush1.msra.mxu0 0.0
    %4385 = vmatprep.subr.mxu0 0.0
    %4386 = vmatpush1.msra.mxu0 0.0
    %4387 = vmatprep.subr.mxu0 0.0
    %4388 = vmatpush1.msra.mxu0 0.0
    %4389 = vmatprep.subr.mxu0 0.0
    %4390 = vmatpush1.msra.mxu0 0.0
    %4391 = vmatprep.subr.mxu0 0.0
    %4392 = vmatpush1.msra.mxu0 0.0
    %4393 = vmatprep.subr.mxu0 0.0
    %4394 = vmatpush1.msra.mxu0 0.0
    %4395 = vmatprep.subr.mxu0 0.0
    %4396 = vmatpush1.msra.mxu0 0.0
    %4397 = vmatprep.subr.mxu0 0.0
    %4398 = vmatpush1.msra.mxu0 0.0
    %4399 = vmatprep.subr.mxu0 0.0
    %4400 = vmatpush1.msra.mxu0 0.0
    %4401 = vmatprep.subr.mxu0 0.0
    %4402 = vmatpush1.msra.mxu0 0.0
    %4403 = vmatprep.subr.mxu0 0.0
    %4404 = vmatpush1.msra.mxu0 0.0
    %4405 = vmatprep.subr.mxu0 0.0
    %4406 = vmatpush1.msra.mxu0 0.0
    %4407 = vmatprep.subr.mxu0 0.0
    %4408 = vmatpush1.msra.mxu0 0.0
    %4409 = vmatprep.subr.mxu0 0.0
    %4410 = vmatpush1.msra.mxu0 0.0
    %4411 = vmatprep.subr.mxu0 0.0
    %4412 = vmatpush1.msra.mxu0 0.0
    %4413 = vmatprep.subr.mxu0 0.0
    %4414 = vmatpush1.msra.mxu0 0.0
    %4415 = vmatprep.subr.mxu0 0.0
    %4416 = vmatpush1.msra.mxu0 0.0
    %4417 = vmatprep.subr.mxu0 0.0
    %4418 = vmatpush1.msra.mxu0 0.0
    %4419 = vmatprep.subr.mxu0 0.0
    %4420 = vmatpush1.msra.mxu0 0.0
    %4421 = vmatprep.subr.mxu0 0.0
    %4422 = vmatpush1.msra.mxu0 0.0
    %4423 = vmatprep.subr.mxu0 0.0
    %4424 = vmatpush1.msra.mxu0 0.0
    %4425 = vmatprep.subr.mxu0 0.0
    %4426 = vmatpush1.msra.mxu0 0.0
    %4427 = vmatprep.mubr.f32.mxu0 0.0
    %4428 = vmatmul.mubr.f32.gmra.mrb[0].mxu0 %v4361
    %v4429 = vpop.f32.mrb[0].mxu0
    %v4430 = vadd.f32 %v4190, %v4429
    %v4431 = vpop.f32.mrb[0].mxu0
    %4432 = vdwg.mxu0
    %4433 = vst.msk [vmem:[%s61 + $0x2] sm:$0x3] %vm4267, %v4430
    %4434 = vmatprep.subr.mxu0 %v4045
    %4435 = vmatpush1.msra.mxu0 %v4044
    %4436 = vmatprep.subr.mxu0 %v4047
    %4437 = vmatpush1.msra.mxu0 %v4046
    %4438 = vmatprep.subr.mxu0 %v4049
    %4439 = vmatpush1.msra.mxu0 %v4048
    %4440 = vmatprep.subr.mxu0 %v4051
    %4441 = vmatpush1.msra.mxu0 %v4050
    %4442 = vmatprep.subr.mxu0 %v4053
    %4443 = vmatpush1.msra.mxu0 %v4052
    %4444 = vmatprep.subr.mxu0 %v4055
    %4445 = vmatpush1.msra.mxu0 %v4054
    %4446 = vmatprep.subr.mxu0 %v4057
    %4447 = vmatpush1.msra.mxu0 %v4056
    %4448 = vmatprep.subr.mxu0 %v4059
    %4449 = vmatpush1.msra.mxu0 %v4058
    %4450 = vmatprep.subr.mxu0 0.0
    %4451 = vmatpush1.msra.mxu0 0.0
    %4452 = vmatprep.subr.mxu0 0.0
    %4453 = vmatpush1.msra.mxu0 0.0
    %4454 = vmatprep.subr.mxu0 0.0
    %4455 = vmatpush1.msra.mxu0 0.0
    %4456 = vmatprep.subr.mxu0 0.0
    %4457 = vmatpush1.msra.mxu0 0.0
    %4458 = vmatprep.subr.mxu0 0.0
    %4459 = vmatpush1.msra.mxu0 0.0
    %4460 = vmatprep.subr.mxu0 0.0
    %4461 = vmatpush1.msra.mxu0 0.0
    %4462 = vmatprep.subr.mxu0 0.0
    %4463 = vmatpush1.msra.mxu0 0.0
    %4464 = vmatprep.subr.mxu0 0.0
    %4465 = vmatpush1.msra.mxu0 0.0
    %4466 = vmatprep.subr.mxu0 0.0
    %4467 = vmatpush1.msra.mxu0 0.0
    %4468 = vmatprep.subr.mxu0 0.0
    %4469 = vmatpush1.msra.mxu0 0.0
    %4470 = vmatprep.subr.mxu0 0.0
    %4471 = vmatpush1.msra.mxu0 0.0
    %4472 = vmatprep.subr.mxu0 0.0
    %4473 = vmatpush1.msra.mxu0 0.0
    %4474 = vmatprep.subr.mxu0 0.0
    %4475 = vmatpush1.msra.mxu0 0.0
    %4476 = vmatprep.subr.mxu0 0.0
    %4477 = vmatpush1.msra.mxu0 0.0
    %4478 = vmatprep.subr.mxu0 0.0
    %4479 = vmatpush1.msra.mxu0 0.0
    %4480 = vmatprep.subr.mxu0 0.0
    %4481 = vmatpush1.msra.mxu0 0.0
    %4482 = vmatprep.subr.mxu0 0.0
    %4483 = vmatpush1.msra.mxu0 0.0
    %4484 = vmatprep.subr.mxu0 0.0
    %4485 = vmatpush1.msra.mxu0 0.0
    %4486 = vmatprep.subr.mxu0 0.0
    %4487 = vmatpush1.msra.mxu0 0.0
    %4488 = vmatprep.subr.mxu0 0.0
    %4489 = vmatpush1.msra.mxu0 0.0
    %4490 = vmatprep.subr.mxu0 0.0
    %4491 = vmatpush1.msra.mxu0 0.0
    %4492 = vmatprep.subr.mxu0 0.0
    %4493 = vmatpush1.msra.mxu0 0.0
    %4494 = vmatprep.subr.mxu0 0.0
    %4495 = vmatpush1.msra.mxu0 0.0
    %4496 = vmatprep.subr.mxu0 0.0
    %4497 = vmatpush1.msra.mxu0 0.0
    %4498 = vmatprep.mubr.f32.mxu0 0.0
    %4499 = vmatmul.mubr.f32.gmra.mrb[0].mxu0 %v4361
    %v4500 = vpop.f32.mrb[0].mxu0
    %v4501 = vadd.f32 %v4074, %v4500
    %v4502 = vpop.f32.mrb[0].mxu0
    %v4503 = vadd.f32 %v4078, %v4502
    %4504 = vdwg.mxu0
    %v4505 = vadd.f32 %v4040, %v4501
    %v4506 = vxor.u32 %v4505, 2147483648
    %v4507 = vmul.f32 %v4506, 1.442695
    %v4508 = vpow.pop %v4507
    %v4509 = vadd.f32 %v4508, 1.0
    %v4510 = vrcp.pop %v4509
    %v4511 = vmul.f32 1.0, %v4510
    %v4512 = vmul.f32 %v4511, %v4503
    %v4513 = vadd.f32 %v4042, %v4512
    %v4514 = vtanh.pop %v4513
    %v4515 = vsub.f32 1.0, %v4511
    %4517 = vrot.lane.b32.xlu0 %v4514, 64
    %v4518 = vpop.permute.xlu0 %4517
    %v4520 = vmul.f32 %v4515, %v4518
    %v4521 = vmul.f32 %v4511, %v4357
    %v4522 = vadd.f32 %v4520, %v4521
    %4524 = vrot.lane.b32.xlu0 %v4522, 64
    %v4525 = vpop.permute.xlu0 %4524
    %v4526 = vsel %vm1029, %v4525, 0
    %4528 = vmatprep.subr.mxu0 0.0
    %4529 = vmatpush1.msra.mxu0 %v4061
    %4530 = vmatprep.subr.mxu0 0.0
    %4531 = vmatpush1.msra.mxu0 %v4062
    %4532 = vmatprep.subr.mxu0 0.0
    %4533 = vmatpush1.msra.mxu0 %v4063
    %4534 = vmatprep.subr.mxu0 0.0
    %4535 = vmatpush1.msra.mxu0 %v4064
    %4536 = vmatprep.subr.mxu0 0.0
    %4537 = vmatpush1.msra.mxu0 %v4065
    %4538 = vmatprep.subr.mxu0 0.0
    %4539 = vmatpush1.msra.mxu0 %v4066
    %4540 = vmatprep.subr.mxu0 0.0
    %4541 = vmatpush1.msra.mxu0 %v4067
    %4542 = vmatprep.subr.mxu0 0.0
    %4543 = vmatpush1.msra.mxu0 %v4068
    %4544 = vmatprep.subr.mxu0 0.0
    %4545 = vmatpush1.msra.mxu0 0.0
    %4546 = vmatprep.subr.mxu0 0.0
    %4547 = vmatpush1.msra.mxu0 0.0
    %4548 = vmatprep.subr.mxu0 0.0
    %4549 = vmatpush1.msra.mxu0 0.0
    %4550 = vmatprep.subr.mxu0 0.0
    %4551 = vmatpush1.msra.mxu0 0.0
    %4552 = vmatprep.subr.mxu0 0.0
    %4553 = vmatpush1.msra.mxu0 0.0
    %4554 = vmatprep.subr.mxu0 0.0
    %4555 = vmatpush1.msra.mxu0 0.0
    %4556 = vmatprep.subr.mxu0 0.0
    %4557 = vmatpush1.msra.mxu0 0.0
    %4558 = vmatprep.subr.mxu0 0.0
    %4559 = vmatpush1.msra.mxu0 0.0
    %4560 = vmatprep.subr.mxu0 0.0
    %4561 = vmatpush1.msra.mxu0 0.0
    %4562 = vmatprep.subr.mxu0 0.0
    %4563 = vmatpush1.msra.mxu0 0.0
    %4564 = vmatprep.subr.mxu0 0.0
    %4565 = vmatpush1.msra.mxu0 0.0
    %4566 = vmatprep.subr.mxu0 0.0
    %4567 = vmatpush1.msra.mxu0 0.0
    %4568 = vmatprep.subr.mxu0 0.0
    %4569 = vmatpush1.msra.mxu0 0.0
    %4570 = vmatprep.subr.mxu0 0.0
    %4571 = vmatpush1.msra.mxu0 0.0
    %4572 = vmatprep.subr.mxu0 0.0
    %4573 = vmatpush1.msra.mxu0 0.0
    %4574 = vmatprep.subr.mxu0 0.0
    %4575 = vmatpush1.msra.mxu0 0.0
    %4576 = vmatprep.subr.mxu0 0.0
    %4577 = vmatpush1.msra.mxu0 0.0
    %4578 = vmatprep.subr.mxu0 0.0
    %4579 = vmatpush1.msra.mxu0 0.0
    %4580 = vmatprep.subr.mxu0 0.0
    %4581 = vmatpush1.msra.mxu0 0.0
    %4582 = vmatprep.subr.mxu0 0.0
    %4583 = vmatpush1.msra.mxu0 0.0
    %4584 = vmatprep.subr.mxu0 0.0
    %4585 = vmatpush1.msra.mxu0 0.0
    %4586 = vmatprep.subr.mxu0 0.0
    %4587 = vmatpush1.msra.mxu0 0.0
    %4588 = vmatprep.subr.mxu0 0.0
    %4589 = vmatpush1.msra.mxu0 0.0
    %4590 = vmatprep.subr.mxu0 0.0
    %4591 = vmatpush1.msra.mxu0 0.0
    %4592 = vmatprep.mubr.f32.mxu0 0.0
    %4593 = vmatmul.mubr.f32.gmra.mrb[0].mxu0 %v4526
    %v4594 = vpop.f32.mrb[0].mxu0
    %v4595 = vadd.f32 %v4190, %v4594
    %v4596 = vpop.f32.mrb[0].mxu0
    %4597 = vdwg.mxu0
    %4598 = vst.msk [vmem:[%s61 + $0x4] sm:$0x3] %vm4267, %v4595
    %4599 = vmatprep.subr.mxu0 %v4045
    %4600 = vmatpush1.msra.mxu0 %v4044
    %4601 = vmatprep.subr.mxu0 %v4047
    %4602 = vmatpush1.msra.mxu0 %v4046
    %4603 = vmatprep.subr.mxu0 %v4049
    %4604 = vmatpush1.msra.mxu0 %v4048
    %4605 = vmatprep.subr.mxu0 %v4051
    %4606 = vmatpush1.msra.mxu0 %v4050
    %4607 = vmatprep.subr.mxu0 %v4053
    %4608 = vmatpush1.msra.mxu0 %v4052
    %4609 = vmatprep.subr.mxu0 %v4055
    %4610 = vmatpush1.msra.mxu0 %v4054
    %4611 = vmatprep.subr.mxu0 %v4057
    %4612 = vmatpush1.msra.mxu0 %v4056
    %4613 = vmatprep.subr.mxu0 %v4059
    %4614 = vmatpush1.msra.mxu0 %v4058
    %4615 = vmatprep.subr.mxu0 0.0
    %4616 = vmatpush1.msra.mxu0 0.0
    %4617 = vmatprep.subr.mxu0 0.0
    %4618 = vmatpush1.msra.mxu0 0.0
    %4619 = vmatprep.subr.mxu0 0.0
    %4620 = vmatpush1.msra.mxu0 0.0
    %4621 = vmatprep.subr.mxu0 0.0
    %4622 = vmatpush1.msra.mxu0 0.0
    %4623 = vmatprep.subr.mxu0 0.0
    %4624 = vmatpush1.msra.mxu0 0.0
    %4625 = vmatprep.subr.mxu0 0.0
    %4626 = vmatpush1.msra.mxu0 0.0
    %4627 = vmatprep.subr.mxu0 0.0
    %4628 = vmatpush1.msra.mxu0 0.0
    %4629 = vmatprep.subr.mxu0 0.0
    %4630 = vmatpush1.msra.mxu0 0.0
    %4631 = vmatprep.subr.mxu0 0.0
    %4632 = vmatpush1.msra.mxu0 0.0
    %4633 = vmatprep.subr.mxu0 0.0
    %4634 = vmatpush1.msra.mxu0 0.0
    %4635 = vmatprep.subr.mxu0 0.0
    %4636 = vmatpush1.msra.mxu0 0.0
    %4637 = vmatprep.subr.mxu0 0.0
    %4638 = vmatpush1.msra.mxu0 0.0
    %4639 = vmatprep.subr.mxu0 0.0
    %4640 = vmatpush1.msra.mxu0 0.0
    %4641 = vmatprep.subr.mxu0 0.0
    %4642 = vmatpush1.msra.mxu0 0.0
    %4643 = vmatprep.subr.mxu0 0.0
    %4644 = vmatpush1.msra.mxu0 0.0
    %4645 = vmatprep.subr.mxu0 0.0
    %4646 = vmatpush1.msra.mxu0 0.0
    %4647 = vmatprep.subr.mxu0 0.0
    %4648 = vmatpush1.msra.mxu0 0.0
    %4649 = vmatprep.subr.mxu0 0.0
    %4650 = vmatpush1.msra.mxu0 0.0
    %4651 = vmatprep.subr.mxu0 0.0
    %4652 = vmatpush1.msra.mxu0 0.0
    %4653 = vmatprep.subr.mxu0 0.0
    %4654 = vmatpush1.msra.mxu0 0.0
    %4655 = vmatprep.subr.mxu0 0.0
    %4656 = vmatpush1.msra.mxu0 0.0
    %4657 = vmatprep.subr.mxu0 0.0
    %4658 = vmatpush1.msra.mxu0 0.0
    %4659 = vmatprep.subr.mxu0 0.0
    %4660 = vmatpush1.msra.mxu0 0.0
    %4661 = vmatprep.subr.mxu0 0.0
    %4662 = vmatpush1.msra.mxu0 0.0
    %4663 = vmatprep.mubr.f32.mxu0 0.0
    %4664 = vmatmul.mubr.f32.gmra.mrb[0].mxu0 %v4526
    %v4665 = vpop.f32.mrb[0].mxu0
    %v4666 = vadd.f32 %v4074, %v4665
    %v4667 = vpop.f32.mrb[0].mxu0
    %v4668 = vadd.f32 %v4078, %v4667
    %4669 = vdwg.mxu0
    %v4670 = vadd.f32 %v4040, %v4666
    %v4671 = vxor.u32 %v4670, 2147483648
    %v4672 = vmul.f32 %v4671, 1.442695
    %v4673 = vpow.pop %v4672
    %v4674 = vadd.f32 %v4673, 1.0
    %v4675 = vrcp.pop %v4674
    %v4676 = vmul.f32 1.0, %v4675
    %v4677 = vmul.f32 %v4676, %v4668
    %v4678 = vadd.f32 %v4042, %v4677
    %v4679 = vtanh.pop %v4678
    %v4680 = vsub.f32 1.0, %v4676
    %4682 = vrot.lane.b32.xlu0 %v4679, 64
    %v4683 = vpop.permute.xlu0 %4682
    %v4685 = vmul.f32 %v4680, %v4683
    %v4686 = vmul.f32 %v4676, %v4522
    %v4687 = vadd.f32 %v4685, %v4686
    %4689 = vrot.lane.b32.xlu0 %v4687, 64
    %v4690 = vpop.permute.xlu0 %4689
    %v4691 = vsel %vm1029, %v4690, 0
    %4693 = vmatprep.subr.mxu0 0.0
    %4694 = vmatpush1.msra.mxu0 %v4061
    %4695 = vmatprep.subr.mxu0 0.0
    %4696 = vmatpush1.msra.mxu0 %v4062
    %4697 = vmatprep.subr.mxu0 0.0
    %4698 = vmatpush1.msra.mxu0 %v4063
    %4699 = vmatprep.subr.mxu0 0.0
    %4700 = vmatpush1.msra.mxu0 %v4064
    %4701 = vmatprep.subr.mxu0 0.0
    %4702 = vmatpush1.msra.mxu0 %v4065
    %4703 = vmatprep.subr.mxu0 0.0
    %4704 = vmatpush1.msra.mxu0 %v4066
    %4705 = vmatprep.subr.mxu0 0.0
    %4706 = vmatpush1.msra.mxu0 %v4067
    %4707 = vmatprep.subr.mxu0 0.0
    %4708 = vmatpush1.msra.mxu0 %v4068
    %4709 = vmatprep.subr.mxu0 0.0
    %4710 = vmatpush1.msra.mxu0 0.0
    %4711 = vmatprep.subr.mxu0 0.0
    %4712 = vmatpush1.msra.mxu0 0.0
    %4713 = vmatprep.subr.mxu0 0.0
    %4714 = vmatpush1.msra.mxu0 0.0
    %4715 = vmatprep.subr.mxu0 0.0
    %4716 = vmatpush1.msra.mxu0 0.0
    %4717 = vmatprep.subr.mxu0 0.0
    %4718 = vmatpush1.msra.mxu0 0.0
    %4719 = vmatprep.subr.mxu0 0.0
    %4720 = vmatpush1.msra.mxu0 0.0
    %4721 = vmatprep.subr.mxu0 0.0
    %4722 = vmatpush1.msra.mxu0 0.0
    %4723 = vmatprep.subr.mxu0 0.0
    %4724 = vmatpush1.msra.mxu0 0.0
    %4725 = vmatprep.subr.mxu0 0.0
    %4726 = vmatpush1.msra.mxu0 0.0
    %4727 = vmatprep.subr.mxu0 0.0
    %4728 = vmatpush1.msra.mxu0 0.0
    %4729 = vmatprep.subr.mxu0 0.0
    %4730 = vmatpush1.msra.mxu0 0.0
    %4731 = vmatprep.subr.mxu0 0.0
    %4732 = vmatpush1.msra.mxu0 0.0
    %4733 = vmatprep.subr.mxu0 0.0
    %4734 = vmatpush1.msra.mxu0 0.0
    %4735 = vmatprep.subr.mxu0 0.0
    %4736 = vmatpush1.msra.mxu0 0.0
    %4737 = vmatprep.subr.mxu0 0.0
    %4738 = vmatpush1.msra.mxu0 0.0
    %4739 = vmatprep.subr.mxu0 0.0
    %4740 = vmatpush1.msra.mxu0 0.0
    %4741 = vmatprep.subr.mxu0 0.0
    %4742 = vmatpush1.msra.mxu0 0.0
    %4743 = vmatprep.subr.mxu0 0.0
    %4744 = vmatpush1.msra.mxu0 0.0
    %4745 = vmatprep.subr.mxu0 0.0
    %4746 = vmatpush1.msra.mxu0 0.0
    %4747 = vmatprep.subr.mxu0 0.0
    %4748 = vmatpush1.msra.mxu0 0.0
    %4749 = vmatprep.subr.mxu0 0.0
    %4750 = vmatpush1.msra.mxu0 0.0
    %4751 = vmatprep.subr.mxu0 0.0
    %4752 = vmatpush1.msra.mxu0 0.0
    %4753 = vmatprep.subr.mxu0 0.0
    %4754 = vmatpush1.msra.mxu0 0.0
    %4755 = vmatprep.subr.mxu0 0.0
    %4756 = vmatpush1.msra.mxu0 0.0
    %4757 = vmatprep.mubr.f32.mxu0 0.0
    %4758 = vmatmul.mubr.f32.gmra.mrb[0].mxu0 %v4691
    %v4759 = vpop.f32.mrb[0].mxu0
    %v4760 = vadd.f32 %v4190, %v4759
    %v4761 = vpop.f32.mrb[0].mxu0
    %4762 = vdwg.mxu0
    %4763 = vst.msk [vmem:[%s61 + $0x6] sm:$0x3] %vm4267, %v4760
    %4764 = vmatprep.subr.mxu0 %v4045
    %4765 = vmatpush1.msra.mxu0 %v4044
    %4766 = vmatprep.subr.mxu0 %v4047
    %4767 = vmatpush1.msra.mxu0 %v4046
    %4768 = vmatprep.subr.mxu0 %v4049
    %4769 = vmatpush1.msra.mxu0 %v4048
    %4770 = vmatprep.subr.mxu0 %v4051
    %4771 = vmatpush1.msra.mxu0 %v4050
    %4772 = vmatprep.subr.mxu0 %v4053
    %4773 = vmatpush1.msra.mxu0 %v4052
    %4774 = vmatprep.subr.mxu0 %v4055
    %4775 = vmatpush1.msra.mxu0 %v4054
    %4776 = vmatprep.subr.mxu0 %v4057
    %4777 = vmatpush1.msra.mxu0 %v4056
    %4778 = vmatprep.subr.mxu0 %v4059
    %4779 = vmatpush1.msra.mxu0 %v4058
    %4780 = vmatprep.subr.mxu0 0.0
    %4781 = vmatpush1.msra.mxu0 0.0
    %4782 = vmatprep.subr.mxu0 0.0
    %4783 = vmatpush1.msra.mxu0 0.0
    %4784 = vmatprep.subr.mxu0 0.0
    %4785 = vmatpush1.msra.mxu0 0.0
    %4786 = vmatprep.subr.mxu0 0.0
    %4787 = vmatpush1.msra.mxu0 0.0
    %4788 = vmatprep.subr.mxu0 0.0
    %4789 = vmatpush1.msra.mxu0 0.0
    %4790 = vmatprep.subr.mxu0 0.0
    %4791 = vmatpush1.msra.mxu0 0.0
    %4792 = vmatprep.subr.mxu0 0.0
    %4793 = vmatpush1.msra.mxu0 0.0
    %4794 = vmatprep.subr.mxu0 0.0
    %4795 = vmatpush1.msra.mxu0 0.0
    %4796 = vmatprep.subr.mxu0 0.0
    %4797 = vmatpush1.msra.mxu0 0.0
    %4798 = vmatprep.subr.mxu0 0.0
    %4799 = vmatpush1.msra.mxu0 0.0
    %4800 = vmatprep.subr.mxu0 0.0
    %4801 = vmatpush1.msra.mxu0 0.0
    %4802 = vmatprep.subr.mxu0 0.0
    %4803 = vmatpush1.msra.mxu0 0.0
    %4804 = vmatprep.subr.mxu0 0.0
    %4805 = vmatpush1.msra.mxu0 0.0
    %4806 = vmatprep.subr.mxu0 0.0
    %4807 = vmatpush1.msra.mxu0 0.0
    %4808 = vmatprep.subr.mxu0 0.0
    %4809 = vmatpush1.msra.mxu0 0.0
    %4810 = vmatprep.subr.mxu0 0.0
    %4811 = vmatpush1.msra.mxu0 0.0
    %4812 = vmatprep.subr.mxu0 0.0
    %4813 = vmatpush1.msra.mxu0 0.0
    %4814 = vmatprep.subr.mxu0 0.0
    %4815 = vmatpush1.msra.mxu0 0.0
    %4816 = vmatprep.subr.mxu0 0.0
    %4817 = vmatpush1.msra.mxu0 0.0
    %4818 = vmatprep.subr.mxu0 0.0
    %4819 = vmatpush1.msra.mxu0 0.0
    %4820 = vmatprep.subr.mxu0 0.0
    %4821 = vmatpush1.msra.mxu0 0.0
    %4822 = vmatprep.subr.mxu0 0.0
    %4823 = vmatpush1.msra.mxu0 0.0
    %4824 = vmatprep.subr.mxu0 0.0
    %4825 = vmatpush1.msra.mxu0 0.0
    %4826 = vmatprep.subr.mxu0 0.0
    %4827 = vmatpush1.msra.mxu0 0.0
    %4828 = vmatprep.mubr.f32.mxu0 0.0
    %4829 = vmatmul.mubr.f32.gmra.mrb[0].mxu0 %v4691
    %v4830 = vpop.f32.mrb[0].mxu0
    %v4831 = vadd.f32 %v4074, %v4830
    %v4832 = vpop.f32.mrb[0].mxu0
    %v4833 = vadd.f32 %v4078, %v4832
    %4834 = vdwg.mxu0
    %v4835 = vadd.f32 %v4040, %v4831
    %v4836 = vxor.u32 %v4835, 2147483648
    %v4837 = vmul.f32 %v4836, 1.442695
    %v4838 = vpow.pop %v4837
    %v4839 = vadd.f32 %v4838, 1.0
    %v4840 = vrcp.pop %v4839
    %v4841 = vmul.f32 1.0, %v4840
    %v4842 = vmul.f32 %v4841, %v4833
    %v4843 = vadd.f32 %v4042, %v4842
    %v4844 = vtanh.pop %v4843
    %v4845 = vsub.f32 1.0, %v4841
    %4847 = vrot.lane.b32.xlu0 %v4844, 64
    %v4848 = vpop.permute.xlu0 %4847
    %v4850 = vmul.f32 %v4845, %v4848
    %v4851 = vmul.f32 %v4841, %v4687
    %v4852 = vadd.f32 %v4850, %v4851
    %4854 = vrot.lane.b32.xlu0 %v4852, 64
    %v4855 = vpop.permute.xlu0 %4854
    %v4856 = vsel %vm1029, %v4855, 0
    %4858 = vmatprep.subr.mxu0 0.0
    %4859 = vmatpush1.msra.mxu0 %v4061
    %4860 = vmatprep.subr.mxu0 0.0
    %4861 = vmatpush1.msra.mxu0 %v4062
    %4862 = vmatprep.subr.mxu0 0.0
    %4863 = vmatpush1.msra.mxu0 %v4063
    %4864 = vmatprep.subr.mxu0 0.0
    %4865 = vmatpush1.msra.mxu0 %v4064
    %4866 = vmatprep.subr.mxu0 0.0
    %4867 = vmatpush1.msra.mxu0 %v4065
    %4868 = vmatprep.subr.mxu0 0.0
    %4869 = vmatpush1.msra.mxu0 %v4066
    %4870 = vmatprep.subr.mxu0 0.0
    %4871 = vmatpush1.msra.mxu0 %v4067
    %4872 = vmatprep.subr.mxu0 0.0
    %4873 = vmatpush1.msra.mxu0 %v4068
    %4874 = vmatprep.subr.mxu0 0.0
    %4875 = vmatpush1.msra.mxu0 0.0
    %4876 = vmatprep.subr.mxu0 0.0
    %4877 = vmatpush1.msra.mxu0 0.0
    %4878 = vmatprep.subr.mxu0 0.0
    %4879 = vmatpush1.msra.mxu0 0.0
    %4880 = vmatprep.subr.mxu0 0.0
    %4881 = vmatpush1.msra.mxu0 0.0
    %4882 = vmatprep.subr.mxu0 0.0
    %4883 = vmatpush1.msra.mxu0 0.0
    %4884 = vmatprep.subr.mxu0 0.0
    %4885 = vmatpush1.msra.mxu0 0.0
    %4886 = vmatprep.subr.mxu0 0.0
    %4887 = vmatpush1.msra.mxu0 0.0
    %4888 = vmatprep.subr.mxu0 0.0
    %4889 = vmatpush1.msra.mxu0 0.0
    %4890 = vmatprep.subr.mxu0 0.0
    %4891 = vmatpush1.msra.mxu0 0.0
    %4892 = vmatprep.subr.mxu0 0.0
    %4893 = vmatpush1.msra.mxu0 0.0
    %4894 = vmatprep.subr.mxu0 0.0
    %4895 = vmatpush1.msra.mxu0 0.0
    %4896 = vmatprep.subr.mxu0 0.0
    %4897 = vmatpush1.msra.mxu0 0.0
    %4898 = vmatprep.subr.mxu0 0.0
    %4899 = vmatpush1.msra.mxu0 0.0
    %4900 = vmatprep.subr.mxu0 0.0
    %4901 = vmatpush1.msra.mxu0 0.0
    %4902 = vmatprep.subr.mxu0 0.0
    %4903 = vmatpush1.msra.mxu0 0.0
    %4904 = vmatprep.subr.mxu0 0.0
    %4905 = vmatpush1.msra.mxu0 0.0
    %4906 = vmatprep.subr.mxu0 0.0
    %4907 = vmatpush1.msra.mxu0 0.0
    %4908 = vmatprep.subr.mxu0 0.0
    %4909 = vmatpush1.msra.mxu0 0.0
    %4910 = vmatprep.subr.mxu0 0.0
    %4911 = vmatpush1.msra.mxu0 0.0
    %4912 = vmatprep.subr.mxu0 0.0
    %4913 = vmatpush1.msra.mxu0 0.0
    %4914 = vmatprep.subr.mxu0 0.0
    %4915 = vmatpush1.msra.mxu0 0.0
    %4916 = vmatprep.subr.mxu0 0.0
    %4917 = vmatpush1.msra.mxu0 0.0
    %4918 = vmatprep.subr.mxu0 0.0
    %4919 = vmatpush1.msra.mxu0 0.0
    %4920 = vmatprep.subr.mxu0 0.0
    %4921 = vmatpush1.msra.mxu0 0.0
    %4922 = vmatprep.mubr.f32.mxu0 0.0
    %4923 = vmatmul.mubr.f32.gmra.mrb[0].mxu0 %v4856
    %v4924 = vpop.f32.mrb[0].mxu0
    %v4925 = vadd.f32 %v4190, %v4924
    %v4926 = vpop.f32.mrb[0].mxu0
    %4927 = vdwg.mxu0
    %4928 = vst.msk [vmem:[%s61 + $0x8] sm:$0x3] %vm4267, %v4925
    %4929 = vmatprep.subr.mxu0 %v4045
    %4930 = vmatpush1.msra.mxu0 %v4044
    %4931 = vmatprep.subr.mxu0 %v4047
    %4932 = vmatpush1.msra.mxu0 %v4046
    %4933 = vmatprep.subr.mxu0 %v4049
    %4934 = vmatpush1.msra.mxu0 %v4048
    %4935 = vmatprep.subr.mxu0 %v4051
    %4936 = vmatpush1.msra.mxu0 %v4050
    %4937 = vmatprep.subr.mxu0 %v4053
    %4938 = vmatpush1.msra.mxu0 %v4052
    %4939 = vmatprep.subr.mxu0 %v4055
    %4940 = vmatpush1.msra.mxu0 %v4054
    %4941 = vmatprep.subr.mxu0 %v4057
    %4942 = vmatpush1.msra.mxu0 %v4056
    %4943 = vmatprep.subr.mxu0 %v4059
    %4944 = vmatpush1.msra.mxu0 %v4058
    %4945 = vmatprep.subr.mxu0 0.0
    %4946 = vmatpush1.msra.mxu0 0.0
    %4947 = vmatprep.subr.mxu0 0.0
    %4948 = vmatpush1.msra.mxu0 0.0
    %4949 = vmatprep.subr.mxu0 0.0
    %4950 = vmatpush1.msra.mxu0 0.0
    %4951 = vmatprep.subr.mxu0 0.0
    %4952 = vmatpush1.msra.mxu0 0.0
    %4953 = vmatprep.subr.mxu0 0.0
    %4954 = vmatpush1.msra.mxu0 0.0
    %4955 = vmatprep.subr.mxu0 0.0
    %4956 = vmatpush1.msra.mxu0 0.0
    %4957 = vmatprep.subr.mxu0 0.0
    %4958 = vmatpush1.msra.mxu0 0.0
    %4959 = vmatprep.subr.mxu0 0.0
    %4960 = vmatpush1.msra.mxu0 0.0
    %4961 = vmatprep.subr.mxu0 0.0
    %4962 = vmatpush1.msra.mxu0 0.0
    %4963 = vmatprep.subr.mxu0 0.0
    %4964 = vmatpush1.msra.mxu0 0.0
    %4965 = vmatprep.subr.mxu0 0.0
    %4966 = vmatpush1.msra.mxu0 0.0
    %4967 = vmatprep.subr.mxu0 0.0
    %4968 = vmatpush1.msra.mxu0 0.0
    %4969 = vmatprep.subr.mxu0 0.0
    %4970 = vmatpush1.msra.mxu0 0.0
    %4971 = vmatprep.subr.mxu0 0.0
    %4972 = vmatpush1.msra.mxu0 0.0
    %4973 = vmatprep.subr.mxu0 0.0
    %4974 = vmatpush1.msra.mxu0 0.0
    %4975 = vmatprep.subr.mxu0 0.0
    %4976 = vmatpush1.msra.mxu0 0.0
    %4977 = vmatprep.subr.mxu0 0.0
    %4978 = vmatpush1.msra.mxu0 0.0
    %4979 = vmatprep.subr.mxu0 0.0
    %4980 = vmatpush1.msra.mxu0 0.0
    %4981 = vmatprep.subr.mxu0 0.0
    %4982 = vmatpush1.msra.mxu0 0.0
    %4983 = vmatprep.subr.mxu0 0.0
    %4984 = vmatpush1.msra.mxu0 0.0
    %4985 = vmatprep.subr.mxu0 0.0
    %4986 = vmatpush1.msra.mxu0 0.0
    %4987 = vmatprep.subr.mxu0 0.0
    %4988 = vmatpush1.msra.mxu0 0.0
    %4989 = vmatprep.subr.mxu0 0.0
    %4990 = vmatpush1.msra.mxu0 0.0
    %4991 = vmatprep.subr.mxu0 0.0
    %4992 = vmatpush1.msra.mxu0 0.0
    %4993 = vmatprep.mubr.f32.mxu0 0.0
    %4994 = vmatmul.mubr.f32.gmra.mrb[0].mxu0 %v4856
    %v4995 = vpop.f32.mrb[0].mxu0
    %v4996 = vadd.f32 %v4074, %v4995
    %v4997 = vpop.f32.mrb[0].mxu0
    %v4998 = vadd.f32 %v4078, %v4997
    %4999 = vdwg.mxu0
    %v5000 = vadd.f32 %v4040, %v4996
    %v5001 = vxor.u32 %v5000, 2147483648
    %v5002 = vmul.f32 %v5001, 1.442695
    %v5003 = vpow.pop %v5002
    %v5004 = vadd.f32 %v5003, 1.0
    %v5005 = vrcp.pop %v5004
    %v5006 = vmul.f32 1.0, %v5005
    %v5007 = vmul.f32 %v5006, %v4998
    %v5008 = vadd.f32 %v4042, %v5007
    %v5009 = vtanh.pop %v5008
    %v5010 = vsub.f32 1.0, %v5006
    %5012 = vrot.lane.b32.xlu0 %v5009, 64
    %v5013 = vpop.permute.xlu0 %5012
    %v5015 = vmul.f32 %v5010, %v5013
    %v5016 = vmul.f32 %v5006, %v4852
    %v5017 = vadd.f32 %v5015, %v5016
    %5019 = vrot.lane.b32.xlu0 %v5017, 64
    %v5020 = vpop.permute.xlu0 %5019
    %v5021 = vsel %vm1029, %v5020, 0
    %5023 = vmatprep.subr.mxu0 0.0
    %5024 = vmatpush1.msra.mxu0 %v4061
    %5025 = vmatprep.subr.mxu0 0.0
    %5026 = vmatpush1.msra.mxu0 %v4062
    %5027 = vmatprep.subr.mxu0 0.0
    %5028 = vmatpush1.msra.mxu0 %v4063
    %5029 = vmatprep.subr.mxu0 0.0
    %5030 = vmatpush1.msra.mxu0 %v4064
    %5031 = vmatprep.subr.mxu0 0.0
    %5032 = vmatpush1.msra.mxu0 %v4065
    %5033 = vmatprep.subr.mxu0 0.0
    %5034 = vmatpush1.msra.mxu0 %v4066
    %5035 = vmatprep.subr.mxu0 0.0
    %5036 = vmatpush1.msra.mxu0 %v4067
    %5037 = vmatprep.subr.mxu0 0.0
    %5038 = vmatpush1.msra.mxu0 %v4068
    %5039 = vmatprep.subr.mxu0 0.0
    %5040 = vmatpush1.msra.mxu0 0.0
    %5041 = vmatprep.subr.mxu0 0.0
    %5042 = vmatpush1.msra.mxu0 0.0
    %5043 = vmatprep.subr.mxu0 0.0
    %5044 = vmatpush1.msra.mxu0 0.0
    %5045 = vmatprep.subr.mxu0 0.0
    %5046 = vmatpush1.msra.mxu0 0.0
    %5047 = vmatprep.subr.mxu0 0.0
    %5048 = vmatpush1.msra.mxu0 0.0
    %5049 = vmatprep.subr.mxu0 0.0
    %5050 = vmatpush1.msra.mxu0 0.0
    %5051 = vmatprep.subr.mxu0 0.0
    %5052 = vmatpush1.msra.mxu0 0.0
    %5053 = vmatprep.subr.mxu0 0.0
    %5054 = vmatpush1.msra.mxu0 0.0
    %5055 = vmatprep.subr.mxu0 0.0
    %5056 = vmatpush1.msra.mxu0 0.0
    %5057 = vmatprep.subr.mxu0 0.0
    %5058 = vmatpush1.msra.mxu0 0.0
    %5059 = vmatprep.subr.mxu0 0.0
    %5060 = vmatpush1.msra.mxu0 0.0
    %5061 = vmatprep.subr.mxu0 0.0
    %5062 = vmatpush1.msra.mxu0 0.0
    %5063 = vmatprep.subr.mxu0 0.0
    %5064 = vmatpush1.msra.mxu0 0.0
    %5065 = vmatprep.subr.mxu0 0.0
    %5066 = vmatpush1.msra.mxu0 0.0
    %5067 = vmatprep.subr.mxu0 0.0
    %5068 = vmatpush1.msra.mxu0 0.0
    %5069 = vmatprep.subr.mxu0 0.0
    %5070 = vmatpush1.msra.mxu0 0.0
    %5071 = vmatprep.subr.mxu0 0.0
    %5072 = vmatpush1.msra.mxu0 0.0
    %5073 = vmatprep.subr.mxu0 0.0
    %5074 = vmatpush1.msra.mxu0 0.0
    %5075 = vmatprep.subr.mxu0 0.0
    %5076 = vmatpush1.msra.mxu0 0.0
    %5077 = vmatprep.subr.mxu0 0.0
    %5078 = vmatpush1.msra.mxu0 0.0
    %5079 = vmatprep.subr.mxu0 0.0
    %5080 = vmatpush1.msra.mxu0 0.0
    %5081 = vmatprep.subr.mxu0 0.0
    %5082 = vmatpush1.msra.mxu0 0.0
    %5083 = vmatprep.subr.mxu0 0.0
    %5084 = vmatpush1.msra.mxu0 0.0
    %5085 = vmatprep.subr.mxu0 0.0
    %5086 = vmatpush1.msra.mxu0 0.0
    %5087 = vmatprep.mubr.f32.mxu0 0.0
    %5088 = vmatmul.mubr.f32.gmra.mrb[0].mxu0 %v5021
    %v5089 = vpop.f32.mrb[0].mxu0
    %v5090 = vadd.f32 %v4190, %v5089
    %v5091 = vpop.f32.mrb[0].mxu0
    %5092 = vdwg.mxu0
    %5093 = vst.msk [vmem:[%s61 + $0xa] sm:$0x3] %vm4267, %v5090
    %5094 = vmatprep.subr.mxu0 %v4045
    %5095 = vmatpush1.msra.mxu0 %v4044
    %5096 = vmatprep.subr.mxu0 %v4047
    %5097 = vmatpush1.msra.mxu0 %v4046
    %5098 = vmatprep.subr.mxu0 %v4049
    %5099 = vmatpush1.msra.mxu0 %v4048
    %5100 = vmatprep.subr.mxu0 %v4051
    %5101 = vmatpush1.msra.mxu0 %v4050
    %5102 = vmatprep.subr.mxu0 %v4053
    %5103 = vmatpush1.msra.mxu0 %v4052
    %5104 = vmatprep.subr.mxu0 %v4055
    %5105 = vmatpush1.msra.mxu0 %v4054
    %5106 = vmatprep.subr.mxu0 %v4057
    %5107 = vmatpush1.msra.mxu0 %v4056
    %5108 = vmatprep.subr.mxu0 %v4059
    %5109 = vmatpush1.msra.mxu0 %v4058
    %5110 = vmatprep.subr.mxu0 0.0
    %5111 = vmatpush1.msra.mxu0 0.0
    %5112 = vmatprep.subr.mxu0 0.0
    %5113 = vmatpush1.msra.mxu0 0.0
    %5114 = vmatprep.subr.mxu0 0.0
    %5115 = vmatpush1.msra.mxu0 0.0
    %5116 = vmatprep.subr.mxu0 0.0
    %5117 = vmatpush1.msra.mxu0 0.0
    %5118 = vmatprep.subr.mxu0 0.0
    %5119 = vmatpush1.msra.mxu0 0.0
    %5120 = vmatprep.subr.mxu0 0.0
    %5121 = vmatpush1.msra.mxu0 0.0
    %5122 = vmatprep.subr.mxu0 0.0
    %5123 = vmatpush1.msra.mxu0 0.0
    %5124 = vmatprep.subr.mxu0 0.0
    %5125 = vmatpush1.msra.mxu0 0.0
    %5126 = vmatprep.subr.mxu0 0.0
    %5127 = vmatpush1.msra.mxu0 0.0
    %5128 = vmatprep.subr.mxu0 0.0
    %5129 = vmatpush1.msra.mxu0 0.0
    %5130 = vmatprep.subr.mxu0 0.0
    %5131 = vmatpush1.msra.mxu0 0.0
    %5132 = vmatprep.subr.mxu0 0.0
    %5133 = vmatpush1.msra.mxu0 0.0
    %5134 = vmatprep.subr.mxu0 0.0
    %5135 = vmatpush1.msra.mxu0 0.0
    %5136 = vmatprep.subr.mxu0 0.0
    %5137 = vmatpush1.msra.mxu0 0.0
    %5138 = vmatprep.subr.mxu0 0.0
    %5139 = vmatpush1.msra.mxu0 0.0
    %5140 = vmatprep.subr.mxu0 0.0
    %5141 = vmatpush1.msra.mxu0 0.0
    %5142 = vmatprep.subr.mxu0 0.0
    %5143 = vmatpush1.msra.mxu0 0.0
    %5144 = vmatprep.subr.mxu0 0.0
    %5145 = vmatpush1.msra.mxu0 0.0
    %5146 = vmatprep.subr.mxu0 0.0
    %5147 = vmatpush1.msra.mxu0 0.0
    %5148 = vmatprep.subr.mxu0 0.0
    %5149 = vmatpush1.msra.mxu0 0.0
    %5150 = vmatprep.subr.mxu0 0.0
    %5151 = vmatpush1.msra.mxu0 0.0
    %5152 = vmatprep.subr.mxu0 0.0
    %5153 = vmatpush1.msra.mxu0 0.0
    %5154 = vmatprep.subr.mxu0 0.0
    %5155 = vmatpush1.msra.mxu0 0.0
    %5156 = vmatprep.subr.mxu0 0.0
    %5157 = vmatpush1.msra.mxu0 0.0
    %5158 = vmatprep.mubr.f32.mxu0 0.0
    %5159 = vmatmul.mubr.f32.gmra.mrb[0].mxu0 %v5021
    %v5160 = vpop.f32.mrb[0].mxu0
    %v5161 = vadd.f32 %v4074, %v5160
    %v5162 = vpop.f32.mrb[0].mxu0
    %v5163 = vadd.f32 %v4078, %v5162
    %5164 = vdwg.mxu0
    %v5165 = vadd.f32 %v4040, %v5161
    %v5166 = vxor.u32 %v5165, 2147483648
    %v5167 = vmul.f32 %v5166, 1.442695
    %v5168 = vpow.pop %v5167
    %v5169 = vadd.f32 %v5168, 1.0
    %v5170 = vrcp.pop %v5169
    %v5171 = vmul.f32 1.0, %v5170
    %v5172 = vmul.f32 %v5171, %v5163
    %v5173 = vadd.f32 %v4042, %v5172
    %v5174 = vtanh.pop %v5173
    %v5175 = vsub.f32 1.0, %v5171
    %5177 = vrot.lane.b32.xlu0 %v5174, 64
    %v5178 = vpop.permute.xlu0 %5177
    %v5180 = vmul.f32 %v5175, %v5178
    %v5181 = vmul.f32 %v5171, %v5017
    %v5182 = vadd.f32 %v5180, %v5181
    %5184 = vrot.lane.b32.xlu0 %v5182, 64
    %v5185 = vpop.permute.xlu0 %5184
    %v5186 = vsel %vm1029, %v5185, 0
    %5188 = vmatprep.subr.mxu0 0.0
    %5189 = vmatpush1.msra.mxu0 %v4061
    %5190 = vmatprep.subr.mxu0 0.0
    %5191 = vmatpush1.msra.mxu0 %v4062
    %5192 = vmatprep.subr.mxu0 0.0
    %5193 = vmatpush1.msra.mxu0 %v4063
    %5194 = vmatprep.subr.mxu0 0.0
    %5195 = vmatpush1.msra.mxu0 %v4064
    %5196 = vmatprep.subr.mxu0 0.0
    %5197 = vmatpush1.msra.mxu0 %v4065
    %5198 = vmatprep.subr.mxu0 0.0
    %5199 = vmatpush1.msra.mxu0 %v4066
    %5200 = vmatprep.subr.mxu0 0.0
    %5201 = vmatpush1.msra.mxu0 %v4067
    %5202 = vmatprep.subr.mxu0 0.0
    %5203 = vmatpush1.msra.mxu0 %v4068
    %5204 = vmatprep.subr.mxu0 0.0
    %5205 = vmatpush1.msra.mxu0 0.0
    %5206 = vmatprep.subr.mxu0 0.0
    %5207 = vmatpush1.msra.mxu0 0.0
    %5208 = vmatprep.subr.mxu0 0.0
    %5209 = vmatpush1.msra.mxu0 0.0
    %5210 = vmatprep.subr.mxu0 0.0
    %5211 = vmatpush1.msra.mxu0 0.0
    %5212 = vmatprep.subr.mxu0 0.0
    %5213 = vmatpush1.msra.mxu0 0.0
    %5214 = vmatprep.subr.mxu0 0.0
    %5215 = vmatpush1.msra.mxu0 0.0
    %5216 = vmatprep.subr.mxu0 0.0
    %5217 = vmatpush1.msra.mxu0 0.0
    %5218 = vmatprep.subr.mxu0 0.0
    %5219 = vmatpush1.msra.mxu0 0.0
    %5220 = vmatprep.subr.mxu0 0.0
    %5221 = vmatpush1.msra.mxu0 0.0
    %5222 = vmatprep.subr.mxu0 0.0
    %5223 = vmatpush1.msra.mxu0 0.0
    %5224 = vmatprep.subr.mxu0 0.0
    %5225 = vmatpush1.msra.mxu0 0.0
    %5226 = vmatprep.subr.mxu0 0.0
    %5227 = vmatpush1.msra.mxu0 0.0
    %5228 = vmatprep.subr.mxu0 0.0
    %5229 = vmatpush1.msra.mxu0 0.0
    %5230 = vmatprep.subr.mxu0 0.0
    %5231 = vmatpush1.msra.mxu0 0.0
    %5232 = vmatprep.subr.mxu0 0.0
    %5233 = vmatpush1.msra.mxu0 0.0
    %5234 = vmatprep.subr.mxu0 0.0
    %5235 = vmatpush1.msra.mxu0 0.0
    %5236 = vmatprep.subr.mxu0 0.0
    %5237 = vmatpush1.msra.mxu0 0.0
    %5238 = vmatprep.subr.mxu0 0.0
    %5239 = vmatpush1.msra.mxu0 0.0
    %5240 = vmatprep.subr.mxu0 0.0
    %5241 = vmatpush1.msra.mxu0 0.0
    %5242 = vmatprep.subr.mxu0 0.0
    %5243 = vmatpush1.msra.mxu0 0.0
    %5244 = vmatprep.subr.mxu0 0.0
    %5245 = vmatpush1.msra.mxu0 0.0
    %5246 = vmatprep.subr.mxu0 0.0
    %5247 = vmatpush1.msra.mxu0 0.0
    %5248 = vmatprep.subr.mxu0 0.0
    %5249 = vmatpush1.msra.mxu0 0.0
    %5250 = vmatprep.subr.mxu0 0.0
    %5251 = vmatpush1.msra.mxu0 0.0
    %5252 = vmatprep.mubr.f32.mxu0 0.0
    %5253 = vmatmul.mubr.f32.gmra.mrb[0].mxu0 %v5186
    %v5254 = vpop.f32.mrb[0].mxu0
    %v5255 = vadd.f32 %v4190, %v5254
    %v5256 = vpop.f32.mrb[0].mxu0
    %5257 = vdwg.mxu0
    %5258 = vst.msk [vmem:[%s61 + $0xc] sm:$0x3] %vm4267, %v5255
    // Predicated region
    $region106: #{forward.6} parent=1 // pred_check
      _
    $region107: #{forward.6} parent=1 // pred_check_branch
      %5260 = sbr.rel (0) target = $region109
    $region108: #{forward.6} parent=1 // pred_region
      %s5262 = ssub.s32 32, 32
      %5263 = vsyncadd [#allocation3], %s5262
      %s5265 = sshll.u32 [#allocation2], 4
      %s5266 = int_to_ptr.vmem [resolvable:$true] %s5265
      %5268 = dma.vmem_to_hbm [thread:$0]  %s5266, 32, %s53, [#allocation3]
    $region109: #{forward.6} parent=1 // pred_fallthru
      _
    // Predicated region
    $region110: #{forward.6} parent=1 // pred_check
      _
    $region111: #{forward.6} parent=1 // pred_check_branch
      %5270 = sbr.rel (0) target = $region113
    $region112: #{forward.6} parent=1 // pred_region
      %s5272 = ssub.s32 32, 32
      %5273 = vsyncadd [#allocation5], %s5272
      %s5275 = sshll.u32 [#allocation4], 4
      %s5276 = int_to_ptr.vmem [resolvable:$true] %s5275
      %5278 = dma.vmem_to_hbm [thread:$0]  %s5276, 32, %s55, [#allocation5]
    $region113: #{forward.6} parent=1 // pred_fallthru
      _
    // Predicated region
    $region114: #{forward.6} parent=1 // pred_check
      _
    $region115: #{forward.6} parent=1 // pred_check_branch
      %5280 = sbr.rel (0) target = $region117
    $region116: #{forward.6} parent=1 // pred_region
      %s5282 = ssub.s32 32, 32
      %5283 = vsyncadd [#allocation5], %s5282
      %s5285 = sshll.u32 [#allocation6], 4
      %s5286 = int_to_ptr.vmem [resolvable:$true] %s5285
      %5288 = dma.vmem_to_hbm [thread:$0]  %s5286, 32, %s57, [#allocation5]
    $region117: #{forward.6} parent=1 // pred_fallthru
      _
    // Predicated region
    $region118: #{forward.6} parent=1 // pred_check
      _
    $region119: #{forward.6} parent=1 // pred_check_branch
      %5290 = sbr.rel (0) target = $region121
    $region120: #{forward.6} parent=1 // pred_region
      _
    $region121: #{forward.6} parent=1 // pred_fallthru
      _
    // Predicated region
    $region122: #{forward.6} parent=1 // pred_check
      _
    $region123: #{forward.6} parent=1 // pred_check_branch
      %5292 = sbr.rel (0) target = $region125
    $region124: #{forward.6} parent=1 // pred_region
      _
    $region125: #{forward.6} parent=1 // pred_fallthru
      _
    // Predicated region
    $region126: #{forward.6} parent=1 // pred_check
      _
    $region127: #{forward.6} parent=1 // pred_check_branch
      %5294 = sbr.rel (0) target = $region129
    $region128: #{forward.6} parent=1 // pred_region
      %5295 = dma.done [#allocation3], 32
    $region129: #{forward.6} parent=1 // pred_fallthru
      _
    // Predicated region
    $region130: #{forward.6} parent=1 // pred_check
      _
    $region131: #{forward.6} parent=1 // pred_check_branch
      %5297 = sbr.rel (0) target = $region133
    $region132: #{forward.6} parent=1 // pred_region
      %5298 = dma.done [#allocation5], 32
    $region133: #{forward.6} parent=1 // pred_fallthru
      _
    // Predicated region
    $region134: #{forward.6} parent=1 // pred_check
      _
    $region135: #{forward.6} parent=1 // pred_check_branch
      %5300 = sbr.rel (0) target = $region137
    $region136: #{forward.6} parent=1 // pred_region
      %5301 = dma.done [#allocation5], 32
    $region137: #{forward.6} parent=1 // pred_fallthru
      _
    // Predicated region
    $region138: #{forward.6} parent=1 // pred_check
      _
    $region139: #{forward.6} parent=1 // pred_check_branch
      %5303 = sbr.rel (0) target = $region141
    $region140: #{forward.6} parent=1 // pred_region
      _
    $region141: #{forward.6} parent=1 // pred_fallthru
      _
    // Predicated region
    $region142: #{forward.6} parent=1 // pred_check
      _
    $region143: #{forward.6} parent=1 // pred_check_branch
      %5305 = sbr.rel (0) target = $region145
    $region144: #{forward.6} parent=1 // pred_region
      _
    $region145: #{forward.6} parent=1 // pred_fallthru
      _
    %5306 = vsyncpa [#allocation3], 1
    %5307 = vsyncpa [#allocation5], 1

</llo_original>
